<compile_context>
chip_gen: v7x
topology: tpu7x:2x2x1
jax: 0.10.0
libtpu: 0.0.40
codegen_flags: <defaults>
</compile_context>

<pallas_src>
import functools

import jax
import jax.numpy as jnp
from jax import lax
from jax.experimental import pallas as pl
from jax.experimental.pallas import tpu as pltpu

K = 5                 # conv kernel size (k_size in the PyTorch module)
PAD = (K - 1) // 2    # SAME conv halo = 2
FPAD = 2 * PAD        # fused-kernel input pad = 4 (conv halo + PoolConv tap reach)
LANE = 128


# ----------------------------------------------------------------------------------
# Hardware queries (best-effort, trace-time, with safe fallbacks)
# ----------------------------------------------------------------------------------
def _two_tensorcores():
    """True iff the chip exposes two TensorCores (v7x) -> enables the 2-way batch grid."""
    try:
        d = jax.devices()[0]
        kind = str(getattr(d, "device_kind", "")).lower()
        if "v7" in kind or "7x" in kind:
            return True
        if int(getattr(d, "num_cores", 1)) >= 2:
            return True
    except Exception:
        pass
    return False


def _vmem_limit_bytes():
    """Explicit scoped-VMEM limit (the default scoped cap rejects big blocks long before HW does)."""
    try:
        cap = int(pltpu.get_tpu_info().vmem_capacity_bytes)
    except Exception:
        cap = 64 * 1024 * 1024           # conservative (v7x physical)
    return max(32 * 1024 * 1024, min(int(cap * 3 // 4), 112 * 1024 * 1024))


def _round_up(x, m):
    return ((x + m - 1) // m) * m


def _plan(B, H, W, Cin, patch_budget_bytes):
    """Pick (grid G over batch, batch chunk Bc, row tile TH, padded contraction KKCp)."""
    G = 1
    if _two_tensorcores() and B >= 2 and B % 2 == 0 and ((B // 2) * H * W) % LANE == 0:
        G = 2                             # feed the second TensorCore on v7x only
    Bc = B // G
    kkcp = _round_up(K * K * Cin, LANE)
    th = 1
    for cand in range(H, 0, -1):          # largest divisor of H whose bf16 patch fits the budget
        if H % cand:
            continue
        if Bc * cand * W * kkcp * 2 <= patch_budget_bytes:
            th = cand
            break
    return G, Bc, th, kkcp


# ----------------------------------------------------------------------------------
# Shared per-row-tile body: im2col scatter -> one bf16 MXU matmul -> bias (+mask) -> store
# ----------------------------------------------------------------------------------
def _conv_tile(fb, w_ref, b_ref, o_ref, patch_ref, t, H, inv):
    # fb        : (Bc, TH+4, W+4, Cin) bf16 conv input window (includes SAME halo)
    # w_ref     : (Cout, KKCp) bf16 im2col weights (zero-padded contraction)
    # b_ref     : (1, Cout) or (Cout, 1) f32 bias (layout matches the output path)
    # o_ref     : (Bc, H, W, Cout) NHWC-direct  OR  (Cout, Bc*H*W) lane-dense slab
    # patch_ref : VMEM (Bc, TH, W, KKCp) bf16 scratch
    # inv       : (1, TH, W, 1) / (1, TH*W) f32 (1-mask0) slice, or None
    Bc, THe, We, Cin = fb.shape
    TH, W = THe - 2 * PAD, We - 2 * PAD
    Cout, KKCp = w_ref.shape
    Mt = Bc * TH * W

    for kh in range(K):
        for kw in range(K):
            kk = kh * K + kw
            patch_ref[:, :, :, kk * Cin:(kk + 1) * Cin] = fb[:, kh:kh + TH, kw:kw + W, :]
    patch = patch_ref[...].reshape(Mt, KKCp)

    if len(o_ref.shape) == 4:
        # NHWC-direct output (Cout % 128 == 0): lane-dense, no external transpose afterwards.
        acc = lax.dot_general(patch, w_ref[...], (((1,), (1,)), ((), ())),
                              preferred_element_type=jnp.float32)
        acc = (acc + b_ref[...]).reshape(Bc, TH, W, Cout)
        if inv is not None:
            acc = acc * inv
        o_ref[:, t * TH:(t + 1) * TH, :, :] = acc.astype(o_ref.dtype)
    else:
        # lane-dense (Cout, Bc*H*W) slab for small Cout.
        acc = lax.dot_general(w_ref[...], patch, (((1,), (1,)), ((), ())),
                              preferred_element_type=jnp.float32)
        acc = (acc + b_ref[...]).reshape(Cout, Bc, TH * W)
        if inv is not None:
            acc = acc * inv.reshape(1, 1, TH * W)
        for b in range(Bc):
            c0 = b * H * W + t * TH * W
            o_ref[:, c0:c0 + TH * W] = acc[:, b, :].astype(o_ref.dtype)


# ----------------------------------------------------------------------------------
# Kernel 1: fused anchor masking + PoolConv fill + 5x5 conv + bias + (1-mask0) scale
#   PyTorch:  xa = x*mask0 ; b,t,r = PoolConv(xa*mask1) ; filled = xa+b+t+r
#             out = Conv5x5(filled) * (1-mask0)
#   PoolConv taps (per channel, zero padded):
#     bottom[i,j]=v[i-1,j-1]   top[i,j]=v[i+1,j-1]   right[i,j]=v[i,j-2]
# ----------------------------------------------------------------------------------
def _space_ctx_kernel(xp_ref, m0p_ref, m1p_ref, validp_ref, inv_ref, w_ref, b_ref,
                      o_ref, patch_ref):
    # xp_ref    : (Bc, H+8, W+8, Cin) bf16 input zero-padded by 4
    # m0p/m1p   : (1,  H+8, W+8, 1)   f32 masks, zero-padded by 4
    # validp_ref: (1,  H+4, W+4, 1)   f32: 1 inside the HxW image, 0 on the conv halo
    # inv_ref   : (1, H, W, 1) or (1, H*W) f32 (1-mask0)
    Bc, Hp, Wp, Cin = xp_ref.shape
    H, W = Hp - 2 * FPAD, Wp - 2 * FPAD
    TH = patch_ref.shape[1]
    KKC, KKCp = K * K * Cin, patch_ref.shape[3]

    if KKCp > KKC:   # zero the contraction pad tail (weights' pad cols are zero too)
        patch_ref[:, :, :, KKC:] = jnp.zeros((Bc, TH, W, KKCp - KKC), patch_ref.dtype)

    for t in range(H // TH):               # in-kernel row tiling bounds the 25x patch scratch
        r0 = t * TH
        THw = TH + 2 * FPAD
        THe, We = TH + 2 * PAD, W + 2 * PAD

        # anchor masking + PoolConv fill in f32 (v5e-safe); input window has a 4-row halo
        xw = xp_ref[:, r0:r0 + THw, :, :].astype(jnp.float32)
        xa = xw * m0p_ref[:, r0:r0 + THw, :, :]
        v = xa * m1p_ref[:, r0:r0 + THw, :, :]
        filled = (xa[:, 2:2 + THe, 2:2 + We, :]       # center : xa[i, j]
                  + v[:, 1:1 + THe, 1:1 + We, :]      # bottom : v[i-1, j-1]
                  + v[:, 3:3 + THe, 1:1 + We, :]      # top    : v[i+1, j-1]
                  + v[:, 2:2 + THe, 0:We, :]          # right  : v[i,   j-2]
                  ) * validp_ref[:, r0:r0 + THe, :, :]  # zero the SAME-conv halo
        fb = filled.astype(jnp.bfloat16)

        if len(inv_ref.shape) == 4:
            inv = inv_ref[:, r0:r0 + TH, :, :]
        else:
            inv = inv_ref[:, r0 * W:(r0 + TH) * W]
        _conv_tile(fb, w_ref, b_ref, o_ref, patch_ref, t, H, inv)


# ----------------------------------------------------------------------------------
# Kernel 2: plain 5x5 SAME conv + bias (channel-context path, no masks)
# ----------------------------------------------------------------------------------
def _chan_ctx_kernel(xp_ref, w_ref, b_ref, o_ref, patch_ref):
    # xp_ref: (Bc, H+4, W+4, Cin) bf16 zero-padded input
    Bc, Hp, Wp, Cin = xp_ref.shape
    H, W = Hp - 2 * PAD, Wp - 2 * PAD
    TH = patch_ref.shape[1]
    KKC, KKCp = K * K * Cin, patch_ref.shape[3]

    if KKCp > KKC:
        patch_ref[:, :, :, KKC:] = jnp.zeros((Bc, TH, W, KKCp - KKC), patch_ref.dtype)

    for t in range(H // TH):
        r0 = t * TH
        fb = xp_ref[:, r0:r0 + TH + 2 * PAD, :, :]     # already bf16, already haloed
        _conv_tile(fb, w_ref, b_ref, o_ref, patch_ref, t, H, None)


# ----------------------------------------------------------------------------------
# Wrappers
# ----------------------------------------------------------------------------------
def _prep_conv(w, b):
    """(K*K, Cin, Cout) f32, (1, Cout) f32 -> (Cout, KKCp) bf16 (zero-padded), (Cout,) f32."""
    kkc, cout = w.shape[0] * w.shape[1], w.shape[2]
    kkcp = _round_up(kkc, LANE)
    wt = jnp.transpose(w.reshape(kkc, cout), (1, 0))
    wt = jnp.pad(wt, ((0, 0), (0, kkcp - kkc))).astype(jnp.bfloat16)
    return wt, b.reshape(-1).astype(jnp.float32)


def prepare_masks(mask0, mask1):
    """Pad / invert the masks ONCE per forward (hoisted out of the per-slice loop)."""
    mask0 = mask0.astype(jnp.float32)
    mask1 = mask1.astype(jnp.float32)
    H, W = mask0.shape[1], mask0.shape[2]
    m0p = jnp.pad(mask0, ((0, 0), (FPAD, FPAD), (FPAD, FPAD), (0, 0)))
    m1p = jnp.pad(mask1, ((0, 0), (FPAD, FPAD), (FPAD, FPAD), (0, 0)))
    validp = jnp.pad(jnp.ones((1, H, W, 1), jnp.float32),
                     ((0, 0), (PAD, PAD), (PAD, PAD), (0, 0)))
    inv_m0 = 1.0 - mask0                                  # (1, H, W, 1), batch-independent
    return m0p, m1p, validp, inv_m0


def _common_call(kernel, args, in_specs, B, H, W, Cout, Bc, G, TH, KKCp, x_dtype, nhwc,
                 vmem_limit):
    if nhwc:
        out_shape = jax.ShapeDtypeStruct((B, H, W, Cout), x_dtype)
        out_spec = pl.BlockSpec((Bc, H, W, Cout), lambda g: (g, 0, 0, 0))
    else:
        out_shape = jax.ShapeDtypeStruct((Cout, B * H * W), x_dtype)
        out_spec = pl.BlockSpec((Cout, Bc * H * W), lambda g: (0, g))
    out = pl.pallas_call(
        kernel,
        out_shape=out_shape,
        grid=(G,),
        in_specs=in_specs,
        out_specs=out_spec,
        scratch_shapes=[pltpu.VMEM((Bc, TH, W, KKCp), jnp.bfloat16)],
        compiler_params=pltpu.CompilerParams(
            dimension_semantics=("parallel",),
            vmem_limit_bytes=vmem_limit),
    )(*args)
    if nhwc:
        return out
    return jnp.transpose(out.reshape(Cout, B, H, W), (1, 2, 3, 0))


@functools.partial(jax.jit, static_argnames=("patch_budget_bytes",))
def space_context(x, m0p, m1p, validp, inv_m0, w_im2col, b_vec, *, patch_budget_bytes=None):
    """Fused anchor-mask + PoolConv fill + conv + (1-mask0). x: (B,H,W,Cin) -> (B,H,W,Cout)."""
    B, H, W, Cin = x.shape
    Cout, KKCp = w_im2col.shape
    vmem_limit = _vmem_limit_bytes()
    budget = patch_budget_bytes if patch_budget_bytes is not None else vmem_limit // 4
    G, Bc, TH, kkcp = _plan(B, H, W, Cin, budget)
    assert kkcp == KKCp, "weight padding and plan disagree"
    nhwc = (Cout % LANE == 0)

    xp = jnp.pad(x.astype(jnp.bfloat16), ((0, 0), (FPAD, FPAD), (FPAD, FPAD), (0, 0)))
    if nhwc:
        inv, bias = inv_m0, b_vec.reshape(1, Cout)
        inv_spec = pl.BlockSpec((1, H, W, 1), lambda g: (0, 0, 0, 0))
    else:
        inv, bias = inv_m0.reshape(1, H * W), b_vec.reshape(Cout, 1)
        inv_spec = pl.BlockSpec((1, H * W), lambda g: (0, 0))

    in_specs = [
        pl.BlockSpec((Bc, H + 2 * FPAD, W + 2 * FPAD, Cin), lambda g: (g, 0, 0, 0)),
        pl.BlockSpec((1, H + 2 * FPAD, W + 2 * FPAD, 1), lambda g: (0, 0, 0, 0)),
        pl.BlockSpec((1, H + 2 * FPAD, W + 2 * FPAD, 1), lambda g: (0, 0, 0, 0)),
        pl.BlockSpec((1, H + 2 * PAD, W + 2 * PAD, 1), lambda g: (0, 0, 0, 0)),
        inv_spec,
        pl.BlockSpec((Cout, KKCp), lambda g: (0, 0)),
        pl.BlockSpec(bias.shape, lambda g: (0, 0)),
    ]
    return _common_call(_space_ctx_kernel, (xp, m0p, m1p, validp, inv, w_im2col, bias),
                        in_specs, B, H, W, Cout, Bc, G, TH, KKCp, x.dtype, nhwc, vmem_limit)


@functools.partial(jax.jit, static_argnames=("patch_budget_bytes",))
def channel_context(x, w_im2col, b_vec, *, patch_budget_bytes=None):
    """Plain 5x5 SAME conv + bias.  x: (B,H,W,Cin) -> (B,H,W,Cout)."""
    B, H, W, Cin = x.shape
    Cout, KKCp = w_im2col.shape
    vmem_limit = _vmem_limit_bytes()
    budget = patch_budget_bytes if patch_budget_bytes is not None else vmem_limit // 4
    G, Bc, TH, kkcp = _plan(B, H, W, Cin, budget)
    assert kkcp == KKCp, "weight padding and plan disagree"
    nhwc = (Cout % LANE == 0)

    xp = jnp.pad(x.astype(jnp.bfloat16), ((0, 0), (PAD, PAD), (PAD, PAD), (0, 0)))
    bias = b_vec.reshape(1, Cout) if nhwc else b_vec.reshape(Cout, 1)
    in_specs = [
        pl.BlockSpec((Bc, H + 2 * PAD, W + 2 * PAD, Cin), lambda g: (g, 0, 0, 0)),
        pl.BlockSpec((Cout, KKCp), lambda g: (0, 0)),
        pl.BlockSpec(bias.shape, lambda g: (0, 0)),
    ]
    return _common_call(_chan_ctx_kernel, (xp, w_im2col, bias),
                        in_specs, B, H, W, Cout, Bc, G, TH, KKCp, x.dtype, nhwc, vmem_limit)


# ----------------------------------------------------------------------------------
# Parameters (deterministic, synthetic)
# ----------------------------------------------------------------------------------
def init_params(key, groups):
    n = len(groups)
    group_start = [sum(groups[:i]) for i in range(n)]
    params = {"space_w": [], "space_b": [], "chan_w": [], "chan_b": []}
    # AdaptiveContext: Conv2d(groups[i], 2*groups[i], 5, 1, 2, bias=True)
    for i in range(n):
        cin, cout = groups[i], 2 * groups[i]
        k1, k2, key = jax.random.split(key, 3)
        fan_in = float(cin * K * K)
        params["space_w"].append(
            jax.random.normal(k1, (K * K, cin, cout), jnp.float32) / jnp.sqrt(fan_in))
        params["space_b"].append(jax.random.normal(k2, (1, cout), jnp.float32) * 0.01)
    # TODO(synk): ChannelARParamTransform's definition is not provided in the source;
    # stood in with a single 5x5 conv mapping the accumulated slices -> 2*groups[i+1].
    for i in range(n - 1):
        cin, cout = group_start[i + 1], 2 * groups[i + 1]
        k1, k2, key = jax.random.split(key, 3)
        fan_in = float(cin * K * K)
        params["chan_w"].append(
            jax.random.normal(k1, (K * K, cin, cout), jnp.float32) / jnp.sqrt(fan_in))
        params["chan_b"].append(jax.random.normal(k2, (1, cout), jnp.float32) * 0.01)
    return params


# ----------------------------------------------------------------------------------
# ContextIterator.forward  (generator, non-TRAIN stage)
# ----------------------------------------------------------------------------------
def context_iterator_forward(params, y_slice_iter, mask0, mask1):
    """Mirrors ContextIterator.forward for stage != CodecStageEnum.TRAIN."""
    y_slices = next(y_slice_iter)
    m0p, m1p, validp, inv_m0 = prepare_masks(mask0, mask1)

    # hoist all weight repacking out of the per-slice loop
    space_wb = [_prep_conv(w, b) for w, b in zip(params["space_w"], params["space_b"])]
    chan_wb = [_prep_conv(w, b) for w, b in zip(params["chan_w"], params["chan_b"])]

    w0, b0 = space_wb[0]
    yield (space_context(y_slices, m0p, m1p, validp, inv_m0, w0, b0),)

    idx = 0
    for y_next in y_slice_iter:
        if idx >= len(chan_wb):
            break  # zip() truncation semantics of the reference
        ws, bs = space_wb[idx + 1]
        ctx_space = space_context(y_next, m0p, m1p, validp, inv_m0, ws, bs)
        wc, bc = chan_wb[idx]
        ctx_channel = channel_context(y_slices, wc, bc)
        yield (ctx_space, ctx_channel)
        y_slices = jnp.concatenate([y_slices, y_next], axis=-1)
        idx += 1


# ----------------------------------------------------------------------------------
# Pure-JAX reference (independent lax.conv path, matches bf16-operand / f32-acc numerics)
# ----------------------------------------------------------------------------------
def _ref_conv(x, w, b):
    x_bf = x.astype(jnp.bfloat16).astype(jnp.float32)
    w_bf = w.astype(jnp.bfloat16).astype(jnp.float32).reshape(K, K, w.shape[1], w.shape[2])
    out = jax.lax.conv_general_dilated(
        x_bf, w_bf, (1, 1), "SAME", dimension_numbers=("NHWC", "HWIO", "NHWC"),
        precision=jax.lax.Precision.HIGHEST)
    return out + b.reshape(1, 1, 1, -1)


def _ref_pool_fill(x, m0, m1):
    """PoolConv fill via actual depthwise convs (mirrors the PyTorch weights exactly)."""
    x = x.astype(jnp.bfloat16).astype(jnp.float32)
    C = x.shape[-1]
    xa = x * m0
    v = xa * m1
    bw = jnp.zeros((3, 3, 1, 1), jnp.float32).at[0, 0, 0, 0].set(1.0)
    tw = jnp.zeros((3, 3, 1, 1), jnp.float32).at[2, 0, 0, 0].set(1.0)
    rw = jnp.zeros((5, 5, 1, 1), jnp.float32).at[2, 0, 0, 0].set(1.0)

    def dw(val, w, pad):
        wc = jnp.tile(w, (1, 1, 1, C))
        return jax.lax.conv_general_dilated(
            val, wc, (1, 1), [(pad, pad), (pad, pad)],
            dimension_numbers=("NHWC", "HWIO", "NHWC"), feature_group_count=C)

    return xa + dw(v, bw, 1) + dw(v, tw, 1) + dw(v, rw, 2)


if __name__ == "__main__":
    B, H, W = 2, 16, 16
    groups = [4, 4, 64]          # last group gives Cout=128 -> exercises the NHWC-direct path

    key = jax.random.PRNGKey(0)
    kp, kd, km = jax.random.split(key, 3)
    params = init_params(kp, groups)

    # checkerboard anchor mask; NON-complementary values mask so the PoolConv taps contribute
    ii = jnp.arange(H)[:, None]
    jj = jnp.arange(W)[None, :]
    mask0 = ((ii + jj) % 2 == 0).astype(jnp.float32)[None, :, :, None]
    mask1 = (jax.random.uniform(km, (1, H, W, 1)) < 0.5).astype(jnp.float32)

    slice_keys = jax.random.split(kd, len(groups))
    y_slices_list = [
        jax.random.normal(slice_keys[i], (B, H, W, groups[i]), jnp.float32)
        for i in range(len(groups))
    ]

    outputs = list(context_iterator_forward(params, iter(y_slices_list), mask0, mask1))
    outputs = jax.block_until_ready(outputs)

    inv0 = 1.0 - mask0
    tol = dict(atol=2e-2, rtol=2e-2)

    # sanity 1: fused space-context kernel, small-Cout slab path
    ref_space0 = _ref_conv(_ref_pool_fill(y_slices_list[0], mask0, mask1),
                           params["space_w"][0], params["space_b"][0]) * inv0
    assert jnp.allclose(outputs[0][0], ref_space0, **tol), "space ctx (slab) mismatch"

    # sanity 2: channel-context conv, small-Cout slab path
    ref_chan0 = _ref_conv(y_slices_list[0], params["chan_w"][0], params["chan_b"][0])
    assert jnp.allclose(outputs[1][1], ref_chan0, **tol), "channel ctx (slab) mismatch"

    # sanity 3: space-context kernel, NHWC-direct path (Cout = 128)
    ref_space2 = _ref_conv(_ref_pool_fill(y_slices_list[2], mask0, mask1),
                           params["space_w"][2], params["space_b"][2]) * inv0
    assert jnp.allclose(outputs[2][0], ref_space2, **tol), "space ctx (nhwc) mismatch"

    # sanity 4: channel-context kernel, NHWC-direct path (Cout = 128)
    y01 = jnp.concatenate(y_slices_list[:2], axis=-1)
    ref_chan1 = _ref_conv(y01, params["chan_w"][1], params["chan_b"][1])
    assert jnp.allclose(outputs[2][1], ref_chan1, **tol), "channel ctx (nhwc) mismatch"

    # sanity 5: force a tiny patch budget to exercise the in-kernel row-tiling (NT > 1) path
    m0p, m1p, validp, inv_m0 = prepare_masks(mask0, mask1)
    w2, b2 = _prep_conv(params["space_w"][2], params["space_b"][2])
    tiled = space_context(y_slices_list[2], m0p, m1p, validp, inv_m0, w2, b2,
                          patch_budget_bytes=512 * 1024)
    tiled = jax.block_until_ready(tiled)
    assert jnp.allclose(tiled, ref_space2, **tol), "row-tiled space ctx mismatch"

    # expected generator structure: (space,), then (space, channel) per subsequent slice
    assert len(outputs) == len(groups)
    assert outputs[0][0].shape == (B, H, W, 2 * groups[0])
    assert outputs[1][0].shape == (B, H, W, 2 * groups[1])
    assert outputs[1][1].shape == (B, H, W, 2 * groups[1])
    assert outputs[2][0].shape == (B, H, W, 2 * groups[2])
    assert outputs[2][1].shape == (B, H, W, 2 * groups[2])

    print("KERNEL_OK")
</pallas_src>

<mosaic_0001>
module attributes {stable_mosaic.version = 11 : i64} {
  func.func @_space_ctx_kernel(%arg0: i32, %arg1: memref<2x24x24x4xbf16, #tpu.memory_space<vmem>>, %arg2: memref<1x24x24x1xf32, #tpu.memory_space<vmem>>, %arg3: memref<1x24x24x1xf32, #tpu.memory_space<vmem>>, %arg4: memref<1x20x20x1xf32, #tpu.memory_space<vmem>>, %arg5: memref<1x256xf32, #tpu.memory_space<vmem>>, %arg6: memref<8x128xbf16, #tpu.memory_space<vmem>>, %arg7: memref<8x1xf32, #tpu.memory_space<vmem>>, %arg8: memref<8x512xf32, #tpu.memory_space<vmem>>, %arg9: memref<2x16x16x128xbf16, #tpu.memory_space<vmem>>) attributes {dimension_semantics = [#tpu.dimension_semantics<parallel>], iteration_bounds = array<i64: 1>, scalar_prefetch = 0 : i64, scratch_operands = 1 : i64, tpu.core_type = #tpu.core_type<tc>, window_params = [{transform_indices = @transform_0, window_bounds = array<i64: 2, 24, 24, 4>}, {pipeline_mode = #tpu.pipeline_mode<synchronous>, transform_indices = @transform_1, window_bounds = array<i64: 1, 24, 24, 1>}, {pipeline_mode = #tpu.pipeline_mode<synchronous>, transform_indices = @transform_2, window_bounds = array<i64: 1, 24, 24, 1>}, {pipeline_mode = #tpu.pipeline_mode<synchronous>, transform_indices = @transform_3, window_bounds = array<i64: 1, 20, 20, 1>}, {pipeline_mode = #tpu.pipeline_mode<synchronous>, transform_indices = @transform_4, window_bounds = array<i64: 1, 256>}, {pipeline_mode = #tpu.pipeline_mode<synchronous>, transform_indices = @transform_5, window_bounds = array<i64: 8, 128>}, {pipeline_mode = #tpu.pipeline_mode<synchronous>, transform_indices = @transform_6, window_bounds = array<i64: 8, 1>}, {transform_indices = @transform_7, window_bounds = array<i64: 8, 512>}]} {
    %cst = arith.constant 0.000000e+00 : bf16
    %0 = vector.broadcast %cst : bf16 to vector<2x16x16x28xbf16>
    %c0 = arith.constant 0 : index
    %c0_0 = arith.constant 0 : index
    %c0_1 = arith.constant 0 : index
    %c100 = arith.constant 100 : index
    %1 = vector.load %arg9[%c0, %c0_0, %c0_1, %c100] : memref<2x16x16x128xbf16, #tpu.memory_space<vmem>>, vector<2x16x16x28xbf16>
    tpu.vector_store %arg9[%c0, %c0_0, %c0_1, %c100], %0 {strides = array<i32>} : memref<2x16x16x128xbf16, #tpu.memory_space<vmem>>, vector<2x16x16x28xbf16>,
    %c0_2 = arith.constant 0 : index
    %c0_3 = arith.constant 0 : index
    %c0_4 = arith.constant 0 : index
    %c0_5 = arith.constant 0 : index
    %2 = vector.load %arg1[%c0_2, %c0_3, %c0_4, %c0_5] : memref<2x24x24x4xbf16, #tpu.memory_space<vmem>>, vector<2x24x24x4xbf16>
    %3 = arith.extf %2 : vector<2x24x24x4xbf16> to vector<2x24x24x4xf32>
    %c0_6 = arith.constant 0 : index
    %c0_7 = arith.constant 0 : index
    %c0_8 = arith.constant 0 : index
    %c0_9 = arith.constant 0 : index
    %4 = vector.load %arg2[%c0_6, %c0_7, %c0_8, %c0_9] : memref<1x24x24x1xf32, #tpu.memory_space<vmem>>, vector<1x24x24x1xf32>
    %5 = vector.broadcast %4 : vector<1x24x24x1xf32> to vector<2x24x24x4xf32>
    %6 = arith.mulf %3, %5 : vector<2x24x24x4xf32>
    %c0_10 = arith.constant 0 : index
    %c0_11 = arith.constant 0 : index
    %c0_12 = arith.constant 0 : index
    %c0_13 = arith.constant 0 : index
    %7 = vector.load %arg3[%c0_10, %c0_11, %c0_12, %c0_13] : memref<1x24x24x1xf32, #tpu.memory_space<vmem>>, vector<1x24x24x1xf32>
    %8 = vector.broadcast %7 : vector<1x24x24x1xf32> to vector<2x24x24x4xf32>
    %9 = arith.mulf %6, %8 : vector<2x24x24x4xf32>
    %10 = vector.extract_strided_slice %6 {offsets = [0, 2, 2, 0], sizes = [2, 20, 20, 4], strides = [1, 1, 1, 1]} : vector<2x24x24x4xf32> to vector<2x20x20x4xf32>
    %11 = vector.extract_strided_slice %9 {offsets = [0, 1, 1, 0], sizes = [2, 20, 20, 4], strides = [1, 1, 1, 1]} : vector<2x24x24x4xf32> to vector<2x20x20x4xf32>
    %12 = arith.addf %10, %11 : vector<2x20x20x4xf32>
    %13 = vector.extract_strided_slice %9 {offsets = [0, 3, 1, 0], sizes = [2, 20, 20, 4], strides = [1, 1, 1, 1]} : vector<2x24x24x4xf32> to vector<2x20x20x4xf32>
    %14 = arith.addf %12, %13 : vector<2x20x20x4xf32>
    %15 = vector.extract_strided_slice %9 {offsets = [0, 2, 0, 0], sizes = [2, 20, 20, 4], strides = [1, 1, 1, 1]} : vector<2x24x24x4xf32> to vector<2x20x20x4xf32>
    %16 = arith.addf %14, %15 : vector<2x20x20x4xf32>
    %c0_14 = arith.constant 0 : index
    %c0_15 = arith.constant 0 : index
    %c0_16 = arith.constant 0 : index
    %c0_17 = arith.constant 0 : index
    %17 = vector.load %arg4[%c0_14, %c0_15, %c0_16, %c0_17] : memref<1x20x20x1xf32, #tpu.memory_space<vmem>>, vector<1x20x20x1xf32>
    %18 = vector.broadcast %17 : vector<1x20x20x1xf32> to vector<2x20x20x4xf32>
    %19 = arith.mulf %16, %18 : vector<2x20x20x4xf32>
    %20 = arith.truncf %19 : vector<2x20x20x4xf32> to vector<2x20x20x4xbf16>
    %c0_18 = arith.constant 0 : index
    %c0_19 = arith.constant 0 : index
    %21 = vector.load %arg5[%c0_18, %c0_19] : memref<1x256xf32, #tpu.memory_space<vmem>>, vector<1x256xf32>
    %22 = vector.extract_strided_slice %20 {offsets = [0, 0, 0, 0], sizes = [2, 16, 16, 4], strides = [1, 1, 1, 1]} : vector<2x20x20x4xbf16> to vector<2x16x16x4xbf16>
    %c0_20 = arith.constant 0 : index
    %c0_21 = arith.constant 0 : index
    %c0_22 = arith.constant 0 : index
    %c0_23 = arith.constant 0 : index
    %23 = vector.load %arg9[%c0_20, %c0_21, %c0_22, %c0_23] : memref<2x16x16x128xbf16, #tpu.memory_space<vmem>>, vector<2x16x16x4xbf16>
    tpu.vector_store %arg9[%c0_20, %c0_21, %c0_22, %c0_23], %22 {strides = array<i32>} : memref<2x16x16x128xbf16, #tpu.memory_space<vmem>>, vector<2x16x16x4xbf16>,
    %24 = vector.extract_strided_slice %20 {offsets = [0, 0, 1, 0], sizes = [2, 16, 16, 4], strides = [1, 1, 1, 1]} : vector<2x20x20x4xbf16> to vector<2x16x16x4xbf16>
    %c0_24 = arith.constant 0 : index
    %c0_25 = arith.constant 0 : index
    %c0_26 = arith.constant 0 : index
    %c4 = arith.constant 4 : index
    %25 = vector.load %arg9[%c0_24, %c0_25, %c0_26, %c4] : memref<2x16x16x128xbf16, #tpu.memory_space<vmem>>, vector<2x16x16x4xbf16>
    tpu.vector_store %arg9[%c0_24, %c0_25, %c0_26, %c4], %24 {strides = array<i32>} : memref<2x16x16x128xbf16, #tpu.memory_space<vmem>>, vector<2x16x16x4xbf16>,
    %26 = vector.extract_strided_slice %20 {offsets = [0, 0, 2, 0], sizes = [2, 16, 16, 4], strides = [1, 1, 1, 1]} : vector<2x20x20x4xbf16> to vector<2x16x16x4xbf16>
    %c0_27 = arith.constant 0 : index
    %c0_28 = arith.constant 0 : index
    %c0_29 = arith.constant 0 : index
    %c8 = arith.constant 8 : index
    %27 = vector.load %arg9[%c0_27, %c0_28, %c0_29, %c8] : memref<2x16x16x128xbf16, #tpu.memory_space<vmem>>, vector<2x16x16x4xbf16>
    tpu.vector_store %arg9[%c0_27, %c0_28, %c0_29, %c8], %26 {strides = array<i32>} : memref<2x16x16x128xbf16, #tpu.memory_space<vmem>>, vector<2x16x16x4xbf16>,
    %28 = vector.extract_strided_slice %20 {offsets = [0, 0, 3, 0], sizes = [2, 16, 16, 4], strides = [1, 1, 1, 1]} : vector<2x20x20x4xbf16> to vector<2x16x16x4xbf16>
    %c0_30 = arith.constant 0 : index
    %c0_31 = arith.constant 0 : index
    %c0_32 = arith.constant 0 : index
    %c12 = arith.constant 12 : index
    %29 = vector.load %arg9[%c0_30, %c0_31, %c0_32, %c12] : memref<2x16x16x128xbf16, #tpu.memory_space<vmem>>, vector<2x16x16x4xbf16>
    tpu.vector_store %arg9[%c0_30, %c0_31, %c0_32, %c12], %28 {strides = array<i32>} : memref<2x16x16x128xbf16, #tpu.memory_space<vmem>>, vector<2x16x16x4xbf16>,
    %30 = vector.extract_strided_slice %20 {offsets = [0, 0, 4, 0], sizes = [2, 16, 16, 4], strides = [1, 1, 1, 1]} : vector<2x20x20x4xbf16> to vector<2x16x16x4xbf16>
    %c0_33 = arith.constant 0 : index
    %c0_34 = arith.constant 0 : index
    %c0_35 = arith.constant 0 : index
    %c16 = arith.constant 16 : index
    %31 = vector.load %arg9[%c0_33, %c0_34, %c0_35, %c16] : memref<2x16x16x128xbf16, #tpu.memory_space<vmem>>, vector<2x16x16x4xbf16>
    tpu.vector_store %arg9[%c0_33, %c0_34, %c0_35, %c16], %30 {strides = array<i32>} : memref<2x16x16x128xbf16, #tpu.memory_space<vmem>>, vector<2x16x16x4xbf16>,
    %32 = vector.extract_strided_slice %20 {offsets = [0, 1, 0, 0], sizes = [2, 16, 16, 4], strides = [1, 1, 1, 1]} : vector<2x20x20x4xbf16> to vector<2x16x16x4xbf16>
    %c0_36 = arith.constant 0 : index
    %c0_37 = arith.constant 0 : index
    %c0_38 = arith.constant 0 : index
    %c20 = arith.constant 20 : index
    %33 = vector.load %arg9[%c0_36, %c0_37, %c0_38, %c20] : memref<2x16x16x128xbf16, #tpu.memory_space<vmem>>, vector<2x16x16x4xbf16>
    tpu.vector_store %arg9[%c0_36, %c0_37, %c0_38, %c20], %32 {strides = array<i32>} : memref<2x16x16x128xbf16, #tpu.memory_space<vmem>>, vector<2x16x16x4xbf16>,
    %34 = vector.extract_strided_slice %20 {offsets = [0, 1, 1, 0], sizes = [2, 16, 16, 4], strides = [1, 1, 1, 1]} : vector<2x20x20x4xbf16> to vector<2x16x16x4xbf16>
    %c0_39 = arith.constant 0 : index
    %c0_40 = arith.constant 0 : index
    %c0_41 = arith.constant 0 : index
    %c24 = arith.constant 24 : index
    %35 = vector.load %arg9[%c0_39, %c0_40, %c0_41, %c24] : memref<2x16x16x128xbf16, #tpu.memory_space<vmem>>, vector<2x16x16x4xbf16>
    tpu.vector_store %arg9[%c0_39, %c0_40, %c0_41, %c24], %34 {strides = array<i32>} : memref<2x16x16x128xbf16, #tpu.memory_space<vmem>>, vector<2x16x16x4xbf16>,
    %36 = vector.extract_strided_slice %20 {offsets = [0, 1, 2, 0], sizes = [2, 16, 16, 4], strides = [1, 1, 1, 1]} : vector<2x20x20x4xbf16> to vector<2x16x16x4xbf16>
    %c0_42 = arith.constant 0 : index
    %c0_43 = arith.constant 0 : index
    %c0_44 = arith.constant 0 : index
    %c28 = arith.constant 28 : index
    %37 = vector.load %arg9[%c0_42, %c0_43, %c0_44, %c28] : memref<2x16x16x128xbf16, #tpu.memory_space<vmem>>, vector<2x16x16x4xbf16>
    tpu.vector_store %arg9[%c0_42, %c0_43, %c0_44, %c28], %36 {strides = array<i32>} : memref<2x16x16x128xbf16, #tpu.memory_space<vmem>>, vector<2x16x16x4xbf16>,
    %38 = vector.extract_strided_slice %20 {offsets = [0, 1, 3, 0], sizes = [2, 16, 16, 4], strides = [1, 1, 1, 1]} : vector<2x20x20x4xbf16> to vector<2x16x16x4xbf16>
    %c0_45 = arith.constant 0 : index
    %c0_46 = arith.constant 0 : index
    %c0_47 = arith.constant 0 : index
    %c32 = arith.constant 32 : index
    %39 = vector.load %arg9[%c0_45, %c0_46, %c0_47, %c32] : memref<2x16x16x128xbf16, #tpu.memory_space<vmem>>, vector<2x16x16x4xbf16>
    tpu.vector_store %arg9[%c0_45, %c0_46, %c0_47, %c32], %38 {strides = array<i32>} : memref<2x16x16x128xbf16, #tpu.memory_space<vmem>>, vector<2x16x16x4xbf16>,
    %40 = vector.extract_strided_slice %20 {offsets = [0, 1, 4, 0], sizes = [2, 16, 16, 4], strides = [1, 1, 1, 1]} : vector<2x20x20x4xbf16> to vector<2x16x16x4xbf16>
    %c0_48 = arith.constant 0 : index
    %c0_49 = arith.constant 0 : index
    %c0_50 = arith.constant 0 : index
    %c36 = arith.constant 36 : index
    %41 = vector.load %arg9[%c0_48, %c0_49, %c0_50, %c36] : memref<2x16x16x128xbf16, #tpu.memory_space<vmem>>, vector<2x16x16x4xbf16>
    tpu.vector_store %arg9[%c0_48, %c0_49, %c0_50, %c36], %40 {strides = array<i32>} : memref<2x16x16x128xbf16, #tpu.memory_space<vmem>>, vector<2x16x16x4xbf16>,
    %42 = vector.extract_strided_slice %20 {offsets = [0, 2, 0, 0], sizes = [2, 16, 16, 4], strides = [1, 1, 1, 1]} : vector<2x20x20x4xbf16> to vector<2x16x16x4xbf16>
    %c0_51 = arith.constant 0 : index
    %c0_52 = arith.constant 0 : index
    %c0_53 = arith.constant 0 : index
    %c40 = arith.constant 40 : index
    %43 = vector.load %arg9[%c0_51, %c0_52, %c0_53, %c40] : memref<2x16x16x128xbf16, #tpu.memory_space<vmem>>, vector<2x16x16x4xbf16>
    tpu.vector_store %arg9[%c0_51, %c0_52, %c0_53, %c40], %42 {strides = array<i32>} : memref<2x16x16x128xbf16, #tpu.memory_space<vmem>>, vector<2x16x16x4xbf16>,
    %44 = vector.extract_strided_slice %20 {offsets = [0, 2, 1, 0], sizes = [2, 16, 16, 4], strides = [1, 1, 1, 1]} : vector<2x20x20x4xbf16> to vector<2x16x16x4xbf16>
    %c0_54 = arith.constant 0 : index
    %c0_55 = arith.constant 0 : index
    %c0_56 = arith.constant 0 : index
    %c44 = arith.constant 44 : index
    %45 = vector.load %arg9[%c0_54, %c0_55, %c0_56, %c44] : memref<2x16x16x128xbf16, #tpu.memory_space<vmem>>, vector<2x16x16x4xbf16>
    tpu.vector_store %arg9[%c0_54, %c0_55, %c0_56, %c44], %44 {strides = array<i32>} : memref<2x16x16x128xbf16, #tpu.memory_space<vmem>>, vector<2x16x16x4xbf16>,
    %46 = vector.extract_strided_slice %20 {offsets = [0, 2, 2, 0], sizes = [2, 16, 16, 4], strides = [1, 1, 1, 1]} : vector<2x20x20x4xbf16> to vector<2x16x16x4xbf16>
    %c0_57 = arith.constant 0 : index
    %c0_58 = arith.constant 0 : index
    %c0_59 = arith.constant 0 : index
    %c48 = arith.constant 48 : index
    %47 = vector.load %arg9[%c0_57, %c0_58, %c0_59, %c48] : memref<2x16x16x128xbf16, #tpu.memory_space<vmem>>, vector<2x16x16x4xbf16>
    tpu.vector_store %arg9[%c0_57, %c0_58, %c0_59, %c48], %46 {strides = array<i32>} : memref<2x16x16x128xbf16, #tpu.memory_space<vmem>>, vector<2x16x16x4xbf16>,
    %48 = vector.extract_strided_slice %20 {offsets = [0, 2, 3, 0], sizes = [2, 16, 16, 4], strides = [1, 1, 1, 1]} : vector<2x20x20x4xbf16> to vector<2x16x16x4xbf16>
    %c0_60 = arith.constant 0 : index
    %c0_61 = arith.constant 0 : index
    %c0_62 = arith.constant 0 : index
    %c52 = arith.constant 52 : index
    %49 = vector.load %arg9[%c0_60, %c0_61, %c0_62, %c52] : memref<2x16x16x128xbf16, #tpu.memory_space<vmem>>, vector<2x16x16x4xbf16>
    tpu.vector_store %arg9[%c0_60, %c0_61, %c0_62, %c52], %48 {strides = array<i32>} : memref<2x16x16x128xbf16, #tpu.memory_space<vmem>>, vector<2x16x16x4xbf16>,
    %50 = vector.extract_strided_slice %20 {offsets = [0, 2, 4, 0], sizes = [2, 16, 16, 4], strides = [1, 1, 1, 1]} : vector<2x20x20x4xbf16> to vector<2x16x16x4xbf16>
    %c0_63 = arith.constant 0 : index
    %c0_64 = arith.constant 0 : index
    %c0_65 = arith.constant 0 : index
    %c56 = arith.constant 56 : index
    %51 = vector.load %arg9[%c0_63, %c0_64, %c0_65, %c56] : memref<2x16x16x128xbf16, #tpu.memory_space<vmem>>, vector<2x16x16x4xbf16>
    tpu.vector_store %arg9[%c0_63, %c0_64, %c0_65, %c56], %50 {strides = array<i32>} : memref<2x16x16x128xbf16, #tpu.memory_space<vmem>>, vector<2x16x16x4xbf16>,
    %52 = vector.extract_strided_slice %20 {offsets = [0, 3, 0, 0], sizes = [2, 16, 16, 4], strides = [1, 1, 1, 1]} : vector<2x20x20x4xbf16> to vector<2x16x16x4xbf16>
    %c0_66 = arith.constant 0 : index
    %c0_67 = arith.constant 0 : index
    %c0_68 = arith.constant 0 : index
    %c60 = arith.constant 60 : index
    %53 = vector.load %arg9[%c0_66, %c0_67, %c0_68, %c60] : memref<2x16x16x128xbf16, #tpu.memory_space<vmem>>, vector<2x16x16x4xbf16>
    tpu.vector_store %arg9[%c0_66, %c0_67, %c0_68, %c60], %52 {strides = array<i32>} : memref<2x16x16x128xbf16, #tpu.memory_space<vmem>>, vector<2x16x16x4xbf16>,
    %54 = vector.extract_strided_slice %20 {offsets = [0, 3, 1, 0], sizes = [2, 16, 16, 4], strides = [1, 1, 1, 1]} : vector<2x20x20x4xbf16> to vector<2x16x16x4xbf16>
    %c0_69 = arith.constant 0 : index
    %c0_70 = arith.constant 0 : index
    %c0_71 = arith.constant 0 : index
    %c64 = arith.constant 64 : index
    %55 = vector.load %arg9[%c0_69, %c0_70, %c0_71, %c64] : memref<2x16x16x128xbf16, #tpu.memory_space<vmem>>, vector<2x16x16x4xbf16>
    tpu.vector_store %arg9[%c0_69, %c0_70, %c0_71, %c64], %54 {strides = array<i32>} : memref<2x16x16x128xbf16, #tpu.memory_space<vmem>>, vector<2x16x16x4xbf16>,
    %56 = vector.extract_strided_slice %20 {offsets = [0, 3, 2, 0], sizes = [2, 16, 16, 4], strides = [1, 1, 1, 1]} : vector<2x20x20x4xbf16> to vector<2x16x16x4xbf16>
    %c0_72 = arith.constant 0 : index
    %c0_73 = arith.constant 0 : index
    %c0_74 = arith.constant 0 : index
    %c68 = arith.constant 68 : index
    %57 = vector.load %arg9[%c0_72, %c0_73, %c0_74, %c68] : memref<2x16x16x128xbf16, #tpu.memory_space<vmem>>, vector<2x16x16x4xbf16>
    tpu.vector_store %arg9[%c0_72, %c0_73, %c0_74, %c68], %56 {strides = array<i32>} : memref<2x16x16x128xbf16, #tpu.memory_space<vmem>>, vector<2x16x16x4xbf16>,
    %58 = vector.extract_strided_slice %20 {offsets = [0, 3, 3, 0], sizes = [2, 16, 16, 4], strides = [1, 1, 1, 1]} : vector<2x20x20x4xbf16> to vector<2x16x16x4xbf16>
    %c0_75 = arith.constant 0 : index
    %c0_76 = arith.constant 0 : index
    %c0_77 = arith.constant 0 : index
    %c72 = arith.constant 72 : index
    %59 = vector.load %arg9[%c0_75, %c0_76, %c0_77, %c72] : memref<2x16x16x128xbf16, #tpu.memory_space<vmem>>, vector<2x16x16x4xbf16>
    tpu.vector_store %arg9[%c0_75, %c0_76, %c0_77, %c72], %58 {strides = array<i32>} : memref<2x16x16x128xbf16, #tpu.memory_space<vmem>>, vector<2x16x16x4xbf16>,
    %60 = vector.extract_strided_slice %20 {offsets = [0, 3, 4, 0], sizes = [2, 16, 16, 4], strides = [1, 1, 1, 1]} : vector<2x20x20x4xbf16> to vector<2x16x16x4xbf16>
    %c0_78 = arith.constant 0 : index
    %c0_79 = arith.constant 0 : index
    %c0_80 = arith.constant 0 : index
    %c76 = arith.constant 76 : index
    %61 = vector.load %arg9[%c0_78, %c0_79, %c0_80, %c76] : memref<2x16x16x128xbf16, #tpu.memory_space<vmem>>, vector<2x16x16x4xbf16>
    tpu.vector_store %arg9[%c0_78, %c0_79, %c0_80, %c76], %60 {strides = array<i32>} : memref<2x16x16x128xbf16, #tpu.memory_space<vmem>>, vector<2x16x16x4xbf16>,
    %62 = vector.extract_strided_slice %20 {offsets = [0, 4, 0, 0], sizes = [2, 16, 16, 4], strides = [1, 1, 1, 1]} : vector<2x20x20x4xbf16> to vector<2x16x16x4xbf16>
    %c0_81 = arith.constant 0 : index
    %c0_82 = arith.constant 0 : index
    %c0_83 = arith.constant 0 : index
    %c80 = arith.constant 80 : index
    %63 = vector.load %arg9[%c0_81, %c0_82, %c0_83, %c80] : memref<2x16x16x128xbf16, #tpu.memory_space<vmem>>, vector<2x16x16x4xbf16>
    tpu.vector_store %arg9[%c0_81, %c0_82, %c0_83, %c80], %62 {strides = array<i32>} : memref<2x16x16x128xbf16, #tpu.memory_space<vmem>>, vector<2x16x16x4xbf16>,
    %64 = vector.extract_strided_slice %20 {offsets = [0, 4, 1, 0], sizes = [2, 16, 16, 4], strides = [1, 1, 1, 1]} : vector<2x20x20x4xbf16> to vector<2x16x16x4xbf16>
    %c0_84 = arith.constant 0 : index
    %c0_85 = arith.constant 0 : index
    %c0_86 = arith.constant 0 : index
    %c84 = arith.constant 84 : index
    %65 = vector.load %arg9[%c0_84, %c0_85, %c0_86, %c84] : memref<2x16x16x128xbf16, #tpu.memory_space<vmem>>, vector<2x16x16x4xbf16>
    tpu.vector_store %arg9[%c0_84, %c0_85, %c0_86, %c84], %64 {strides = array<i32>} : memref<2x16x16x128xbf16, #tpu.memory_space<vmem>>, vector<2x16x16x4xbf16>,
    %66 = vector.extract_strided_slice %20 {offsets = [0, 4, 2, 0], sizes = [2, 16, 16, 4], strides = [1, 1, 1, 1]} : vector<2x20x20x4xbf16> to vector<2x16x16x4xbf16>
    %c0_87 = arith.constant 0 : index
    %c0_88 = arith.constant 0 : index
    %c0_89 = arith.constant 0 : index
    %c88 = arith.constant 88 : index
    %67 = vector.load %arg9[%c0_87, %c0_88, %c0_89, %c88] : memref<2x16x16x128xbf16, #tpu.memory_space<vmem>>, vector<2x16x16x4xbf16>
    tpu.vector_store %arg9[%c0_87, %c0_88, %c0_89, %c88], %66 {strides = array<i32>} : memref<2x16x16x128xbf16, #tpu.memory_space<vmem>>, vector<2x16x16x4xbf16>,
    %68 = vector.extract_strided_slice %20 {offsets = [0, 4, 3, 0], sizes = [2, 16, 16, 4], strides = [1, 1, 1, 1]} : vector<2x20x20x4xbf16> to vector<2x16x16x4xbf16>
    %c0_90 = arith.constant 0 : index
    %c0_91 = arith.constant 0 : index
    %c0_92 = arith.constant 0 : index
    %c92 = arith.constant 92 : index
    %69 = vector.load %arg9[%c0_90, %c0_91, %c0_92, %c92] : memref<2x16x16x128xbf16, #tpu.memory_space<vmem>>, vector<2x16x16x4xbf16>
    tpu.vector_store %arg9[%c0_90, %c0_91, %c0_92, %c92], %68 {strides = array<i32>} : memref<2x16x16x128xbf16, #tpu.memory_space<vmem>>, vector<2x16x16x4xbf16>,
    %70 = vector.extract_strided_slice %20 {offsets = [0, 4, 4, 0], sizes = [2, 16, 16, 4], strides = [1, 1, 1, 1]} : vector<2x20x20x4xbf16> to vector<2x16x16x4xbf16>
    %c0_93 = arith.constant 0 : index
    %c0_94 = arith.constant 0 : index
    %c0_95 = arith.constant 0 : index
    %c96 = arith.constant 96 : index
    %71 = vector.load %arg9[%c0_93, %c0_94, %c0_95, %c96] : memref<2x16x16x128xbf16, #tpu.memory_space<vmem>>, vector<2x16x16x4xbf16>
    tpu.vector_store %arg9[%c0_93, %c0_94, %c0_95, %c96], %70 {strides = array<i32>} : memref<2x16x16x128xbf16, #tpu.memory_space<vmem>>, vector<2x16x16x4xbf16>,
    %c0_96 = arith.constant 0 : index
    %c0_97 = arith.constant 0 : index
    %c0_98 = arith.constant 0 : index
    %c0_99 = arith.constant 0 : index
    %72 = vector.load %arg9[%c0_96, %c0_97, %c0_98, %c0_99] : memref<2x16x16x128xbf16, #tpu.memory_space<vmem>>, vector<2x16x16x128xbf16>
    %73 = vector.shape_cast %72 : vector<2x16x16x128xbf16> to vector<512x128xbf16>
    %c0_100 = arith.constant 0 : index
    %c0_101 = arith.constant 0 : index
    %74 = vector.load %arg6[%c0_100, %c0_101] : memref<8x128xbf16, #tpu.memory_space<vmem>>, vector<8x128xbf16>
    %cst_102 = arith.constant dense<0.000000e+00> : vector<8x512xf32>
    %75 = tpu.matmul %74, %73, %cst_102 {dimension_numbers = #tpu.dot_dimension_numbers<[1], [1], [0], [0], [0, 0, 1, 0], [], []>} : vector<8x128xbf16>, vector<512x128xbf16>, vector<8x512xf32> -> vector<8x512xf32>
    %c0_103 = arith.constant 0 : index
    %c0_104 = arith.constant 0 : index
    %76 = vector.load %arg7[%c0_103, %c0_104] : memref<8x1xf32, #tpu.memory_space<vmem>>, vector<8x1xf32>
    %77 = vector.broadcast %76 : vector<8x1xf32> to vector<8x512xf32>
    %78 = arith.addf %75, %77 : vector<8x512xf32>
    %79 = vector.shape_cast %78 : vector<8x512xf32> to vector<8x2x256xf32>
    %80 = vector.shape_cast %21 : vector<1x256xf32> to vector<1x1x256xf32>
    %81 = vector.broadcast %80 : vector<1x1x256xf32> to vector<8x2x256xf32>
    %82 = arith.mulf %79, %81 : vector<8x2x256xf32>
    %83 = vector.extract_strided_slice %82 {offsets = [0, 0, 0], sizes = [8, 1, 256], strides = [1, 1, 1]} : vector<8x2x256xf32> to vector<8x1x256xf32>
    %84 = vector.shape_cast %83 : vector<8x1x256xf32> to vector<8x256xf32>
    %c0_105 = arith.constant 0 : index
    %c0_106 = arith.constant 0 : index
    %85 = vector.load %arg8[%c0_105, %c0_106] : memref<8x512xf32, #tpu.memory_space<vmem>>, vector<8x256xf32>
    tpu.vector_store %arg8[%c0_105, %c0_106], %84 {strides = array<i32>} : memref<8x512xf32, #tpu.memory_space<vmem>>, vector<8x256xf32>,
    %86 = vector.extract_strided_slice %82 {offsets = [0, 1, 0], sizes = [8, 1, 256], strides = [1, 1, 1]} : vector<8x2x256xf32> to vector<8x1x256xf32>
    %87 = vector.shape_cast %86 : vector<8x1x256xf32> to vector<8x256xf32>
    %c0_107 = arith.constant 0 : index
    %c256 = arith.constant 256 : index
    %88 = vector.load %arg8[%c0_107, %c256] : memref<8x512xf32, #tpu.memory_space<vmem>>, vector<8x256xf32>
    tpu.vector_store %arg8[%c0_107, %c256], %87 {strides = array<i32>} : memref<8x512xf32, #tpu.memory_space<vmem>>, vector<8x256xf32>,
    return
  }
  func.func @transform_0(%arg0: i32) -> (i32, i32, i32, i32) {
    %c0_i32 = arith.constant 0 : i32
    %c0_i32_0 = arith.constant 0 : i32
    %c0_i32_1 = arith.constant 0 : i32
    %c0_i32_2 = arith.constant 0 : i32
    return %arg0, %c0_i32, %c0_i32_0, %c0_i32_1 : i32, i32, i32, i32
  }
  func.func @transform_1(%arg0: i32) -> (i32, i32, i32, i32) {
    %c0_i32 = arith.constant 0 : i32
    %c0_i32_0 = arith.constant 0 : i32
    %c0_i32_1 = arith.constant 0 : i32
    %c0_i32_2 = arith.constant 0 : i32
    %c0_i32_3 = arith.constant 0 : i32
    return %c0_i32, %c0_i32_0, %c0_i32_1, %c0_i32_2 : i32, i32, i32, i32
  }
  func.func @transform_2(%arg0: i32) -> (i32, i32, i32, i32) {
    %c0_i32 = arith.constant 0 : i32
    %c0_i32_0 = arith.constant 0 : i32
    %c0_i32_1 = arith.constant 0 : i32
    %c0_i32_2 = arith.constant 0 : i32
    %c0_i32_3 = arith.constant 0 : i32
    return %c0_i32, %c0_i32_0, %c0_i32_1, %c0_i32_2 : i32, i32, i32, i32
  }
  func.func @transform_3(%arg0: i32) -> (i32, i32, i32, i32) {
    %c0_i32 = arith.constant 0 : i32
    %c0_i32_0 = arith.constant 0 : i32
    %c0_i32_1 = arith.constant 0 : i32
    %c0_i32_2 = arith.constant 0 : i32
    %c0_i32_3 = arith.constant 0 : i32
    return %c0_i32, %c0_i32_0, %c0_i32_1, %c0_i32_2 : i32, i32, i32, i32
  }
  func.func @transform_4(%arg0: i32) -> (i32, i32) {
    %c0_i32 = arith.constant 0 : i32
    %c0_i32_0 = arith.constant 0 : i32
    %c0_i32_1 = arith.constant 0 : i32
    return %c0_i32, %c0_i32_0 : i32, i32
  }
  func.func @transform_5(%arg0: i32) -> (i32, i32) {
    %c0_i32 = arith.constant 0 : i32
    %c0_i32_0 = arith.constant 0 : i32
    %c0_i32_1 = arith.constant 0 : i32
    return %c0_i32, %c0_i32_0 : i32, i32
  }
  func.func @transform_6(%arg0: i32) -> (i32, i32) {
    %c0_i32 = arith.constant 0 : i32
    %c0_i32_0 = arith.constant 0 : i32
    %c0_i32_1 = arith.constant 0 : i32
    return %c0_i32, %c0_i32_0 : i32, i32
  }
  func.func @transform_7(%arg0: i32) -> (i32, i32) {
    %c0_i32 = arith.constant 0 : i32
    %c0_i32_0 = arith.constant 0 : i32
    return %c0_i32, %arg0 : i32, i32
  }
}

</mosaic_0001>

<llo_original>
// kernel: space_context.1
$region0: #{space_context.1}
  #allocation0 [shape = 'u32[]', space=smem, size = 0x4, offset = 0x4, fixed_abs, tag = 'smem constant byte address 0x4 - core index']
  #allocation1 [shape = 'u32[144,128]{1,0:T(1,128)}', space=vmem, size = 0x12000, scoped, tag = 'internal scratch']
  #allocation2 [shape = 'bf16[2,16,16,128]{3,2,1,0:T(16,128)(2,1)}', space=vmem, size = 0x20000, scoped, tag = 'scratch operand']
  %s0 = inlined_call_operand.vmem [shape: bf16[2,24,24,4], index: 0, kind: input, shape index: {}]
  %s1 = inlined_call_operand.vmem [shape: f32[1,24,24,1], index: 1, kind: input, shape index: {}]
  %s2 = inlined_call_operand.vmem [shape: f32[1,24,24,1], index: 2, kind: input, shape index: {}]
  %s3 = inlined_call_operand.vmem [shape: f32[1,20,20,1], index: 3, kind: input, shape index: {}]
  %s4 = inlined_call_operand.vmem [shape: f32[1,256], index: 4, kind: input, shape index: {}]
  %s5 = inlined_call_operand.vmem [shape: bf16[8,128], index: 5, kind: input, shape index: {}]
  %s6 = inlined_call_operand.vmem [shape: f32[8,1], index: 6, kind: input, shape index: {}]
  %s7 = inlined_call_operand.vmem [shape: f32[8,512], index: 7, kind: output, shape index: {}]
  %s8 = sld [smem:[#allocation0]]
  $region38: #{space_context.1} parent=0
    _
  %s10 = ssub.s32 1, %s8
  %s11 = scalar_select 0, %s10, %s8
  // Predicated region
  $region2: #{space_context.1} parent=0 // pred_check
    _
  $region3: #{space_context.1} parent=0 // pred_check_branch
    %13 = sbr.rel (0) target = $region5
  $region4: #{space_context.1} parent=0 // pred_region
    _
  $region5: #{space_context.1} parent=0 // pred_fallthru
    _
  // Predicated region
  $region6: #{space_context.1} parent=0 // pred_check
    _
  $region7: #{space_context.1} parent=0 // pred_check_branch
    %15 = sbr.rel (0) target = $region9
  $region8: #{space_context.1} parent=0 // pred_region
    _
  $region9: #{space_context.1} parent=0 // pred_fallthru
    _
  // Predicated region
  $region10: #{space_context.1} parent=0 // pred_check
    _
  $region11: #{space_context.1} parent=0 // pred_check_branch
    %17 = sbr.rel (0) target = $region13
  $region12: #{space_context.1} parent=0 // pred_region
    _
  $region13: #{space_context.1} parent=0 // pred_fallthru
    _
  // Predicated region
  $region14: #{space_context.1} parent=0 // pred_check
    _
  $region15: #{space_context.1} parent=0 // pred_check_branch
    %19 = sbr.rel (0) target = $region17
  $region16: #{space_context.1} parent=0 // pred_region
    _
  $region17: #{space_context.1} parent=0 // pred_fallthru
    _
  // Predicated region
  $region18: #{space_context.1} parent=0 // pred_check
    _
  $region19: #{space_context.1} parent=0 // pred_check_branch
    %21 = sbr.rel (0) target = $region21
  $region20: #{space_context.1} parent=0 // pred_region
    _
  $region21: #{space_context.1} parent=0 // pred_fallthru
    _
  // Predicated region
  $region22: #{space_context.1} parent=0 // pred_check
    _
  $region23: #{space_context.1} parent=0 // pred_check_branch
    %23 = sbr.rel (0) target = $region25
  $region24: #{space_context.1} parent=0 // pred_region
    _
  $region25: #{space_context.1} parent=0 // pred_fallthru
    _
  // Predicated region
  $region26: #{space_context.1} parent=0 // pred_check
    _
  $region27: #{space_context.1} parent=0 // pred_check_branch
    %25 = sbr.rel (0) target = $region29
  $region28: #{space_context.1} parent=0 // pred_region
    _
  $region29: #{space_context.1} parent=0 // pred_fallthru
    _
  %vm27 = vcmask 1048352
  %28 = vst.msk [vmem:[#allocation2] sm:$0xff] %vm27, 0
  %29 = vst.msk [vmem:[#allocation2 + $0x8] sm:$0xff] %vm27, 0
  %30 = vst.msk [vmem:[#allocation2 + $0x10] sm:$0xff] %vm27, 0
  %31 = vst.msk [vmem:[#allocation2 + $0x18] sm:$0xff] %vm27, 0
  %32 = vst.msk [vmem:[#allocation2 + $0x20] sm:$0xff] %vm27, 0
  %33 = vst.msk [vmem:[#allocation2 + $0x28] sm:$0xff] %vm27, 0
  %34 = vst.msk [vmem:[#allocation2 + $0x30] sm:$0xff] %vm27, 0
  %35 = vst.msk [vmem:[#allocation2 + $0x38] sm:$0xff] %vm27, 0
  %36 = vst.msk [vmem:[#allocation2 + $0x40] sm:$0xff] %vm27, 0
  %37 = vst.msk [vmem:[#allocation2 + $0x48] sm:$0xff] %vm27, 0
  %38 = vst.msk [vmem:[#allocation2 + $0x50] sm:$0xff] %vm27, 0
  %39 = vst.msk [vmem:[#allocation2 + $0x58] sm:$0xff] %vm27, 0
  %40 = vst.msk [vmem:[#allocation2 + $0x60] sm:$0xff] %vm27, 0
  %41 = vst.msk [vmem:[#allocation2 + $0x68] sm:$0xff] %vm27, 0
  %42 = vst.msk [vmem:[#allocation2 + $0x70] sm:$0xff] %vm27, 0
  %43 = vst.msk [vmem:[#allocation2 + $0x78] sm:$0xff] %vm27, 0
  %44 = vst.msk [vmem:[#allocation2 + $0x80] sm:$0xff] %vm27, 0
  %45 = vst.msk [vmem:[#allocation2 + $0x88] sm:$0xff] %vm27, 0
  %46 = vst.msk [vmem:[#allocation2 + $0x90] sm:$0xff] %vm27, 0
  %47 = vst.msk [vmem:[#allocation2 + $0x98] sm:$0xff] %vm27, 0
  %48 = vst.msk [vmem:[#allocation2 + $0xa0] sm:$0xff] %vm27, 0
  %49 = vst.msk [vmem:[#allocation2 + $0xa8] sm:$0xff] %vm27, 0
  %50 = vst.msk [vmem:[#allocation2 + $0xb0] sm:$0xff] %vm27, 0
  %51 = vst.msk [vmem:[#allocation2 + $0xb8] sm:$0xff] %vm27, 0
  %52 = vst.msk [vmem:[#allocation2 + $0xc0] sm:$0xff] %vm27, 0
  %53 = vst.msk [vmem:[#allocation2 + $0xc8] sm:$0xff] %vm27, 0
  %54 = vst.msk [vmem:[#allocation2 + $0xd0] sm:$0xff] %vm27, 0
  %55 = vst.msk [vmem:[#allocation2 + $0xd8] sm:$0xff] %vm27, 0
  %56 = vst.msk [vmem:[#allocation2 + $0xe0] sm:$0xff] %vm27, 0
  %57 = vst.msk [vmem:[#allocation2 + $0xe8] sm:$0xff] %vm27, 0
  %58 = vst.msk [vmem:[#allocation2 + $0xf0] sm:$0xff] %vm27, 0
  %59 = vst.msk [vmem:[#allocation2 + $0xf8] sm:$0xff] %vm27, 0
  %v60 = vld [vmem:[%s0 + $0xc] sm:$0xf]
  %v61 = vld [vmem:[%s0 + $0x10] sm:$0xf]
  %v62 = vld [vmem:[%s0 + $0x14] sm:$0xf]
  %v63 = vld [vmem:[%s0 + $0x18] sm:$0xf]
  %v64 = vld [vmem:[%s0 + $0x1c] sm:$0xf]
  %v65 = vld [vmem:[%s0 + $0x20] sm:$0xf]
  %v66 = vld [vmem:[%s0 + $0x24] sm:$0xf]
  %v67 = vld [vmem:[%s0 + $0x28] sm:$0xf]
  %v68 = vld [vmem:[%s0 + $0x2c] sm:$0xf]
  %v69 = vld [vmem:[%s0 + $0x30] sm:$0xf]
  %v70 = vld [vmem:[%s0 + $0x34] sm:$0xf]
  %v71 = vld [vmem:[%s0 + $0x38] sm:$0xf]
  %v72 = vld [vmem:[%s0 + $0x3c] sm:$0xf]
  %v73 = vld [vmem:[%s0 + $0x40] sm:$0xf]
  %v74 = vld [vmem:[%s0 + $0x44] sm:$0xf]
  %v75 = vld [vmem:[%s0 + $0x48] sm:$0xf]
  %v76 = vld [vmem:[%s0 + $0x4c] sm:$0xf]
  %v77 = vld [vmem:[%s0 + $0x50] sm:$0xf]
  %v78 = vld [vmem:[%s0 + $0x54] sm:$0xf]
  %v79 = vld [vmem:[%s0 + $0x58] sm:$0xf]
  %v80 = vld [vmem:[%s0 + $0x5c] sm:$0xf]
  %v81 = vld [vmem:[%s0 + $0x60] sm:$0xf]
  %v82 = vld [vmem:[%s0 + $0x64] sm:$0xf]
  %v83 = vld [vmem:[%s0 + $0x68] sm:$0xf]
  %v84 = vld [vmem:[%s0 + $0x6c] sm:$0xf]
  %v85 = vld [vmem:[%s0 + $0x70] sm:$0xf]
  %v86 = vld [vmem:[%s0 + $0x74] sm:$0xf]
  %v87 = vld [vmem:[%s0 + $0x78] sm:$0xf]
  %v88 = vld [vmem:[%s0 + $0x7c] sm:$0xf]
  %v89 = vld [vmem:[%s0 + $0x80] sm:$0xf]
  %v90 = vld [vmem:[%s0 + $0x84] sm:$0xf]
  %v91 = vld [vmem:[%s0 + $0x88] sm:$0xf]
  %v92 = vld [vmem:[%s0 + $0x8c] sm:$0xf]
  %v93 = vld [vmem:[%s0 + $0x90] sm:$0xf]
  %v94 = vld [vmem:[%s0 + $0x94] sm:$0xf]
  %v95 = vld [vmem:[%s0 + $0x98] sm:$0xf]
  %v96 = vld [vmem:[%s0 + $0x9c] sm:$0xf]
  %v97 = vld [vmem:[%s0 + $0xa0] sm:$0xf]
  %v98 = vld [vmem:[%s0 + $0xa4] sm:$0xf]
  %v99 = vld [vmem:[%s0 + $0xa8] sm:$0xf]
  %v100 = vld [vmem:[%s0 + $0xac] sm:$0xf]
  %v101 = vld [vmem:[%s0 + $0xb0] sm:$0xf]
  %v102 = vld [vmem:[%s0 + $0xb4] sm:$0xf]
  %v103 = vld [vmem:[%s0 + $0xb8] sm:$0xf]
  %v104 = vld [vmem:[%s0 + $0xbc] sm:$0xf]
  %v105 = vld [vmem:[%s0 + $0xc0] sm:$0xf]
  %v106 = vld [vmem:[%s0 + $0xc4] sm:$0xf]
  %v107 = vld [vmem:[%s0 + $0xc8] sm:$0xf]
  %v108 = vld [vmem:[%s0 + $0xcc] sm:$0xf]
  %v109 = vld [vmem:[%s0 + $0xd0] sm:$0xf]
  %v110 = vld [vmem:[%s0 + $0xd4] sm:$0xf]
  %v111 = vld [vmem:[%s0 + $0xd8] sm:$0xf]
  %v112 = vld [vmem:[%s0 + $0xdc] sm:$0xf]
  %v113 = vld [vmem:[%s0 + $0xe0] sm:$0xf]
  %v114 = vld [vmem:[%s0 + $0xe4] sm:$0xf]
  %v115 = vld [vmem:[%s0 + $0xe8] sm:$0xf]
  %v116 = vld [vmem:[%s0 + $0xec] sm:$0xf]
  %v117 = vld [vmem:[%s0 + $0xf0] sm:$0xf]
  %v118 = vld [vmem:[%s0 + $0xf4] sm:$0xf]
  %v119 = vld [vmem:[%s0 + $0xf8] sm:$0xf]
  %v120 = vld [vmem:[%s0 + $0xfc] sm:$0xf]
  %v121 = vld [vmem:[%s0 + $0x100] sm:$0xf]
  %v122 = vld [vmem:[%s0 + $0x104] sm:$0xf]
  %v123 = vld [vmem:[%s0 + $0x108] sm:$0xf]
  %v124 = vld [vmem:[%s0 + $0x10c] sm:$0xf]
  %v125 = vld [vmem:[%s0 + $0x110] sm:$0xf]
  %v126 = vld [vmem:[%s0 + $0x12c] sm:$0xf]
  %v127 = vld [vmem:[%s0 + $0x130] sm:$0xf]
  %v128 = vld [vmem:[%s0 + $0x134] sm:$0xf]
  %v129 = vld [vmem:[%s0 + $0x138] sm:$0xf]
  %v130 = vld [vmem:[%s0 + $0x13c] sm:$0xf]
  %v131 = vld [vmem:[%s0 + $0x140] sm:$0xf]
  %v132 = vld [vmem:[%s0 + $0x144] sm:$0xf]
  %v133 = vld [vmem:[%s0 + $0x148] sm:$0xf]
  %v134 = vld [vmem:[%s0 + $0x14c] sm:$0xf]
  %v135 = vld [vmem:[%s0 + $0x150] sm:$0xf]
  %v136 = vld [vmem:[%s0 + $0x154] sm:$0xf]
  %v137 = vld [vmem:[%s0 + $0x158] sm:$0xf]
  %v138 = vld [vmem:[%s0 + $0x15c] sm:$0xf]
  %v139 = vld [vmem:[%s0 + $0x160] sm:$0xf]
  %v140 = vld [vmem:[%s0 + $0x164] sm:$0xf]
  %v141 = vld [vmem:[%s0 + $0x168] sm:$0xf]
  %v142 = vld [vmem:[%s0 + $0x16c] sm:$0xf]
  %v143 = vld [vmem:[%s0 + $0x170] sm:$0xf]
  %v144 = vld [vmem:[%s0 + $0x174] sm:$0xf]
  %v145 = vld [vmem:[%s0 + $0x178] sm:$0xf]
  %v146 = vld [vmem:[%s0 + $0x17c] sm:$0xf]
  %v147 = vld [vmem:[%s0 + $0x180] sm:$0xf]
  %v148 = vld [vmem:[%s0 + $0x184] sm:$0xf]
  %v149 = vld [vmem:[%s0 + $0x188] sm:$0xf]
  %v150 = vld [vmem:[%s0 + $0x18c] sm:$0xf]
  %v151 = vld [vmem:[%s0 + $0x190] sm:$0xf]
  %v152 = vld [vmem:[%s0 + $0x194] sm:$0xf]
  %v153 = vld [vmem:[%s0 + $0x198] sm:$0xf]
  %v154 = vld [vmem:[%s0 + $0x19c] sm:$0xf]
  %v155 = vld [vmem:[%s0 + $0x1a0] sm:$0xf]
  %v156 = vld [vmem:[%s0 + $0x1a4] sm:$0xf]
  %v157 = vld [vmem:[%s0 + $0x1a8] sm:$0xf]
  %v158 = vld [vmem:[%s0 + $0x1ac] sm:$0xf]
  %v159 = vld [vmem:[%s0 + $0x1b0] sm:$0xf]
  %v160 = vld [vmem:[%s0 + $0x1b4] sm:$0xf]
  %v161 = vld [vmem:[%s0 + $0x1b8] sm:$0xf]
  %v162 = vld [vmem:[%s0 + $0x1bc] sm:$0xf]
  %v163 = vld [vmem:[%s0 + $0x1c0] sm:$0xf]
  %v164 = vld [vmem:[%s0 + $0x1c4] sm:$0xf]
  %v165 = vld [vmem:[%s0 + $0x1c8] sm:$0xf]
  %v166 = vld [vmem:[%s0 + $0x1cc] sm:$0xf]
  %v167 = vld [vmem:[%s0 + $0x1d0] sm:$0xf]
  %v168 = vld [vmem:[%s0 + $0x1d4] sm:$0xf]
  %v169 = vld [vmem:[%s0 + $0x1d8] sm:$0xf]
  %v170 = vld [vmem:[%s0 + $0x1dc] sm:$0xf]
  %v171 = vld [vmem:[%s0 + $0x1e0] sm:$0xf]
  %v172 = vld [vmem:[%s0 + $0x1e4] sm:$0xf]
  %v173 = vld [vmem:[%s0 + $0x1e8] sm:$0xf]
  %v174 = vld [vmem:[%s0 + $0x1ec] sm:$0xf]
  %v175 = vld [vmem:[%s0 + $0x1f0] sm:$0xf]
  %v176 = vld [vmem:[%s0 + $0x1f4] sm:$0xf]
  %v177 = vld [vmem:[%s0 + $0x1f8] sm:$0xf]
  %v178 = vld [vmem:[%s0 + $0x1fc] sm:$0xf]
  %v179 = vld [vmem:[%s0 + $0x200] sm:$0xf]
  %v180 = vld [vmem:[%s0 + $0x204] sm:$0xf]
  %v181 = vld [vmem:[%s0 + $0x208] sm:$0xf]
  %v182 = vld [vmem:[%s0 + $0x20c] sm:$0xf]
  %v183 = vld [vmem:[%s0 + $0x210] sm:$0xf]
  %v184 = vld [vmem:[%s0 + $0x214] sm:$0xf]
  %v185 = vld [vmem:[%s0 + $0x218] sm:$0xf]
  %v186 = vld [vmem:[%s0 + $0x21c] sm:$0xf]
  %v187 = vld [vmem:[%s0 + $0x220] sm:$0xf]
  %v188 = vld [vmem:[%s0 + $0x224] sm:$0xf]
  %v189 = vld [vmem:[%s0 + $0x228] sm:$0xf]
  %v190 = vld [vmem:[%s0 + $0x22c] sm:$0xf]
  %v191 = vld [vmem:[%s0 + $0x230] sm:$0xf]
  %v192 = vunpack.c.l.bf16 %v60
  %v193 = vunpack.c.l.bf16 %v61
  %v194 = vunpack.c.l.bf16 %v62
  %v195 = vunpack.c.l.bf16 %v63
  %v196 = vunpack.c.l.bf16 %v64
  %v197 = vunpack.c.l.bf16 %v65
  %v198 = vunpack.c.l.bf16 %v66
  %v199 = vunpack.c.l.bf16 %v67
  %v200 = vunpack.c.l.bf16 %v68
  %v201 = vunpack.c.l.bf16 %v69
  %v202 = vunpack.c.l.bf16 %v70
  %v203 = vunpack.c.l.bf16 %v71
  %v204 = vunpack.c.l.bf16 %v72
  %v205 = vunpack.c.l.bf16 %v73
  %v206 = vunpack.c.l.bf16 %v74
  %v207 = vunpack.c.l.bf16 %v75
  %v208 = vunpack.c.l.bf16 %v76
  %v209 = vunpack.c.l.bf16 %v77
  %v210 = vunpack.c.l.bf16 %v78
  %v211 = vunpack.c.l.bf16 %v79
  %v212 = vunpack.c.l.bf16 %v80
  %v213 = vunpack.c.l.bf16 %v81
  %v214 = vunpack.c.l.bf16 %v82
  %v215 = vunpack.c.l.bf16 %v83
  %v216 = vunpack.c.l.bf16 %v84
  %v217 = vunpack.c.l.bf16 %v85
  %v218 = vunpack.c.l.bf16 %v86
  %v219 = vunpack.c.l.bf16 %v87
  %v220 = vunpack.c.l.bf16 %v88
  %v221 = vunpack.c.l.bf16 %v89
  %v222 = vunpack.c.l.bf16 %v90
  %v223 = vunpack.c.l.bf16 %v91
  %v224 = vunpack.c.l.bf16 %v92
  %v225 = vunpack.c.l.bf16 %v93
  %v226 = vunpack.c.l.bf16 %v94
  %v227 = vunpack.c.l.bf16 %v95
  %v228 = vunpack.c.l.bf16 %v96
  %v229 = vunpack.c.l.bf16 %v97
  %v230 = vunpack.c.l.bf16 %v98
  %v231 = vunpack.c.l.bf16 %v99
  %v232 = vunpack.c.l.bf16 %v100
  %v233 = vunpack.c.l.bf16 %v101
  %v234 = vunpack.c.l.bf16 %v102
  %v235 = vunpack.c.l.bf16 %v103
  %v236 = vunpack.c.l.bf16 %v104
  %v237 = vunpack.c.l.bf16 %v105
  %v238 = vunpack.c.l.bf16 %v106
  %v239 = vunpack.c.l.bf16 %v107
  %v240 = vunpack.c.l.bf16 %v108
  %v241 = vunpack.c.l.bf16 %v109
  %v242 = vunpack.c.l.bf16 %v110
  %v243 = vunpack.c.l.bf16 %v111
  %v244 = vunpack.c.l.bf16 %v112
  %v245 = vunpack.c.l.bf16 %v113
  %v246 = vunpack.c.l.bf16 %v114
  %v247 = vunpack.c.l.bf16 %v115
  %v248 = vunpack.c.l.bf16 %v116
  %v249 = vunpack.c.l.bf16 %v117
  %v250 = vunpack.c.l.bf16 %v118
  %v251 = vunpack.c.l.bf16 %v119
  %v252 = vunpack.c.l.bf16 %v120
  %v253 = vunpack.c.l.bf16 %v121
  %v254 = vunpack.c.l.bf16 %v122
  %v255 = vunpack.c.l.bf16 %v123
  %v256 = vunpack.c.l.bf16 %v124
  %v257 = vunpack.c.l.bf16 %v125
  %v258 = vunpack.c.l.bf16 %v126
  %v259 = vunpack.c.l.bf16 %v127
  %v260 = vunpack.c.l.bf16 %v128
  %v261 = vunpack.c.l.bf16 %v129
  %v262 = vunpack.c.l.bf16 %v130
  %v263 = vunpack.c.l.bf16 %v131
  %v264 = vunpack.c.l.bf16 %v132
  %v265 = vunpack.c.l.bf16 %v133
  %v266 = vunpack.c.l.bf16 %v134
  %v267 = vunpack.c.l.bf16 %v135
  %v268 = vunpack.c.l.bf16 %v136
  %v269 = vunpack.c.l.bf16 %v137
  %v270 = vunpack.c.l.bf16 %v138
  %v271 = vunpack.c.l.bf16 %v139
  %v272 = vunpack.c.l.bf16 %v140
  %v273 = vunpack.c.l.bf16 %v141
  %v274 = vunpack.c.l.bf16 %v142
  %v275 = vunpack.c.l.bf16 %v143
  %v276 = vunpack.c.l.bf16 %v144
  %v277 = vunpack.c.l.bf16 %v145
  %v278 = vunpack.c.l.bf16 %v146
  %v279 = vunpack.c.l.bf16 %v147
  %v280 = vunpack.c.l.bf16 %v148
  %v281 = vunpack.c.l.bf16 %v149
  %v282 = vunpack.c.l.bf16 %v150
  %v283 = vunpack.c.l.bf16 %v151
  %v284 = vunpack.c.l.bf16 %v152
  %v285 = vunpack.c.l.bf16 %v153
  %v286 = vunpack.c.l.bf16 %v154
  %v287 = vunpack.c.l.bf16 %v155
  %v288 = vunpack.c.l.bf16 %v156
  %v289 = vunpack.c.l.bf16 %v157
  %v290 = vunpack.c.l.bf16 %v158
  %v291 = vunpack.c.l.bf16 %v159
  %v292 = vunpack.c.l.bf16 %v160
  %v293 = vunpack.c.l.bf16 %v161
  %v294 = vunpack.c.l.bf16 %v162
  %v295 = vunpack.c.l.bf16 %v163
  %v296 = vunpack.c.l.bf16 %v164
  %v297 = vunpack.c.l.bf16 %v165
  %v298 = vunpack.c.l.bf16 %v166
  %v299 = vunpack.c.l.bf16 %v167
  %v300 = vunpack.c.l.bf16 %v168
  %v301 = vunpack.c.l.bf16 %v169
  %v302 = vunpack.c.l.bf16 %v170
  %v303 = vunpack.c.l.bf16 %v171
  %v304 = vunpack.c.l.bf16 %v172
  %v305 = vunpack.c.l.bf16 %v173
  %v306 = vunpack.c.l.bf16 %v174
  %v307 = vunpack.c.l.bf16 %v175
  %v308 = vunpack.c.l.bf16 %v176
  %v309 = vunpack.c.l.bf16 %v177
  %v310 = vunpack.c.l.bf16 %v178
  %v311 = vunpack.c.l.bf16 %v179
  %v312 = vunpack.c.l.bf16 %v180
  %v313 = vunpack.c.l.bf16 %v181
  %v314 = vunpack.c.l.bf16 %v182
  %v315 = vunpack.c.l.bf16 %v183
  %v316 = vunpack.c.l.bf16 %v184
  %v317 = vunpack.c.l.bf16 %v185
  %v318 = vunpack.c.l.bf16 %v186
  %v319 = vunpack.c.l.bf16 %v187
  %v320 = vunpack.c.l.bf16 %v188
  %v321 = vunpack.c.l.bf16 %v189
  %v322 = vunpack.c.l.bf16 %v190
  %v323 = vunpack.c.l.bf16 %v191
  %v324 = vld [vmem:[%s1 + $0x18] sm:$0xff]
  %v325 = vld [vmem:[%s1 + $0x20] sm:$0xff]
  %v326 = vld [vmem:[%s1 + $0x28] sm:$0xff]
  %v327 = vld [vmem:[%s1 + $0x30] sm:$0xff]
  %v328 = vld [vmem:[%s1 + $0x38] sm:$0xff]
  %v329 = vld [vmem:[%s1 + $0x40] sm:$0xff]
  %v330 = vld [vmem:[%s1 + $0x48] sm:$0xff]
  %v331 = vld [vmem:[%s1 + $0x50] sm:$0xff]
  %v332 = vld [vmem:[%s1 + $0x58] sm:$0xff]
  %v333 = vld [vmem:[%s1 + $0x60] sm:$0xff]
  %v334 = vld [vmem:[%s1 + $0x68] sm:$0xff]
  %v335 = vld [vmem:[%s1 + $0x70] sm:$0xff]
  %v336 = vld [vmem:[%s1 + $0x78] sm:$0xff]
  %v337 = vld [vmem:[%s1 + $0x80] sm:$0xff]
  %v338 = vld [vmem:[%s1 + $0x88] sm:$0xff]
  %v339 = vld [vmem:[%s1 + $0x90] sm:$0xff]
  %v340 = vld [vmem:[%s1 + $0x98] sm:$0xff]
  %v341 = vld [vmem:[%s1 + $0xa0] sm:$0xff]
  %v342 = vld [vmem:[%s1 + $0xa8] sm:$0xff]
  %v343 = vld [vmem:[%s1 + $0xb0] sm:$0xff]
  %v344 = vld [vmem:[%s1 + $0xb8] sm:$0xff]
  %v345 = vld [vmem:[%s1 + $0xc0] sm:$0xff]
  %v346 = vld [vmem:[%s1 + $0xc8] sm:$0xff]
  %v347 = vld [vmem:[%s1 + $0xd0] sm:$0xff]
  %v348 = vld [vmem:[%s1 + $0xd8] sm:$0xff]
  %v349 = vld [vmem:[%s1 + $0xe0] sm:$0xff]
  %v350 = vld [vmem:[%s1 + $0xe8] sm:$0xff]
  %v351 = vld [vmem:[%s1 + $0xf0] sm:$0xff]
  %v352 = vld [vmem:[%s1 + $0xf8] sm:$0xff]
  %v353 = vld [vmem:[%s1 + $0x100] sm:$0xff]
  %v354 = vld [vmem:[%s1 + $0x108] sm:$0xff]
  %v355 = vld [vmem:[%s1 + $0x110] sm:$0xff]
  %v356 = vld [vmem:[%s1 + $0x118] sm:$0xff]
  %v357 = vld [vmem:[%s1 + $0x120] sm:$0xff]
  %v358 = vld [vmem:[%s1 + $0x128] sm:$0xff]
  %v359 = vld [vmem:[%s1 + $0x130] sm:$0xff]
  %v360 = vld [vmem:[%s1 + $0x138] sm:$0xff]
  %v361 = vld [vmem:[%s1 + $0x140] sm:$0xff]
  %v362 = vld [vmem:[%s1 + $0x148] sm:$0xff]
  %v363 = vld [vmem:[%s1 + $0x150] sm:$0xff]
  %v364 = vld [vmem:[%s1 + $0x158] sm:$0xff]
  %v365 = vld [vmem:[%s1 + $0x160] sm:$0xff]
  %v366 = vld [vmem:[%s1 + $0x168] sm:$0xff]
  %v367 = vld [vmem:[%s1 + $0x170] sm:$0xff]
  %v368 = vld [vmem:[%s1 + $0x178] sm:$0xff]
  %v369 = vld [vmem:[%s1 + $0x180] sm:$0xff]
  %v370 = vld [vmem:[%s1 + $0x188] sm:$0xff]
  %v371 = vld [vmem:[%s1 + $0x190] sm:$0xff]
  %v372 = vld [vmem:[%s1 + $0x198] sm:$0xff]
  %v373 = vld [vmem:[%s1 + $0x1a0] sm:$0xff]
  %v374 = vld [vmem:[%s1 + $0x1a8] sm:$0xff]
  %v375 = vld [vmem:[%s1 + $0x1b0] sm:$0xff]
  %v376 = vld [vmem:[%s1 + $0x1b8] sm:$0xff]
  %v377 = vld [vmem:[%s1 + $0x1c0] sm:$0xff]
  %v378 = vld [vmem:[%s1 + $0x1c8] sm:$0xff]
  %v379 = vld [vmem:[%s1 + $0x1d0] sm:$0xff]
  %v380 = vld [vmem:[%s1 + $0x1d8] sm:$0xff]
  %v381 = vld [vmem:[%s1 + $0x1e0] sm:$0xff]
  %v382 = vld [vmem:[%s1 + $0x1e8] sm:$0xff]
  %v383 = vld [vmem:[%s1 + $0x1f0] sm:$0xff]
  %v384 = vld [vmem:[%s1 + $0x1f8] sm:$0xff]
  %v385 = vld [vmem:[%s1 + $0x200] sm:$0xff]
  %v386 = vld [vmem:[%s1 + $0x208] sm:$0xff]
  %v387 = vld [vmem:[%s1 + $0x210] sm:$0xff]
  %v388 = vld [vmem:[%s1 + $0x218] sm:$0xff]
  %v389 = vld [vmem:[%s1 + $0x220] sm:$0xff]
  %391 = vset.pattern.permute.xlu0 0
  %392 = vperm.xlu0 %391, %v324
  %v393 = vpop.permute.xlu0 %392
  %396 = vset.pattern.permute.xlu0 0
  %397 = vperm.xlu0 %396, %v325
  %v398 = vpop.permute.xlu0 %397
  %401 = vset.pattern.permute.xlu0 0
  %402 = vperm.xlu0 %401, %v326
  %v403 = vpop.permute.xlu0 %402
  %406 = vset.pattern.permute.xlu0 0
  %407 = vperm.xlu0 %406, %v327
  %v408 = vpop.permute.xlu0 %407
  %411 = vset.pattern.permute.xlu0 0
  %412 = vperm.xlu0 %411, %v328
  %v413 = vpop.permute.xlu0 %412
  %416 = vset.pattern.permute.xlu0 0
  %417 = vperm.xlu0 %416, %v329
  %v418 = vpop.permute.xlu0 %417
  %421 = vset.pattern.permute.xlu0 0
  %422 = vperm.xlu0 %421, %v330
  %v423 = vpop.permute.xlu0 %422
  %426 = vset.pattern.permute.xlu0 0
  %427 = vperm.xlu0 %426, %v331
  %v428 = vpop.permute.xlu0 %427
  %431 = vset.pattern.permute.xlu0 0
  %432 = vperm.xlu0 %431, %v332
  %v433 = vpop.permute.xlu0 %432
  %436 = vset.pattern.permute.xlu0 0
  %437 = vperm.xlu0 %436, %v333
  %v438 = vpop.permute.xlu0 %437
  %441 = vset.pattern.permute.xlu0 0
  %442 = vperm.xlu0 %441, %v334
  %v443 = vpop.permute.xlu0 %442
  %446 = vset.pattern.permute.xlu0 0
  %447 = vperm.xlu0 %446, %v335
  %v448 = vpop.permute.xlu0 %447
  %451 = vset.pattern.permute.xlu0 0
  %452 = vperm.xlu0 %451, %v336
  %v453 = vpop.permute.xlu0 %452
  %456 = vset.pattern.permute.xlu0 0
  %457 = vperm.xlu0 %456, %v337
  %v458 = vpop.permute.xlu0 %457
  %461 = vset.pattern.permute.xlu0 0
  %462 = vperm.xlu0 %461, %v338
  %v463 = vpop.permute.xlu0 %462
  %466 = vset.pattern.permute.xlu0 0
  %467 = vperm.xlu0 %466, %v339
  %v468 = vpop.permute.xlu0 %467
  %471 = vset.pattern.permute.xlu0 0
  %472 = vperm.xlu0 %471, %v340
  %v473 = vpop.permute.xlu0 %472
  %476 = vset.pattern.permute.xlu0 0
  %477 = vperm.xlu0 %476, %v341
  %v478 = vpop.permute.xlu0 %477
  %481 = vset.pattern.permute.xlu0 0
  %482 = vperm.xlu0 %481, %v342
  %v483 = vpop.permute.xlu0 %482
  %486 = vset.pattern.permute.xlu0 0
  %487 = vperm.xlu0 %486, %v343
  %v488 = vpop.permute.xlu0 %487
  %491 = vset.pattern.permute.xlu0 0
  %492 = vperm.xlu0 %491, %v344
  %v493 = vpop.permute.xlu0 %492
  %496 = vset.pattern.permute.xlu0 0
  %497 = vperm.xlu0 %496, %v345
  %v498 = vpop.permute.xlu0 %497
  %501 = vset.pattern.permute.xlu0 0
  %502 = vperm.xlu0 %501, %v346
  %v503 = vpop.permute.xlu0 %502
  %506 = vset.pattern.permute.xlu0 0
  %507 = vperm.xlu0 %506, %v347
  %v508 = vpop.permute.xlu0 %507
  %511 = vset.pattern.permute.xlu0 0
  %512 = vperm.xlu0 %511, %v348
  %v513 = vpop.permute.xlu0 %512
  %516 = vset.pattern.permute.xlu0 0
  %517 = vperm.xlu0 %516, %v349
  %v518 = vpop.permute.xlu0 %517
  %521 = vset.pattern.permute.xlu0 0
  %522 = vperm.xlu0 %521, %v350
  %v523 = vpop.permute.xlu0 %522
  %526 = vset.pattern.permute.xlu0 0
  %527 = vperm.xlu0 %526, %v351
  %v528 = vpop.permute.xlu0 %527
  %531 = vset.pattern.permute.xlu0 0
  %532 = vperm.xlu0 %531, %v352
  %v533 = vpop.permute.xlu0 %532
  %536 = vset.pattern.permute.xlu0 0
  %537 = vperm.xlu0 %536, %v353
  %v538 = vpop.permute.xlu0 %537
  %541 = vset.pattern.permute.xlu0 0
  %542 = vperm.xlu0 %541, %v354
  %v543 = vpop.permute.xlu0 %542
  %546 = vset.pattern.permute.xlu0 0
  %547 = vperm.xlu0 %546, %v355
  %v548 = vpop.permute.xlu0 %547
  %551 = vset.pattern.permute.xlu0 0
  %552 = vperm.xlu0 %551, %v356
  %v553 = vpop.permute.xlu0 %552
  %556 = vset.pattern.permute.xlu0 0
  %557 = vperm.xlu0 %556, %v357
  %v558 = vpop.permute.xlu0 %557
  %561 = vset.pattern.permute.xlu0 0
  %562 = vperm.xlu0 %561, %v358
  %v563 = vpop.permute.xlu0 %562
  %566 = vset.pattern.permute.xlu0 0
  %567 = vperm.xlu0 %566, %v359
  %v568 = vpop.permute.xlu0 %567
  %571 = vset.pattern.permute.xlu0 0
  %572 = vperm.xlu0 %571, %v360
  %v573 = vpop.permute.xlu0 %572
  %576 = vset.pattern.permute.xlu0 0
  %577 = vperm.xlu0 %576, %v361
  %v578 = vpop.permute.xlu0 %577
  %581 = vset.pattern.permute.xlu0 0
  %582 = vperm.xlu0 %581, %v362
  %v583 = vpop.permute.xlu0 %582
  %586 = vset.pattern.permute.xlu0 0
  %587 = vperm.xlu0 %586, %v363
  %v588 = vpop.permute.xlu0 %587
  %591 = vset.pattern.permute.xlu0 0
  %592 = vperm.xlu0 %591, %v364
  %v593 = vpop.permute.xlu0 %592
  %596 = vset.pattern.permute.xlu0 0
  %597 = vperm.xlu0 %596, %v365
  %v598 = vpop.permute.xlu0 %597
  %601 = vset.pattern.permute.xlu0 0
  %602 = vperm.xlu0 %601, %v366
  %v603 = vpop.permute.xlu0 %602
  %606 = vset.pattern.permute.xlu0 0
  %607 = vperm.xlu0 %606, %v367
  %v608 = vpop.permute.xlu0 %607
  %611 = vset.pattern.permute.xlu0 0
  %612 = vperm.xlu0 %611, %v368
  %v613 = vpop.permute.xlu0 %612
  %616 = vset.pattern.permute.xlu0 0
  %617 = vperm.xlu0 %616, %v369
  %v618 = vpop.permute.xlu0 %617
  %621 = vset.pattern.permute.xlu0 0
  %622 = vperm.xlu0 %621, %v370
  %v623 = vpop.permute.xlu0 %622
  %626 = vset.pattern.permute.xlu0 0
  %627 = vperm.xlu0 %626, %v371
  %v628 = vpop.permute.xlu0 %627
  %631 = vset.pattern.permute.xlu0 0
  %632 = vperm.xlu0 %631, %v372
  %v633 = vpop.permute.xlu0 %632
  %636 = vset.pattern.permute.xlu0 0
  %637 = vperm.xlu0 %636, %v373
  %v638 = vpop.permute.xlu0 %637
  %641 = vset.pattern.permute.xlu0 0
  %642 = vperm.xlu0 %641, %v374
  %v643 = vpop.permute.xlu0 %642
  %646 = vset.pattern.permute.xlu0 0
  %647 = vperm.xlu0 %646, %v375
  %v648 = vpop.permute.xlu0 %647
  %651 = vset.pattern.permute.xlu0 0
  %652 = vperm.xlu0 %651, %v376
  %v653 = vpop.permute.xlu0 %652
  %656 = vset.pattern.permute.xlu0 0
  %657 = vperm.xlu0 %656, %v377
  %v658 = vpop.permute.xlu0 %657
  %661 = vset.pattern.permute.xlu0 0
  %662 = vperm.xlu0 %661, %v378
  %v663 = vpop.permute.xlu0 %662
  %666 = vset.pattern.permute.xlu0 0
  %667 = vperm.xlu0 %666, %v379
  %v668 = vpop.permute.xlu0 %667
  %671 = vset.pattern.permute.xlu0 0
  %672 = vperm.xlu0 %671, %v380
  %v673 = vpop.permute.xlu0 %672
  %676 = vset.pattern.permute.xlu0 0
  %677 = vperm.xlu0 %676, %v381
  %v678 = vpop.permute.xlu0 %677
  %681 = vset.pattern.permute.xlu0 0
  %682 = vperm.xlu0 %681, %v382
  %v683 = vpop.permute.xlu0 %682
  %686 = vset.pattern.permute.xlu0 0
  %687 = vperm.xlu0 %686, %v383
  %v688 = vpop.permute.xlu0 %687
  %691 = vset.pattern.permute.xlu0 0
  %692 = vperm.xlu0 %691, %v384
  %v693 = vpop.permute.xlu0 %692
  %696 = vset.pattern.permute.xlu0 0
  %697 = vperm.xlu0 %696, %v385
  %v698 = vpop.permute.xlu0 %697
  %701 = vset.pattern.permute.xlu0 0
  %702 = vperm.xlu0 %701, %v386
  %v703 = vpop.permute.xlu0 %702
  %706 = vset.pattern.permute.xlu0 0
  %707 = vperm.xlu0 %706, %v387
  %v708 = vpop.permute.xlu0 %707
  %711 = vset.pattern.permute.xlu0 0
  %712 = vperm.xlu0 %711, %v388
  %v713 = vpop.permute.xlu0 %712
  %716 = vset.pattern.permute.xlu0 0
  %717 = vperm.xlu0 %716, %v389
  %v718 = vpop.permute.xlu0 %717
  %v720 = vmul.f32 %v192, %v393
  %v721 = vmul.f32 %v193, %v398
  %v722 = vmul.f32 %v194, %v403
  %v723 = vmul.f32 %v195, %v408
  %v724 = vmul.f32 %v196, %v413
  %v725 = vmul.f32 %v197, %v418
  %v726 = vmul.f32 %v198, %v423
  %v727 = vmul.f32 %v199, %v428
  %v728 = vmul.f32 %v200, %v433
  %v729 = vmul.f32 %v201, %v438
  %v730 = vmul.f32 %v202, %v443
  %v731 = vmul.f32 %v203, %v448
  %v732 = vmul.f32 %v204, %v453
  %v733 = vmul.f32 %v205, %v458
  %v734 = vmul.f32 %v206, %v463
  %v735 = vmul.f32 %v207, %v468
  %v736 = vmul.f32 %v208, %v473
  %v737 = vmul.f32 %v209, %v478
  %v738 = vmul.f32 %v210, %v483
  %v739 = vmul.f32 %v211, %v488
  %v740 = vmul.f32 %v212, %v493
  %v741 = vmul.f32 %v213, %v498
  %v742 = vmul.f32 %v214, %v503
  %v743 = vmul.f32 %v215, %v508
  %v744 = vmul.f32 %v216, %v513
  %v745 = vmul.f32 %v217, %v518
  %v746 = vmul.f32 %v218, %v523
  %v747 = vmul.f32 %v219, %v528
  %v748 = vmul.f32 %v220, %v533
  %v749 = vmul.f32 %v221, %v538
  %v750 = vmul.f32 %v222, %v543
  %v751 = vmul.f32 %v223, %v548
  %v752 = vmul.f32 %v224, %v553
  %v753 = vmul.f32 %v225, %v558
  %v754 = vmul.f32 %v226, %v563
  %v755 = vmul.f32 %v227, %v568
  %v756 = vmul.f32 %v228, %v573
  %v757 = vmul.f32 %v229, %v578
  %v758 = vmul.f32 %v230, %v583
  %v759 = vmul.f32 %v231, %v588
  %v760 = vmul.f32 %v232, %v593
  %v761 = vmul.f32 %v233, %v598
  %v762 = vmul.f32 %v234, %v603
  %v763 = vmul.f32 %v235, %v608
  %v764 = vmul.f32 %v236, %v613
  %v765 = vmul.f32 %v237, %v618
  %v766 = vmul.f32 %v238, %v623
  %v767 = vmul.f32 %v239, %v628
  %v768 = vmul.f32 %v240, %v633
  %v769 = vmul.f32 %v241, %v638
  %v770 = vmul.f32 %v242, %v643
  %v771 = vmul.f32 %v243, %v648
  %v772 = vmul.f32 %v244, %v653
  %v773 = vmul.f32 %v245, %v658
  %v774 = vmul.f32 %v246, %v663
  %v775 = vmul.f32 %v247, %v668
  %v776 = vmul.f32 %v248, %v673
  %v777 = vmul.f32 %v249, %v678
  %v778 = vmul.f32 %v250, %v683
  %v779 = vmul.f32 %v251, %v688
  %v780 = vmul.f32 %v252, %v693
  %v781 = vmul.f32 %v253, %v698
  %v782 = vmul.f32 %v254, %v703
  %v783 = vmul.f32 %v255, %v708
  %v784 = vmul.f32 %v256, %v713
  %v785 = vmul.f32 %v257, %v718
  %v786 = vmul.f32 %v258, %v393
  %v787 = vmul.f32 %v259, %v398
  %v788 = vmul.f32 %v260, %v403
  %v789 = vmul.f32 %v261, %v408
  %v790 = vmul.f32 %v262, %v413
  %v791 = vmul.f32 %v263, %v418
  %v792 = vmul.f32 %v264, %v423
  %v793 = vmul.f32 %v265, %v428
  %v794 = vmul.f32 %v266, %v433
  %v795 = vmul.f32 %v267, %v438
  %v796 = vmul.f32 %v268, %v443
  %v797 = vmul.f32 %v269, %v448
  %v798 = vmul.f32 %v270, %v453
  %v799 = vmul.f32 %v271, %v458
  %v800 = vmul.f32 %v272, %v463
  %v801 = vmul.f32 %v273, %v468
  %v802 = vmul.f32 %v274, %v473
  %v803 = vmul.f32 %v275, %v478
  %v804 = vmul.f32 %v276, %v483
  %v805 = vmul.f32 %v277, %v488
  %v806 = vmul.f32 %v278, %v493
  %v807 = vmul.f32 %v279, %v498
  %v808 = vmul.f32 %v280, %v503
  %v809 = vmul.f32 %v281, %v508
  %v810 = vmul.f32 %v282, %v513
  %v811 = vmul.f32 %v283, %v518
  %v812 = vmul.f32 %v284, %v523
  %v813 = vmul.f32 %v285, %v528
  %v814 = vmul.f32 %v286, %v533
  %v815 = vmul.f32 %v287, %v538
  %v816 = vmul.f32 %v288, %v543
  %v817 = vmul.f32 %v289, %v548
  %v818 = vmul.f32 %v290, %v553
  %v819 = vmul.f32 %v291, %v558
  %v820 = vmul.f32 %v292, %v563
  %v821 = vmul.f32 %v293, %v568
  %v822 = vmul.f32 %v294, %v573
  %v823 = vmul.f32 %v295, %v578
  %v824 = vmul.f32 %v296, %v583
  %v825 = vmul.f32 %v297, %v588
  %v826 = vmul.f32 %v298, %v593
  %v827 = vmul.f32 %v299, %v598
  %v828 = vmul.f32 %v300, %v603
  %v829 = vmul.f32 %v301, %v608
  %v830 = vmul.f32 %v302, %v613
  %v831 = vmul.f32 %v303, %v618
  %v832 = vmul.f32 %v304, %v623
  %v833 = vmul.f32 %v305, %v628
  %v834 = vmul.f32 %v306, %v633
  %v835 = vmul.f32 %v307, %v638
  %v836 = vmul.f32 %v308, %v643
  %v837 = vmul.f32 %v309, %v648
  %v838 = vmul.f32 %v310, %v653
  %v839 = vmul.f32 %v311, %v658
  %v840 = vmul.f32 %v312, %v663
  %v841 = vmul.f32 %v313, %v668
  %v842 = vmul.f32 %v314, %v673
  %v843 = vmul.f32 %v315, %v678
  %v844 = vmul.f32 %v316, %v683
  %v845 = vmul.f32 %v317, %v688
  %v846 = vmul.f32 %v318, %v693
  %v847 = vmul.f32 %v319, %v698
  %v848 = vmul.f32 %v320, %v703
  %v849 = vmul.f32 %v321, %v708
  %v850 = vmul.f32 %v322, %v713
  %v851 = vmul.f32 %v323, %v718
  %v852 = vld [vmem:[%s2 + $0x18] sm:$0xff]
  %v853 = vld [vmem:[%s2 + $0x20] sm:$0xff]
  %v854 = vld [vmem:[%s2 + $0x28] sm:$0xff]
  %v855 = vld [vmem:[%s2 + $0x30] sm:$0xff]
  %v856 = vld [vmem:[%s2 + $0x38] sm:$0xff]
  %v857 = vld [vmem:[%s2 + $0x40] sm:$0xff]
  %v858 = vld [vmem:[%s2 + $0x48] sm:$0xff]
  %v859 = vld [vmem:[%s2 + $0x50] sm:$0xff]
  %v860 = vld [vmem:[%s2 + $0x58] sm:$0xff]
  %v861 = vld [vmem:[%s2 + $0x60] sm:$0xff]
  %v862 = vld [vmem:[%s2 + $0x68] sm:$0xff]
  %v863 = vld [vmem:[%s2 + $0x70] sm:$0xff]
  %v864 = vld [vmem:[%s2 + $0x78] sm:$0xff]
  %v865 = vld [vmem:[%s2 + $0x80] sm:$0xff]
  %v866 = vld [vmem:[%s2 + $0x88] sm:$0xff]
  %v867 = vld [vmem:[%s2 + $0x90] sm:$0xff]
  %v868 = vld [vmem:[%s2 + $0x98] sm:$0xff]
  %v869 = vld [vmem:[%s2 + $0xa0] sm:$0xff]
  %v870 = vld [vmem:[%s2 + $0xa8] sm:$0xff]
  %v871 = vld [vmem:[%s2 + $0xb0] sm:$0xff]
  %v872 = vld [vmem:[%s2 + $0xb8] sm:$0xff]
  %v873 = vld [vmem:[%s2 + $0xc0] sm:$0xff]
  %v874 = vld [vmem:[%s2 + $0xc8] sm:$0xff]
  %v875 = vld [vmem:[%s2 + $0xd0] sm:$0xff]
  %v876 = vld [vmem:[%s2 + $0xd8] sm:$0xff]
  %v877 = vld [vmem:[%s2 + $0xe0] sm:$0xff]
  %v878 = vld [vmem:[%s2 + $0xe8] sm:$0xff]
  %v879 = vld [vmem:[%s2 + $0xf0] sm:$0xff]
  %v880 = vld [vmem:[%s2 + $0xf8] sm:$0xff]
  %v881 = vld [vmem:[%s2 + $0x100] sm:$0xff]
  %v882 = vld [vmem:[%s2 + $0x108] sm:$0xff]
  %v883 = vld [vmem:[%s2 + $0x110] sm:$0xff]
  %v884 = vld [vmem:[%s2 + $0x118] sm:$0xff]
  %v885 = vld [vmem:[%s2 + $0x120] sm:$0xff]
  %v886 = vld [vmem:[%s2 + $0x128] sm:$0xff]
  %v887 = vld [vmem:[%s2 + $0x130] sm:$0xff]
  %v888 = vld [vmem:[%s2 + $0x138] sm:$0xff]
  %v889 = vld [vmem:[%s2 + $0x140] sm:$0xff]
  %v890 = vld [vmem:[%s2 + $0x148] sm:$0xff]
  %v891 = vld [vmem:[%s2 + $0x150] sm:$0xff]
  %v892 = vld [vmem:[%s2 + $0x158] sm:$0xff]
  %v893 = vld [vmem:[%s2 + $0x160] sm:$0xff]
  %v894 = vld [vmem:[%s2 + $0x168] sm:$0xff]
  %v895 = vld [vmem:[%s2 + $0x170] sm:$0xff]
  %v896 = vld [vmem:[%s2 + $0x178] sm:$0xff]
  %v897 = vld [vmem:[%s2 + $0x180] sm:$0xff]
  %v898 = vld [vmem:[%s2 + $0x188] sm:$0xff]
  %v899 = vld [vmem:[%s2 + $0x190] sm:$0xff]
  %v900 = vld [vmem:[%s2 + $0x198] sm:$0xff]
  %v901 = vld [vmem:[%s2 + $0x1a0] sm:$0xff]
  %v902 = vld [vmem:[%s2 + $0x1a8] sm:$0xff]
  %v903 = vld [vmem:[%s2 + $0x1b0] sm:$0xff]
  %v904 = vld [vmem:[%s2 + $0x1b8] sm:$0xff]
  %v905 = vld [vmem:[%s2 + $0x1c0] sm:$0xff]
  %v906 = vld [vmem:[%s2 + $0x1c8] sm:$0xff]
  %v907 = vld [vmem:[%s2 + $0x1d0] sm:$0xff]
  %v908 = vld [vmem:[%s2 + $0x1d8] sm:$0xff]
  %v909 = vld [vmem:[%s2 + $0x1e0] sm:$0xff]
  %v910 = vld [vmem:[%s2 + $0x1e8] sm:$0xff]
  %v911 = vld [vmem:[%s2 + $0x1f0] sm:$0xff]
  %v912 = vld [vmem:[%s2 + $0x1f8] sm:$0xff]
  %v913 = vld [vmem:[%s2 + $0x200] sm:$0xff]
  %v914 = vld [vmem:[%s2 + $0x208] sm:$0xff]
  %v915 = vld [vmem:[%s2 + $0x210] sm:$0xff]
  %v916 = vld [vmem:[%s2 + $0x218] sm:$0xff]
  %v917 = vld [vmem:[%s2 + $0x220] sm:$0xff]
  %919 = vset.pattern.permute.xlu0 0
  %920 = vperm.xlu0 %919, %v852
  %v921 = vpop.permute.xlu0 %920
  %924 = vset.pattern.permute.xlu0 0
  %925 = vperm.xlu0 %924, %v853
  %v926 = vpop.permute.xlu0 %925
  %929 = vset.pattern.permute.xlu0 0
  %930 = vperm.xlu0 %929, %v854
  %v931 = vpop.permute.xlu0 %930
  %934 = vset.pattern.permute.xlu0 0
  %935 = vperm.xlu0 %934, %v855
  %v936 = vpop.permute.xlu0 %935
  %939 = vset.pattern.permute.xlu0 0
  %940 = vperm.xlu0 %939, %v856
  %v941 = vpop.permute.xlu0 %940
  %944 = vset.pattern.permute.xlu0 0
  %945 = vperm.xlu0 %944, %v857
  %v946 = vpop.permute.xlu0 %945
  %949 = vset.pattern.permute.xlu0 0
  %950 = vperm.xlu0 %949, %v858
  %v951 = vpop.permute.xlu0 %950
  %954 = vset.pattern.permute.xlu0 0
  %955 = vperm.xlu0 %954, %v859
  %v956 = vpop.permute.xlu0 %955
  %959 = vset.pattern.permute.xlu0 0
  %960 = vperm.xlu0 %959, %v860
  %v961 = vpop.permute.xlu0 %960
  %964 = vset.pattern.permute.xlu0 0
  %965 = vperm.xlu0 %964, %v861
  %v966 = vpop.permute.xlu0 %965
  %969 = vset.pattern.permute.xlu0 0
  %970 = vperm.xlu0 %969, %v862
  %v971 = vpop.permute.xlu0 %970
  %974 = vset.pattern.permute.xlu0 0
  %975 = vperm.xlu0 %974, %v863
  %v976 = vpop.permute.xlu0 %975
  %979 = vset.pattern.permute.xlu0 0
  %980 = vperm.xlu0 %979, %v864
  %v981 = vpop.permute.xlu0 %980
  %984 = vset.pattern.permute.xlu0 0
  %985 = vperm.xlu0 %984, %v865
  %v986 = vpop.permute.xlu0 %985
  %989 = vset.pattern.permute.xlu0 0
  %990 = vperm.xlu0 %989, %v866
  %v991 = vpop.permute.xlu0 %990
  %994 = vset.pattern.permute.xlu0 0
  %995 = vperm.xlu0 %994, %v867
  %v996 = vpop.permute.xlu0 %995
  %999 = vset.pattern.permute.xlu0 0
  %1000 = vperm.xlu0 %999, %v868
  %v1001 = vpop.permute.xlu0 %1000
  %1004 = vset.pattern.permute.xlu0 0
  %1005 = vperm.xlu0 %1004, %v869
  %v1006 = vpop.permute.xlu0 %1005
  %1009 = vset.pattern.permute.xlu0 0
  %1010 = vperm.xlu0 %1009, %v870
  %v1011 = vpop.permute.xlu0 %1010
  %1014 = vset.pattern.permute.xlu0 0
  %1015 = vperm.xlu0 %1014, %v871
  %v1016 = vpop.permute.xlu0 %1015
  %1019 = vset.pattern.permute.xlu0 0
  %1020 = vperm.xlu0 %1019, %v872
  %v1021 = vpop.permute.xlu0 %1020
  %1024 = vset.pattern.permute.xlu0 0
  %1025 = vperm.xlu0 %1024, %v873
  %v1026 = vpop.permute.xlu0 %1025
  %1029 = vset.pattern.permute.xlu0 0
  %1030 = vperm.xlu0 %1029, %v874
  %v1031 = vpop.permute.xlu0 %1030
  %1034 = vset.pattern.permute.xlu0 0
  %1035 = vperm.xlu0 %1034, %v875
  %v1036 = vpop.permute.xlu0 %1035
  %1039 = vset.pattern.permute.xlu0 0
  %1040 = vperm.xlu0 %1039, %v876
  %v1041 = vpop.permute.xlu0 %1040
  %1044 = vset.pattern.permute.xlu0 0
  %1045 = vperm.xlu0 %1044, %v877
  %v1046 = vpop.permute.xlu0 %1045
  %1049 = vset.pattern.permute.xlu0 0
  %1050 = vperm.xlu0 %1049, %v878
  %v1051 = vpop.permute.xlu0 %1050
  %1054 = vset.pattern.permute.xlu0 0
  %1055 = vperm.xlu0 %1054, %v879
  %v1056 = vpop.permute.xlu0 %1055
  %1059 = vset.pattern.permute.xlu0 0
  %1060 = vperm.xlu0 %1059, %v880
  %v1061 = vpop.permute.xlu0 %1060
  %1064 = vset.pattern.permute.xlu0 0
  %1065 = vperm.xlu0 %1064, %v881
  %v1066 = vpop.permute.xlu0 %1065
  %1069 = vset.pattern.permute.xlu0 0
  %1070 = vperm.xlu0 %1069, %v882
  %v1071 = vpop.permute.xlu0 %1070
  %1074 = vset.pattern.permute.xlu0 0
  %1075 = vperm.xlu0 %1074, %v883
  %v1076 = vpop.permute.xlu0 %1075
  %1079 = vset.pattern.permute.xlu0 0
  %1080 = vperm.xlu0 %1079, %v884
  %v1081 = vpop.permute.xlu0 %1080
  %1084 = vset.pattern.permute.xlu0 0
  %1085 = vperm.xlu0 %1084, %v885
  %v1086 = vpop.permute.xlu0 %1085
  %1089 = vset.pattern.permute.xlu0 0
  %1090 = vperm.xlu0 %1089, %v886
  %v1091 = vpop.permute.xlu0 %1090
  %1094 = vset.pattern.permute.xlu0 0
  %1095 = vperm.xlu0 %1094, %v887
  %v1096 = vpop.permute.xlu0 %1095
  %1099 = vset.pattern.permute.xlu0 0
  %1100 = vperm.xlu0 %1099, %v888
  %v1101 = vpop.permute.xlu0 %1100
  %1104 = vset.pattern.permute.xlu0 0
  %1105 = vperm.xlu0 %1104, %v889
  %v1106 = vpop.permute.xlu0 %1105
  %1109 = vset.pattern.permute.xlu0 0
  %1110 = vperm.xlu0 %1109, %v890
  %v1111 = vpop.permute.xlu0 %1110
  %1114 = vset.pattern.permute.xlu0 0
  %1115 = vperm.xlu0 %1114, %v891
  %v1116 = vpop.permute.xlu0 %1115
  %1119 = vset.pattern.permute.xlu0 0
  %1120 = vperm.xlu0 %1119, %v892
  %v1121 = vpop.permute.xlu0 %1120
  %1124 = vset.pattern.permute.xlu0 0
  %1125 = vperm.xlu0 %1124, %v893
  %v1126 = vpop.permute.xlu0 %1125
  %1129 = vset.pattern.permute.xlu0 0
  %1130 = vperm.xlu0 %1129, %v894
  %v1131 = vpop.permute.xlu0 %1130
  %1134 = vset.pattern.permute.xlu0 0
  %1135 = vperm.xlu0 %1134, %v895
  %v1136 = vpop.permute.xlu0 %1135
  %1139 = vset.pattern.permute.xlu0 0
  %1140 = vperm.xlu0 %1139, %v896
  %v1141 = vpop.permute.xlu0 %1140
  %1144 = vset.pattern.permute.xlu0 0
  %1145 = vperm.xlu0 %1144, %v897
  %v1146 = vpop.permute.xlu0 %1145
  %1149 = vset.pattern.permute.xlu0 0
  %1150 = vperm.xlu0 %1149, %v898
  %v1151 = vpop.permute.xlu0 %1150
  %1154 = vset.pattern.permute.xlu0 0
  %1155 = vperm.xlu0 %1154, %v899
  %v1156 = vpop.permute.xlu0 %1155
  %1159 = vset.pattern.permute.xlu0 0
  %1160 = vperm.xlu0 %1159, %v900
  %v1161 = vpop.permute.xlu0 %1160
  %1164 = vset.pattern.permute.xlu0 0
  %1165 = vperm.xlu0 %1164, %v901
  %v1166 = vpop.permute.xlu0 %1165
  %1169 = vset.pattern.permute.xlu0 0
  %1170 = vperm.xlu0 %1169, %v902
  %v1171 = vpop.permute.xlu0 %1170
  %1174 = vset.pattern.permute.xlu0 0
  %1175 = vperm.xlu0 %1174, %v903
  %v1176 = vpop.permute.xlu0 %1175
  %1179 = vset.pattern.permute.xlu0 0
  %1180 = vperm.xlu0 %1179, %v904
  %v1181 = vpop.permute.xlu0 %1180
  %1184 = vset.pattern.permute.xlu0 0
  %1185 = vperm.xlu0 %1184, %v905
  %v1186 = vpop.permute.xlu0 %1185
  %1189 = vset.pattern.permute.xlu0 0
  %1190 = vperm.xlu0 %1189, %v906
  %v1191 = vpop.permute.xlu0 %1190
  %1194 = vset.pattern.permute.xlu0 0
  %1195 = vperm.xlu0 %1194, %v907
  %v1196 = vpop.permute.xlu0 %1195
  %1199 = vset.pattern.permute.xlu0 0
  %1200 = vperm.xlu0 %1199, %v908
  %v1201 = vpop.permute.xlu0 %1200
  %1204 = vset.pattern.permute.xlu0 0
  %1205 = vperm.xlu0 %1204, %v909
  %v1206 = vpop.permute.xlu0 %1205
  %1209 = vset.pattern.permute.xlu0 0
  %1210 = vperm.xlu0 %1209, %v910
  %v1211 = vpop.permute.xlu0 %1210
  %1214 = vset.pattern.permute.xlu0 0
  %1215 = vperm.xlu0 %1214, %v911
  %v1216 = vpop.permute.xlu0 %1215
  %1219 = vset.pattern.permute.xlu0 0
  %1220 = vperm.xlu0 %1219, %v912
  %v1221 = vpop.permute.xlu0 %1220
  %1224 = vset.pattern.permute.xlu0 0
  %1225 = vperm.xlu0 %1224, %v913
  %v1226 = vpop.permute.xlu0 %1225
  %1229 = vset.pattern.permute.xlu0 0
  %1230 = vperm.xlu0 %1229, %v914
  %v1231 = vpop.permute.xlu0 %1230
  %1234 = vset.pattern.permute.xlu0 0
  %1235 = vperm.xlu0 %1234, %v915
  %v1236 = vpop.permute.xlu0 %1235
  %1239 = vset.pattern.permute.xlu0 0
  %1240 = vperm.xlu0 %1239, %v916
  %v1241 = vpop.permute.xlu0 %1240
  %1244 = vset.pattern.permute.xlu0 0
  %1245 = vperm.xlu0 %1244, %v917
  %v1246 = vpop.permute.xlu0 %1245
  %v1248 = vmul.f32 %v720, %v921
  %v1249 = vmul.f32 %v721, %v926
  %v1250 = vmul.f32 %v722, %v931
  %v1251 = vmul.f32 %v723, %v936
  %v1252 = vmul.f32 %v724, %v941
  %v1253 = vmul.f32 %v725, %v946
  %v1254 = vmul.f32 %v726, %v951
  %v1255 = vmul.f32 %v727, %v956
  %v1256 = vmul.f32 %v728, %v961
  %v1257 = vmul.f32 %v729, %v966
  %v1258 = vmul.f32 %v730, %v971
  %v1259 = vmul.f32 %v731, %v976
  %v1260 = vmul.f32 %v732, %v981
  %v1261 = vmul.f32 %v733, %v986
  %v1262 = vmul.f32 %v734, %v991
  %v1263 = vmul.f32 %v735, %v996
  %v1264 = vmul.f32 %v736, %v1001
  %v1265 = vmul.f32 %v737, %v1006
  %v1266 = vmul.f32 %v738, %v1011
  %v1267 = vmul.f32 %v739, %v1016
  %v1268 = vmul.f32 %v740, %v1021
  %v1269 = vmul.f32 %v741, %v1026
  %v1270 = vmul.f32 %v742, %v1031
  %v1271 = vmul.f32 %v743, %v1036
  %v1272 = vmul.f32 %v744, %v1041
  %v1273 = vmul.f32 %v745, %v1046
  %v1274 = vmul.f32 %v746, %v1051
  %v1275 = vmul.f32 %v747, %v1056
  %v1276 = vmul.f32 %v748, %v1061
  %v1277 = vmul.f32 %v749, %v1066
  %v1278 = vmul.f32 %v750, %v1071
  %v1279 = vmul.f32 %v751, %v1076
  %v1280 = vmul.f32 %v752, %v1081
  %v1281 = vmul.f32 %v753, %v1086
  %v1282 = vmul.f32 %v754, %v1091
  %v1283 = vmul.f32 %v755, %v1096
  %v1284 = vmul.f32 %v756, %v1101
  %v1285 = vmul.f32 %v757, %v1106
  %v1286 = vmul.f32 %v758, %v1111
  %v1287 = vmul.f32 %v759, %v1116
  %v1288 = vmul.f32 %v760, %v1121
  %v1289 = vmul.f32 %v761, %v1126
  %v1290 = vmul.f32 %v762, %v1131
  %v1291 = vmul.f32 %v763, %v1136
  %v1292 = vmul.f32 %v764, %v1141
  %v1293 = vmul.f32 %v765, %v1146
  %v1294 = vmul.f32 %v766, %v1151
  %v1295 = vmul.f32 %v767, %v1156
  %v1296 = vmul.f32 %v768, %v1161
  %v1297 = vmul.f32 %v769, %v1166
  %v1298 = vmul.f32 %v770, %v1171
  %v1299 = vmul.f32 %v771, %v1176
  %v1300 = vmul.f32 %v772, %v1181
  %v1301 = vmul.f32 %v773, %v1186
  %v1302 = vmul.f32 %v774, %v1191
  %v1303 = vmul.f32 %v775, %v1196
  %v1304 = vmul.f32 %v776, %v1201
  %v1305 = vmul.f32 %v777, %v1206
  %v1306 = vmul.f32 %v778, %v1211
  %v1307 = vmul.f32 %v779, %v1216
  %v1308 = vmul.f32 %v780, %v1221
  %v1309 = vmul.f32 %v781, %v1226
  %v1310 = vmul.f32 %v782, %v1231
  %v1311 = vmul.f32 %v783, %v1236
  %v1312 = vmul.f32 %v784, %v1241
  %v1313 = vmul.f32 %v785, %v1246
  %v1314 = vmul.f32 %v786, %v921
  %v1315 = vmul.f32 %v787, %v926
  %v1316 = vmul.f32 %v788, %v931
  %v1317 = vmul.f32 %v789, %v936
  %v1318 = vmul.f32 %v790, %v941
  %v1319 = vmul.f32 %v791, %v946
  %v1320 = vmul.f32 %v792, %v951
  %v1321 = vmul.f32 %v793, %v956
  %v1322 = vmul.f32 %v794, %v961
  %v1323 = vmul.f32 %v795, %v966
  %v1324 = vmul.f32 %v796, %v971
  %v1325 = vmul.f32 %v797, %v976
  %v1326 = vmul.f32 %v798, %v981
  %v1327 = vmul.f32 %v799, %v986
  %v1328 = vmul.f32 %v800, %v991
  %v1329 = vmul.f32 %v801, %v996
  %v1330 = vmul.f32 %v802, %v1001
  %v1331 = vmul.f32 %v803, %v1006
  %v1332 = vmul.f32 %v804, %v1011
  %v1333 = vmul.f32 %v805, %v1016
  %v1334 = vmul.f32 %v806, %v1021
  %v1335 = vmul.f32 %v807, %v1026
  %v1336 = vmul.f32 %v808, %v1031
  %v1337 = vmul.f32 %v809, %v1036
  %v1338 = vmul.f32 %v810, %v1041
  %v1339 = vmul.f32 %v811, %v1046
  %v1340 = vmul.f32 %v812, %v1051
  %v1341 = vmul.f32 %v813, %v1056
  %v1342 = vmul.f32 %v814, %v1061
  %v1343 = vmul.f32 %v815, %v1066
  %v1344 = vmul.f32 %v816, %v1071
  %v1345 = vmul.f32 %v817, %v1076
  %v1346 = vmul.f32 %v818, %v1081
  %v1347 = vmul.f32 %v819, %v1086
  %v1348 = vmul.f32 %v820, %v1091
  %v1349 = vmul.f32 %v821, %v1096
  %v1350 = vmul.f32 %v822, %v1101
  %v1351 = vmul.f32 %v823, %v1106
  %v1352 = vmul.f32 %v824, %v1111
  %v1353 = vmul.f32 %v825, %v1116
  %v1354 = vmul.f32 %v826, %v1121
  %v1355 = vmul.f32 %v827, %v1126
  %v1356 = vmul.f32 %v828, %v1131
  %v1357 = vmul.f32 %v829, %v1136
  %v1358 = vmul.f32 %v830, %v1141
  %v1359 = vmul.f32 %v831, %v1146
  %v1360 = vmul.f32 %v832, %v1151
  %v1361 = vmul.f32 %v833, %v1156
  %v1362 = vmul.f32 %v834, %v1161
  %v1363 = vmul.f32 %v835, %v1166
  %v1364 = vmul.f32 %v836, %v1171
  %v1365 = vmul.f32 %v837, %v1176
  %v1366 = vmul.f32 %v838, %v1181
  %v1367 = vmul.f32 %v839, %v1186
  %v1368 = vmul.f32 %v840, %v1191
  %v1369 = vmul.f32 %v841, %v1196
  %v1370 = vmul.f32 %v842, %v1201
  %v1371 = vmul.f32 %v843, %v1206
  %v1372 = vmul.f32 %v844, %v1211
  %v1373 = vmul.f32 %v845, %v1216
  %v1374 = vmul.f32 %v846, %v1221
  %v1375 = vmul.f32 %v847, %v1226
  %v1376 = vmul.f32 %v848, %v1231
  %v1377 = vmul.f32 %v849, %v1236
  %v1378 = vmul.f32 %v850, %v1241
  %v1379 = vmul.f32 %v851, %v1246
  %vm1500 = vcmask 1040384
  %v1501 = vrot.slane %v1248, 7
  %v1502 = vrot.slane %v1249, 7
  %v1503 = vsel %vm1500, %v1501, %v1502
  %v1504 = vrot.slane %v1250, 7
  %v1505 = vsel %vm1500, %v1502, %v1504
  %v1506 = vrot.slane %v1251, 7
  %v1507 = vrot.slane %v1252, 7
  %v1508 = vsel %vm1500, %v1506, %v1507
  %v1509 = vrot.slane %v1253, 7
  %v1510 = vsel %vm1500, %v1507, %v1509
  %v1511 = vrot.slane %v1254, 7
  %v1512 = vrot.slane %v1255, 7
  %v1513 = vsel %vm1500, %v1511, %v1512
  %v1514 = vrot.slane %v1256, 7
  %v1515 = vsel %vm1500, %v1512, %v1514
  %v1516 = vrot.slane %v1257, 7
  %v1517 = vrot.slane %v1258, 7
  %v1518 = vsel %vm1500, %v1516, %v1517
  %v1519 = vrot.slane %v1259, 7
  %v1520 = vsel %vm1500, %v1517, %v1519
  %v1521 = vrot.slane %v1260, 7
  %v1522 = vrot.slane %v1261, 7
  %v1523 = vsel %vm1500, %v1521, %v1522
  %v1524 = vrot.slane %v1262, 7
  %v1525 = vsel %vm1500, %v1522, %v1524
  %v1526 = vrot.slane %v1263, 7
  %v1527 = vrot.slane %v1264, 7
  %v1528 = vsel %vm1500, %v1526, %v1527
  %v1529 = vrot.slane %v1265, 7
  %v1530 = vsel %vm1500, %v1527, %v1529
  %v1531 = vrot.slane %v1266, 7
  %v1532 = vrot.slane %v1267, 7
  %v1533 = vsel %vm1500, %v1531, %v1532
  %v1534 = vrot.slane %v1268, 7
  %v1535 = vsel %vm1500, %v1532, %v1534
  %v1536 = vrot.slane %v1269, 7
  %v1537 = vrot.slane %v1270, 7
  %v1538 = vsel %vm1500, %v1536, %v1537
  %v1539 = vrot.slane %v1271, 7
  %v1540 = vsel %vm1500, %v1537, %v1539
  %v1541 = vrot.slane %v1272, 7
  %v1542 = vrot.slane %v1273, 7
  %v1543 = vsel %vm1500, %v1541, %v1542
  %v1544 = vrot.slane %v1274, 7
  %v1545 = vsel %vm1500, %v1542, %v1544
  %v1546 = vrot.slane %v1275, 7
  %v1547 = vrot.slane %v1276, 7
  %v1548 = vsel %vm1500, %v1546, %v1547
  %v1549 = vrot.slane %v1277, 7
  %v1550 = vsel %vm1500, %v1547, %v1549
  %v1551 = vrot.slane %v1278, 7
  %v1552 = vrot.slane %v1279, 7
  %v1553 = vsel %vm1500, %v1551, %v1552
  %v1554 = vrot.slane %v1280, 7
  %v1555 = vsel %vm1500, %v1552, %v1554
  %v1556 = vrot.slane %v1281, 7
  %v1557 = vrot.slane %v1282, 7
  %v1558 = vsel %vm1500, %v1556, %v1557
  %v1559 = vrot.slane %v1283, 7
  %v1560 = vsel %vm1500, %v1557, %v1559
  %v1561 = vrot.slane %v1284, 7
  %v1562 = vrot.slane %v1285, 7
  %v1563 = vsel %vm1500, %v1561, %v1562
  %v1564 = vrot.slane %v1286, 7
  %v1565 = vsel %vm1500, %v1562, %v1564
  %v1566 = vrot.slane %v1287, 7
  %v1567 = vrot.slane %v1288, 7
  %v1568 = vsel %vm1500, %v1566, %v1567
  %v1569 = vrot.slane %v1289, 7
  %v1570 = vsel %vm1500, %v1567, %v1569
  %v1571 = vrot.slane %v1290, 7
  %v1572 = vrot.slane %v1291, 7
  %v1573 = vsel %vm1500, %v1571, %v1572
  %v1574 = vrot.slane %v1292, 7
  %v1575 = vsel %vm1500, %v1572, %v1574
  %v1576 = vrot.slane %v1293, 7
  %v1577 = vrot.slane %v1294, 7
  %v1578 = vsel %vm1500, %v1576, %v1577
  %v1579 = vrot.slane %v1295, 7
  %v1580 = vsel %vm1500, %v1577, %v1579
  %v1581 = vrot.slane %v1296, 7
  %v1582 = vrot.slane %v1297, 7
  %v1583 = vsel %vm1500, %v1581, %v1582
  %v1584 = vrot.slane %v1298, 7
  %v1585 = vsel %vm1500, %v1582, %v1584
  %v1586 = vrot.slane %v1299, 7
  %v1587 = vrot.slane %v1300, 7
  %v1588 = vsel %vm1500, %v1586, %v1587
  %v1589 = vrot.slane %v1301, 7
  %v1590 = vsel %vm1500, %v1587, %v1589
  %v1591 = vrot.slane %v1302, 7
  %v1592 = vrot.slane %v1303, 7
  %v1593 = vsel %vm1500, %v1591, %v1592
  %v1594 = vrot.slane %v1304, 7
  %v1595 = vsel %vm1500, %v1592, %v1594
  %v1596 = vrot.slane %v1305, 7
  %v1597 = vrot.slane %v1306, 7
  %v1598 = vsel %vm1500, %v1596, %v1597
  %v1599 = vrot.slane %v1307, 7
  %v1600 = vsel %vm1500, %v1597, %v1599
  %v1601 = vrot.slane %v1314, 7
  %v1602 = vrot.slane %v1315, 7
  %v1603 = vsel %vm1500, %v1601, %v1602
  %v1604 = vrot.slane %v1316, 7
  %v1605 = vsel %vm1500, %v1602, %v1604
  %v1606 = vrot.slane %v1317, 7
  %v1607 = vrot.slane %v1318, 7
  %v1608 = vsel %vm1500, %v1606, %v1607
  %v1609 = vrot.slane %v1319, 7
  %v1610 = vsel %vm1500, %v1607, %v1609
  %v1611 = vrot.slane %v1320, 7
  %v1612 = vrot.slane %v1321, 7
  %v1613 = vsel %vm1500, %v1611, %v1612
  %v1614 = vrot.slane %v1322, 7
  %v1615 = vsel %vm1500, %v1612, %v1614
  %v1616 = vrot.slane %v1323, 7
  %v1617 = vrot.slane %v1324, 7
  %v1618 = vsel %vm1500, %v1616, %v1617
  %v1619 = vrot.slane %v1325, 7
  %v1620 = vsel %vm1500, %v1617, %v1619
  %v1621 = vrot.slane %v1326, 7
  %v1622 = vrot.slane %v1327, 7
  %v1623 = vsel %vm1500, %v1621, %v1622
  %v1624 = vrot.slane %v1328, 7
  %v1625 = vsel %vm1500, %v1622, %v1624
  %v1626 = vrot.slane %v1329, 7
  %v1627 = vrot.slane %v1330, 7
  %v1628 = vsel %vm1500, %v1626, %v1627
  %v1629 = vrot.slane %v1331, 7
  %v1630 = vsel %vm1500, %v1627, %v1629
  %v1631 = vrot.slane %v1332, 7
  %v1632 = vrot.slane %v1333, 7
  %v1633 = vsel %vm1500, %v1631, %v1632
  %v1634 = vrot.slane %v1334, 7
  %v1635 = vsel %vm1500, %v1632, %v1634
  %v1636 = vrot.slane %v1335, 7
  %v1637 = vrot.slane %v1336, 7
  %v1638 = vsel %vm1500, %v1636, %v1637
  %v1639 = vrot.slane %v1337, 7
  %v1640 = vsel %vm1500, %v1637, %v1639
  %v1641 = vrot.slane %v1338, 7
  %v1642 = vrot.slane %v1339, 7
  %v1643 = vsel %vm1500, %v1641, %v1642
  %v1644 = vrot.slane %v1340, 7
  %v1645 = vsel %vm1500, %v1642, %v1644
  %v1646 = vrot.slane %v1341, 7
  %v1647 = vrot.slane %v1342, 7
  %v1648 = vsel %vm1500, %v1646, %v1647
  %v1649 = vrot.slane %v1343, 7
  %v1650 = vsel %vm1500, %v1647, %v1649
  %v1651 = vrot.slane %v1344, 7
  %v1652 = vrot.slane %v1345, 7
  %v1653 = vsel %vm1500, %v1651, %v1652
  %v1654 = vrot.slane %v1346, 7
  %v1655 = vsel %vm1500, %v1652, %v1654
  %v1656 = vrot.slane %v1347, 7
  %v1657 = vrot.slane %v1348, 7
  %v1658 = vsel %vm1500, %v1656, %v1657
  %v1659 = vrot.slane %v1349, 7
  %v1660 = vsel %vm1500, %v1657, %v1659
  %v1661 = vrot.slane %v1350, 7
  %v1662 = vrot.slane %v1351, 7
  %v1663 = vsel %vm1500, %v1661, %v1662
  %v1664 = vrot.slane %v1352, 7
  %v1665 = vsel %vm1500, %v1662, %v1664
  %v1666 = vrot.slane %v1353, 7
  %v1667 = vrot.slane %v1354, 7
  %v1668 = vsel %vm1500, %v1666, %v1667
  %v1669 = vrot.slane %v1355, 7
  %v1670 = vsel %vm1500, %v1667, %v1669
  %v1671 = vrot.slane %v1356, 7
  %v1672 = vrot.slane %v1357, 7
  %v1673 = vsel %vm1500, %v1671, %v1672
  %v1674 = vrot.slane %v1358, 7
  %v1675 = vsel %vm1500, %v1672, %v1674
  %v1676 = vrot.slane %v1359, 7
  %v1677 = vrot.slane %v1360, 7
  %v1678 = vsel %vm1500, %v1676, %v1677
  %v1679 = vrot.slane %v1361, 7
  %v1680 = vsel %vm1500, %v1677, %v1679
  %v1681 = vrot.slane %v1362, 7
  %v1682 = vrot.slane %v1363, 7
  %v1683 = vsel %vm1500, %v1681, %v1682
  %v1684 = vrot.slane %v1364, 7
  %v1685 = vsel %vm1500, %v1682, %v1684
  %v1686 = vrot.slane %v1365, 7
  %v1687 = vrot.slane %v1366, 7
  %v1688 = vsel %vm1500, %v1686, %v1687
  %v1689 = vrot.slane %v1367, 7
  %v1690 = vsel %vm1500, %v1687, %v1689
  %v1691 = vrot.slane %v1368, 7
  %v1692 = vrot.slane %v1369, 7
  %v1693 = vsel %vm1500, %v1691, %v1692
  %v1694 = vrot.slane %v1370, 7
  %v1695 = vsel %vm1500, %v1692, %v1694
  %v1696 = vrot.slane %v1371, 7
  %v1697 = vrot.slane %v1372, 7
  %v1698 = vsel %vm1500, %v1696, %v1697
  %v1699 = vrot.slane %v1373, 7
  %v1700 = vsel %vm1500, %v1697, %v1699
  %v1821 = vadd.f32 %v723, %v1501
  %v1822 = vadd.f32 %v724, %v1503
  %v1823 = vadd.f32 %v725, %v1505
  %v1824 = vadd.f32 %v726, %v1506
  %v1825 = vadd.f32 %v727, %v1508
  %v1826 = vadd.f32 %v728, %v1510
  %v1827 = vadd.f32 %v729, %v1511
  %v1828 = vadd.f32 %v730, %v1513
  %v1829 = vadd.f32 %v731, %v1515
  %v1830 = vadd.f32 %v732, %v1516
  %v1831 = vadd.f32 %v733, %v1518
  %v1832 = vadd.f32 %v734, %v1520
  %v1833 = vadd.f32 %v735, %v1521
  %v1834 = vadd.f32 %v736, %v1523
  %v1835 = vadd.f32 %v737, %v1525
  %v1836 = vadd.f32 %v738, %v1526
  %v1837 = vadd.f32 %v739, %v1528
  %v1838 = vadd.f32 %v740, %v1530
  %v1839 = vadd.f32 %v741, %v1531
  %v1840 = vadd.f32 %v742, %v1533
  %v1841 = vadd.f32 %v743, %v1535
  %v1842 = vadd.f32 %v744, %v1536
  %v1843 = vadd.f32 %v745, %v1538
  %v1844 = vadd.f32 %v746, %v1540
  %v1845 = vadd.f32 %v747, %v1541
  %v1846 = vadd.f32 %v748, %v1543
  %v1847 = vadd.f32 %v749, %v1545
  %v1848 = vadd.f32 %v750, %v1546
  %v1849 = vadd.f32 %v751, %v1548
  %v1850 = vadd.f32 %v752, %v1550
  %v1851 = vadd.f32 %v753, %v1551
  %v1852 = vadd.f32 %v754, %v1553
  %v1853 = vadd.f32 %v755, %v1555
  %v1854 = vadd.f32 %v756, %v1556
  %v1855 = vadd.f32 %v757, %v1558
  %v1856 = vadd.f32 %v758, %v1560
  %v1857 = vadd.f32 %v759, %v1561
  %v1858 = vadd.f32 %v760, %v1563
  %v1859 = vadd.f32 %v761, %v1565
  %v1860 = vadd.f32 %v762, %v1566
  %v1861 = vadd.f32 %v763, %v1568
  %v1862 = vadd.f32 %v764, %v1570
  %v1863 = vadd.f32 %v765, %v1571
  %v1864 = vadd.f32 %v766, %v1573
  %v1865 = vadd.f32 %v767, %v1575
  %v1866 = vadd.f32 %v768, %v1576
  %v1867 = vadd.f32 %v769, %v1578
  %v1868 = vadd.f32 %v770, %v1580
  %v1869 = vadd.f32 %v771, %v1581
  %v1870 = vadd.f32 %v772, %v1583
  %v1871 = vadd.f32 %v773, %v1585
  %v1872 = vadd.f32 %v774, %v1586
  %v1873 = vadd.f32 %v775, %v1588
  %v1874 = vadd.f32 %v776, %v1590
  %v1875 = vadd.f32 %v777, %v1591
  %v1876 = vadd.f32 %v778, %v1593
  %v1877 = vadd.f32 %v779, %v1595
  %v1878 = vadd.f32 %v780, %v1596
  %v1879 = vadd.f32 %v781, %v1598
  %v1880 = vadd.f32 %v782, %v1600
  %v1881 = vadd.f32 %v789, %v1601
  %v1882 = vadd.f32 %v790, %v1603
  %v1883 = vadd.f32 %v791, %v1605
  %v1884 = vadd.f32 %v792, %v1606
  %v1885 = vadd.f32 %v793, %v1608
  %v1886 = vadd.f32 %v794, %v1610
  %v1887 = vadd.f32 %v795, %v1611
  %v1888 = vadd.f32 %v796, %v1613
  %v1889 = vadd.f32 %v797, %v1615
  %v1890 = vadd.f32 %v798, %v1616
  %v1891 = vadd.f32 %v799, %v1618
  %v1892 = vadd.f32 %v800, %v1620
  %v1893 = vadd.f32 %v801, %v1621
  %v1894 = vadd.f32 %v802, %v1623
  %v1895 = vadd.f32 %v803, %v1625
  %v1896 = vadd.f32 %v804, %v1626
  %v1897 = vadd.f32 %v805, %v1628
  %v1898 = vadd.f32 %v806, %v1630
  %v1899 = vadd.f32 %v807, %v1631
  %v1900 = vadd.f32 %v808, %v1633
  %v1901 = vadd.f32 %v809, %v1635
  %v1902 = vadd.f32 %v810, %v1636
  %v1903 = vadd.f32 %v811, %v1638
  %v1904 = vadd.f32 %v812, %v1640
  %v1905 = vadd.f32 %v813, %v1641
  %v1906 = vadd.f32 %v814, %v1643
  %v1907 = vadd.f32 %v815, %v1645
  %v1908 = vadd.f32 %v816, %v1646
  %v1909 = vadd.f32 %v817, %v1648
  %v1910 = vadd.f32 %v818, %v1650
  %v1911 = vadd.f32 %v819, %v1651
  %v1912 = vadd.f32 %v820, %v1653
  %v1913 = vadd.f32 %v821, %v1655
  %v1914 = vadd.f32 %v822, %v1656
  %v1915 = vadd.f32 %v823, %v1658
  %v1916 = vadd.f32 %v824, %v1660
  %v1917 = vadd.f32 %v825, %v1661
  %v1918 = vadd.f32 %v826, %v1663
  %v1919 = vadd.f32 %v827, %v1665
  %v1920 = vadd.f32 %v828, %v1666
  %v1921 = vadd.f32 %v829, %v1668
  %v1922 = vadd.f32 %v830, %v1670
  %v1923 = vadd.f32 %v831, %v1671
  %v1924 = vadd.f32 %v832, %v1673
  %v1925 = vadd.f32 %v833, %v1675
  %v1926 = vadd.f32 %v834, %v1676
  %v1927 = vadd.f32 %v835, %v1678
  %v1928 = vadd.f32 %v836, %v1680
  %v1929 = vadd.f32 %v837, %v1681
  %v1930 = vadd.f32 %v838, %v1683
  %v1931 = vadd.f32 %v839, %v1685
  %v1932 = vadd.f32 %v840, %v1686
  %v1933 = vadd.f32 %v841, %v1688
  %v1934 = vadd.f32 %v842, %v1690
  %v1935 = vadd.f32 %v843, %v1691
  %v1936 = vadd.f32 %v844, %v1693
  %v1937 = vadd.f32 %v845, %v1695
  %v1938 = vadd.f32 %v846, %v1696
  %v1939 = vadd.f32 %v847, %v1698
  %v1940 = vadd.f32 %v848, %v1700
  %v1953 = vrot.slane %v1308, 7
  %v1954 = vrot.slane %v1309, 7
  %v1955 = vsel %vm1500, %v1953, %v1954
  %v1956 = vrot.slane %v1310, 7
  %v1957 = vsel %vm1500, %v1954, %v1956
  %v1958 = vrot.slane %v1311, 7
  %v1959 = vrot.slane %v1312, 7
  %v1960 = vsel %vm1500, %v1958, %v1959
  %v1961 = vrot.slane %v1313, 7
  %v1962 = vsel %vm1500, %v1959, %v1961
  %v1963 = vrot.slane %v1374, 7
  %v1964 = vrot.slane %v1375, 7
  %v1965 = vsel %vm1500, %v1963, %v1964
  %v1966 = vrot.slane %v1376, 7
  %v1967 = vsel %vm1500, %v1964, %v1966
  %v1968 = vrot.slane %v1377, 7
  %v1969 = vrot.slane %v1378, 7
  %v1970 = vsel %vm1500, %v1968, %v1969
  %v1971 = vrot.slane %v1379, 7
  %v1972 = vsel %vm1500, %v1969, %v1971
  %v1985 = vadd.f32 %v1821, %v1511
  %v1986 = vadd.f32 %v1822, %v1513
  %v1987 = vadd.f32 %v1823, %v1515
  %v1988 = vadd.f32 %v1824, %v1516
  %v1989 = vadd.f32 %v1825, %v1518
  %v1990 = vadd.f32 %v1826, %v1520
  %v1991 = vadd.f32 %v1827, %v1521
  %v1992 = vadd.f32 %v1828, %v1523
  %v1993 = vadd.f32 %v1829, %v1525
  %v1994 = vadd.f32 %v1830, %v1526
  %v1995 = vadd.f32 %v1831, %v1528
  %v1996 = vadd.f32 %v1832, %v1530
  %v1997 = vadd.f32 %v1833, %v1531
  %v1998 = vadd.f32 %v1834, %v1533
  %v1999 = vadd.f32 %v1835, %v1535
  %v2000 = vadd.f32 %v1836, %v1536
  %v2001 = vadd.f32 %v1837, %v1538
  %v2002 = vadd.f32 %v1838, %v1540
  %v2003 = vadd.f32 %v1839, %v1541
  %v2004 = vadd.f32 %v1840, %v1543
  %v2005 = vadd.f32 %v1841, %v1545
  %v2006 = vadd.f32 %v1842, %v1546
  %v2007 = vadd.f32 %v1843, %v1548
  %v2008 = vadd.f32 %v1844, %v1550
  %v2009 = vadd.f32 %v1845, %v1551
  %v2010 = vadd.f32 %v1846, %v1553
  %v2011 = vadd.f32 %v1847, %v1555
  %v2012 = vadd.f32 %v1848, %v1556
  %v2013 = vadd.f32 %v1849, %v1558
  %v2014 = vadd.f32 %v1850, %v1560
  %v2015 = vadd.f32 %v1851, %v1561
  %v2016 = vadd.f32 %v1852, %v1563
  %v2017 = vadd.f32 %v1853, %v1565
  %v2018 = vadd.f32 %v1854, %v1566
  %v2019 = vadd.f32 %v1855, %v1568
  %v2020 = vadd.f32 %v1856, %v1570
  %v2021 = vadd.f32 %v1857, %v1571
  %v2022 = vadd.f32 %v1858, %v1573
  %v2023 = vadd.f32 %v1859, %v1575
  %v2024 = vadd.f32 %v1860, %v1576
  %v2025 = vadd.f32 %v1861, %v1578
  %v2026 = vadd.f32 %v1862, %v1580
  %v2027 = vadd.f32 %v1863, %v1581
  %v2028 = vadd.f32 %v1864, %v1583
  %v2029 = vadd.f32 %v1865, %v1585
  %v2030 = vadd.f32 %v1866, %v1586
  %v2031 = vadd.f32 %v1867, %v1588
  %v2032 = vadd.f32 %v1868, %v1590
  %v2033 = vadd.f32 %v1869, %v1591
  %v2034 = vadd.f32 %v1870, %v1593
  %v2035 = vadd.f32 %v1871, %v1595
  %v2036 = vadd.f32 %v1872, %v1596
  %v2037 = vadd.f32 %v1873, %v1598
  %v2038 = vadd.f32 %v1874, %v1600
  %v2039 = vadd.f32 %v1875, %v1953
  %v2040 = vadd.f32 %v1876, %v1955
  %v2041 = vadd.f32 %v1877, %v1957
  %v2042 = vadd.f32 %v1878, %v1958
  %v2043 = vadd.f32 %v1879, %v1960
  %v2044 = vadd.f32 %v1880, %v1962
  %v2045 = vadd.f32 %v1881, %v1611
  %v2046 = vadd.f32 %v1882, %v1613
  %v2047 = vadd.f32 %v1883, %v1615
  %v2048 = vadd.f32 %v1884, %v1616
  %v2049 = vadd.f32 %v1885, %v1618
  %v2050 = vadd.f32 %v1886, %v1620
  %v2051 = vadd.f32 %v1887, %v1621
  %v2052 = vadd.f32 %v1888, %v1623
  %v2053 = vadd.f32 %v1889, %v1625
  %v2054 = vadd.f32 %v1890, %v1626
  %v2055 = vadd.f32 %v1891, %v1628
  %v2056 = vadd.f32 %v1892, %v1630
  %v2057 = vadd.f32 %v1893, %v1631
  %v2058 = vadd.f32 %v1894, %v1633
  %v2059 = vadd.f32 %v1895, %v1635
  %v2060 = vadd.f32 %v1896, %v1636
  %v2061 = vadd.f32 %v1897, %v1638
  %v2062 = vadd.f32 %v1898, %v1640
  %v2063 = vadd.f32 %v1899, %v1641
  %v2064 = vadd.f32 %v1900, %v1643
  %v2065 = vadd.f32 %v1901, %v1645
  %v2066 = vadd.f32 %v1902, %v1646
  %v2067 = vadd.f32 %v1903, %v1648
  %v2068 = vadd.f32 %v1904, %v1650
  %v2069 = vadd.f32 %v1905, %v1651
  %v2070 = vadd.f32 %v1906, %v1653
  %v2071 = vadd.f32 %v1907, %v1655
  %v2072 = vadd.f32 %v1908, %v1656
  %v2073 = vadd.f32 %v1909, %v1658
  %v2074 = vadd.f32 %v1910, %v1660
  %v2075 = vadd.f32 %v1911, %v1661
  %v2076 = vadd.f32 %v1912, %v1663
  %v2077 = vadd.f32 %v1913, %v1665
  %v2078 = vadd.f32 %v1914, %v1666
  %v2079 = vadd.f32 %v1915, %v1668
  %v2080 = vadd.f32 %v1916, %v1670
  %v2081 = vadd.f32 %v1917, %v1671
  %v2082 = vadd.f32 %v1918, %v1673
  %v2083 = vadd.f32 %v1919, %v1675
  %v2084 = vadd.f32 %v1920, %v1676
  %v2085 = vadd.f32 %v1921, %v1678
  %v2086 = vadd.f32 %v1922, %v1680
  %v2087 = vadd.f32 %v1923, %v1681
  %v2088 = vadd.f32 %v1924, %v1683
  %v2089 = vadd.f32 %v1925, %v1685
  %v2090 = vadd.f32 %v1926, %v1686
  %v2091 = vadd.f32 %v1927, %v1688
  %v2092 = vadd.f32 %v1928, %v1690
  %v2093 = vadd.f32 %v1929, %v1691
  %v2094 = vadd.f32 %v1930, %v1693
  %v2095 = vadd.f32 %v1931, %v1695
  %v2096 = vadd.f32 %v1932, %v1696
  %v2097 = vadd.f32 %v1933, %v1698
  %v2098 = vadd.f32 %v1934, %v1700
  %v2099 = vadd.f32 %v1935, %v1963
  %v2100 = vadd.f32 %v1936, %v1965
  %v2101 = vadd.f32 %v1937, %v1967
  %v2102 = vadd.f32 %v1938, %v1968
  %v2103 = vadd.f32 %v1939, %v1970
  %v2104 = vadd.f32 %v1940, %v1972
  %vm2105 = vcmask 1041408
  %v2106 = vrot.slane %v1251, 6
  %v2107 = vrot.slane %v1252, 6
  %v2108 = vsel %vm2105, %v2106, %v2107
  %v2109 = vrot.slane %v1253, 6
  %v2110 = vsel %vm2105, %v2107, %v2109
  %v2111 = vrot.slane %v1254, 6
  %v2112 = vrot.slane %v1255, 6
  %v2113 = vsel %vm2105, %v2111, %v2112
  %v2114 = vrot.slane %v1256, 6
  %v2115 = vsel %vm2105, %v2112, %v2114
  %v2116 = vrot.slane %v1257, 6
  %v2117 = vrot.slane %v1258, 6
  %v2118 = vsel %vm2105, %v2116, %v2117
  %v2119 = vrot.slane %v1259, 6
  %v2120 = vsel %vm2105, %v2117, %v2119
  %v2121 = vrot.slane %v1260, 6
  %v2122 = vrot.slane %v1261, 6
  %v2123 = vsel %vm2105, %v2121, %v2122
  %v2124 = vrot.slane %v1262, 6
  %v2125 = vsel %vm2105, %v2122, %v2124
  %v2126 = vrot.slane %v1263, 6
  %v2127 = vrot.slane %v1264, 6
  %v2128 = vsel %vm2105, %v2126, %v2127
  %v2129 = vrot.slane %v1265, 6
  %v2130 = vsel %vm2105, %v2127, %v2129
  %v2131 = vrot.slane %v1266, 6
  %v2132 = vrot.slane %v1267, 6
  %v2133 = vsel %vm2105, %v2131, %v2132
  %v2134 = vrot.slane %v1268, 6
  %v2135 = vsel %vm2105, %v2132, %v2134
  %v2136 = vrot.slane %v1269, 6
  %v2137 = vrot.slane %v1270, 6
  %v2138 = vsel %vm2105, %v2136, %v2137
  %v2139 = vrot.slane %v1271, 6
  %v2140 = vsel %vm2105, %v2137, %v2139
  %v2141 = vrot.slane %v1272, 6
  %v2142 = vrot.slane %v1273, 6
  %v2143 = vsel %vm2105, %v2141, %v2142
  %v2144 = vrot.slane %v1274, 6
  %v2145 = vsel %vm2105, %v2142, %v2144
  %v2146 = vrot.slane %v1275, 6
  %v2147 = vrot.slane %v1276, 6
  %v2148 = vsel %vm2105, %v2146, %v2147
  %v2149 = vrot.slane %v1277, 6
  %v2150 = vsel %vm2105, %v2147, %v2149
  %v2151 = vrot.slane %v1278, 6
  %v2152 = vrot.slane %v1279, 6
  %v2153 = vsel %vm2105, %v2151, %v2152
  %v2154 = vrot.slane %v1280, 6
  %v2155 = vsel %vm2105, %v2152, %v2154
  %v2156 = vrot.slane %v1281, 6
  %v2157 = vrot.slane %v1282, 6
  %v2158 = vsel %vm2105, %v2156, %v2157
  %v2159 = vrot.slane %v1283, 6
  %v2160 = vsel %vm2105, %v2157, %v2159
  %v2161 = vrot.slane %v1284, 6
  %v2162 = vrot.slane %v1285, 6
  %v2163 = vsel %vm2105, %v2161, %v2162
  %v2164 = vrot.slane %v1286, 6
  %v2165 = vsel %vm2105, %v2162, %v2164
  %v2166 = vrot.slane %v1287, 6
  %v2167 = vrot.slane %v1288, 6
  %v2168 = vsel %vm2105, %v2166, %v2167
  %v2169 = vrot.slane %v1289, 6
  %v2170 = vsel %vm2105, %v2167, %v2169
  %v2171 = vrot.slane %v1290, 6
  %v2172 = vrot.slane %v1291, 6
  %v2173 = vsel %vm2105, %v2171, %v2172
  %v2174 = vrot.slane %v1292, 6
  %v2175 = vsel %vm2105, %v2172, %v2174
  %v2176 = vrot.slane %v1293, 6
  %v2177 = vrot.slane %v1294, 6
  %v2178 = vsel %vm2105, %v2176, %v2177
  %v2179 = vrot.slane %v1295, 6
  %v2180 = vsel %vm2105, %v2177, %v2179
  %v2181 = vrot.slane %v1296, 6
  %v2182 = vrot.slane %v1297, 6
  %v2183 = vsel %vm2105, %v2181, %v2182
  %v2184 = vrot.slane %v1298, 6
  %v2185 = vsel %vm2105, %v2182, %v2184
  %v2186 = vrot.slane %v1299, 6
  %v2187 = vrot.slane %v1300, 6
  %v2188 = vsel %vm2105, %v2186, %v2187
  %v2189 = vrot.slane %v1301, 6
  %v2190 = vsel %vm2105, %v2187, %v2189
  %v2191 = vrot.slane %v1302, 6
  %v2192 = vrot.slane %v1303, 6
  %v2193 = vsel %vm2105, %v2191, %v2192
  %v2194 = vrot.slane %v1304, 6
  %v2195 = vsel %vm2105, %v2192, %v2194
  %v2196 = vrot.slane %v1305, 6
  %v2197 = vrot.slane %v1306, 6
  %v2198 = vsel %vm2105, %v2196, %v2197
  %v2199 = vrot.slane %v1307, 6
  %v2200 = vsel %vm2105, %v2197, %v2199
  %v2201 = vrot.slane %v1308, 6
  %v2202 = vrot.slane %v1309, 6
  %v2203 = vsel %vm2105, %v2201, %v2202
  %v2204 = vrot.slane %v1310, 6
  %v2205 = vsel %vm2105, %v2202, %v2204
  %v2206 = vrot.slane %v1317, 6
  %v2207 = vrot.slane %v1318, 6
  %v2208 = vsel %vm2105, %v2206, %v2207
  %v2209 = vrot.slane %v1319, 6
  %v2210 = vsel %vm2105, %v2207, %v2209
  %v2211 = vrot.slane %v1320, 6
  %v2212 = vrot.slane %v1321, 6
  %v2213 = vsel %vm2105, %v2211, %v2212
  %v2214 = vrot.slane %v1322, 6
  %v2215 = vsel %vm2105, %v2212, %v2214
  %v2216 = vrot.slane %v1323, 6
  %v2217 = vrot.slane %v1324, 6
  %v2218 = vsel %vm2105, %v2216, %v2217
  %v2219 = vrot.slane %v1325, 6
  %v2220 = vsel %vm2105, %v2217, %v2219
  %v2221 = vrot.slane %v1326, 6
  %v2222 = vrot.slane %v1327, 6
  %v2223 = vsel %vm2105, %v2221, %v2222
  %v2224 = vrot.slane %v1328, 6
  %v2225 = vsel %vm2105, %v2222, %v2224
  %v2226 = vrot.slane %v1329, 6
  %v2227 = vrot.slane %v1330, 6
  %v2228 = vsel %vm2105, %v2226, %v2227
  %v2229 = vrot.slane %v1331, 6
  %v2230 = vsel %vm2105, %v2227, %v2229
  %v2231 = vrot.slane %v1332, 6
  %v2232 = vrot.slane %v1333, 6
  %v2233 = vsel %vm2105, %v2231, %v2232
  %v2234 = vrot.slane %v1334, 6
  %v2235 = vsel %vm2105, %v2232, %v2234
  %v2236 = vrot.slane %v1335, 6
  %v2237 = vrot.slane %v1336, 6
  %v2238 = vsel %vm2105, %v2236, %v2237
  %v2239 = vrot.slane %v1337, 6
  %v2240 = vsel %vm2105, %v2237, %v2239
  %v2241 = vrot.slane %v1338, 6
  %v2242 = vrot.slane %v1339, 6
  %v2243 = vsel %vm2105, %v2241, %v2242
  %v2244 = vrot.slane %v1340, 6
  %v2245 = vsel %vm2105, %v2242, %v2244
  %v2246 = vrot.slane %v1341, 6
  %v2247 = vrot.slane %v1342, 6
  %v2248 = vsel %vm2105, %v2246, %v2247
  %v2249 = vrot.slane %v1343, 6
  %v2250 = vsel %vm2105, %v2247, %v2249
  %v2251 = vrot.slane %v1344, 6
  %v2252 = vrot.slane %v1345, 6
  %v2253 = vsel %vm2105, %v2251, %v2252
  %v2254 = vrot.slane %v1346, 6
  %v2255 = vsel %vm2105, %v2252, %v2254
  %v2256 = vrot.slane %v1347, 6
  %v2257 = vrot.slane %v1348, 6
  %v2258 = vsel %vm2105, %v2256, %v2257
  %v2259 = vrot.slane %v1349, 6
  %v2260 = vsel %vm2105, %v2257, %v2259
  %v2261 = vrot.slane %v1350, 6
  %v2262 = vrot.slane %v1351, 6
  %v2263 = vsel %vm2105, %v2261, %v2262
  %v2264 = vrot.slane %v1352, 6
  %v2265 = vsel %vm2105, %v2262, %v2264
  %v2266 = vrot.slane %v1353, 6
  %v2267 = vrot.slane %v1354, 6
  %v2268 = vsel %vm2105, %v2266, %v2267
  %v2269 = vrot.slane %v1355, 6
  %v2270 = vsel %vm2105, %v2267, %v2269
  %v2271 = vrot.slane %v1356, 6
  %v2272 = vrot.slane %v1357, 6
  %v2273 = vsel %vm2105, %v2271, %v2272
  %v2274 = vrot.slane %v1358, 6
  %v2275 = vsel %vm2105, %v2272, %v2274
  %v2276 = vrot.slane %v1359, 6
  %v2277 = vrot.slane %v1360, 6
  %v2278 = vsel %vm2105, %v2276, %v2277
  %v2279 = vrot.slane %v1361, 6
  %v2280 = vsel %vm2105, %v2277, %v2279
  %v2281 = vrot.slane %v1362, 6
  %v2282 = vrot.slane %v1363, 6
  %v2283 = vsel %vm2105, %v2281, %v2282
  %v2284 = vrot.slane %v1364, 6
  %v2285 = vsel %vm2105, %v2282, %v2284
  %v2286 = vrot.slane %v1365, 6
  %v2287 = vrot.slane %v1366, 6
  %v2288 = vsel %vm2105, %v2286, %v2287
  %v2289 = vrot.slane %v1367, 6
  %v2290 = vsel %vm2105, %v2287, %v2289
  %v2291 = vrot.slane %v1368, 6
  %v2292 = vrot.slane %v1369, 6
  %v2293 = vsel %vm2105, %v2291, %v2292
  %v2294 = vrot.slane %v1370, 6
  %v2295 = vsel %vm2105, %v2292, %v2294
  %v2296 = vrot.slane %v1371, 6
  %v2297 = vrot.slane %v1372, 6
  %v2298 = vsel %vm2105, %v2296, %v2297
  %v2299 = vrot.slane %v1373, 6
  %v2300 = vsel %vm2105, %v2297, %v2299
  %v2301 = vrot.slane %v1374, 6
  %v2302 = vrot.slane %v1375, 6
  %v2303 = vsel %vm2105, %v2301, %v2302
  %v2304 = vrot.slane %v1376, 6
  %v2305 = vsel %vm2105, %v2302, %v2304
  %v2426 = vadd.f32 %v1985, %v2106
  %v2427 = vadd.f32 %v1986, %v2108
  %v2428 = vadd.f32 %v1987, %v2110
  %v2429 = vadd.f32 %v1988, %v2111
  %v2430 = vadd.f32 %v1989, %v2113
  %v2431 = vadd.f32 %v1990, %v2115
  %v2432 = vadd.f32 %v1991, %v2116
  %v2433 = vadd.f32 %v1992, %v2118
  %v2434 = vadd.f32 %v1993, %v2120
  %v2435 = vadd.f32 %v1994, %v2121
  %v2436 = vadd.f32 %v1995, %v2123
  %v2437 = vadd.f32 %v1996, %v2125
  %v2438 = vadd.f32 %v1997, %v2126
  %v2439 = vadd.f32 %v1998, %v2128
  %v2440 = vadd.f32 %v1999, %v2130
  %v2441 = vadd.f32 %v2000, %v2131
  %v2442 = vadd.f32 %v2001, %v2133
  %v2443 = vadd.f32 %v2002, %v2135
  %v2444 = vadd.f32 %v2003, %v2136
  %v2445 = vadd.f32 %v2004, %v2138
  %v2446 = vadd.f32 %v2005, %v2140
  %v2447 = vadd.f32 %v2006, %v2141
  %v2448 = vadd.f32 %v2007, %v2143
  %v2449 = vadd.f32 %v2008, %v2145
  %v2450 = vadd.f32 %v2009, %v2146
  %v2451 = vadd.f32 %v2010, %v2148
  %v2452 = vadd.f32 %v2011, %v2150
  %v2453 = vadd.f32 %v2012, %v2151
  %v2454 = vadd.f32 %v2013, %v2153
  %v2455 = vadd.f32 %v2014, %v2155
  %v2456 = vadd.f32 %v2015, %v2156
  %v2457 = vadd.f32 %v2016, %v2158
  %v2458 = vadd.f32 %v2017, %v2160
  %v2459 = vadd.f32 %v2018, %v2161
  %v2460 = vadd.f32 %v2019, %v2163
  %v2461 = vadd.f32 %v2020, %v2165
  %v2462 = vadd.f32 %v2021, %v2166
  %v2463 = vadd.f32 %v2022, %v2168
  %v2464 = vadd.f32 %v2023, %v2170
  %v2465 = vadd.f32 %v2024, %v2171
  %v2466 = vadd.f32 %v2025, %v2173
  %v2467 = vadd.f32 %v2026, %v2175
  %v2468 = vadd.f32 %v2027, %v2176
  %v2469 = vadd.f32 %v2028, %v2178
  %v2470 = vadd.f32 %v2029, %v2180
  %v2471 = vadd.f32 %v2030, %v2181
  %v2472 = vadd.f32 %v2031, %v2183
  %v2473 = vadd.f32 %v2032, %v2185
  %v2474 = vadd.f32 %v2033, %v2186
  %v2475 = vadd.f32 %v2034, %v2188
  %v2476 = vadd.f32 %v2035, %v2190
  %v2477 = vadd.f32 %v2036, %v2191
  %v2478 = vadd.f32 %v2037, %v2193
  %v2479 = vadd.f32 %v2038, %v2195
  %v2480 = vadd.f32 %v2039, %v2196
  %v2481 = vadd.f32 %v2040, %v2198
  %v2482 = vadd.f32 %v2041, %v2200
  %v2483 = vadd.f32 %v2042, %v2201
  %v2484 = vadd.f32 %v2043, %v2203
  %v2485 = vadd.f32 %v2044, %v2205
  %v2486 = vadd.f32 %v2045, %v2206
  %v2487 = vadd.f32 %v2046, %v2208
  %v2488 = vadd.f32 %v2047, %v2210
  %v2489 = vadd.f32 %v2048, %v2211
  %v2490 = vadd.f32 %v2049, %v2213
  %v2491 = vadd.f32 %v2050, %v2215
  %v2492 = vadd.f32 %v2051, %v2216
  %v2493 = vadd.f32 %v2052, %v2218
  %v2494 = vadd.f32 %v2053, %v2220
  %v2495 = vadd.f32 %v2054, %v2221
  %v2496 = vadd.f32 %v2055, %v2223
  %v2497 = vadd.f32 %v2056, %v2225
  %v2498 = vadd.f32 %v2057, %v2226
  %v2499 = vadd.f32 %v2058, %v2228
  %v2500 = vadd.f32 %v2059, %v2230
  %v2501 = vadd.f32 %v2060, %v2231
  %v2502 = vadd.f32 %v2061, %v2233
  %v2503 = vadd.f32 %v2062, %v2235
  %v2504 = vadd.f32 %v2063, %v2236
  %v2505 = vadd.f32 %v2064, %v2238
  %v2506 = vadd.f32 %v2065, %v2240
  %v2507 = vadd.f32 %v2066, %v2241
  %v2508 = vadd.f32 %v2067, %v2243
  %v2509 = vadd.f32 %v2068, %v2245
  %v2510 = vadd.f32 %v2069, %v2246
  %v2511 = vadd.f32 %v2070, %v2248
  %v2512 = vadd.f32 %v2071, %v2250
  %v2513 = vadd.f32 %v2072, %v2251
  %v2514 = vadd.f32 %v2073, %v2253
  %v2515 = vadd.f32 %v2074, %v2255
  %v2516 = vadd.f32 %v2075, %v2256
  %v2517 = vadd.f32 %v2076, %v2258
  %v2518 = vadd.f32 %v2077, %v2260
  %v2519 = vadd.f32 %v2078, %v2261
  %v2520 = vadd.f32 %v2079, %v2263
  %v2521 = vadd.f32 %v2080, %v2265
  %v2522 = vadd.f32 %v2081, %v2266
  %v2523 = vadd.f32 %v2082, %v2268
  %v2524 = vadd.f32 %v2083, %v2270
  %v2525 = vadd.f32 %v2084, %v2271
  %v2526 = vadd.f32 %v2085, %v2273
  %v2527 = vadd.f32 %v2086, %v2275
  %v2528 = vadd.f32 %v2087, %v2276
  %v2529 = vadd.f32 %v2088, %v2278
  %v2530 = vadd.f32 %v2089, %v2280
  %v2531 = vadd.f32 %v2090, %v2281
  %v2532 = vadd.f32 %v2091, %v2283
  %v2533 = vadd.f32 %v2092, %v2285
  %v2534 = vadd.f32 %v2093, %v2286
  %v2535 = vadd.f32 %v2094, %v2288
  %v2536 = vadd.f32 %v2095, %v2290
  %v2537 = vadd.f32 %v2096, %v2291
  %v2538 = vadd.f32 %v2097, %v2293
  %v2539 = vadd.f32 %v2098, %v2295
  %v2540 = vadd.f32 %v2099, %v2296
  %v2541 = vadd.f32 %v2100, %v2298
  %v2542 = vadd.f32 %v2101, %v2300
  %v2543 = vadd.f32 %v2102, %v2301
  %v2544 = vadd.f32 %v2103, %v2303
  %v2545 = vadd.f32 %v2104, %v2305
  %v2546 = vld [vmem:[%s3] sm:$0xff]
  %v2547 = vld [vmem:[%s3 + $0x8] sm:$0xff]
  %v2548 = vld [vmem:[%s3 + $0x10] sm:$0xf]
  %v2549 = vld [vmem:[%s3 + $0x18] sm:$0xff]
  %v2550 = vld [vmem:[%s3 + $0x20] sm:$0xff]
  %v2551 = vld [vmem:[%s3 + $0x28] sm:$0xf]
  %v2552 = vld [vmem:[%s3 + $0x30] sm:$0xff]
  %v2553 = vld [vmem:[%s3 + $0x38] sm:$0xff]
  %v2554 = vld [vmem:[%s3 + $0x40] sm:$0xf]
  %v2555 = vld [vmem:[%s3 + $0x48] sm:$0xff]
  %v2556 = vld [vmem:[%s3 + $0x50] sm:$0xff]
  %v2557 = vld [vmem:[%s3 + $0x58] sm:$0xf]
  %v2558 = vld [vmem:[%s3 + $0x60] sm:$0xff]
  %v2559 = vld [vmem:[%s3 + $0x68] sm:$0xff]
  %v2560 = vld [vmem:[%s3 + $0x70] sm:$0xf]
  %v2561 = vld [vmem:[%s3 + $0x78] sm:$0xff]
  %v2562 = vld [vmem:[%s3 + $0x80] sm:$0xff]
  %v2563 = vld [vmem:[%s3 + $0x88] sm:$0xf]
  %v2564 = vld [vmem:[%s3 + $0x90] sm:$0xff]
  %v2565 = vld [vmem:[%s3 + $0x98] sm:$0xff]
  %v2566 = vld [vmem:[%s3 + $0xa0] sm:$0xf]
  %v2567 = vld [vmem:[%s3 + $0xa8] sm:$0xff]
  %v2568 = vld [vmem:[%s3 + $0xb0] sm:$0xff]
  %v2569 = vld [vmem:[%s3 + $0xb8] sm:$0xf]
  %v2570 = vld [vmem:[%s3 + $0xc0] sm:$0xff]
  %v2571 = vld [vmem:[%s3 + $0xc8] sm:$0xff]
  %v2572 = vld [vmem:[%s3 + $0xd0] sm:$0xf]
  %v2573 = vld [vmem:[%s3 + $0xd8] sm:$0xff]
  %v2574 = vld [vmem:[%s3 + $0xe0] sm:$0xff]
  %v2575 = vld [vmem:[%s3 + $0xe8] sm:$0xf]
  %v2576 = vld [vmem:[%s3 + $0xf0] sm:$0xff]
  %v2577 = vld [vmem:[%s3 + $0xf8] sm:$0xff]
  %v2578 = vld [vmem:[%s3 + $0x100] sm:$0xf]
  %v2579 = vld [vmem:[%s3 + $0x108] sm:$0xff]
  %v2580 = vld [vmem:[%s3 + $0x110] sm:$0xff]
  %v2581 = vld [vmem:[%s3 + $0x118] sm:$0xf]
  %v2582 = vld [vmem:[%s3 + $0x120] sm:$0xff]
  %v2583 = vld [vmem:[%s3 + $0x128] sm:$0xff]
  %v2584 = vld [vmem:[%s3 + $0x130] sm:$0xf]
  %v2585 = vld [vmem:[%s3 + $0x138] sm:$0xff]
  %v2586 = vld [vmem:[%s3 + $0x140] sm:$0xff]
  %v2587 = vld [vmem:[%s3 + $0x148] sm:$0xf]
  %v2588 = vld [vmem:[%s3 + $0x150] sm:$0xff]
  %v2589 = vld [vmem:[%s3 + $0x158] sm:$0xff]
  %v2590 = vld [vmem:[%s3 + $0x160] sm:$0xf]
  %v2591 = vld [vmem:[%s3 + $0x168] sm:$0xff]
  %v2592 = vld [vmem:[%s3 + $0x170] sm:$0xff]
  %v2593 = vld [vmem:[%s3 + $0x178] sm:$0xf]
  %v2594 = vld [vmem:[%s3 + $0x180] sm:$0xff]
  %v2595 = vld [vmem:[%s3 + $0x188] sm:$0xff]
  %v2596 = vld [vmem:[%s3 + $0x190] sm:$0xf]
  %v2597 = vld [vmem:[%s3 + $0x198] sm:$0xff]
  %v2598 = vld [vmem:[%s3 + $0x1a0] sm:$0xff]
  %v2599 = vld [vmem:[%s3 + $0x1a8] sm:$0xf]
  %v2600 = vld [vmem:[%s3 + $0x1b0] sm:$0xff]
  %v2601 = vld [vmem:[%s3 + $0x1b8] sm:$0xff]
  %v2602 = vld [vmem:[%s3 + $0x1c0] sm:$0xf]
  %v2603 = vld [vmem:[%s3 + $0x1c8] sm:$0xff]
  %v2604 = vld [vmem:[%s3 + $0x1d0] sm:$0xff]
  %v2605 = vld [vmem:[%s3 + $0x1d8] sm:$0xf]
  %2607 = vset.pattern.permute.xlu0 0
  %2608 = vperm.xlu0 %2607, %v2546
  %v2609 = vpop.permute.xlu0 %2608
  %2611 = vset.pattern.permute.xlu0 0
  %2612 = vperm.xlu0 %2611, %v2547
  %v2613 = vpop.permute.xlu0 %2612
  %2615 = vset.pattern.permute.xlu0 0
  %2616 = vperm.xlu0 %2615, %v2548
  %v2617 = vpop.permute.xlu0 %2616
  %2619 = vset.pattern.permute.xlu0 0
  %2620 = vperm.xlu0 %2619, %v2549
  %v2621 = vpop.permute.xlu0 %2620
  %2623 = vset.pattern.permute.xlu0 0
  %2624 = vperm.xlu0 %2623, %v2550
  %v2625 = vpop.permute.xlu0 %2624
  %2627 = vset.pattern.permute.xlu0 0
  %2628 = vperm.xlu0 %2627, %v2551
  %v2629 = vpop.permute.xlu0 %2628
  %2631 = vset.pattern.permute.xlu0 0
  %2632 = vperm.xlu0 %2631, %v2552
  %v2633 = vpop.permute.xlu0 %2632
  %2635 = vset.pattern.permute.xlu0 0
  %2636 = vperm.xlu0 %2635, %v2553
  %v2637 = vpop.permute.xlu0 %2636
  %2639 = vset.pattern.permute.xlu0 0
  %2640 = vperm.xlu0 %2639, %v2554
  %v2641 = vpop.permute.xlu0 %2640
  %2643 = vset.pattern.permute.xlu0 0
  %2644 = vperm.xlu0 %2643, %v2555
  %v2645 = vpop.permute.xlu0 %2644
  %2647 = vset.pattern.permute.xlu0 0
  %2648 = vperm.xlu0 %2647, %v2556
  %v2649 = vpop.permute.xlu0 %2648
  %2651 = vset.pattern.permute.xlu0 0
  %2652 = vperm.xlu0 %2651, %v2557
  %v2653 = vpop.permute.xlu0 %2652
  %2655 = vset.pattern.permute.xlu0 0
  %2656 = vperm.xlu0 %2655, %v2558
  %v2657 = vpop.permute.xlu0 %2656
  %2659 = vset.pattern.permute.xlu0 0
  %2660 = vperm.xlu0 %2659, %v2559
  %v2661 = vpop.permute.xlu0 %2660
  %2663 = vset.pattern.permute.xlu0 0
  %2664 = vperm.xlu0 %2663, %v2560
  %v2665 = vpop.permute.xlu0 %2664
  %2667 = vset.pattern.permute.xlu0 0
  %2668 = vperm.xlu0 %2667, %v2561
  %v2669 = vpop.permute.xlu0 %2668
  %2671 = vset.pattern.permute.xlu0 0
  %2672 = vperm.xlu0 %2671, %v2562
  %v2673 = vpop.permute.xlu0 %2672
  %2675 = vset.pattern.permute.xlu0 0
  %2676 = vperm.xlu0 %2675, %v2563
  %v2677 = vpop.permute.xlu0 %2676
  %2679 = vset.pattern.permute.xlu0 0
  %2680 = vperm.xlu0 %2679, %v2564
  %v2681 = vpop.permute.xlu0 %2680
  %2683 = vset.pattern.permute.xlu0 0
  %2684 = vperm.xlu0 %2683, %v2565
  %v2685 = vpop.permute.xlu0 %2684
  %2687 = vset.pattern.permute.xlu0 0
  %2688 = vperm.xlu0 %2687, %v2566
  %v2689 = vpop.permute.xlu0 %2688
  %2691 = vset.pattern.permute.xlu0 0
  %2692 = vperm.xlu0 %2691, %v2567
  %v2693 = vpop.permute.xlu0 %2692
  %2695 = vset.pattern.permute.xlu0 0
  %2696 = vperm.xlu0 %2695, %v2568
  %v2697 = vpop.permute.xlu0 %2696
  %2699 = vset.pattern.permute.xlu0 0
  %2700 = vperm.xlu0 %2699, %v2569
  %v2701 = vpop.permute.xlu0 %2700
  %2703 = vset.pattern.permute.xlu0 0
  %2704 = vperm.xlu0 %2703, %v2570
  %v2705 = vpop.permute.xlu0 %2704
  %2707 = vset.pattern.permute.xlu0 0
  %2708 = vperm.xlu0 %2707, %v2571
  %v2709 = vpop.permute.xlu0 %2708
  %2711 = vset.pattern.permute.xlu0 0
  %2712 = vperm.xlu0 %2711, %v2572
  %v2713 = vpop.permute.xlu0 %2712
  %2715 = vset.pattern.permute.xlu0 0
  %2716 = vperm.xlu0 %2715, %v2573
  %v2717 = vpop.permute.xlu0 %2716
  %2719 = vset.pattern.permute.xlu0 0
  %2720 = vperm.xlu0 %2719, %v2574
  %v2721 = vpop.permute.xlu0 %2720
  %2723 = vset.pattern.permute.xlu0 0
  %2724 = vperm.xlu0 %2723, %v2575
  %v2725 = vpop.permute.xlu0 %2724
  %2727 = vset.pattern.permute.xlu0 0
  %2728 = vperm.xlu0 %2727, %v2576
  %v2729 = vpop.permute.xlu0 %2728
  %2731 = vset.pattern.permute.xlu0 0
  %2732 = vperm.xlu0 %2731, %v2577
  %v2733 = vpop.permute.xlu0 %2732
  %2735 = vset.pattern.permute.xlu0 0
  %2736 = vperm.xlu0 %2735, %v2578
  %v2737 = vpop.permute.xlu0 %2736
  %2739 = vset.pattern.permute.xlu0 0
  %2740 = vperm.xlu0 %2739, %v2579
  %v2741 = vpop.permute.xlu0 %2740
  %2743 = vset.pattern.permute.xlu0 0
  %2744 = vperm.xlu0 %2743, %v2580
  %v2745 = vpop.permute.xlu0 %2744
  %2747 = vset.pattern.permute.xlu0 0
  %2748 = vperm.xlu0 %2747, %v2581
  %v2749 = vpop.permute.xlu0 %2748
  %2751 = vset.pattern.permute.xlu0 0
  %2752 = vperm.xlu0 %2751, %v2582
  %v2753 = vpop.permute.xlu0 %2752
  %2755 = vset.pattern.permute.xlu0 0
  %2756 = vperm.xlu0 %2755, %v2583
  %v2757 = vpop.permute.xlu0 %2756
  %2759 = vset.pattern.permute.xlu0 0
  %2760 = vperm.xlu0 %2759, %v2584
  %v2761 = vpop.permute.xlu0 %2760
  %2763 = vset.pattern.permute.xlu0 0
  %2764 = vperm.xlu0 %2763, %v2585
  %v2765 = vpop.permute.xlu0 %2764
  %2767 = vset.pattern.permute.xlu0 0
  %2768 = vperm.xlu0 %2767, %v2586
  %v2769 = vpop.permute.xlu0 %2768
  %2771 = vset.pattern.permute.xlu0 0
  %2772 = vperm.xlu0 %2771, %v2587
  %v2773 = vpop.permute.xlu0 %2772
  %2775 = vset.pattern.permute.xlu0 0
  %2776 = vperm.xlu0 %2775, %v2588
  %v2777 = vpop.permute.xlu0 %2776
  %2779 = vset.pattern.permute.xlu0 0
  %2780 = vperm.xlu0 %2779, %v2589
  %v2781 = vpop.permute.xlu0 %2780
  %2783 = vset.pattern.permute.xlu0 0
  %2784 = vperm.xlu0 %2783, %v2590
  %v2785 = vpop.permute.xlu0 %2784
  %2787 = vset.pattern.permute.xlu0 0
  %2788 = vperm.xlu0 %2787, %v2591
  %v2789 = vpop.permute.xlu0 %2788
  %2791 = vset.pattern.permute.xlu0 0
  %2792 = vperm.xlu0 %2791, %v2592
  %v2793 = vpop.permute.xlu0 %2792
  %2795 = vset.pattern.permute.xlu0 0
  %2796 = vperm.xlu0 %2795, %v2593
  %v2797 = vpop.permute.xlu0 %2796
  %2799 = vset.pattern.permute.xlu0 0
  %2800 = vperm.xlu0 %2799, %v2594
  %v2801 = vpop.permute.xlu0 %2800
  %2803 = vset.pattern.permute.xlu0 0
  %2804 = vperm.xlu0 %2803, %v2595
  %v2805 = vpop.permute.xlu0 %2804
  %2807 = vset.pattern.permute.xlu0 0
  %2808 = vperm.xlu0 %2807, %v2596
  %v2809 = vpop.permute.xlu0 %2808
  %2811 = vset.pattern.permute.xlu0 0
  %2812 = vperm.xlu0 %2811, %v2597
  %v2813 = vpop.permute.xlu0 %2812
  %2815 = vset.pattern.permute.xlu0 0
  %2816 = vperm.xlu0 %2815, %v2598
  %v2817 = vpop.permute.xlu0 %2816
  %2819 = vset.pattern.permute.xlu0 0
  %2820 = vperm.xlu0 %2819, %v2599
  %v2821 = vpop.permute.xlu0 %2820
  %2823 = vset.pattern.permute.xlu0 0
  %2824 = vperm.xlu0 %2823, %v2600
  %v2825 = vpop.permute.xlu0 %2824
  %2827 = vset.pattern.permute.xlu0 0
  %2828 = vperm.xlu0 %2827, %v2601
  %v2829 = vpop.permute.xlu0 %2828
  %2831 = vset.pattern.permute.xlu0 0
  %2832 = vperm.xlu0 %2831, %v2602
  %v2833 = vpop.permute.xlu0 %2832
  %2835 = vset.pattern.permute.xlu0 0
  %2836 = vperm.xlu0 %2835, %v2603
  %v2837 = vpop.permute.xlu0 %2836
  %2839 = vset.pattern.permute.xlu0 0
  %2840 = vperm.xlu0 %2839, %v2604
  %v2841 = vpop.permute.xlu0 %2840
  %2843 = vset.pattern.permute.xlu0 0
  %2844 = vperm.xlu0 %2843, %v2605
  %v2845 = vpop.permute.xlu0 %2844
  %v2846 = vrot.slane %v2609, 6
  %v2847 = vrot.slane %v2613, 6
  %v2848 = vsel %vm2105, %v2846, %v2847
  %v2849 = vrot.slane %v2617, 6
  %v2850 = vsel %vm2105, %v2847, %v2849
  %v2851 = vrot.slane %v2621, 6
  %v2852 = vrot.slane %v2625, 6
  %v2853 = vsel %vm2105, %v2851, %v2852
  %v2854 = vrot.slane %v2629, 6
  %v2855 = vsel %vm2105, %v2852, %v2854
  %v2856 = vrot.slane %v2633, 6
  %v2857 = vrot.slane %v2637, 6
  %v2858 = vsel %vm2105, %v2856, %v2857
  %v2859 = vrot.slane %v2641, 6
  %v2860 = vsel %vm2105, %v2857, %v2859
  %v2861 = vrot.slane %v2645, 6
  %v2862 = vrot.slane %v2649, 6
  %v2863 = vsel %vm2105, %v2861, %v2862
  %v2864 = vrot.slane %v2653, 6
  %v2865 = vsel %vm2105, %v2862, %v2864
  %v2866 = vrot.slane %v2657, 6
  %v2867 = vrot.slane %v2661, 6
  %v2868 = vsel %vm2105, %v2866, %v2867
  %v2869 = vrot.slane %v2665, 6
  %v2870 = vsel %vm2105, %v2867, %v2869
  %v2871 = vrot.slane %v2669, 6
  %v2872 = vrot.slane %v2673, 6
  %v2873 = vsel %vm2105, %v2871, %v2872
  %v2874 = vrot.slane %v2677, 6
  %v2875 = vsel %vm2105, %v2872, %v2874
  %v2876 = vrot.slane %v2681, 6
  %v2877 = vrot.slane %v2685, 6
  %v2878 = vsel %vm2105, %v2876, %v2877
  %v2879 = vrot.slane %v2689, 6
  %v2880 = vsel %vm2105, %v2877, %v2879
  %v2881 = vrot.slane %v2693, 6
  %v2882 = vrot.slane %v2697, 6
  %v2883 = vsel %vm2105, %v2881, %v2882
  %v2884 = vrot.slane %v2701, 6
  %v2885 = vsel %vm2105, %v2882, %v2884
  %v2886 = vrot.slane %v2705, 6
  %v2887 = vrot.slane %v2709, 6
  %v2888 = vsel %vm2105, %v2886, %v2887
  %v2889 = vrot.slane %v2713, 6
  %v2890 = vsel %vm2105, %v2887, %v2889
  %v2891 = vrot.slane %v2717, 6
  %v2892 = vrot.slane %v2721, 6
  %v2893 = vsel %vm2105, %v2891, %v2892
  %v2894 = vrot.slane %v2725, 6
  %v2895 = vsel %vm2105, %v2892, %v2894
  %v2896 = vrot.slane %v2729, 6
  %v2897 = vrot.slane %v2733, 6
  %v2898 = vsel %vm2105, %v2896, %v2897
  %v2899 = vrot.slane %v2737, 6
  %v2900 = vsel %vm2105, %v2897, %v2899
  %v2901 = vrot.slane %v2741, 6
  %v2902 = vrot.slane %v2745, 6
  %v2903 = vsel %vm2105, %v2901, %v2902
  %v2904 = vrot.slane %v2749, 6
  %v2905 = vsel %vm2105, %v2902, %v2904
  %v2906 = vrot.slane %v2753, 6
  %v2907 = vrot.slane %v2757, 6
  %v2908 = vsel %vm2105, %v2906, %v2907
  %v2909 = vrot.slane %v2761, 6
  %v2910 = vsel %vm2105, %v2907, %v2909
  %v2911 = vrot.slane %v2765, 6
  %v2912 = vrot.slane %v2769, 6
  %v2913 = vsel %vm2105, %v2911, %v2912
  %v2914 = vrot.slane %v2773, 6
  %v2915 = vsel %vm2105, %v2912, %v2914
  %v2916 = vrot.slane %v2777, 6
  %v2917 = vrot.slane %v2781, 6
  %v2918 = vsel %vm2105, %v2916, %v2917
  %v2919 = vrot.slane %v2785, 6
  %v2920 = vsel %vm2105, %v2917, %v2919
  %v2921 = vrot.slane %v2789, 6
  %v2922 = vrot.slane %v2793, 6
  %v2923 = vsel %vm2105, %v2921, %v2922
  %v2924 = vrot.slane %v2797, 6
  %v2925 = vsel %vm2105, %v2922, %v2924
  %v2926 = vrot.slane %v2801, 6
  %v2927 = vrot.slane %v2805, 6
  %v2928 = vsel %vm2105, %v2926, %v2927
  %v2929 = vrot.slane %v2809, 6
  %v2930 = vsel %vm2105, %v2927, %v2929
  %v2931 = vrot.slane %v2813, 6
  %v2932 = vrot.slane %v2817, 6
  %v2933 = vsel %vm2105, %v2931, %v2932
  %v2934 = vrot.slane %v2821, 6
  %v2935 = vsel %vm2105, %v2932, %v2934
  %v2936 = vrot.slane %v2825, 6
  %v2937 = vrot.slane %v2829, 6
  %v2938 = vsel %vm2105, %v2936, %v2937
  %v2939 = vrot.slane %v2833, 6
  %v2940 = vsel %vm2105, %v2937, %v2939
  %v2941 = vrot.slane %v2837, 6
  %v2942 = vrot.slane %v2841, 6
  %v2943 = vsel %vm2105, %v2941, %v2942
  %v2944 = vrot.slane %v2845, 6
  %v2945 = vsel %vm2105, %v2942, %v2944
  %v3006 = vmul.f32 %v2426, %v2846
  %v3007 = vmul.f32 %v2427, %v2848
  %v3008 = vmul.f32 %v2428, %v2850
  %v3009 = vmul.f32 %v2429, %v2851
  %v3010 = vmul.f32 %v2430, %v2853
  %v3011 = vmul.f32 %v2431, %v2855
  %v3012 = vmul.f32 %v2432, %v2856
  %v3013 = vmul.f32 %v2433, %v2858
  %v3014 = vmul.f32 %v2434, %v2860
  %v3015 = vmul.f32 %v2435, %v2861
  %v3016 = vmul.f32 %v2436, %v2863
  %v3017 = vmul.f32 %v2437, %v2865
  %v3018 = vmul.f32 %v2438, %v2866
  %v3019 = vmul.f32 %v2439, %v2868
  %v3020 = vmul.f32 %v2440, %v2870
  %v3021 = vmul.f32 %v2441, %v2871
  %v3022 = vmul.f32 %v2442, %v2873
  %v3023 = vmul.f32 %v2443, %v2875
  %v3024 = vmul.f32 %v2444, %v2876
  %v3025 = vmul.f32 %v2445, %v2878
  %v3026 = vmul.f32 %v2446, %v2880
  %v3027 = vmul.f32 %v2447, %v2881
  %v3028 = vmul.f32 %v2448, %v2883
  %v3029 = vmul.f32 %v2449, %v2885
  %v3030 = vmul.f32 %v2450, %v2886
  %v3031 = vmul.f32 %v2451, %v2888
  %v3032 = vmul.f32 %v2452, %v2890
  %v3033 = vmul.f32 %v2453, %v2891
  %v3034 = vmul.f32 %v2454, %v2893
  %v3035 = vmul.f32 %v2455, %v2895
  %v3036 = vmul.f32 %v2456, %v2896
  %v3037 = vmul.f32 %v2457, %v2898
  %v3038 = vmul.f32 %v2458, %v2900
  %v3039 = vmul.f32 %v2459, %v2901
  %v3040 = vmul.f32 %v2460, %v2903
  %v3041 = vmul.f32 %v2461, %v2905
  %v3042 = vmul.f32 %v2462, %v2906
  %v3043 = vmul.f32 %v2463, %v2908
  %v3044 = vmul.f32 %v2464, %v2910
  %v3045 = vmul.f32 %v2465, %v2911
  %v3046 = vmul.f32 %v2466, %v2913
  %v3047 = vmul.f32 %v2467, %v2915
  %v3048 = vmul.f32 %v2468, %v2916
  %v3049 = vmul.f32 %v2469, %v2918
  %v3050 = vmul.f32 %v2470, %v2920
  %v3051 = vmul.f32 %v2471, %v2921
  %v3052 = vmul.f32 %v2472, %v2923
  %v3053 = vmul.f32 %v2473, %v2925
  %v3054 = vmul.f32 %v2474, %v2926
  %v3055 = vmul.f32 %v2475, %v2928
  %v3056 = vmul.f32 %v2476, %v2930
  %v3057 = vmul.f32 %v2477, %v2931
  %v3058 = vmul.f32 %v2478, %v2933
  %v3059 = vmul.f32 %v2479, %v2935
  %v3060 = vmul.f32 %v2480, %v2936
  %v3061 = vmul.f32 %v2481, %v2938
  %v3062 = vmul.f32 %v2482, %v2940
  %v3063 = vmul.f32 %v2483, %v2941
  %v3064 = vmul.f32 %v2484, %v2943
  %v3065 = vmul.f32 %v2485, %v2945
  %v3066 = vmul.f32 %v2486, %v2846
  %v3067 = vmul.f32 %v2487, %v2848
  %v3068 = vmul.f32 %v2488, %v2850
  %v3069 = vmul.f32 %v2489, %v2851
  %v3070 = vmul.f32 %v2490, %v2853
  %v3071 = vmul.f32 %v2491, %v2855
  %v3072 = vmul.f32 %v2492, %v2856
  %v3073 = vmul.f32 %v2493, %v2858
  %v3074 = vmul.f32 %v2494, %v2860
  %v3075 = vmul.f32 %v2495, %v2861
  %v3076 = vmul.f32 %v2496, %v2863
  %v3077 = vmul.f32 %v2497, %v2865
  %v3078 = vmul.f32 %v2498, %v2866
  %v3079 = vmul.f32 %v2499, %v2868
  %v3080 = vmul.f32 %v2500, %v2870
  %v3081 = vmul.f32 %v2501, %v2871
  %v3082 = vmul.f32 %v2502, %v2873
  %v3083 = vmul.f32 %v2503, %v2875
  %v3084 = vmul.f32 %v2504, %v2876
  %v3085 = vmul.f32 %v2505, %v2878
  %v3086 = vmul.f32 %v2506, %v2880
  %v3087 = vmul.f32 %v2507, %v2881
  %v3088 = vmul.f32 %v2508, %v2883
  %v3089 = vmul.f32 %v2509, %v2885
  %v3090 = vmul.f32 %v2510, %v2886
  %v3091 = vmul.f32 %v2511, %v2888
  %v3092 = vmul.f32 %v2512, %v2890
  %v3093 = vmul.f32 %v2513, %v2891
  %v3094 = vmul.f32 %v2514, %v2893
  %v3095 = vmul.f32 %v2515, %v2895
  %v3096 = vmul.f32 %v2516, %v2896
  %v3097 = vmul.f32 %v2517, %v2898
  %v3098 = vmul.f32 %v2518, %v2900
  %v3099 = vmul.f32 %v2519, %v2901
  %v3100 = vmul.f32 %v2520, %v2903
  %v3101 = vmul.f32 %v2521, %v2905
  %v3102 = vmul.f32 %v2522, %v2906
  %v3103 = vmul.f32 %v2523, %v2908
  %v3104 = vmul.f32 %v2524, %v2910
  %v3105 = vmul.f32 %v2525, %v2911
  %v3106 = vmul.f32 %v2526, %v2913
  %v3107 = vmul.f32 %v2527, %v2915
  %v3108 = vmul.f32 %v2528, %v2916
  %v3109 = vmul.f32 %v2529, %v2918
  %v3110 = vmul.f32 %v2530, %v2920
  %v3111 = vmul.f32 %v2531, %v2921
  %v3112 = vmul.f32 %v2532, %v2923
  %v3113 = vmul.f32 %v2533, %v2925
  %v3114 = vmul.f32 %v2534, %v2926
  %v3115 = vmul.f32 %v2535, %v2928
  %v3116 = vmul.f32 %v2536, %v2930
  %v3117 = vmul.f32 %v2537, %v2931
  %v3118 = vmul.f32 %v2538, %v2933
  %v3119 = vmul.f32 %v2539, %v2935
  %v3120 = vmul.f32 %v2540, %v2936
  %v3121 = vmul.f32 %v2541, %v2938
  %v3122 = vmul.f32 %v2542, %v2940
  %v3123 = vmul.f32 %v2543, %v2941
  %v3124 = vmul.f32 %v2544, %v2943
  %v3125 = vmul.f32 %v2545, %v2945
  %v3126 = vpack.c.bf16 %v3007, %v3006
  %v3127 = vpack.c.bf16 %v3008, %v3008
  %v3128 = vpack.c.bf16 %v3010, %v3009
  %v3129 = vpack.c.bf16 %v3011, %v3011
  %v3130 = vpack.c.bf16 %v3013, %v3012
  %v3131 = vpack.c.bf16 %v3014, %v3014
  %v3132 = vpack.c.bf16 %v3016, %v3015
  %v3133 = vpack.c.bf16 %v3017, %v3017
  %v3134 = vpack.c.bf16 %v3019, %v3018
  %v3135 = vpack.c.bf16 %v3020, %v3020
  %v3136 = vpack.c.bf16 %v3022, %v3021
  %v3137 = vpack.c.bf16 %v3023, %v3023
  %v3138 = vpack.c.bf16 %v3025, %v3024
  %v3139 = vpack.c.bf16 %v3026, %v3026
  %v3140 = vpack.c.bf16 %v3028, %v3027
  %v3141 = vpack.c.bf16 %v3029, %v3029
  %v3142 = vpack.c.bf16 %v3031, %v3030
  %v3143 = vpack.c.bf16 %v3032, %v3032
  %v3144 = vpack.c.bf16 %v3034, %v3033
  %v3145 = vpack.c.bf16 %v3035, %v3035
  %v3146 = vpack.c.bf16 %v3037, %v3036
  %v3147 = vpack.c.bf16 %v3038, %v3038
  %v3148 = vpack.c.bf16 %v3040, %v3039
  %v3149 = vpack.c.bf16 %v3041, %v3041
  %v3150 = vpack.c.bf16 %v3043, %v3042
  %v3151 = vpack.c.bf16 %v3044, %v3044
  %v3152 = vpack.c.bf16 %v3046, %v3045
  %v3153 = vpack.c.bf16 %v3047, %v3047
  %v3154 = vpack.c.bf16 %v3049, %v3048
  %v3155 = vpack.c.bf16 %v3050, %v3050
  %v3156 = vpack.c.bf16 %v3052, %v3051
  %v3157 = vpack.c.bf16 %v3053, %v3053
  %v3158 = vpack.c.bf16 %v3055, %v3054
  %v3159 = vpack.c.bf16 %v3056, %v3056
  %v3160 = vpack.c.bf16 %v3058, %v3057
  %v3161 = vpack.c.bf16 %v3059, %v3059
  %v3162 = vpack.c.bf16 %v3061, %v3060
  %v3163 = vpack.c.bf16 %v3062, %v3062
  %v3164 = vpack.c.bf16 %v3064, %v3063
  %v3165 = vpack.c.bf16 %v3065, %v3065
  %v3166 = vpack.c.bf16 %v3067, %v3066
  %v3167 = vpack.c.bf16 %v3068, %v3068
  %v3168 = vpack.c.bf16 %v3070, %v3069
  %v3169 = vpack.c.bf16 %v3071, %v3071
  %v3170 = vpack.c.bf16 %v3073, %v3072
  %v3171 = vpack.c.bf16 %v3074, %v3074
  %v3172 = vpack.c.bf16 %v3076, %v3075
  %v3173 = vpack.c.bf16 %v3077, %v3077
  %v3174 = vpack.c.bf16 %v3079, %v3078
  %v3175 = vpack.c.bf16 %v3080, %v3080
  %v3176 = vpack.c.bf16 %v3082, %v3081
  %v3177 = vpack.c.bf16 %v3083, %v3083
  %v3178 = vpack.c.bf16 %v3085, %v3084
  %v3179 = vpack.c.bf16 %v3086, %v3086
  %v3180 = vpack.c.bf16 %v3088, %v3087
  %v3181 = vpack.c.bf16 %v3089, %v3089
  %v3182 = vpack.c.bf16 %v3091, %v3090
  %v3183 = vpack.c.bf16 %v3092, %v3092
  %v3184 = vpack.c.bf16 %v3094, %v3093
  %v3185 = vpack.c.bf16 %v3095, %v3095
  %v3186 = vpack.c.bf16 %v3097, %v3096
  %v3187 = vpack.c.bf16 %v3098, %v3098
  %v3188 = vpack.c.bf16 %v3100, %v3099
  %v3189 = vpack.c.bf16 %v3101, %v3101
  %v3190 = vpack.c.bf16 %v3103, %v3102
  %v3191 = vpack.c.bf16 %v3104, %v3104
  %v3192 = vpack.c.bf16 %v3106, %v3105
  %v3193 = vpack.c.bf16 %v3107, %v3107
  %v3194 = vpack.c.bf16 %v3109, %v3108
  %v3195 = vpack.c.bf16 %v3110, %v3110
  %v3196 = vpack.c.bf16 %v3112, %v3111
  %v3197 = vpack.c.bf16 %v3113, %v3113
  %v3198 = vpack.c.bf16 %v3115, %v3114
  %v3199 = vpack.c.bf16 %v3116, %v3116
  %v3200 = vpack.c.bf16 %v3118, %v3117
  %v3201 = vpack.c.bf16 %v3119, %v3119
  %v3202 = vpack.c.bf16 %v3121, %v3120
  %v3203 = vpack.c.bf16 %v3122, %v3122
  %v3204 = vpack.c.bf16 %v3124, %v3123
  %v3205 = vpack.c.bf16 %v3125, %v3125
  %v3206 = vld [vmem:[%s4] sm:$0x3]
  %vm3271 = vcmask 1046528
  %v3272 = vrot.slane %v3126, 1
  %v3273 = vrot.slane %v3127, 1
  %v3274 = vsel %vm3271, %v3272, %v3273
  %v3275 = vrot.slane %v3128, 1
  %v3276 = vrot.slane %v3129, 1
  %v3277 = vsel %vm3271, %v3275, %v3276
  %v3278 = vrot.slane %v3130, 1
  %v3279 = vrot.slane %v3131, 1
  %v3280 = vsel %vm3271, %v3278, %v3279
  %v3281 = vrot.slane %v3132, 1
  %v3282 = vrot.slane %v3133, 1
  %v3283 = vsel %vm3271, %v3281, %v3282
  %v3284 = vrot.slane %v3134, 1
  %v3285 = vrot.slane %v3135, 1
  %v3286 = vsel %vm3271, %v3284, %v3285
  %v3287 = vrot.slane %v3136, 1
  %v3288 = vrot.slane %v3137, 1
  %v3289 = vsel %vm3271, %v3287, %v3288
  %v3290 = vrot.slane %v3138, 1
  %v3291 = vrot.slane %v3139, 1
  %v3292 = vsel %vm3271, %v3290, %v3291
  %v3293 = vrot.slane %v3140, 1
  %v3294 = vrot.slane %v3141, 1
  %v3295 = vsel %vm3271, %v3293, %v3294
  %v3296 = vrot.slane %v3142, 1
  %v3297 = vrot.slane %v3143, 1
  %v3298 = vsel %vm3271, %v3296, %v3297
  %v3299 = vrot.slane %v3144, 1
  %v3300 = vrot.slane %v3145, 1
  %v3301 = vsel %vm3271, %v3299, %v3300
  %v3302 = vrot.slane %v3146, 1
  %v3303 = vrot.slane %v3147, 1
  %v3304 = vsel %vm3271, %v3302, %v3303
  %v3305 = vrot.slane %v3148, 1
  %v3306 = vrot.slane %v3149, 1
  %v3307 = vsel %vm3271, %v3305, %v3306
  %v3308 = vrot.slane %v3150, 1
  %v3309 = vrot.slane %v3151, 1
  %v3310 = vsel %vm3271, %v3308, %v3309
  %v3311 = vrot.slane %v3152, 1
  %v3312 = vrot.slane %v3153, 1
  %v3313 = vsel %vm3271, %v3311, %v3312
  %v3314 = vrot.slane %v3154, 1
  %v3315 = vrot.slane %v3155, 1
  %v3316 = vsel %vm3271, %v3314, %v3315
  %v3317 = vrot.slane %v3156, 1
  %v3318 = vrot.slane %v3157, 1
  %v3319 = vsel %vm3271, %v3317, %v3318
  %v3320 = vrot.slane %v3166, 1
  %v3321 = vrot.slane %v3167, 1
  %v3322 = vsel %vm3271, %v3320, %v3321
  %v3323 = vrot.slane %v3168, 1
  %v3324 = vrot.slane %v3169, 1
  %v3325 = vsel %vm3271, %v3323, %v3324
  %v3326 = vrot.slane %v3170, 1
  %v3327 = vrot.slane %v3171, 1
  %v3328 = vsel %vm3271, %v3326, %v3327
  %v3329 = vrot.slane %v3172, 1
  %v3330 = vrot.slane %v3173, 1
  %v3331 = vsel %vm3271, %v3329, %v3330
  %v3332 = vrot.slane %v3174, 1
  %v3333 = vrot.slane %v3175, 1
  %v3334 = vsel %vm3271, %v3332, %v3333
  %v3335 = vrot.slane %v3176, 1
  %v3336 = vrot.slane %v3177, 1
  %v3337 = vsel %vm3271, %v3335, %v3336
  %v3338 = vrot.slane %v3178, 1
  %v3339 = vrot.slane %v3179, 1
  %v3340 = vsel %vm3271, %v3338, %v3339
  %v3341 = vrot.slane %v3180, 1
  %v3342 = vrot.slane %v3181, 1
  %v3343 = vsel %vm3271, %v3341, %v3342
  %v3344 = vrot.slane %v3182, 1
  %v3345 = vrot.slane %v3183, 1
  %v3346 = vsel %vm3271, %v3344, %v3345
  %v3347 = vrot.slane %v3184, 1
  %v3348 = vrot.slane %v3185, 1
  %v3349 = vsel %vm3271, %v3347, %v3348
  %v3350 = vrot.slane %v3186, 1
  %v3351 = vrot.slane %v3187, 1
  %v3352 = vsel %vm3271, %v3350, %v3351
  %v3353 = vrot.slane %v3188, 1
  %v3354 = vrot.slane %v3189, 1
  %v3355 = vsel %vm3271, %v3353, %v3354
  %v3356 = vrot.slane %v3190, 1
  %v3357 = vrot.slane %v3191, 1
  %v3358 = vsel %vm3271, %v3356, %v3357
  %v3359 = vrot.slane %v3192, 1
  %v3360 = vrot.slane %v3193, 1
  %v3361 = vsel %vm3271, %v3359, %v3360
  %v3362 = vrot.slane %v3194, 1
  %v3363 = vrot.slane %v3195, 1
  %v3364 = vsel %vm3271, %v3362, %v3363
  %v3365 = vrot.slane %v3196, 1
  %v3366 = vrot.slane %v3197, 1
  %v3367 = vsel %vm3271, %v3365, %v3366
  %vm3400 = vcmask 31744
  %3401 = vst.msk [vmem:[#allocation2] sm:$0xff] %vm3400, %v3274
  %3402 = vst.msk [vmem:[#allocation2 + $0x8] sm:$0xff] %vm3400, %v3277
  %3403 = vst.msk [vmem:[#allocation2 + $0x10] sm:$0xff] %vm3400, %v3280
  %3404 = vst.msk [vmem:[#allocation2 + $0x18] sm:$0xff] %vm3400, %v3283
  %3405 = vst.msk [vmem:[#allocation2 + $0x20] sm:$0xff] %vm3400, %v3286
  %3406 = vst.msk [vmem:[#allocation2 + $0x28] sm:$0xff] %vm3400, %v3289
  %3407 = vst.msk [vmem:[#allocation2 + $0x30] sm:$0xff] %vm3400, %v3292
  %3408 = vst.msk [vmem:[#allocation2 + $0x38] sm:$0xff] %vm3400, %v3295
  %3409 = vst.msk [vmem:[#allocation2 + $0x40] sm:$0xff] %vm3400, %v3298
  %3410 = vst.msk [vmem:[#allocation2 + $0x48] sm:$0xff] %vm3400, %v3301
  %3411 = vst.msk [vmem:[#allocation2 + $0x50] sm:$0xff] %vm3400, %v3304
  %3412 = vst.msk [vmem:[#allocation2 + $0x58] sm:$0xff] %vm3400, %v3307
  %3413 = vst.msk [vmem:[#allocation2 + $0x60] sm:$0xff] %vm3400, %v3310
  %3414 = vst.msk [vmem:[#allocation2 + $0x68] sm:$0xff] %vm3400, %v3313
  %3415 = vst.msk [vmem:[#allocation2 + $0x70] sm:$0xff] %vm3400, %v3316
  %3416 = vst.msk [vmem:[#allocation2 + $0x78] sm:$0xff] %vm3400, %v3319
  %3417 = vst.msk [vmem:[#allocation2 + $0x80] sm:$0xff] %vm3400, %v3322
  %3418 = vst.msk [vmem:[#allocation2 + $0x88] sm:$0xff] %vm3400, %v3325
  %3419 = vst.msk [vmem:[#allocation2 + $0x90] sm:$0xff] %vm3400, %v3328
  %3420 = vst.msk [vmem:[#allocation2 + $0x98] sm:$0xff] %vm3400, %v3331
  %3421 = vst.msk [vmem:[#allocation2 + $0xa0] sm:$0xff] %vm3400, %v3334
  %3422 = vst.msk [vmem:[#allocation2 + $0xa8] sm:$0xff] %vm3400, %v3337
  %3423 = vst.msk [vmem:[#allocation2 + $0xb0] sm:$0xff] %vm3400, %v3340
  %3424 = vst.msk [vmem:[#allocation2 + $0xb8] sm:$0xff] %vm3400, %v3343
  %3425 = vst.msk [vmem:[#allocation2 + $0xc0] sm:$0xff] %vm3400, %v3346
  %3426 = vst.msk [vmem:[#allocation2 + $0xc8] sm:$0xff] %vm3400, %v3349
  %3427 = vst.msk [vmem:[#allocation2 + $0xd0] sm:$0xff] %vm3400, %v3352
  %3428 = vst.msk [vmem:[#allocation2 + $0xd8] sm:$0xff] %vm3400, %v3355
  %3429 = vst.msk [vmem:[#allocation2 + $0xe0] sm:$0xff] %vm3400, %v3358
  %3430 = vst.msk [vmem:[#allocation2 + $0xe8] sm:$0xff] %vm3400, %v3361
  %3431 = vst.msk [vmem:[#allocation2 + $0xf0] sm:$0xff] %vm3400, %v3364
  %3432 = vst.msk [vmem:[#allocation2 + $0xf8] sm:$0xff] %vm3400, %v3367
  %vm3433 = vsmask.f32 6400
  %v3435 = vshrl.u32 %v3126, 16
  %v3437 = vrot.slane %v3435, 1
  %v3438 = vshll.u32 %v3126, 16
  %v3440 = vrot.slane %v3438, 2
  %v3441 = vor.u32 %v3437, %v3440
  %v3443 = vshrl.u32 %v3127, 16
  %v3445 = vrot.slane %v3443, 1
  %v3446 = vshll.u32 %v3127, 16
  %v3448 = vrot.slane %v3446, 2
  %v3449 = vor.u32 %v3445, %v3448
  %v3450 = vsel %vm3433, %v3441, %v3449
  %v3452 = vshrl.u32 %v3128, 16
  %v3454 = vrot.slane %v3452, 1
  %v3455 = vshll.u32 %v3128, 16
  %v3457 = vrot.slane %v3455, 2
  %v3458 = vor.u32 %v3454, %v3457
  %v3460 = vshrl.u32 %v3129, 16
  %v3462 = vrot.slane %v3460, 1
  %v3463 = vshll.u32 %v3129, 16
  %v3465 = vrot.slane %v3463, 2
  %v3466 = vor.u32 %v3462, %v3465
  %v3467 = vsel %vm3433, %v3458, %v3466
  %v3469 = vshrl.u32 %v3130, 16
  %v3471 = vrot.slane %v3469, 1
  %v3472 = vshll.u32 %v3130, 16
  %v3474 = vrot.slane %v3472, 2
  %v3475 = vor.u32 %v3471, %v3474
  %v3477 = vshrl.u32 %v3131, 16
  %v3479 = vrot.slane %v3477, 1
  %v3480 = vshll.u32 %v3131, 16
  %v3482 = vrot.slane %v3480, 2
  %v3483 = vor.u32 %v3479, %v3482
  %v3484 = vsel %vm3433, %v3475, %v3483
  %v3486 = vshrl.u32 %v3132, 16
  %v3488 = vrot.slane %v3486, 1
  %v3489 = vshll.u32 %v3132, 16
  %v3491 = vrot.slane %v3489, 2
  %v3492 = vor.u32 %v3488, %v3491
  %v3494 = vshrl.u32 %v3133, 16
  %v3496 = vrot.slane %v3494, 1
  %v3497 = vshll.u32 %v3133, 16
  %v3499 = vrot.slane %v3497, 2
  %v3500 = vor.u32 %v3496, %v3499
  %v3501 = vsel %vm3433, %v3492, %v3500
  %v3503 = vshrl.u32 %v3134, 16
  %v3505 = vrot.slane %v3503, 1
  %v3506 = vshll.u32 %v3134, 16
  %v3508 = vrot.slane %v3506, 2
  %v3509 = vor.u32 %v3505, %v3508
  %v3511 = vshrl.u32 %v3135, 16
  %v3513 = vrot.slane %v3511, 1
  %v3514 = vshll.u32 %v3135, 16
  %v3516 = vrot.slane %v3514, 2
  %v3517 = vor.u32 %v3513, %v3516
  %v3518 = vsel %vm3433, %v3509, %v3517
  %v3520 = vshrl.u32 %v3136, 16
  %v3522 = vrot.slane %v3520, 1
  %v3523 = vshll.u32 %v3136, 16
  %v3525 = vrot.slane %v3523, 2
  %v3526 = vor.u32 %v3522, %v3525
  %v3528 = vshrl.u32 %v3137, 16
  %v3530 = vrot.slane %v3528, 1
  %v3531 = vshll.u32 %v3137, 16
  %v3533 = vrot.slane %v3531, 2
  %v3534 = vor.u32 %v3530, %v3533
  %v3535 = vsel %vm3433, %v3526, %v3534
  %v3537 = vshrl.u32 %v3138, 16
  %v3539 = vrot.slane %v3537, 1
  %v3540 = vshll.u32 %v3138, 16
  %v3542 = vrot.slane %v3540, 2
  %v3543 = vor.u32 %v3539, %v3542
  %v3545 = vshrl.u32 %v3139, 16
  %v3547 = vrot.slane %v3545, 1
  %v3548 = vshll.u32 %v3139, 16
  %v3550 = vrot.slane %v3548, 2
  %v3551 = vor.u32 %v3547, %v3550
  %v3552 = vsel %vm3433, %v3543, %v3551
  %v3554 = vshrl.u32 %v3140, 16
  %v3556 = vrot.slane %v3554, 1
  %v3557 = vshll.u32 %v3140, 16
  %v3559 = vrot.slane %v3557, 2
  %v3560 = vor.u32 %v3556, %v3559
  %v3562 = vshrl.u32 %v3141, 16
  %v3564 = vrot.slane %v3562, 1
  %v3565 = vshll.u32 %v3141, 16
  %v3567 = vrot.slane %v3565, 2
  %v3568 = vor.u32 %v3564, %v3567
  %v3569 = vsel %vm3433, %v3560, %v3568
  %v3571 = vshrl.u32 %v3142, 16
  %v3573 = vrot.slane %v3571, 1
  %v3574 = vshll.u32 %v3142, 16
  %v3576 = vrot.slane %v3574, 2
  %v3577 = vor.u32 %v3573, %v3576
  %v3579 = vshrl.u32 %v3143, 16
  %v3581 = vrot.slane %v3579, 1
  %v3582 = vshll.u32 %v3143, 16
  %v3584 = vrot.slane %v3582, 2
  %v3585 = vor.u32 %v3581, %v3584
  %v3586 = vsel %vm3433, %v3577, %v3585
  %v3588 = vshrl.u32 %v3144, 16
  %v3590 = vrot.slane %v3588, 1
  %v3591 = vshll.u32 %v3144, 16
  %v3593 = vrot.slane %v3591, 2
  %v3594 = vor.u32 %v3590, %v3593
  %v3596 = vshrl.u32 %v3145, 16
  %v3598 = vrot.slane %v3596, 1
  %v3599 = vshll.u32 %v3145, 16
  %v3601 = vrot.slane %v3599, 2
  %v3602 = vor.u32 %v3598, %v3601
  %v3603 = vsel %vm3433, %v3594, %v3602
  %v3605 = vshrl.u32 %v3146, 16
  %v3607 = vrot.slane %v3605, 1
  %v3608 = vshll.u32 %v3146, 16
  %v3610 = vrot.slane %v3608, 2
  %v3611 = vor.u32 %v3607, %v3610
  %v3613 = vshrl.u32 %v3147, 16
  %v3615 = vrot.slane %v3613, 1
  %v3616 = vshll.u32 %v3147, 16
  %v3618 = vrot.slane %v3616, 2
  %v3619 = vor.u32 %v3615, %v3618
  %v3620 = vsel %vm3433, %v3611, %v3619
  %v3622 = vshrl.u32 %v3148, 16
  %v3624 = vrot.slane %v3622, 1
  %v3625 = vshll.u32 %v3148, 16
  %v3627 = vrot.slane %v3625, 2
  %v3628 = vor.u32 %v3624, %v3627
  %v3630 = vshrl.u32 %v3149, 16
  %v3632 = vrot.slane %v3630, 1
  %v3633 = vshll.u32 %v3149, 16
  %v3635 = vrot.slane %v3633, 2
  %v3636 = vor.u32 %v3632, %v3635
  %v3637 = vsel %vm3433, %v3628, %v3636
  %v3639 = vshrl.u32 %v3150, 16
  %v3641 = vrot.slane %v3639, 1
  %v3642 = vshll.u32 %v3150, 16
  %v3644 = vrot.slane %v3642, 2
  %v3645 = vor.u32 %v3641, %v3644
  %v3647 = vshrl.u32 %v3151, 16
  %v3649 = vrot.slane %v3647, 1
  %v3650 = vshll.u32 %v3151, 16
  %v3652 = vrot.slane %v3650, 2
  %v3653 = vor.u32 %v3649, %v3652
  %v3654 = vsel %vm3433, %v3645, %v3653
  %v3656 = vshrl.u32 %v3152, 16
  %v3658 = vrot.slane %v3656, 1
  %v3659 = vshll.u32 %v3152, 16
  %v3661 = vrot.slane %v3659, 2
  %v3662 = vor.u32 %v3658, %v3661
  %v3664 = vshrl.u32 %v3153, 16
  %v3666 = vrot.slane %v3664, 1
  %v3667 = vshll.u32 %v3153, 16
  %v3669 = vrot.slane %v3667, 2
  %v3670 = vor.u32 %v3666, %v3669
  %v3671 = vsel %vm3433, %v3662, %v3670
  %v3673 = vshrl.u32 %v3154, 16
  %v3675 = vrot.slane %v3673, 1
  %v3676 = vshll.u32 %v3154, 16
  %v3678 = vrot.slane %v3676, 2
  %v3679 = vor.u32 %v3675, %v3678
  %v3681 = vshrl.u32 %v3155, 16
  %v3683 = vrot.slane %v3681, 1
  %v3684 = vshll.u32 %v3155, 16
  %v3686 = vrot.slane %v3684, 2
  %v3687 = vor.u32 %v3683, %v3686
  %v3688 = vsel %vm3433, %v3679, %v3687
  %v3690 = vshrl.u32 %v3156, 16
  %v3692 = vrot.slane %v3690, 1
  %v3693 = vshll.u32 %v3156, 16
  %v3695 = vrot.slane %v3693, 2
  %v3696 = vor.u32 %v3692, %v3695
  %v3698 = vshrl.u32 %v3157, 16
  %v3700 = vrot.slane %v3698, 1
  %v3701 = vshll.u32 %v3157, 16
  %v3703 = vrot.slane %v3701, 2
  %v3704 = vor.u32 %v3700, %v3703
  %v3705 = vsel %vm3433, %v3696, %v3704
  %v3707 = vshrl.u32 %v3166, 16
  %v3709 = vrot.slane %v3707, 1
  %v3710 = vshll.u32 %v3166, 16
  %v3712 = vrot.slane %v3710, 2
  %v3713 = vor.u32 %v3709, %v3712
  %v3715 = vshrl.u32 %v3167, 16
  %v3717 = vrot.slane %v3715, 1
  %v3718 = vshll.u32 %v3167, 16
  %v3720 = vrot.slane %v3718, 2
  %v3721 = vor.u32 %v3717, %v3720
  %v3722 = vsel %vm3433, %v3713, %v3721
  %v3724 = vshrl.u32 %v3168, 16
  %v3726 = vrot.slane %v3724, 1
  %v3727 = vshll.u32 %v3168, 16
  %v3729 = vrot.slane %v3727, 2
  %v3730 = vor.u32 %v3726, %v3729
  %v3732 = vshrl.u32 %v3169, 16
  %v3734 = vrot.slane %v3732, 1
  %v3735 = vshll.u32 %v3169, 16
  %v3737 = vrot.slane %v3735, 2
  %v3738 = vor.u32 %v3734, %v3737
  %v3739 = vsel %vm3433, %v3730, %v3738
  %v3741 = vshrl.u32 %v3170, 16
  %v3743 = vrot.slane %v3741, 1
  %v3744 = vshll.u32 %v3170, 16
  %v3746 = vrot.slane %v3744, 2
  %v3747 = vor.u32 %v3743, %v3746
  %v3749 = vshrl.u32 %v3171, 16
  %v3751 = vrot.slane %v3749, 1
  %v3752 = vshll.u32 %v3171, 16
  %v3754 = vrot.slane %v3752, 2
  %v3755 = vor.u32 %v3751, %v3754
  %v3756 = vsel %vm3433, %v3747, %v3755
  %v3758 = vshrl.u32 %v3172, 16
  %v3760 = vrot.slane %v3758, 1
  %v3761 = vshll.u32 %v3172, 16
  %v3763 = vrot.slane %v3761, 2
  %v3764 = vor.u32 %v3760, %v3763
  %v3766 = vshrl.u32 %v3173, 16
  %v3768 = vrot.slane %v3766, 1
  %v3769 = vshll.u32 %v3173, 16
  %v3771 = vrot.slane %v3769, 2
  %v3772 = vor.u32 %v3768, %v3771
  %v3773 = vsel %vm3433, %v3764, %v3772
  %v3775 = vshrl.u32 %v3174, 16
  %v3777 = vrot.slane %v3775, 1
  %v3778 = vshll.u32 %v3174, 16
  %v3780 = vrot.slane %v3778, 2
  %v3781 = vor.u32 %v3777, %v3780
  %v3783 = vshrl.u32 %v3175, 16
  %v3785 = vrot.slane %v3783, 1
  %v3786 = vshll.u32 %v3175, 16
  %v3788 = vrot.slane %v3786, 2
  %v3789 = vor.u32 %v3785, %v3788
  %v3790 = vsel %vm3433, %v3781, %v3789
  %v3792 = vshrl.u32 %v3176, 16
  %v3794 = vrot.slane %v3792, 1
  %v3795 = vshll.u32 %v3176, 16
  %v3797 = vrot.slane %v3795, 2
  %v3798 = vor.u32 %v3794, %v3797
  %v3800 = vshrl.u32 %v3177, 16
  %v3802 = vrot.slane %v3800, 1
  %v3803 = vshll.u32 %v3177, 16
  %v3805 = vrot.slane %v3803, 2
  %v3806 = vor.u32 %v3802, %v3805
  %v3807 = vsel %vm3433, %v3798, %v3806
  %v3809 = vshrl.u32 %v3178, 16
  %v3811 = vrot.slane %v3809, 1
  %v3812 = vshll.u32 %v3178, 16
  %v3814 = vrot.slane %v3812, 2
  %v3815 = vor.u32 %v3811, %v3814
  %v3817 = vshrl.u32 %v3179, 16
  %v3819 = vrot.slane %v3817, 1
  %v3820 = vshll.u32 %v3179, 16
  %v3822 = vrot.slane %v3820, 2
  %v3823 = vor.u32 %v3819, %v3822
  %v3824 = vsel %vm3433, %v3815, %v3823
  %v3826 = vshrl.u32 %v3180, 16
  %v3828 = vrot.slane %v3826, 1
  %v3829 = vshll.u32 %v3180, 16
  %v3831 = vrot.slane %v3829, 2
  %v3832 = vor.u32 %v3828, %v3831
  %v3834 = vshrl.u32 %v3181, 16
  %v3836 = vrot.slane %v3834, 1
  %v3837 = vshll.u32 %v3181, 16
  %v3839 = vrot.slane %v3837, 2
  %v3840 = vor.u32 %v3836, %v3839
  %v3841 = vsel %vm3433, %v3832, %v3840
  %v3843 = vshrl.u32 %v3182, 16
  %v3845 = vrot.slane %v3843, 1
  %v3846 = vshll.u32 %v3182, 16
  %v3848 = vrot.slane %v3846, 2
  %v3849 = vor.u32 %v3845, %v3848
  %v3851 = vshrl.u32 %v3183, 16
  %v3853 = vrot.slane %v3851, 1
  %v3854 = vshll.u32 %v3183, 16
  %v3856 = vrot.slane %v3854, 2
  %v3857 = vor.u32 %v3853, %v3856
  %v3858 = vsel %vm3433, %v3849, %v3857
  %v3860 = vshrl.u32 %v3184, 16
  %v3862 = vrot.slane %v3860, 1
  %v3863 = vshll.u32 %v3184, 16
  %v3865 = vrot.slane %v3863, 2
  %v3866 = vor.u32 %v3862, %v3865
  %v3868 = vshrl.u32 %v3185, 16
  %v3870 = vrot.slane %v3868, 1
  %v3871 = vshll.u32 %v3185, 16
  %v3873 = vrot.slane %v3871, 2
  %v3874 = vor.u32 %v3870, %v3873
  %v3875 = vsel %vm3433, %v3866, %v3874
  %v3877 = vshrl.u32 %v3186, 16
  %v3879 = vrot.slane %v3877, 1
  %v3880 = vshll.u32 %v3186, 16
  %v3882 = vrot.slane %v3880, 2
  %v3883 = vor.u32 %v3879, %v3882
  %v3885 = vshrl.u32 %v3187, 16
  %v3887 = vrot.slane %v3885, 1
  %v3888 = vshll.u32 %v3187, 16
  %v3890 = vrot.slane %v3888, 2
  %v3891 = vor.u32 %v3887, %v3890
  %v3892 = vsel %vm3433, %v3883, %v3891
  %v3894 = vshrl.u32 %v3188, 16
  %v3896 = vrot.slane %v3894, 1
  %v3897 = vshll.u32 %v3188, 16
  %v3899 = vrot.slane %v3897, 2
  %v3900 = vor.u32 %v3896, %v3899
  %v3902 = vshrl.u32 %v3189, 16
  %v3904 = vrot.slane %v3902, 1
  %v3905 = vshll.u32 %v3189, 16
  %v3907 = vrot.slane %v3905, 2
  %v3908 = vor.u32 %v3904, %v3907
  %v3909 = vsel %vm3433, %v3900, %v3908
  %v3911 = vshrl.u32 %v3190, 16
  %v3913 = vrot.slane %v3911, 1
  %v3914 = vshll.u32 %v3190, 16
  %v3916 = vrot.slane %v3914, 2
  %v3917 = vor.u32 %v3913, %v3916
  %v3919 = vshrl.u32 %v3191, 16
  %v3921 = vrot.slane %v3919, 1
  %v3922 = vshll.u32 %v3191, 16
  %v3924 = vrot.slane %v3922, 2
  %v3925 = vor.u32 %v3921, %v3924
  %v3926 = vsel %vm3433, %v3917, %v3925
  %v3928 = vshrl.u32 %v3192, 16
  %v3930 = vrot.slane %v3928, 1
  %v3931 = vshll.u32 %v3192, 16
  %v3933 = vrot.slane %v3931, 2
  %v3934 = vor.u32 %v3930, %v3933
  %v3936 = vshrl.u32 %v3193, 16
  %v3938 = vrot.slane %v3936, 1
  %v3939 = vshll.u32 %v3193, 16
  %v3941 = vrot.slane %v3939, 2
  %v3942 = vor.u32 %v3938, %v3941
  %v3943 = vsel %vm3433, %v3934, %v3942
  %v3945 = vshrl.u32 %v3194, 16
  %v3947 = vrot.slane %v3945, 1
  %v3948 = vshll.u32 %v3194, 16
  %v3950 = vrot.slane %v3948, 2
  %v3951 = vor.u32 %v3947, %v3950
  %v3953 = vshrl.u32 %v3195, 16
  %v3955 = vrot.slane %v3953, 1
  %v3956 = vshll.u32 %v3195, 16
  %v3958 = vrot.slane %v3956, 2
  %v3959 = vor.u32 %v3955, %v3958
  %v3960 = vsel %vm3433, %v3951, %v3959
  %v3962 = vshrl.u32 %v3196, 16
  %v3964 = vrot.slane %v3962, 1
  %v3965 = vshll.u32 %v3196, 16
  %v3967 = vrot.slane %v3965, 2
  %v3968 = vor.u32 %v3964, %v3967
  %v3970 = vshrl.u32 %v3197, 16
  %v3972 = vrot.slane %v3970, 1
  %v3973 = vshll.u32 %v3197, 16
  %v3975 = vrot.slane %v3973, 2
  %v3976 = vor.u32 %v3972, %v3975
  %v3977 = vsel %vm3433, %v3968, %v3976
  %3978 = vrot.lane.b32.xlu0 %v3450, 4
  %v3979 = vpop.permute.xlu0 %3978
  %3980 = vrot.lane.b32.xlu0 %v3467, 4
  %v3981 = vpop.permute.xlu0 %3980
  %3982 = vrot.lane.b32.xlu0 %v3484, 4
  %v3983 = vpop.permute.xlu0 %3982
  %3984 = vrot.lane.b32.xlu0 %v3501, 4
  %v3985 = vpop.permute.xlu0 %3984
  %3986 = vrot.lane.b32.xlu0 %v3518, 4
  %v3987 = vpop.permute.xlu0 %3986
  %3988 = vrot.lane.b32.xlu0 %v3535, 4
  %v3989 = vpop.permute.xlu0 %3988
  %3990 = vrot.lane.b32.xlu0 %v3552, 4
  %v3991 = vpop.permute.xlu0 %3990
  %3992 = vrot.lane.b32.xlu0 %v3569, 4
  %v3993 = vpop.permute.xlu0 %3992
  %3994 = vrot.lane.b32.xlu0 %v3586, 4
  %v3995 = vpop.permute.xlu0 %3994
  %3996 = vrot.lane.b32.xlu0 %v3603, 4
  %v3997 = vpop.permute.xlu0 %3996
  %3998 = vrot.lane.b32.xlu0 %v3620, 4
  %v3999 = vpop.permute.xlu0 %3998
  %4000 = vrot.lane.b32.xlu0 %v3637, 4
  %v4001 = vpop.permute.xlu0 %4000
  %4002 = vrot.lane.b32.xlu0 %v3654, 4
  %v4003 = vpop.permute.xlu0 %4002
  %4004 = vrot.lane.b32.xlu0 %v3671, 4
  %v4005 = vpop.permute.xlu0 %4004
  %4006 = vrot.lane.b32.xlu0 %v3688, 4
  %v4007 = vpop.permute.xlu0 %4006
  %4008 = vrot.lane.b32.xlu0 %v3705, 4
  %v4009 = vpop.permute.xlu0 %4008
  %4010 = vrot.lane.b32.xlu0 %v3722, 4
  %v4011 = vpop.permute.xlu0 %4010
  %4012 = vrot.lane.b32.xlu0 %v3739, 4
  %v4013 = vpop.permute.xlu0 %4012
  %4014 = vrot.lane.b32.xlu0 %v3756, 4
  %v4015 = vpop.permute.xlu0 %4014
  %4016 = vrot.lane.b32.xlu0 %v3773, 4
  %v4017 = vpop.permute.xlu0 %4016
  %4018 = vrot.lane.b32.xlu0 %v3790, 4
  %v4019 = vpop.permute.xlu0 %4018
  %4020 = vrot.lane.b32.xlu0 %v3807, 4
  %v4021 = vpop.permute.xlu0 %4020
  %4022 = vrot.lane.b32.xlu0 %v3824, 4
  %v4023 = vpop.permute.xlu0 %4022
  %4024 = vrot.lane.b32.xlu0 %v3841, 4
  %v4025 = vpop.permute.xlu0 %4024
  %4026 = vrot.lane.b32.xlu0 %v3858, 4
  %v4027 = vpop.permute.xlu0 %4026
  %4028 = vrot.lane.b32.xlu0 %v3875, 4
  %v4029 = vpop.permute.xlu0 %4028
  %4030 = vrot.lane.b32.xlu0 %v3892, 4
  %v4031 = vpop.permute.xlu0 %4030
  %4032 = vrot.lane.b32.xlu0 %v3909, 4
  %v4033 = vpop.permute.xlu0 %4032
  %4034 = vrot.lane.b32.xlu0 %v3926, 4
  %v4035 = vpop.permute.xlu0 %4034
  %4036 = vrot.lane.b32.xlu0 %v3943, 4
  %v4037 = vpop.permute.xlu0 %4036
  %4038 = vrot.lane.b32.xlu0 %v3960, 4
  %v4039 = vpop.permute.xlu0 %4038
  %4040 = vrot.lane.b32.xlu0 %v3977, 4
  %v4041 = vpop.permute.xlu0 %4040
  %vm4074 = vcmask 64544
  %4075 = vst.msk [vmem:[#allocation2] sm:$0xff] %vm4074, %v3979
  %4076 = vst.msk [vmem:[#allocation2 + $0x8] sm:$0xff] %vm4074, %v3981
  %4077 = vst.msk [vmem:[#allocation2 + $0x10] sm:$0xff] %vm4074, %v3983
  %4078 = vst.msk [vmem:[#allocation2 + $0x18] sm:$0xff] %vm4074, %v3985
  %4079 = vst.msk [vmem:[#allocation2 + $0x20] sm:$0xff] %vm4074, %v3987
  %4080 = vst.msk [vmem:[#allocation2 + $0x28] sm:$0xff] %vm4074, %v3989
  %4081 = vst.msk [vmem:[#allocation2 + $0x30] sm:$0xff] %vm4074, %v3991
  %4082 = vst.msk [vmem:[#allocation2 + $0x38] sm:$0xff] %vm4074, %v3993
  %4083 = vst.msk [vmem:[#allocation2 + $0x40] sm:$0xff] %vm4074, %v3995
  %4084 = vst.msk [vmem:[#allocation2 + $0x48] sm:$0xff] %vm4074, %v3997
  %4085 = vst.msk [vmem:[#allocation2 + $0x50] sm:$0xff] %vm4074, %v3999
  %4086 = vst.msk [vmem:[#allocation2 + $0x58] sm:$0xff] %vm4074, %v4001
  %4087 = vst.msk [vmem:[#allocation2 + $0x60] sm:$0xff] %vm4074, %v4003
  %4088 = vst.msk [vmem:[#allocation2 + $0x68] sm:$0xff] %vm4074, %v4005
  %4089 = vst.msk [vmem:[#allocation2 + $0x70] sm:$0xff] %vm4074, %v4007
  %4090 = vst.msk [vmem:[#allocation2 + $0x78] sm:$0xff] %vm4074, %v4009
  %4091 = vst.msk [vmem:[#allocation2 + $0x80] sm:$0xff] %vm4074, %v4011
  %4092 = vst.msk [vmem:[#allocation2 + $0x88] sm:$0xff] %vm4074, %v4013
  %4093 = vst.msk [vmem:[#allocation2 + $0x90] sm:$0xff] %vm4074, %v4015
  %4094 = vst.msk [vmem:[#allocation2 + $0x98] sm:$0xff] %vm4074, %v4017
  %4095 = vst.msk [vmem:[#allocation2 + $0xa0] sm:$0xff] %vm4074, %v4019
  %4096 = vst.msk [vmem:[#allocation2 + $0xa8] sm:$0xff] %vm4074, %v4021
  %4097 = vst.msk [vmem:[#allocation2 + $0xb0] sm:$0xff] %vm4074, %v4023
  %4098 = vst.msk [vmem:[#allocation2 + $0xb8] sm:$0xff] %vm4074, %v4025
  %4099 = vst.msk [vmem:[#allocation2 + $0xc0] sm:$0xff] %vm4074, %v4027
  %4100 = vst.msk [vmem:[#allocation2 + $0xc8] sm:$0xff] %vm4074, %v4029
  %4101 = vst.msk [vmem:[#allocation2 + $0xd0] sm:$0xff] %vm4074, %v4031
  %4102 = vst.msk [vmem:[#allocation2 + $0xd8] sm:$0xff] %vm4074, %v4033
  %4103 = vst.msk [vmem:[#allocation2 + $0xe0] sm:$0xff] %vm4074, %v4035
  %4104 = vst.msk [vmem:[#allocation2 + $0xe8] sm:$0xff] %vm4074, %v4037
  %4105 = vst.msk [vmem:[#allocation2 + $0xf0] sm:$0xff] %vm4074, %v4039
  %4106 = vst.msk [vmem:[#allocation2 + $0xf8] sm:$0xff] %vm4074, %v4041
  %vm4107 = vcmask 1045504
  %v4108 = vrot.slane %v3126, 2
  %v4109 = vrot.slane %v3127, 2
  %v4110 = vsel %vm4107, %v4108, %v4109
  %v4111 = vrot.slane %v3128, 2
  %v4112 = vrot.slane %v3129, 2
  %v4113 = vsel %vm4107, %v4111, %v4112
  %v4114 = vrot.slane %v3130, 2
  %v4115 = vrot.slane %v3131, 2
  %v4116 = vsel %vm4107, %v4114, %v4115
  %v4117 = vrot.slane %v3132, 2
  %v4118 = vrot.slane %v3133, 2
  %v4119 = vsel %vm4107, %v4117, %v4118
  %v4120 = vrot.slane %v3134, 2
  %v4121 = vrot.slane %v3135, 2
  %v4122 = vsel %vm4107, %v4120, %v4121
  %v4123 = vrot.slane %v3136, 2
  %v4124 = vrot.slane %v3137, 2
  %v4125 = vsel %vm4107, %v4123, %v4124
  %v4126 = vrot.slane %v3138, 2
  %v4127 = vrot.slane %v3139, 2
  %v4128 = vsel %vm4107, %v4126, %v4127
  %v4129 = vrot.slane %v3140, 2
  %v4130 = vrot.slane %v3141, 2
  %v4131 = vsel %vm4107, %v4129, %v4130
  %v4132 = vrot.slane %v3142, 2
  %v4133 = vrot.slane %v3143, 2
  %v4134 = vsel %vm4107, %v4132, %v4133
  %v4135 = vrot.slane %v3144, 2
  %v4136 = vrot.slane %v3145, 2
  %v4137 = vsel %vm4107, %v4135, %v4136
  %v4138 = vrot.slane %v3146, 2
  %v4139 = vrot.slane %v3147, 2
  %v4140 = vsel %vm4107, %v4138, %v4139
  %v4141 = vrot.slane %v3148, 2
  %v4142 = vrot.slane %v3149, 2
  %v4143 = vsel %vm4107, %v4141, %v4142
  %v4144 = vrot.slane %v3150, 2
  %v4145 = vrot.slane %v3151, 2
  %v4146 = vsel %vm4107, %v4144, %v4145
  %v4147 = vrot.slane %v3152, 2
  %v4148 = vrot.slane %v3153, 2
  %v4149 = vsel %vm4107, %v4147, %v4148
  %v4150 = vrot.slane %v3154, 2
  %v4151 = vrot.slane %v3155, 2
  %v4152 = vsel %vm4107, %v4150, %v4151
  %v4153 = vrot.slane %v3156, 2
  %v4154 = vrot.slane %v3157, 2
  %v4155 = vsel %vm4107, %v4153, %v4154
  %v4156 = vrot.slane %v3166, 2
  %v4157 = vrot.slane %v3167, 2
  %v4158 = vsel %vm4107, %v4156, %v4157
  %v4159 = vrot.slane %v3168, 2
  %v4160 = vrot.slane %v3169, 2
  %v4161 = vsel %vm4107, %v4159, %v4160
  %v4162 = vrot.slane %v3170, 2
  %v4163 = vrot.slane %v3171, 2
  %v4164 = vsel %vm4107, %v4162, %v4163
  %v4165 = vrot.slane %v3172, 2
  %v4166 = vrot.slane %v3173, 2
  %v4167 = vsel %vm4107, %v4165, %v4166
  %v4168 = vrot.slane %v3174, 2
  %v4169 = vrot.slane %v3175, 2
  %v4170 = vsel %vm4107, %v4168, %v4169
  %v4171 = vrot.slane %v3176, 2
  %v4172 = vrot.slane %v3177, 2
  %v4173 = vsel %vm4107, %v4171, %v4172
  %v4174 = vrot.slane %v3178, 2
  %v4175 = vrot.slane %v3179, 2
  %v4176 = vsel %vm4107, %v4174, %v4175
  %v4177 = vrot.slane %v3180, 2
  %v4178 = vrot.slane %v3181, 2
  %v4179 = vsel %vm4107, %v4177, %v4178
  %v4180 = vrot.slane %v3182, 2
  %v4181 = vrot.slane %v3183, 2
  %v4182 = vsel %vm4107, %v4180, %v4181
  %v4183 = vrot.slane %v3184, 2
  %v4184 = vrot.slane %v3185, 2
  %v4185 = vsel %vm4107, %v4183, %v4184
  %v4186 = vrot.slane %v3186, 2
  %v4187 = vrot.slane %v3187, 2
  %v4188 = vsel %vm4107, %v4186, %v4187
  %v4189 = vrot.slane %v3188, 2
  %v4190 = vrot.slane %v3189, 2
  %v4191 = vsel %vm4107, %v4189, %v4190
  %v4192 = vrot.slane %v3190, 2
  %v4193 = vrot.slane %v3191, 2
  %v4194 = vsel %vm4107, %v4192, %v4193
  %v4195 = vrot.slane %v3192, 2
  %v4196 = vrot.slane %v3193, 2
  %v4197 = vsel %vm4107, %v4195, %v4196
  %v4198 = vrot.slane %v3194, 2
  %v4199 = vrot.slane %v3195, 2
  %v4200 = vsel %vm4107, %v4198, %v4199
  %v4201 = vrot.slane %v3196, 2
  %v4202 = vrot.slane %v3197, 2
  %v4203 = vsel %vm4107, %v4201, %v4202
  %4204 = vrot.lane.b32.xlu0 %v4110, 8
  %v4205 = vpop.permute.xlu0 %4204
  %4206 = vrot.lane.b32.xlu0 %v4113, 8
  %v4207 = vpop.permute.xlu0 %4206
  %4208 = vrot.lane.b32.xlu0 %v4116, 8
  %v4209 = vpop.permute.xlu0 %4208
  %4210 = vrot.lane.b32.xlu0 %v4119, 8
  %v4211 = vpop.permute.xlu0 %4210
  %4212 = vrot.lane.b32.xlu0 %v4122, 8
  %v4213 = vpop.permute.xlu0 %4212
  %4214 = vrot.lane.b32.xlu0 %v4125, 8
  %v4215 = vpop.permute.xlu0 %4214
  %4216 = vrot.lane.b32.xlu0 %v4128, 8
  %v4217 = vpop.permute.xlu0 %4216
  %4218 = vrot.lane.b32.xlu0 %v4131, 8
  %v4219 = vpop.permute.xlu0 %4218
  %4220 = vrot.lane.b32.xlu0 %v4134, 8
  %v4221 = vpop.permute.xlu0 %4220
  %4222 = vrot.lane.b32.xlu0 %v4137, 8
  %v4223 = vpop.permute.xlu0 %4222
  %4224 = vrot.lane.b32.xlu0 %v4140, 8
  %v4225 = vpop.permute.xlu0 %4224
  %4226 = vrot.lane.b32.xlu0 %v4143, 8
  %v4227 = vpop.permute.xlu0 %4226
  %4228 = vrot.lane.b32.xlu0 %v4146, 8
  %v4229 = vpop.permute.xlu0 %4228
  %4230 = vrot.lane.b32.xlu0 %v4149, 8
  %v4231 = vpop.permute.xlu0 %4230
  %4232 = vrot.lane.b32.xlu0 %v4152, 8
  %v4233 = vpop.permute.xlu0 %4232
  %4234 = vrot.lane.b32.xlu0 %v4155, 8
  %v4235 = vpop.permute.xlu0 %4234
  %4236 = vrot.lane.b32.xlu0 %v4158, 8
  %v4237 = vpop.permute.xlu0 %4236
  %4238 = vrot.lane.b32.xlu0 %v4161, 8
  %v4239 = vpop.permute.xlu0 %4238
  %4240 = vrot.lane.b32.xlu0 %v4164, 8
  %v4241 = vpop.permute.xlu0 %4240
  %4242 = vrot.lane.b32.xlu0 %v4167, 8
  %v4243 = vpop.permute.xlu0 %4242
  %4244 = vrot.lane.b32.xlu0 %v4170, 8
  %v4245 = vpop.permute.xlu0 %4244
  %4246 = vrot.lane.b32.xlu0 %v4173, 8
  %v4247 = vpop.permute.xlu0 %4246
  %4248 = vrot.lane.b32.xlu0 %v4176, 8
  %v4249 = vpop.permute.xlu0 %4248
  %4250 = vrot.lane.b32.xlu0 %v4179, 8
  %v4251 = vpop.permute.xlu0 %4250
  %4252 = vrot.lane.b32.xlu0 %v4182, 8
  %v4253 = vpop.permute.xlu0 %4252
  %4254 = vrot.lane.b32.xlu0 %v4185, 8
  %v4255 = vpop.permute.xlu0 %4254
  %4256 = vrot.lane.b32.xlu0 %v4188, 8
  %v4257 = vpop.permute.xlu0 %4256
  %4258 = vrot.lane.b32.xlu0 %v4191, 8
  %v4259 = vpop.permute.xlu0 %4258
  %4260 = vrot.lane.b32.xlu0 %v4194, 8
  %v4261 = vpop.permute.xlu0 %4260
  %4262 = vrot.lane.b32.xlu0 %v4197, 8
  %v4263 = vpop.permute.xlu0 %4262
  %4264 = vrot.lane.b32.xlu0 %v4200, 8
  %v4265 = vpop.permute.xlu0 %4264
  %4266 = vrot.lane.b32.xlu0 %v4203, 8
  %v4267 = vpop.permute.xlu0 %4266
  %vm4300 = vcmask 97344
  %4301 = vst.msk [vmem:[#allocation2] sm:$0xff] %vm4300, %v4205
  %4302 = vst.msk [vmem:[#allocation2 + $0x8] sm:$0xff] %vm4300, %v4207
  %4303 = vst.msk [vmem:[#allocation2 + $0x10] sm:$0xff] %vm4300, %v4209
  %4304 = vst.msk [vmem:[#allocation2 + $0x18] sm:$0xff] %vm4300, %v4211
  %4305 = vst.msk [vmem:[#allocation2 + $0x20] sm:$0xff] %vm4300, %v4213
  %4306 = vst.msk [vmem:[#allocation2 + $0x28] sm:$0xff] %vm4300, %v4215
  %4307 = vst.msk [vmem:[#allocation2 + $0x30] sm:$0xff] %vm4300, %v4217
  %4308 = vst.msk [vmem:[#allocation2 + $0x38] sm:$0xff] %vm4300, %v4219
  %4309 = vst.msk [vmem:[#allocation2 + $0x40] sm:$0xff] %vm4300, %v4221
  %4310 = vst.msk [vmem:[#allocation2 + $0x48] sm:$0xff] %vm4300, %v4223
  %4311 = vst.msk [vmem:[#allocation2 + $0x50] sm:$0xff] %vm4300, %v4225
  %4312 = vst.msk [vmem:[#allocation2 + $0x58] sm:$0xff] %vm4300, %v4227
  %4313 = vst.msk [vmem:[#allocation2 + $0x60] sm:$0xff] %vm4300, %v4229
  %4314 = vst.msk [vmem:[#allocation2 + $0x68] sm:$0xff] %vm4300, %v4231
  %4315 = vst.msk [vmem:[#allocation2 + $0x70] sm:$0xff] %vm4300, %v4233
  %4316 = vst.msk [vmem:[#allocation2 + $0x78] sm:$0xff] %vm4300, %v4235
  %4317 = vst.msk [vmem:[#allocation2 + $0x80] sm:$0xff] %vm4300, %v4237
  %4318 = vst.msk [vmem:[#allocation2 + $0x88] sm:$0xff] %vm4300, %v4239
  %4319 = vst.msk [vmem:[#allocation2 + $0x90] sm:$0xff] %vm4300, %v4241
  %4320 = vst.msk [vmem:[#allocation2 + $0x98] sm:$0xff] %vm4300, %v4243
  %4321 = vst.msk [vmem:[#allocation2 + $0xa0] sm:$0xff] %vm4300, %v4245
  %4322 = vst.msk [vmem:[#allocation2 + $0xa8] sm:$0xff] %vm4300, %v4247
  %4323 = vst.msk [vmem:[#allocation2 + $0xb0] sm:$0xff] %vm4300, %v4249
  %4324 = vst.msk [vmem:[#allocation2 + $0xb8] sm:$0xff] %vm4300, %v4251
  %4325 = vst.msk [vmem:[#allocation2 + $0xc0] sm:$0xff] %vm4300, %v4253
  %4326 = vst.msk [vmem:[#allocation2 + $0xc8] sm:$0xff] %vm4300, %v4255
  %4327 = vst.msk [vmem:[#allocation2 + $0xd0] sm:$0xff] %vm4300, %v4257
  %4328 = vst.msk [vmem:[#allocation2 + $0xd8] sm:$0xff] %vm4300, %v4259
  %4329 = vst.msk [vmem:[#allocation2 + $0xe0] sm:$0xff] %vm4300, %v4261
  %4330 = vst.msk [vmem:[#allocation2 + $0xe8] sm:$0xff] %vm4300, %v4263
  %4331 = vst.msk [vmem:[#allocation2 + $0xf0] sm:$0xff] %vm4300, %v4265
  %4332 = vst.msk [vmem:[#allocation2 + $0xf8] sm:$0xff] %vm4300, %v4267
  %vm4333 = vsmask.f32 5376
  %v4334 = vrot.slane %v3435, 2
  %v4335 = vrot.slane %v3438, 3
  %v4336 = vor.u32 %v4334, %v4335
  %v4337 = vrot.slane %v3443, 2
  %v4338 = vrot.slane %v3446, 3
  %v4339 = vor.u32 %v4337, %v4338
  %v4340 = vsel %vm4333, %v4336, %v4339
  %v4341 = vrot.slane %v3452, 2
  %v4342 = vrot.slane %v3455, 3
  %v4343 = vor.u32 %v4341, %v4342
  %v4344 = vrot.slane %v3460, 2
  %v4345 = vrot.slane %v3463, 3
  %v4346 = vor.u32 %v4344, %v4345
  %v4347 = vsel %vm4333, %v4343, %v4346
  %v4348 = vrot.slane %v3469, 2
  %v4349 = vrot.slane %v3472, 3
  %v4350 = vor.u32 %v4348, %v4349
  %v4351 = vrot.slane %v3477, 2
  %v4352 = vrot.slane %v3480, 3
  %v4353 = vor.u32 %v4351, %v4352
  %v4354 = vsel %vm4333, %v4350, %v4353
  %v4355 = vrot.slane %v3486, 2
  %v4356 = vrot.slane %v3489, 3
  %v4357 = vor.u32 %v4355, %v4356
  %v4358 = vrot.slane %v3494, 2
  %v4359 = vrot.slane %v3497, 3
  %v4360 = vor.u32 %v4358, %v4359
  %v4361 = vsel %vm4333, %v4357, %v4360
  %v4362 = vrot.slane %v3503, 2
  %v4363 = vrot.slane %v3506, 3
  %v4364 = vor.u32 %v4362, %v4363
  %v4365 = vrot.slane %v3511, 2
  %v4366 = vrot.slane %v3514, 3
  %v4367 = vor.u32 %v4365, %v4366
  %v4368 = vsel %vm4333, %v4364, %v4367
  %v4369 = vrot.slane %v3520, 2
  %v4370 = vrot.slane %v3523, 3
  %v4371 = vor.u32 %v4369, %v4370
  %v4372 = vrot.slane %v3528, 2
  %v4373 = vrot.slane %v3531, 3
  %v4374 = vor.u32 %v4372, %v4373
  %v4375 = vsel %vm4333, %v4371, %v4374
  %v4376 = vrot.slane %v3537, 2
  %v4377 = vrot.slane %v3540, 3
  %v4378 = vor.u32 %v4376, %v4377
  %v4379 = vrot.slane %v3545, 2
  %v4380 = vrot.slane %v3548, 3
  %v4381 = vor.u32 %v4379, %v4380
  %v4382 = vsel %vm4333, %v4378, %v4381
  %v4383 = vrot.slane %v3554, 2
  %v4384 = vrot.slane %v3557, 3
  %v4385 = vor.u32 %v4383, %v4384
  %v4386 = vrot.slane %v3562, 2
  %v4387 = vrot.slane %v3565, 3
  %v4388 = vor.u32 %v4386, %v4387
  %v4389 = vsel %vm4333, %v4385, %v4388
  %v4390 = vrot.slane %v3571, 2
  %v4391 = vrot.slane %v3574, 3
  %v4392 = vor.u32 %v4390, %v4391
  %v4393 = vrot.slane %v3579, 2
  %v4394 = vrot.slane %v3582, 3
  %v4395 = vor.u32 %v4393, %v4394
  %v4396 = vsel %vm4333, %v4392, %v4395
  %v4397 = vrot.slane %v3588, 2
  %v4398 = vrot.slane %v3591, 3
  %v4399 = vor.u32 %v4397, %v4398
  %v4400 = vrot.slane %v3596, 2
  %v4401 = vrot.slane %v3599, 3
  %v4402 = vor.u32 %v4400, %v4401
  %v4403 = vsel %vm4333, %v4399, %v4402
  %v4404 = vrot.slane %v3605, 2
  %v4405 = vrot.slane %v3608, 3
  %v4406 = vor.u32 %v4404, %v4405
  %v4407 = vrot.slane %v3613, 2
  %v4408 = vrot.slane %v3616, 3
  %v4409 = vor.u32 %v4407, %v4408
  %v4410 = vsel %vm4333, %v4406, %v4409
  %v4411 = vrot.slane %v3622, 2
  %v4412 = vrot.slane %v3625, 3
  %v4413 = vor.u32 %v4411, %v4412
  %v4414 = vrot.slane %v3630, 2
  %v4415 = vrot.slane %v3633, 3
  %v4416 = vor.u32 %v4414, %v4415
  %v4417 = vsel %vm4333, %v4413, %v4416
  %v4418 = vrot.slane %v3639, 2
  %v4419 = vrot.slane %v3642, 3
  %v4420 = vor.u32 %v4418, %v4419
  %v4421 = vrot.slane %v3647, 2
  %v4422 = vrot.slane %v3650, 3
  %v4423 = vor.u32 %v4421, %v4422
  %v4424 = vsel %vm4333, %v4420, %v4423
  %v4425 = vrot.slane %v3656, 2
  %v4426 = vrot.slane %v3659, 3
  %v4427 = vor.u32 %v4425, %v4426
  %v4428 = vrot.slane %v3664, 2
  %v4429 = vrot.slane %v3667, 3
  %v4430 = vor.u32 %v4428, %v4429
  %v4431 = vsel %vm4333, %v4427, %v4430
  %v4432 = vrot.slane %v3673, 2
  %v4433 = vrot.slane %v3676, 3
  %v4434 = vor.u32 %v4432, %v4433
  %v4435 = vrot.slane %v3681, 2
  %v4436 = vrot.slane %v3684, 3
  %v4437 = vor.u32 %v4435, %v4436
  %v4438 = vsel %vm4333, %v4434, %v4437
  %v4439 = vrot.slane %v3690, 2
  %v4440 = vrot.slane %v3693, 3
  %v4441 = vor.u32 %v4439, %v4440
  %v4442 = vrot.slane %v3698, 2
  %v4443 = vrot.slane %v3701, 3
  %v4444 = vor.u32 %v4442, %v4443
  %v4445 = vsel %vm4333, %v4441, %v4444
  %v4446 = vrot.slane %v3707, 2
  %v4447 = vrot.slane %v3710, 3
  %v4448 = vor.u32 %v4446, %v4447
  %v4449 = vrot.slane %v3715, 2
  %v4450 = vrot.slane %v3718, 3
  %v4451 = vor.u32 %v4449, %v4450
  %v4452 = vsel %vm4333, %v4448, %v4451
  %v4453 = vrot.slane %v3724, 2
  %v4454 = vrot.slane %v3727, 3
  %v4455 = vor.u32 %v4453, %v4454
  %v4456 = vrot.slane %v3732, 2
  %v4457 = vrot.slane %v3735, 3
  %v4458 = vor.u32 %v4456, %v4457
  %v4459 = vsel %vm4333, %v4455, %v4458
  %v4460 = vrot.slane %v3741, 2
  %v4461 = vrot.slane %v3744, 3
  %v4462 = vor.u32 %v4460, %v4461
  %v4463 = vrot.slane %v3749, 2
  %v4464 = vrot.slane %v3752, 3
  %v4465 = vor.u32 %v4463, %v4464
  %v4466 = vsel %vm4333, %v4462, %v4465
  %v4467 = vrot.slane %v3758, 2
  %v4468 = vrot.slane %v3761, 3
  %v4469 = vor.u32 %v4467, %v4468
  %v4470 = vrot.slane %v3766, 2
  %v4471 = vrot.slane %v3769, 3
  %v4472 = vor.u32 %v4470, %v4471
  %v4473 = vsel %vm4333, %v4469, %v4472
  %v4474 = vrot.slane %v3775, 2
  %v4475 = vrot.slane %v3778, 3
  %v4476 = vor.u32 %v4474, %v4475
  %v4477 = vrot.slane %v3783, 2
  %v4478 = vrot.slane %v3786, 3
  %v4479 = vor.u32 %v4477, %v4478
  %v4480 = vsel %vm4333, %v4476, %v4479
  %v4481 = vrot.slane %v3792, 2
  %v4482 = vrot.slane %v3795, 3
  %v4483 = vor.u32 %v4481, %v4482
  %v4484 = vrot.slane %v3800, 2
  %v4485 = vrot.slane %v3803, 3
  %v4486 = vor.u32 %v4484, %v4485
  %v4487 = vsel %vm4333, %v4483, %v4486
  %v4488 = vrot.slane %v3809, 2
  %v4489 = vrot.slane %v3812, 3
  %v4490 = vor.u32 %v4488, %v4489
  %v4491 = vrot.slane %v3817, 2
  %v4492 = vrot.slane %v3820, 3
  %v4493 = vor.u32 %v4491, %v4492
  %v4494 = vsel %vm4333, %v4490, %v4493
  %v4495 = vrot.slane %v3826, 2
  %v4496 = vrot.slane %v3829, 3
  %v4497 = vor.u32 %v4495, %v4496
  %v4498 = vrot.slane %v3834, 2
  %v4499 = vrot.slane %v3837, 3
  %v4500 = vor.u32 %v4498, %v4499
  %v4501 = vsel %vm4333, %v4497, %v4500
  %v4502 = vrot.slane %v3843, 2
  %v4503 = vrot.slane %v3846, 3
  %v4504 = vor.u32 %v4502, %v4503
  %v4505 = vrot.slane %v3851, 2
  %v4506 = vrot.slane %v3854, 3
  %v4507 = vor.u32 %v4505, %v4506
  %v4508 = vsel %vm4333, %v4504, %v4507
  %v4509 = vrot.slane %v3860, 2
  %v4510 = vrot.slane %v3863, 3
  %v4511 = vor.u32 %v4509, %v4510
  %v4512 = vrot.slane %v3868, 2
  %v4513 = vrot.slane %v3871, 3
  %v4514 = vor.u32 %v4512, %v4513
  %v4515 = vsel %vm4333, %v4511, %v4514
  %v4516 = vrot.slane %v3877, 2
  %v4517 = vrot.slane %v3880, 3
  %v4518 = vor.u32 %v4516, %v4517
  %v4519 = vrot.slane %v3885, 2
  %v4520 = vrot.slane %v3888, 3
  %v4521 = vor.u32 %v4519, %v4520
  %v4522 = vsel %vm4333, %v4518, %v4521
  %v4523 = vrot.slane %v3894, 2
  %v4524 = vrot.slane %v3897, 3
  %v4525 = vor.u32 %v4523, %v4524
  %v4526 = vrot.slane %v3902, 2
  %v4527 = vrot.slane %v3905, 3
  %v4528 = vor.u32 %v4526, %v4527
  %v4529 = vsel %vm4333, %v4525, %v4528
  %v4530 = vrot.slane %v3911, 2
  %v4531 = vrot.slane %v3914, 3
  %v4532 = vor.u32 %v4530, %v4531
  %v4533 = vrot.slane %v3919, 2
  %v4534 = vrot.slane %v3922, 3
  %v4535 = vor.u32 %v4533, %v4534
  %v4536 = vsel %vm4333, %v4532, %v4535
  %v4537 = vrot.slane %v3928, 2
  %v4538 = vrot.slane %v3931, 3
  %v4539 = vor.u32 %v4537, %v4538
  %v4540 = vrot.slane %v3936, 2
  %v4541 = vrot.slane %v3939, 3
  %v4542 = vor.u32 %v4540, %v4541
  %v4543 = vsel %vm4333, %v4539, %v4542
  %v4544 = vrot.slane %v3945, 2
  %v4545 = vrot.slane %v3948, 3
  %v4546 = vor.u32 %v4544, %v4545
  %v4547 = vrot.slane %v3953, 2
  %v4548 = vrot.slane %v3956, 3
  %v4549 = vor.u32 %v4547, %v4548
  %v4550 = vsel %vm4333, %v4546, %v4549
  %v4551 = vrot.slane %v3962, 2
  %v4552 = vrot.slane %v3965, 3
  %v4553 = vor.u32 %v4551, %v4552
  %v4554 = vrot.slane %v3970, 2
  %v4555 = vrot.slane %v3973, 3
  %v4556 = vor.u32 %v4554, %v4555
  %v4557 = vsel %vm4333, %v4553, %v4556
  %4558 = vrot.lane.b32.xlu0 %v4340, 12
  %v4559 = vpop.permute.xlu0 %4558
  %4560 = vrot.lane.b32.xlu0 %v4347, 12
  %v4561 = vpop.permute.xlu0 %4560
  %4562 = vrot.lane.b32.xlu0 %v4354, 12
  %v4563 = vpop.permute.xlu0 %4562
  %4564 = vrot.lane.b32.xlu0 %v4361, 12
  %v4565 = vpop.permute.xlu0 %4564
  %4566 = vrot.lane.b32.xlu0 %v4368, 12
  %v4567 = vpop.permute.xlu0 %4566
  %4568 = vrot.lane.b32.xlu0 %v4375, 12
  %v4569 = vpop.permute.xlu0 %4568
  %4570 = vrot.lane.b32.xlu0 %v4382, 12
  %v4571 = vpop.permute.xlu0 %4570
  %4572 = vrot.lane.b32.xlu0 %v4389, 12
  %v4573 = vpop.permute.xlu0 %4572
  %4574 = vrot.lane.b32.xlu0 %v4396, 12
  %v4575 = vpop.permute.xlu0 %4574
  %4576 = vrot.lane.b32.xlu0 %v4403, 12
  %v4577 = vpop.permute.xlu0 %4576
  %4578 = vrot.lane.b32.xlu0 %v4410, 12
  %v4579 = vpop.permute.xlu0 %4578
  %4580 = vrot.lane.b32.xlu0 %v4417, 12
  %v4581 = vpop.permute.xlu0 %4580
  %4582 = vrot.lane.b32.xlu0 %v4424, 12
  %v4583 = vpop.permute.xlu0 %4582
  %4584 = vrot.lane.b32.xlu0 %v4431, 12
  %v4585 = vpop.permute.xlu0 %4584
  %4586 = vrot.lane.b32.xlu0 %v4438, 12
  %v4587 = vpop.permute.xlu0 %4586
  %4588 = vrot.lane.b32.xlu0 %v4445, 12
  %v4589 = vpop.permute.xlu0 %4588
  %4590 = vrot.lane.b32.xlu0 %v4452, 12
  %v4591 = vpop.permute.xlu0 %4590
  %4592 = vrot.lane.b32.xlu0 %v4459, 12
  %v4593 = vpop.permute.xlu0 %4592
  %4594 = vrot.lane.b32.xlu0 %v4466, 12
  %v4595 = vpop.permute.xlu0 %4594
  %4596 = vrot.lane.b32.xlu0 %v4473, 12
  %v4597 = vpop.permute.xlu0 %4596
  %4598 = vrot.lane.b32.xlu0 %v4480, 12
  %v4599 = vpop.permute.xlu0 %4598
  %4600 = vrot.lane.b32.xlu0 %v4487, 12
  %v4601 = vpop.permute.xlu0 %4600
  %4602 = vrot.lane.b32.xlu0 %v4494, 12
  %v4603 = vpop.permute.xlu0 %4602
  %4604 = vrot.lane.b32.xlu0 %v4501, 12
  %v4605 = vpop.permute.xlu0 %4604
  %4606 = vrot.lane.b32.xlu0 %v4508, 12
  %v4607 = vpop.permute.xlu0 %4606
  %4608 = vrot.lane.b32.xlu0 %v4515, 12
  %v4609 = vpop.permute.xlu0 %4608
  %4610 = vrot.lane.b32.xlu0 %v4522, 12
  %v4611 = vpop.permute.xlu0 %4610
  %4612 = vrot.lane.b32.xlu0 %v4529, 12
  %v4613 = vpop.permute.xlu0 %4612
  %4614 = vrot.lane.b32.xlu0 %v4536, 12
  %v4615 = vpop.permute.xlu0 %4614
  %4616 = vrot.lane.b32.xlu0 %v4543, 12
  %v4617 = vpop.permute.xlu0 %4616
  %4618 = vrot.lane.b32.xlu0 %v4550, 12
  %v4619 = vpop.permute.xlu0 %4618
  %4620 = vrot.lane.b32.xlu0 %v4557, 12
  %v4621 = vpop.permute.xlu0 %4620
  %vm4654 = vcmask 130144
  %4655 = vst.msk [vmem:[#allocation2] sm:$0xff] %vm4654, %v4559
  %4656 = vst.msk [vmem:[#allocation2 + $0x8] sm:$0xff] %vm4654, %v4561
  %4657 = vst.msk [vmem:[#allocation2 + $0x10] sm:$0xff] %vm4654, %v4563
  %4658 = vst.msk [vmem:[#allocation2 + $0x18] sm:$0xff] %vm4654, %v4565
  %4659 = vst.msk [vmem:[#allocation2 + $0x20] sm:$0xff] %vm4654, %v4567
  %4660 = vst.msk [vmem:[#allocation2 + $0x28] sm:$0xff] %vm4654, %v4569
  %4661 = vst.msk [vmem:[#allocation2 + $0x30] sm:$0xff] %vm4654, %v4571
  %4662 = vst.msk [vmem:[#allocation2 + $0x38] sm:$0xff] %vm4654, %v4573
  %4663 = vst.msk [vmem:[#allocation2 + $0x40] sm:$0xff] %vm4654, %v4575
  %4664 = vst.msk [vmem:[#allocation2 + $0x48] sm:$0xff] %vm4654, %v4577
  %4665 = vst.msk [vmem:[#allocation2 + $0x50] sm:$0xff] %vm4654, %v4579
  %4666 = vst.msk [vmem:[#allocation2 + $0x58] sm:$0xff] %vm4654, %v4581
  %4667 = vst.msk [vmem:[#allocation2 + $0x60] sm:$0xff] %vm4654, %v4583
  %4668 = vst.msk [vmem:[#allocation2 + $0x68] sm:$0xff] %vm4654, %v4585
  %4669 = vst.msk [vmem:[#allocation2 + $0x70] sm:$0xff] %vm4654, %v4587
  %4670 = vst.msk [vmem:[#allocation2 + $0x78] sm:$0xff] %vm4654, %v4589
  %4671 = vst.msk [vmem:[#allocation2 + $0x80] sm:$0xff] %vm4654, %v4591
  %4672 = vst.msk [vmem:[#allocation2 + $0x88] sm:$0xff] %vm4654, %v4593
  %4673 = vst.msk [vmem:[#allocation2 + $0x90] sm:$0xff] %vm4654, %v4595
  %4674 = vst.msk [vmem:[#allocation2 + $0x98] sm:$0xff] %vm4654, %v4597
  %4675 = vst.msk [vmem:[#allocation2 + $0xa0] sm:$0xff] %vm4654, %v4599
  %4676 = vst.msk [vmem:[#allocation2 + $0xa8] sm:$0xff] %vm4654, %v4601
  %4677 = vst.msk [vmem:[#allocation2 + $0xb0] sm:$0xff] %vm4654, %v4603
  %4678 = vst.msk [vmem:[#allocation2 + $0xb8] sm:$0xff] %vm4654, %v4605
  %4679 = vst.msk [vmem:[#allocation2 + $0xc0] sm:$0xff] %vm4654, %v4607
  %4680 = vst.msk [vmem:[#allocation2 + $0xc8] sm:$0xff] %vm4654, %v4609
  %4681 = vst.msk [vmem:[#allocation2 + $0xd0] sm:$0xff] %vm4654, %v4611
  %4682 = vst.msk [vmem:[#allocation2 + $0xd8] sm:$0xff] %vm4654, %v4613
  %4683 = vst.msk [vmem:[#allocation2 + $0xe0] sm:$0xff] %vm4654, %v4615
  %4684 = vst.msk [vmem:[#allocation2 + $0xe8] sm:$0xff] %vm4654, %v4617
  %4685 = vst.msk [vmem:[#allocation2 + $0xf0] sm:$0xff] %vm4654, %v4619
  %4686 = vst.msk [vmem:[#allocation2 + $0xf8] sm:$0xff] %vm4654, %v4621
  %vm4687 = vcmask 1044480
  %v4688 = vrot.slane %v3126, 3
  %v4689 = vrot.slane %v3127, 3
  %v4690 = vsel %vm4687, %v4688, %v4689
  %v4691 = vrot.slane %v3128, 3
  %v4692 = vrot.slane %v3129, 3
  %v4693 = vsel %vm4687, %v4691, %v4692
  %v4694 = vrot.slane %v3130, 3
  %v4695 = vrot.slane %v3131, 3
  %v4696 = vsel %vm4687, %v4694, %v4695
  %v4697 = vrot.slane %v3132, 3
  %v4698 = vrot.slane %v3133, 3
  %v4699 = vsel %vm4687, %v4697, %v4698
  %v4700 = vrot.slane %v3134, 3
  %v4701 = vrot.slane %v3135, 3
  %v4702 = vsel %vm4687, %v4700, %v4701
  %v4703 = vrot.slane %v3136, 3
  %v4704 = vrot.slane %v3137, 3
  %v4705 = vsel %vm4687, %v4703, %v4704
  %v4706 = vrot.slane %v3138, 3
  %v4707 = vrot.slane %v3139, 3
  %v4708 = vsel %vm4687, %v4706, %v4707
  %v4709 = vrot.slane %v3140, 3
  %v4710 = vrot.slane %v3141, 3
  %v4711 = vsel %vm4687, %v4709, %v4710
  %v4712 = vrot.slane %v3142, 3
  %v4713 = vrot.slane %v3143, 3
  %v4714 = vsel %vm4687, %v4712, %v4713
  %v4715 = vrot.slane %v3144, 3
  %v4716 = vrot.slane %v3145, 3
  %v4717 = vsel %vm4687, %v4715, %v4716
  %v4718 = vrot.slane %v3146, 3
  %v4719 = vrot.slane %v3147, 3
  %v4720 = vsel %vm4687, %v4718, %v4719
  %v4721 = vrot.slane %v3148, 3
  %v4722 = vrot.slane %v3149, 3
  %v4723 = vsel %vm4687, %v4721, %v4722
  %v4724 = vrot.slane %v3150, 3
  %v4725 = vrot.slane %v3151, 3
  %v4726 = vsel %vm4687, %v4724, %v4725
  %v4727 = vrot.slane %v3152, 3
  %v4728 = vrot.slane %v3153, 3
  %v4729 = vsel %vm4687, %v4727, %v4728
  %v4730 = vrot.slane %v3154, 3
  %v4731 = vrot.slane %v3155, 3
  %v4732 = vsel %vm4687, %v4730, %v4731
  %v4733 = vrot.slane %v3156, 3
  %v4734 = vrot.slane %v3157, 3
  %v4735 = vsel %vm4687, %v4733, %v4734
  %v4736 = vrot.slane %v3166, 3
  %v4737 = vrot.slane %v3167, 3
  %v4738 = vsel %vm4687, %v4736, %v4737
  %v4739 = vrot.slane %v3168, 3
  %v4740 = vrot.slane %v3169, 3
  %v4741 = vsel %vm4687, %v4739, %v4740
  %v4742 = vrot.slane %v3170, 3
  %v4743 = vrot.slane %v3171, 3
  %v4744 = vsel %vm4687, %v4742, %v4743
  %v4745 = vrot.slane %v3172, 3
  %v4746 = vrot.slane %v3173, 3
  %v4747 = vsel %vm4687, %v4745, %v4746
  %v4748 = vrot.slane %v3174, 3
  %v4749 = vrot.slane %v3175, 3
  %v4750 = vsel %vm4687, %v4748, %v4749
  %v4751 = vrot.slane %v3176, 3
  %v4752 = vrot.slane %v3177, 3
  %v4753 = vsel %vm4687, %v4751, %v4752
  %v4754 = vrot.slane %v3178, 3
  %v4755 = vrot.slane %v3179, 3
  %v4756 = vsel %vm4687, %v4754, %v4755
  %v4757 = vrot.slane %v3180, 3
  %v4758 = vrot.slane %v3181, 3
  %v4759 = vsel %vm4687, %v4757, %v4758
  %v4760 = vrot.slane %v3182, 3
  %v4761 = vrot.slane %v3183, 3
  %v4762 = vsel %vm4687, %v4760, %v4761
  %v4763 = vrot.slane %v3184, 3
  %v4764 = vrot.slane %v3185, 3
  %v4765 = vsel %vm4687, %v4763, %v4764
  %v4766 = vrot.slane %v3186, 3
  %v4767 = vrot.slane %v3187, 3
  %v4768 = vsel %vm4687, %v4766, %v4767
  %v4769 = vrot.slane %v3188, 3
  %v4770 = vrot.slane %v3189, 3
  %v4771 = vsel %vm4687, %v4769, %v4770
  %v4772 = vrot.slane %v3190, 3
  %v4773 = vrot.slane %v3191, 3
  %v4774 = vsel %vm4687, %v4772, %v4773
  %v4775 = vrot.slane %v3192, 3
  %v4776 = vrot.slane %v3193, 3
  %v4777 = vsel %vm4687, %v4775, %v4776
  %v4778 = vrot.slane %v3194, 3
  %v4779 = vrot.slane %v3195, 3
  %v4780 = vsel %vm4687, %v4778, %v4779
  %v4781 = vrot.slane %v3196, 3
  %v4782 = vrot.slane %v3197, 3
  %v4783 = vsel %vm4687, %v4781, %v4782
  %4784 = vrot.lane.b32.xlu0 %v4690, 16
  %v4785 = vpop.permute.xlu0 %4784
  %4786 = vrot.lane.b32.xlu0 %v4693, 16
  %v4787 = vpop.permute.xlu0 %4786
  %4788 = vrot.lane.b32.xlu0 %v4696, 16
  %v4789 = vpop.permute.xlu0 %4788
  %4790 = vrot.lane.b32.xlu0 %v4699, 16
  %v4791 = vpop.permute.xlu0 %4790
  %4792 = vrot.lane.b32.xlu0 %v4702, 16
  %v4793 = vpop.permute.xlu0 %4792
  %4794 = vrot.lane.b32.xlu0 %v4705, 16
  %v4795 = vpop.permute.xlu0 %4794
  %4796 = vrot.lane.b32.xlu0 %v4708, 16
  %v4797 = vpop.permute.xlu0 %4796
  %4798 = vrot.lane.b32.xlu0 %v4711, 16
  %v4799 = vpop.permute.xlu0 %4798
  %4800 = vrot.lane.b32.xlu0 %v4714, 16
  %v4801 = vpop.permute.xlu0 %4800
  %4802 = vrot.lane.b32.xlu0 %v4717, 16
  %v4803 = vpop.permute.xlu0 %4802
  %4804 = vrot.lane.b32.xlu0 %v4720, 16
  %v4805 = vpop.permute.xlu0 %4804
  %4806 = vrot.lane.b32.xlu0 %v4723, 16
  %v4807 = vpop.permute.xlu0 %4806
  %4808 = vrot.lane.b32.xlu0 %v4726, 16
  %v4809 = vpop.permute.xlu0 %4808
  %4810 = vrot.lane.b32.xlu0 %v4729, 16
  %v4811 = vpop.permute.xlu0 %4810
  %4812 = vrot.lane.b32.xlu0 %v4732, 16
  %v4813 = vpop.permute.xlu0 %4812
  %4814 = vrot.lane.b32.xlu0 %v4735, 16
  %v4815 = vpop.permute.xlu0 %4814
  %4816 = vrot.lane.b32.xlu0 %v4738, 16
  %v4817 = vpop.permute.xlu0 %4816
  %4818 = vrot.lane.b32.xlu0 %v4741, 16
  %v4819 = vpop.permute.xlu0 %4818
  %4820 = vrot.lane.b32.xlu0 %v4744, 16
  %v4821 = vpop.permute.xlu0 %4820
  %4822 = vrot.lane.b32.xlu0 %v4747, 16
  %v4823 = vpop.permute.xlu0 %4822
  %4824 = vrot.lane.b32.xlu0 %v4750, 16
  %v4825 = vpop.permute.xlu0 %4824
  %4826 = vrot.lane.b32.xlu0 %v4753, 16
  %v4827 = vpop.permute.xlu0 %4826
  %4828 = vrot.lane.b32.xlu0 %v4756, 16
  %v4829 = vpop.permute.xlu0 %4828
  %4830 = vrot.lane.b32.xlu0 %v4759, 16
  %v4831 = vpop.permute.xlu0 %4830
  %4832 = vrot.lane.b32.xlu0 %v4762, 16
  %v4833 = vpop.permute.xlu0 %4832
  %4834 = vrot.lane.b32.xlu0 %v4765, 16
  %v4835 = vpop.permute.xlu0 %4834
  %4836 = vrot.lane.b32.xlu0 %v4768, 16
  %v4837 = vpop.permute.xlu0 %4836
  %4838 = vrot.lane.b32.xlu0 %v4771, 16
  %v4839 = vpop.permute.xlu0 %4838
  %4840 = vrot.lane.b32.xlu0 %v4774, 16
  %v4841 = vpop.permute.xlu0 %4840
  %4842 = vrot.lane.b32.xlu0 %v4777, 16
  %v4843 = vpop.permute.xlu0 %4842
  %4844 = vrot.lane.b32.xlu0 %v4780, 16
  %v4845 = vpop.permute.xlu0 %4844
  %4846 = vrot.lane.b32.xlu0 %v4783, 16
  %v4847 = vpop.permute.xlu0 %4846
  %vm4880 = vcmask 162944
  %4881 = vst.msk [vmem:[#allocation2] sm:$0xff] %vm4880, %v4785
  %4882 = vst.msk [vmem:[#allocation2 + $0x8] sm:$0xff] %vm4880, %v4787
  %4883 = vst.msk [vmem:[#allocation2 + $0x10] sm:$0xff] %vm4880, %v4789
  %4884 = vst.msk [vmem:[#allocation2 + $0x18] sm:$0xff] %vm4880, %v4791
  %4885 = vst.msk [vmem:[#allocation2 + $0x20] sm:$0xff] %vm4880, %v4793
  %4886 = vst.msk [vmem:[#allocation2 + $0x28] sm:$0xff] %vm4880, %v4795
  %4887 = vst.msk [vmem:[#allocation2 + $0x30] sm:$0xff] %vm4880, %v4797
  %4888 = vst.msk [vmem:[#allocation2 + $0x38] sm:$0xff] %vm4880, %v4799
  %4889 = vst.msk [vmem:[#allocation2 + $0x40] sm:$0xff] %vm4880, %v4801
  %4890 = vst.msk [vmem:[#allocation2 + $0x48] sm:$0xff] %vm4880, %v4803
  %4891 = vst.msk [vmem:[#allocation2 + $0x50] sm:$0xff] %vm4880, %v4805
  %4892 = vst.msk [vmem:[#allocation2 + $0x58] sm:$0xff] %vm4880, %v4807
  %4893 = vst.msk [vmem:[#allocation2 + $0x60] sm:$0xff] %vm4880, %v4809
  %4894 = vst.msk [vmem:[#allocation2 + $0x68] sm:$0xff] %vm4880, %v4811
  %4895 = vst.msk [vmem:[#allocation2 + $0x70] sm:$0xff] %vm4880, %v4813
  %4896 = vst.msk [vmem:[#allocation2 + $0x78] sm:$0xff] %vm4880, %v4815
  %4897 = vst.msk [vmem:[#allocation2 + $0x80] sm:$0xff] %vm4880, %v4817
  %4898 = vst.msk [vmem:[#allocation2 + $0x88] sm:$0xff] %vm4880, %v4819
  %4899 = vst.msk [vmem:[#allocation2 + $0x90] sm:$0xff] %vm4880, %v4821
  %4900 = vst.msk [vmem:[#allocation2 + $0x98] sm:$0xff] %vm4880, %v4823
  %4901 = vst.msk [vmem:[#allocation2 + $0xa0] sm:$0xff] %vm4880, %v4825
  %4902 = vst.msk [vmem:[#allocation2 + $0xa8] sm:$0xff] %vm4880, %v4827
  %4903 = vst.msk [vmem:[#allocation2 + $0xb0] sm:$0xff] %vm4880, %v4829
  %4904 = vst.msk [vmem:[#allocation2 + $0xb8] sm:$0xff] %vm4880, %v4831
  %4905 = vst.msk [vmem:[#allocation2 + $0xc0] sm:$0xff] %vm4880, %v4833
  %4906 = vst.msk [vmem:[#allocation2 + $0xc8] sm:$0xff] %vm4880, %v4835
  %4907 = vst.msk [vmem:[#allocation2 + $0xd0] sm:$0xff] %vm4880, %v4837
  %4908 = vst.msk [vmem:[#allocation2 + $0xd8] sm:$0xff] %vm4880, %v4839
  %4909 = vst.msk [vmem:[#allocation2 + $0xe0] sm:$0xff] %vm4880, %v4841
  %4910 = vst.msk [vmem:[#allocation2 + $0xe8] sm:$0xff] %vm4880, %v4843
  %4911 = vst.msk [vmem:[#allocation2 + $0xf0] sm:$0xff] %vm4880, %v4845
  %4912 = vst.msk [vmem:[#allocation2 + $0xf8] sm:$0xff] %vm4880, %v4847
  %v4917 = vrot.slane %v3158, 1
  %v4918 = vrot.slane %v3159, 1
  %v4919 = vsel %vm3271, %v4917, %v4918
  %v4920 = vrot.slane %v3198, 1
  %v4921 = vrot.slane %v3199, 1
  %v4922 = vsel %vm3271, %v4920, %v4921
  %4923 = vrot.lane.b32.xlu0 %v3277, 20
  %v4924 = vpop.permute.xlu0 %4923
  %4925 = vrot.lane.b32.xlu0 %v3280, 20
  %v4926 = vpop.permute.xlu0 %4925
  %4927 = vrot.lane.b32.xlu0 %v3283, 20
  %v4928 = vpop.permute.xlu0 %4927
  %4929 = vrot.lane.b32.xlu0 %v3286, 20
  %v4930 = vpop.permute.xlu0 %4929
  %4931 = vrot.lane.b32.xlu0 %v3289, 20
  %v4932 = vpop.permute.xlu0 %4931
  %4933 = vrot.lane.b32.xlu0 %v3292, 20
  %v4934 = vpop.permute.xlu0 %4933
  %4935 = vrot.lane.b32.xlu0 %v3295, 20
  %v4936 = vpop.permute.xlu0 %4935
  %4937 = vrot.lane.b32.xlu0 %v3298, 20
  %v4938 = vpop.permute.xlu0 %4937
  %4939 = vrot.lane.b32.xlu0 %v3301, 20
  %v4940 = vpop.permute.xlu0 %4939
  %4941 = vrot.lane.b32.xlu0 %v3304, 20
  %v4942 = vpop.permute.xlu0 %4941
  %4943 = vrot.lane.b32.xlu0 %v3307, 20
  %v4944 = vpop.permute.xlu0 %4943
  %4945 = vrot.lane.b32.xlu0 %v3310, 20
  %v4946 = vpop.permute.xlu0 %4945
  %4947 = vrot.lane.b32.xlu0 %v3313, 20
  %v4948 = vpop.permute.xlu0 %4947
  %4949 = vrot.lane.b32.xlu0 %v3316, 20
  %v4950 = vpop.permute.xlu0 %4949
  %4951 = vrot.lane.b32.xlu0 %v3319, 20
  %v4952 = vpop.permute.xlu0 %4951
  %4953 = vrot.lane.b32.xlu0 %v4919, 20
  %v4954 = vpop.permute.xlu0 %4953
  %4955 = vrot.lane.b32.xlu0 %v3325, 20
  %v4956 = vpop.permute.xlu0 %4955
  %4957 = vrot.lane.b32.xlu0 %v3328, 20
  %v4958 = vpop.permute.xlu0 %4957
  %4959 = vrot.lane.b32.xlu0 %v3331, 20
  %v4960 = vpop.permute.xlu0 %4959
  %4961 = vrot.lane.b32.xlu0 %v3334, 20
  %v4962 = vpop.permute.xlu0 %4961
  %4963 = vrot.lane.b32.xlu0 %v3337, 20
  %v4964 = vpop.permute.xlu0 %4963
  %4965 = vrot.lane.b32.xlu0 %v3340, 20
  %v4966 = vpop.permute.xlu0 %4965
  %4967 = vrot.lane.b32.xlu0 %v3343, 20
  %v4968 = vpop.permute.xlu0 %4967
  %4969 = vrot.lane.b32.xlu0 %v3346, 20
  %v4970 = vpop.permute.xlu0 %4969
  %4971 = vrot.lane.b32.xlu0 %v3349, 20
  %v4972 = vpop.permute.xlu0 %4971
  %4973 = vrot.lane.b32.xlu0 %v3352, 20
  %v4974 = vpop.permute.xlu0 %4973
  %4975 = vrot.lane.b32.xlu0 %v3355, 20
  %v4976 = vpop.permute.xlu0 %4975
  %4977 = vrot.lane.b32.xlu0 %v3358, 20
  %v4978 = vpop.permute.xlu0 %4977
  %4979 = vrot.lane.b32.xlu0 %v3361, 20
  %v4980 = vpop.permute.xlu0 %4979
  %4981 = vrot.lane.b32.xlu0 %v3364, 20
  %v4982 = vpop.permute.xlu0 %4981
  %4983 = vrot.lane.b32.xlu0 %v3367, 20
  %v4984 = vpop.permute.xlu0 %4983
  %4985 = vrot.lane.b32.xlu0 %v4922, 20
  %v4986 = vpop.permute.xlu0 %4985
  %vm5019 = vcmask 195744
  %5020 = vst.msk [vmem:[#allocation2] sm:$0xff] %vm5019, %v4924
  %5021 = vst.msk [vmem:[#allocation2 + $0x8] sm:$0xff] %vm5019, %v4926
  %5022 = vst.msk [vmem:[#allocation2 + $0x10] sm:$0xff] %vm5019, %v4928
  %5023 = vst.msk [vmem:[#allocation2 + $0x18] sm:$0xff] %vm5019, %v4930
  %5024 = vst.msk [vmem:[#allocation2 + $0x20] sm:$0xff] %vm5019, %v4932
  %5025 = vst.msk [vmem:[#allocation2 + $0x28] sm:$0xff] %vm5019, %v4934
  %5026 = vst.msk [vmem:[#allocation2 + $0x30] sm:$0xff] %vm5019, %v4936
  %5027 = vst.msk [vmem:[#allocation2 + $0x38] sm:$0xff] %vm5019, %v4938
  %5028 = vst.msk [vmem:[#allocation2 + $0x40] sm:$0xff] %vm5019, %v4940
  %5029 = vst.msk [vmem:[#allocation2 + $0x48] sm:$0xff] %vm5019, %v4942
  %5030 = vst.msk [vmem:[#allocation2 + $0x50] sm:$0xff] %vm5019, %v4944
  %5031 = vst.msk [vmem:[#allocation2 + $0x58] sm:$0xff] %vm5019, %v4946
  %5032 = vst.msk [vmem:[#allocation2 + $0x60] sm:$0xff] %vm5019, %v4948
  %5033 = vst.msk [vmem:[#allocation2 + $0x68] sm:$0xff] %vm5019, %v4950
  %5034 = vst.msk [vmem:[#allocation2 + $0x70] sm:$0xff] %vm5019, %v4952
  %5035 = vst.msk [vmem:[#allocation2 + $0x78] sm:$0xff] %vm5019, %v4954
  %5036 = vst.msk [vmem:[#allocation2 + $0x80] sm:$0xff] %vm5019, %v4956
  %5037 = vst.msk [vmem:[#allocation2 + $0x88] sm:$0xff] %vm5019, %v4958
  %5038 = vst.msk [vmem:[#allocation2 + $0x90] sm:$0xff] %vm5019, %v4960
  %5039 = vst.msk [vmem:[#allocation2 + $0x98] sm:$0xff] %vm5019, %v4962
  %5040 = vst.msk [vmem:[#allocation2 + $0xa0] sm:$0xff] %vm5019, %v4964
  %5041 = vst.msk [vmem:[#allocation2 + $0xa8] sm:$0xff] %vm5019, %v4966
  %5042 = vst.msk [vmem:[#allocation2 + $0xb0] sm:$0xff] %vm5019, %v4968
  %5043 = vst.msk [vmem:[#allocation2 + $0xb8] sm:$0xff] %vm5019, %v4970
  %5044 = vst.msk [vmem:[#allocation2 + $0xc0] sm:$0xff] %vm5019, %v4972
  %5045 = vst.msk [vmem:[#allocation2 + $0xc8] sm:$0xff] %vm5019, %v4974
  %5046 = vst.msk [vmem:[#allocation2 + $0xd0] sm:$0xff] %vm5019, %v4976
  %5047 = vst.msk [vmem:[#allocation2 + $0xd8] sm:$0xff] %vm5019, %v4978
  %5048 = vst.msk [vmem:[#allocation2 + $0xe0] sm:$0xff] %vm5019, %v4980
  %5049 = vst.msk [vmem:[#allocation2 + $0xe8] sm:$0xff] %vm5019, %v4982
  %5050 = vst.msk [vmem:[#allocation2 + $0xf0] sm:$0xff] %vm5019, %v4984
  %5051 = vst.msk [vmem:[#allocation2 + $0xf8] sm:$0xff] %vm5019, %v4986
  %v5053 = vshrl.u32 %v3158, 16
  %v5055 = vrot.slane %v5053, 1
  %v5056 = vshll.u32 %v3158, 16
  %v5058 = vrot.slane %v5056, 2
  %v5059 = vor.u32 %v5055, %v5058
  %v5061 = vshrl.u32 %v3159, 16
  %v5063 = vrot.slane %v5061, 1
  %v5064 = vshll.u32 %v3159, 16
  %v5066 = vrot.slane %v5064, 2
  %v5067 = vor.u32 %v5063, %v5066
  %v5068 = vsel %vm3433, %v5059, %v5067
  %v5070 = vshrl.u32 %v3198, 16
  %v5072 = vrot.slane %v5070, 1
  %v5073 = vshll.u32 %v3198, 16
  %v5075 = vrot.slane %v5073, 2
  %v5076 = vor.u32 %v5072, %v5075
  %v5078 = vshrl.u32 %v3199, 16
  %v5080 = vrot.slane %v5078, 1
  %v5081 = vshll.u32 %v3199, 16
  %v5083 = vrot.slane %v5081, 2
  %v5084 = vor.u32 %v5080, %v5083
  %v5085 = vsel %vm3433, %v5076, %v5084
  %5086 = vrot.lane.b32.xlu0 %v3467, 24
  %v5087 = vpop.permute.xlu0 %5086
  %5088 = vrot.lane.b32.xlu0 %v3484, 24
  %v5089 = vpop.permute.xlu0 %5088
  %5090 = vrot.lane.b32.xlu0 %v3501, 24
  %v5091 = vpop.permute.xlu0 %5090
  %5092 = vrot.lane.b32.xlu0 %v3518, 24
  %v5093 = vpop.permute.xlu0 %5092
  %5094 = vrot.lane.b32.xlu0 %v3535, 24
  %v5095 = vpop.permute.xlu0 %5094
  %5096 = vrot.lane.b32.xlu0 %v3552, 24
  %v5097 = vpop.permute.xlu0 %5096
  %5098 = vrot.lane.b32.xlu0 %v3569, 24
  %v5099 = vpop.permute.xlu0 %5098
  %5100 = vrot.lane.b32.xlu0 %v3586, 24
  %v5101 = vpop.permute.xlu0 %5100
  %5102 = vrot.lane.b32.xlu0 %v3603, 24
  %v5103 = vpop.permute.xlu0 %5102
  %5104 = vrot.lane.b32.xlu0 %v3620, 24
  %v5105 = vpop.permute.xlu0 %5104
  %5106 = vrot.lane.b32.xlu0 %v3637, 24
  %v5107 = vpop.permute.xlu0 %5106
  %5108 = vrot.lane.b32.xlu0 %v3654, 24
  %v5109 = vpop.permute.xlu0 %5108
  %5110 = vrot.lane.b32.xlu0 %v3671, 24
  %v5111 = vpop.permute.xlu0 %5110
  %5112 = vrot.lane.b32.xlu0 %v3688, 24
  %v5113 = vpop.permute.xlu0 %5112
  %5114 = vrot.lane.b32.xlu0 %v3705, 24
  %v5115 = vpop.permute.xlu0 %5114
  %5116 = vrot.lane.b32.xlu0 %v5068, 24
  %v5117 = vpop.permute.xlu0 %5116
  %5118 = vrot.lane.b32.xlu0 %v3739, 24
  %v5119 = vpop.permute.xlu0 %5118
  %5120 = vrot.lane.b32.xlu0 %v3756, 24
  %v5121 = vpop.permute.xlu0 %5120
  %5122 = vrot.lane.b32.xlu0 %v3773, 24
  %v5123 = vpop.permute.xlu0 %5122
  %5124 = vrot.lane.b32.xlu0 %v3790, 24
  %v5125 = vpop.permute.xlu0 %5124
  %5126 = vrot.lane.b32.xlu0 %v3807, 24
  %v5127 = vpop.permute.xlu0 %5126
  %5128 = vrot.lane.b32.xlu0 %v3824, 24
  %v5129 = vpop.permute.xlu0 %5128
  %5130 = vrot.lane.b32.xlu0 %v3841, 24
  %v5131 = vpop.permute.xlu0 %5130
  %5132 = vrot.lane.b32.xlu0 %v3858, 24
  %v5133 = vpop.permute.xlu0 %5132
  %5134 = vrot.lane.b32.xlu0 %v3875, 24
  %v5135 = vpop.permute.xlu0 %5134
  %5136 = vrot.lane.b32.xlu0 %v3892, 24
  %v5137 = vpop.permute.xlu0 %5136
  %5138 = vrot.lane.b32.xlu0 %v3909, 24
  %v5139 = vpop.permute.xlu0 %5138
  %5140 = vrot.lane.b32.xlu0 %v3926, 24
  %v5141 = vpop.permute.xlu0 %5140
  %5142 = vrot.lane.b32.xlu0 %v3943, 24
  %v5143 = vpop.permute.xlu0 %5142
  %5144 = vrot.lane.b32.xlu0 %v3960, 24
  %v5145 = vpop.permute.xlu0 %5144
  %5146 = vrot.lane.b32.xlu0 %v3977, 24
  %v5147 = vpop.permute.xlu0 %5146
  %5148 = vrot.lane.b32.xlu0 %v5085, 24
  %v5149 = vpop.permute.xlu0 %5148
  %vm5182 = vcmask 228544
  %5183 = vst.msk [vmem:[#allocation2] sm:$0xff] %vm5182, %v5087
  %5184 = vst.msk [vmem:[#allocation2 + $0x8] sm:$0xff] %vm5182, %v5089
  %5185 = vst.msk [vmem:[#allocation2 + $0x10] sm:$0xff] %vm5182, %v5091
  %5186 = vst.msk [vmem:[#allocation2 + $0x18] sm:$0xff] %vm5182, %v5093
  %5187 = vst.msk [vmem:[#allocation2 + $0x20] sm:$0xff] %vm5182, %v5095
  %5188 = vst.msk [vmem:[#allocation2 + $0x28] sm:$0xff] %vm5182, %v5097
  %5189 = vst.msk [vmem:[#allocation2 + $0x30] sm:$0xff] %vm5182, %v5099
  %5190 = vst.msk [vmem:[#allocation2 + $0x38] sm:$0xff] %vm5182, %v5101
  %5191 = vst.msk [vmem:[#allocation2 + $0x40] sm:$0xff] %vm5182, %v5103
  %5192 = vst.msk [vmem:[#allocation2 + $0x48] sm:$0xff] %vm5182, %v5105
  %5193 = vst.msk [vmem:[#allocation2 + $0x50] sm:$0xff] %vm5182, %v5107
  %5194 = vst.msk [vmem:[#allocation2 + $0x58] sm:$0xff] %vm5182, %v5109
  %5195 = vst.msk [vmem:[#allocation2 + $0x60] sm:$0xff] %vm5182, %v5111
  %5196 = vst.msk [vmem:[#allocation2 + $0x68] sm:$0xff] %vm5182, %v5113
  %5197 = vst.msk [vmem:[#allocation2 + $0x70] sm:$0xff] %vm5182, %v5115
  %5198 = vst.msk [vmem:[#allocation2 + $0x78] sm:$0xff] %vm5182, %v5117
  %5199 = vst.msk [vmem:[#allocation2 + $0x80] sm:$0xff] %vm5182, %v5119
  %5200 = vst.msk [vmem:[#allocation2 + $0x88] sm:$0xff] %vm5182, %v5121
  %5201 = vst.msk [vmem:[#allocation2 + $0x90] sm:$0xff] %vm5182, %v5123
  %5202 = vst.msk [vmem:[#allocation2 + $0x98] sm:$0xff] %vm5182, %v5125
  %5203 = vst.msk [vmem:[#allocation2 + $0xa0] sm:$0xff] %vm5182, %v5127
  %5204 = vst.msk [vmem:[#allocation2 + $0xa8] sm:$0xff] %vm5182, %v5129
  %5205 = vst.msk [vmem:[#allocation2 + $0xb0] sm:$0xff] %vm5182, %v5131
  %5206 = vst.msk [vmem:[#allocation2 + $0xb8] sm:$0xff] %vm5182, %v5133
  %5207 = vst.msk [vmem:[#allocation2 + $0xc0] sm:$0xff] %vm5182, %v5135
  %5208 = vst.msk [vmem:[#allocation2 + $0xc8] sm:$0xff] %vm5182, %v5137
  %5209 = vst.msk [vmem:[#allocation2 + $0xd0] sm:$0xff] %vm5182, %v5139
  %5210 = vst.msk [vmem:[#allocation2 + $0xd8] sm:$0xff] %vm5182, %v5141
  %5211 = vst.msk [vmem:[#allocation2 + $0xe0] sm:$0xff] %vm5182, %v5143
  %5212 = vst.msk [vmem:[#allocation2 + $0xe8] sm:$0xff] %vm5182, %v5145
  %5213 = vst.msk [vmem:[#allocation2 + $0xf0] sm:$0xff] %vm5182, %v5147
  %5214 = vst.msk [vmem:[#allocation2 + $0xf8] sm:$0xff] %vm5182, %v5149
  %v5215 = vrot.slane %v3158, 2
  %v5216 = vrot.slane %v3159, 2
  %v5217 = vsel %vm4107, %v5215, %v5216
  %v5218 = vrot.slane %v3198, 2
  %v5219 = vrot.slane %v3199, 2
  %v5220 = vsel %vm4107, %v5218, %v5219
  %5221 = vrot.lane.b32.xlu0 %v4113, 28
  %v5222 = vpop.permute.xlu0 %5221
  %5223 = vrot.lane.b32.xlu0 %v4116, 28
  %v5224 = vpop.permute.xlu0 %5223
  %5225 = vrot.lane.b32.xlu0 %v4119, 28
  %v5226 = vpop.permute.xlu0 %5225
  %5227 = vrot.lane.b32.xlu0 %v4122, 28
  %v5228 = vpop.permute.xlu0 %5227
  %5229 = vrot.lane.b32.xlu0 %v4125, 28
  %v5230 = vpop.permute.xlu0 %5229
  %5231 = vrot.lane.b32.xlu0 %v4128, 28
  %v5232 = vpop.permute.xlu0 %5231
  %5233 = vrot.lane.b32.xlu0 %v4131, 28
  %v5234 = vpop.permute.xlu0 %5233
  %5235 = vrot.lane.b32.xlu0 %v4134, 28
  %v5236 = vpop.permute.xlu0 %5235
  %5237 = vrot.lane.b32.xlu0 %v4137, 28
  %v5238 = vpop.permute.xlu0 %5237
  %5239 = vrot.lane.b32.xlu0 %v4140, 28
  %v5240 = vpop.permute.xlu0 %5239
  %5241 = vrot.lane.b32.xlu0 %v4143, 28
  %v5242 = vpop.permute.xlu0 %5241
  %5243 = vrot.lane.b32.xlu0 %v4146, 28
  %v5244 = vpop.permute.xlu0 %5243
  %5245 = vrot.lane.b32.xlu0 %v4149, 28
  %v5246 = vpop.permute.xlu0 %5245
  %5247 = vrot.lane.b32.xlu0 %v4152, 28
  %v5248 = vpop.permute.xlu0 %5247
  %5249 = vrot.lane.b32.xlu0 %v4155, 28
  %v5250 = vpop.permute.xlu0 %5249
  %5251 = vrot.lane.b32.xlu0 %v5217, 28
  %v5252 = vpop.permute.xlu0 %5251
  %5253 = vrot.lane.b32.xlu0 %v4161, 28
  %v5254 = vpop.permute.xlu0 %5253
  %5255 = vrot.lane.b32.xlu0 %v4164, 28
  %v5256 = vpop.permute.xlu0 %5255
  %5257 = vrot.lane.b32.xlu0 %v4167, 28
  %v5258 = vpop.permute.xlu0 %5257
  %5259 = vrot.lane.b32.xlu0 %v4170, 28
  %v5260 = vpop.permute.xlu0 %5259
  %5261 = vrot.lane.b32.xlu0 %v4173, 28
  %v5262 = vpop.permute.xlu0 %5261
  %5263 = vrot.lane.b32.xlu0 %v4176, 28
  %v5264 = vpop.permute.xlu0 %5263
  %5265 = vrot.lane.b32.xlu0 %v4179, 28
  %v5266 = vpop.permute.xlu0 %5265
  %5267 = vrot.lane.b32.xlu0 %v4182, 28
  %v5268 = vpop.permute.xlu0 %5267
  %5269 = vrot.lane.b32.xlu0 %v4185, 28
  %v5270 = vpop.permute.xlu0 %5269
  %5271 = vrot.lane.b32.xlu0 %v4188, 28
  %v5272 = vpop.permute.xlu0 %5271
  %5273 = vrot.lane.b32.xlu0 %v4191, 28
  %v5274 = vpop.permute.xlu0 %5273
  %5275 = vrot.lane.b32.xlu0 %v4194, 28
  %v5276 = vpop.permute.xlu0 %5275
  %5277 = vrot.lane.b32.xlu0 %v4197, 28
  %v5278 = vpop.permute.xlu0 %5277
  %5279 = vrot.lane.b32.xlu0 %v4200, 28
  %v5280 = vpop.permute.xlu0 %5279
  %5281 = vrot.lane.b32.xlu0 %v4203, 28
  %v5282 = vpop.permute.xlu0 %5281
  %5283 = vrot.lane.b32.xlu0 %v5220, 28
  %v5284 = vpop.permute.xlu0 %5283
  %vm5317 = vcmask 261344
  %5318 = vst.msk [vmem:[#allocation2] sm:$0xff] %vm5317, %v5222
  %5319 = vst.msk [vmem:[#allocation2 + $0x8] sm:$0xff] %vm5317, %v5224
  %5320 = vst.msk [vmem:[#allocation2 + $0x10] sm:$0xff] %vm5317, %v5226
  %5321 = vst.msk [vmem:[#allocation2 + $0x18] sm:$0xff] %vm5317, %v5228
  %5322 = vst.msk [vmem:[#allocation2 + $0x20] sm:$0xff] %vm5317, %v5230
  %5323 = vst.msk [vmem:[#allocation2 + $0x28] sm:$0xff] %vm5317, %v5232
  %5324 = vst.msk [vmem:[#allocation2 + $0x30] sm:$0xff] %vm5317, %v5234
  %5325 = vst.msk [vmem:[#allocation2 + $0x38] sm:$0xff] %vm5317, %v5236
  %5326 = vst.msk [vmem:[#allocation2 + $0x40] sm:$0xff] %vm5317, %v5238
  %5327 = vst.msk [vmem:[#allocation2 + $0x48] sm:$0xff] %vm5317, %v5240
  %5328 = vst.msk [vmem:[#allocation2 + $0x50] sm:$0xff] %vm5317, %v5242
  %5329 = vst.msk [vmem:[#allocation2 + $0x58] sm:$0xff] %vm5317, %v5244
  %5330 = vst.msk [vmem:[#allocation2 + $0x60] sm:$0xff] %vm5317, %v5246
  %5331 = vst.msk [vmem:[#allocation2 + $0x68] sm:$0xff] %vm5317, %v5248
  %5332 = vst.msk [vmem:[#allocation2 + $0x70] sm:$0xff] %vm5317, %v5250
  %5333 = vst.msk [vmem:[#allocation2 + $0x78] sm:$0xff] %vm5317, %v5252
  %5334 = vst.msk [vmem:[#allocation2 + $0x80] sm:$0xff] %vm5317, %v5254
  %5335 = vst.msk [vmem:[#allocation2 + $0x88] sm:$0xff] %vm5317, %v5256
  %5336 = vst.msk [vmem:[#allocation2 + $0x90] sm:$0xff] %vm5317, %v5258
  %5337 = vst.msk [vmem:[#allocation2 + $0x98] sm:$0xff] %vm5317, %v5260
  %5338 = vst.msk [vmem:[#allocation2 + $0xa0] sm:$0xff] %vm5317, %v5262
  %5339 = vst.msk [vmem:[#allocation2 + $0xa8] sm:$0xff] %vm5317, %v5264
  %5340 = vst.msk [vmem:[#allocation2 + $0xb0] sm:$0xff] %vm5317, %v5266
  %5341 = vst.msk [vmem:[#allocation2 + $0xb8] sm:$0xff] %vm5317, %v5268
  %5342 = vst.msk [vmem:[#allocation2 + $0xc0] sm:$0xff] %vm5317, %v5270
  %5343 = vst.msk [vmem:[#allocation2 + $0xc8] sm:$0xff] %vm5317, %v5272
  %5344 = vst.msk [vmem:[#allocation2 + $0xd0] sm:$0xff] %vm5317, %v5274
  %5345 = vst.msk [vmem:[#allocation2 + $0xd8] sm:$0xff] %vm5317, %v5276
  %5346 = vst.msk [vmem:[#allocation2 + $0xe0] sm:$0xff] %vm5317, %v5278
  %5347 = vst.msk [vmem:[#allocation2 + $0xe8] sm:$0xff] %vm5317, %v5280
  %5348 = vst.msk [vmem:[#allocation2 + $0xf0] sm:$0xff] %vm5317, %v5282
  %5349 = vst.msk [vmem:[#allocation2 + $0xf8] sm:$0xff] %vm5317, %v5284
  %v5350 = vrot.slane %v5053, 2
  %v5351 = vrot.slane %v5056, 3
  %v5352 = vor.u32 %v5350, %v5351
  %v5353 = vrot.slane %v5061, 2
  %v5354 = vrot.slane %v5064, 3
  %v5355 = vor.u32 %v5353, %v5354
  %v5356 = vsel %vm4333, %v5352, %v5355
  %v5357 = vrot.slane %v5070, 2
  %v5358 = vrot.slane %v5073, 3
  %v5359 = vor.u32 %v5357, %v5358
  %v5360 = vrot.slane %v5078, 2
  %v5361 = vrot.slane %v5081, 3
  %v5362 = vor.u32 %v5360, %v5361
  %v5363 = vsel %vm4333, %v5359, %v5362
  %5364 = vrot.lane.b32.xlu0 %v4347, 32
  %v5365 = vpop.permute.xlu0 %5364
  %5366 = vrot.lane.b32.xlu0 %v4354, 32
  %v5367 = vpop.permute.xlu0 %5366
  %5368 = vrot.lane.b32.xlu0 %v4361, 32
  %v5369 = vpop.permute.xlu0 %5368
  %5370 = vrot.lane.b32.xlu0 %v4368, 32
  %v5371 = vpop.permute.xlu0 %5370
  %5372 = vrot.lane.b32.xlu0 %v4375, 32
  %v5373 = vpop.permute.xlu0 %5372
  %5374 = vrot.lane.b32.xlu0 %v4382, 32
  %v5375 = vpop.permute.xlu0 %5374
  %5376 = vrot.lane.b32.xlu0 %v4389, 32
  %v5377 = vpop.permute.xlu0 %5376
  %5378 = vrot.lane.b32.xlu0 %v4396, 32
  %v5379 = vpop.permute.xlu0 %5378
  %5380 = vrot.lane.b32.xlu0 %v4403, 32
  %v5381 = vpop.permute.xlu0 %5380
  %5382 = vrot.lane.b32.xlu0 %v4410, 32
  %v5383 = vpop.permute.xlu0 %5382
  %5384 = vrot.lane.b32.xlu0 %v4417, 32
  %v5385 = vpop.permute.xlu0 %5384
  %5386 = vrot.lane.b32.xlu0 %v4424, 32
  %v5387 = vpop.permute.xlu0 %5386
  %5388 = vrot.lane.b32.xlu0 %v4431, 32
  %v5389 = vpop.permute.xlu0 %5388
  %5390 = vrot.lane.b32.xlu0 %v4438, 32
  %v5391 = vpop.permute.xlu0 %5390
  %5392 = vrot.lane.b32.xlu0 %v4445, 32
  %v5393 = vpop.permute.xlu0 %5392
  %5394 = vrot.lane.b32.xlu0 %v5356, 32
  %v5395 = vpop.permute.xlu0 %5394
  %5396 = vrot.lane.b32.xlu0 %v4459, 32
  %v5397 = vpop.permute.xlu0 %5396
  %5398 = vrot.lane.b32.xlu0 %v4466, 32
  %v5399 = vpop.permute.xlu0 %5398
  %5400 = vrot.lane.b32.xlu0 %v4473, 32
  %v5401 = vpop.permute.xlu0 %5400
  %5402 = vrot.lane.b32.xlu0 %v4480, 32
  %v5403 = vpop.permute.xlu0 %5402
  %5404 = vrot.lane.b32.xlu0 %v4487, 32
  %v5405 = vpop.permute.xlu0 %5404
  %5406 = vrot.lane.b32.xlu0 %v4494, 32
  %v5407 = vpop.permute.xlu0 %5406
  %5408 = vrot.lane.b32.xlu0 %v4501, 32
  %v5409 = vpop.permute.xlu0 %5408
  %5410 = vrot.lane.b32.xlu0 %v4508, 32
  %v5411 = vpop.permute.xlu0 %5410
  %5412 = vrot.lane.b32.xlu0 %v4515, 32
  %v5413 = vpop.permute.xlu0 %5412
  %5414 = vrot.lane.b32.xlu0 %v4522, 32
  %v5415 = vpop.permute.xlu0 %5414
  %5416 = vrot.lane.b32.xlu0 %v4529, 32
  %v5417 = vpop.permute.xlu0 %5416
  %5418 = vrot.lane.b32.xlu0 %v4536, 32
  %v5419 = vpop.permute.xlu0 %5418
  %5420 = vrot.lane.b32.xlu0 %v4543, 32
  %v5421 = vpop.permute.xlu0 %5420
  %5422 = vrot.lane.b32.xlu0 %v4550, 32
  %v5423 = vpop.permute.xlu0 %5422
  %5424 = vrot.lane.b32.xlu0 %v4557, 32
  %v5425 = vpop.permute.xlu0 %5424
  %5426 = vrot.lane.b32.xlu0 %v5363, 32
  %v5427 = vpop.permute.xlu0 %5426
  %vm5460 = vcmask 294144
  %5461 = vst.msk [vmem:[#allocation2] sm:$0xff] %vm5460, %v5365
  %5462 = vst.msk [vmem:[#allocation2 + $0x8] sm:$0xff] %vm5460, %v5367
  %5463 = vst.msk [vmem:[#allocation2 + $0x10] sm:$0xff] %vm5460, %v5369
  %5464 = vst.msk [vmem:[#allocation2 + $0x18] sm:$0xff] %vm5460, %v5371
  %5465 = vst.msk [vmem:[#allocation2 + $0x20] sm:$0xff] %vm5460, %v5373
  %5466 = vst.msk [vmem:[#allocation2 + $0x28] sm:$0xff] %vm5460, %v5375
  %5467 = vst.msk [vmem:[#allocation2 + $0x30] sm:$0xff] %vm5460, %v5377
  %5468 = vst.msk [vmem:[#allocation2 + $0x38] sm:$0xff] %vm5460, %v5379
  %5469 = vst.msk [vmem:[#allocation2 + $0x40] sm:$0xff] %vm5460, %v5381
  %5470 = vst.msk [vmem:[#allocation2 + $0x48] sm:$0xff] %vm5460, %v5383
  %5471 = vst.msk [vmem:[#allocation2 + $0x50] sm:$0xff] %vm5460, %v5385
  %5472 = vst.msk [vmem:[#allocation2 + $0x58] sm:$0xff] %vm5460, %v5387
  %5473 = vst.msk [vmem:[#allocation2 + $0x60] sm:$0xff] %vm5460, %v5389
  %5474 = vst.msk [vmem:[#allocation2 + $0x68] sm:$0xff] %vm5460, %v5391
  %5475 = vst.msk [vmem:[#allocation2 + $0x70] sm:$0xff] %vm5460, %v5393
  %5476 = vst.msk [vmem:[#allocation2 + $0x78] sm:$0xff] %vm5460, %v5395
  %5477 = vst.msk [vmem:[#allocation2 + $0x80] sm:$0xff] %vm5460, %v5397
  %5478 = vst.msk [vmem:[#allocation2 + $0x88] sm:$0xff] %vm5460, %v5399
  %5479 = vst.msk [vmem:[#allocation2 + $0x90] sm:$0xff] %vm5460, %v5401
  %5480 = vst.msk [vmem:[#allocation2 + $0x98] sm:$0xff] %vm5460, %v5403
  %5481 = vst.msk [vmem:[#allocation2 + $0xa0] sm:$0xff] %vm5460, %v5405
  %5482 = vst.msk [vmem:[#allocation2 + $0xa8] sm:$0xff] %vm5460, %v5407
  %5483 = vst.msk [vmem:[#allocation2 + $0xb0] sm:$0xff] %vm5460, %v5409
  %5484 = vst.msk [vmem:[#allocation2 + $0xb8] sm:$0xff] %vm5460, %v5411
  %5485 = vst.msk [vmem:[#allocation2 + $0xc0] sm:$0xff] %vm5460, %v5413
  %5486 = vst.msk [vmem:[#allocation2 + $0xc8] sm:$0xff] %vm5460, %v5415
  %5487 = vst.msk [vmem:[#allocation2 + $0xd0] sm:$0xff] %vm5460, %v5417
  %5488 = vst.msk [vmem:[#allocation2 + $0xd8] sm:$0xff] %vm5460, %v5419
  %5489 = vst.msk [vmem:[#allocation2 + $0xe0] sm:$0xff] %vm5460, %v5421
  %5490 = vst.msk [vmem:[#allocation2 + $0xe8] sm:$0xff] %vm5460, %v5423
  %5491 = vst.msk [vmem:[#allocation2 + $0xf0] sm:$0xff] %vm5460, %v5425
  %5492 = vst.msk [vmem:[#allocation2 + $0xf8] sm:$0xff] %vm5460, %v5427
  %v5493 = vrot.slane %v3158, 3
  %v5494 = vrot.slane %v3159, 3
  %v5495 = vsel %vm4687, %v5493, %v5494
  %v5496 = vrot.slane %v3198, 3
  %v5497 = vrot.slane %v3199, 3
  %v5498 = vsel %vm4687, %v5496, %v5497
  %5499 = vrot.lane.b32.xlu0 %v4693, 36
  %v5500 = vpop.permute.xlu0 %5499
  %5501 = vrot.lane.b32.xlu0 %v4696, 36
  %v5502 = vpop.permute.xlu0 %5501
  %5503 = vrot.lane.b32.xlu0 %v4699, 36
  %v5504 = vpop.permute.xlu0 %5503
  %5505 = vrot.lane.b32.xlu0 %v4702, 36
  %v5506 = vpop.permute.xlu0 %5505
  %5507 = vrot.lane.b32.xlu0 %v4705, 36
  %v5508 = vpop.permute.xlu0 %5507
  %5509 = vrot.lane.b32.xlu0 %v4708, 36
  %v5510 = vpop.permute.xlu0 %5509
  %5511 = vrot.lane.b32.xlu0 %v4711, 36
  %v5512 = vpop.permute.xlu0 %5511
  %5513 = vrot.lane.b32.xlu0 %v4714, 36
  %v5514 = vpop.permute.xlu0 %5513
  %5515 = vrot.lane.b32.xlu0 %v4717, 36
  %v5516 = vpop.permute.xlu0 %5515
  %5517 = vrot.lane.b32.xlu0 %v4720, 36
  %v5518 = vpop.permute.xlu0 %5517
  %5519 = vrot.lane.b32.xlu0 %v4723, 36
  %v5520 = vpop.permute.xlu0 %5519
  %5521 = vrot.lane.b32.xlu0 %v4726, 36
  %v5522 = vpop.permute.xlu0 %5521
  %5523 = vrot.lane.b32.xlu0 %v4729, 36
  %v5524 = vpop.permute.xlu0 %5523
  %5525 = vrot.lane.b32.xlu0 %v4732, 36
  %v5526 = vpop.permute.xlu0 %5525
  %5527 = vrot.lane.b32.xlu0 %v4735, 36
  %v5528 = vpop.permute.xlu0 %5527
  %5529 = vrot.lane.b32.xlu0 %v5495, 36
  %v5530 = vpop.permute.xlu0 %5529
  %5531 = vrot.lane.b32.xlu0 %v4741, 36
  %v5532 = vpop.permute.xlu0 %5531
  %5533 = vrot.lane.b32.xlu0 %v4744, 36
  %v5534 = vpop.permute.xlu0 %5533
  %5535 = vrot.lane.b32.xlu0 %v4747, 36
  %v5536 = vpop.permute.xlu0 %5535
  %5537 = vrot.lane.b32.xlu0 %v4750, 36
  %v5538 = vpop.permute.xlu0 %5537
  %5539 = vrot.lane.b32.xlu0 %v4753, 36
  %v5540 = vpop.permute.xlu0 %5539
  %5541 = vrot.lane.b32.xlu0 %v4756, 36
  %v5542 = vpop.permute.xlu0 %5541
  %5543 = vrot.lane.b32.xlu0 %v4759, 36
  %v5544 = vpop.permute.xlu0 %5543
  %5545 = vrot.lane.b32.xlu0 %v4762, 36
  %v5546 = vpop.permute.xlu0 %5545
  %5547 = vrot.lane.b32.xlu0 %v4765, 36
  %v5548 = vpop.permute.xlu0 %5547
  %5549 = vrot.lane.b32.xlu0 %v4768, 36
  %v5550 = vpop.permute.xlu0 %5549
  %5551 = vrot.lane.b32.xlu0 %v4771, 36
  %v5552 = vpop.permute.xlu0 %5551
  %5553 = vrot.lane.b32.xlu0 %v4774, 36
  %v5554 = vpop.permute.xlu0 %5553
  %5555 = vrot.lane.b32.xlu0 %v4777, 36
  %v5556 = vpop.permute.xlu0 %5555
  %5557 = vrot.lane.b32.xlu0 %v4780, 36
  %v5558 = vpop.permute.xlu0 %5557
  %5559 = vrot.lane.b32.xlu0 %v4783, 36
  %v5560 = vpop.permute.xlu0 %5559
  %5561 = vrot.lane.b32.xlu0 %v5498, 36
  %v5562 = vpop.permute.xlu0 %5561
  %vm5595 = vcmask 326944
  %5596 = vst.msk [vmem:[#allocation2] sm:$0xff] %vm5595, %v5500
  %5597 = vst.msk [vmem:[#allocation2 + $0x8] sm:$0xff] %vm5595, %v5502
  %5598 = vst.msk [vmem:[#allocation2 + $0x10] sm:$0xff] %vm5595, %v5504
  %5599 = vst.msk [vmem:[#allocation2 + $0x18] sm:$0xff] %vm5595, %v5506
  %5600 = vst.msk [vmem:[#allocation2 + $0x20] sm:$0xff] %vm5595, %v5508
  %5601 = vst.msk [vmem:[#allocation2 + $0x28] sm:$0xff] %vm5595, %v5510
  %5602 = vst.msk [vmem:[#allocation2 + $0x30] sm:$0xff] %vm5595, %v5512
  %5603 = vst.msk [vmem:[#allocation2 + $0x38] sm:$0xff] %vm5595, %v5514
  %5604 = vst.msk [vmem:[#allocation2 + $0x40] sm:$0xff] %vm5595, %v5516
  %5605 = vst.msk [vmem:[#allocation2 + $0x48] sm:$0xff] %vm5595, %v5518
  %5606 = vst.msk [vmem:[#allocation2 + $0x50] sm:$0xff] %vm5595, %v5520
  %5607 = vst.msk [vmem:[#allocation2 + $0x58] sm:$0xff] %vm5595, %v5522
  %5608 = vst.msk [vmem:[#allocation2 + $0x60] sm:$0xff] %vm5595, %v5524
  %5609 = vst.msk [vmem:[#allocation2 + $0x68] sm:$0xff] %vm5595, %v5526
  %5610 = vst.msk [vmem:[#allocation2 + $0x70] sm:$0xff] %vm5595, %v5528
  %5611 = vst.msk [vmem:[#allocation2 + $0x78] sm:$0xff] %vm5595, %v5530
  %5612 = vst.msk [vmem:[#allocation2 + $0x80] sm:$0xff] %vm5595, %v5532
  %5613 = vst.msk [vmem:[#allocation2 + $0x88] sm:$0xff] %vm5595, %v5534
  %5614 = vst.msk [vmem:[#allocation2 + $0x90] sm:$0xff] %vm5595, %v5536
  %5615 = vst.msk [vmem:[#allocation2 + $0x98] sm:$0xff] %vm5595, %v5538
  %5616 = vst.msk [vmem:[#allocation2 + $0xa0] sm:$0xff] %vm5595, %v5540
  %5617 = vst.msk [vmem:[#allocation2 + $0xa8] sm:$0xff] %vm5595, %v5542
  %5618 = vst.msk [vmem:[#allocation2 + $0xb0] sm:$0xff] %vm5595, %v5544
  %5619 = vst.msk [vmem:[#allocation2 + $0xb8] sm:$0xff] %vm5595, %v5546
  %5620 = vst.msk [vmem:[#allocation2 + $0xc0] sm:$0xff] %vm5595, %v5548
  %5621 = vst.msk [vmem:[#allocation2 + $0xc8] sm:$0xff] %vm5595, %v5550
  %5622 = vst.msk [vmem:[#allocation2 + $0xd0] sm:$0xff] %vm5595, %v5552
  %5623 = vst.msk [vmem:[#allocation2 + $0xd8] sm:$0xff] %vm5595, %v5554
  %5624 = vst.msk [vmem:[#allocation2 + $0xe0] sm:$0xff] %vm5595, %v5556
  %5625 = vst.msk [vmem:[#allocation2 + $0xe8] sm:$0xff] %vm5595, %v5558
  %5626 = vst.msk [vmem:[#allocation2 + $0xf0] sm:$0xff] %vm5595, %v5560
  %5627 = vst.msk [vmem:[#allocation2 + $0xf8] sm:$0xff] %vm5595, %v5562
  %v5632 = vrot.slane %v3160, 1
  %v5633 = vrot.slane %v3161, 1
  %v5634 = vsel %vm3271, %v5632, %v5633
  %v5635 = vrot.slane %v3200, 1
  %v5636 = vrot.slane %v3201, 1
  %v5637 = vsel %vm3271, %v5635, %v5636
  %5638 = vrot.lane.b32.xlu0 %v3280, 40
  %v5639 = vpop.permute.xlu0 %5638
  %5640 = vrot.lane.b32.xlu0 %v3283, 40
  %v5641 = vpop.permute.xlu0 %5640
  %5642 = vrot.lane.b32.xlu0 %v3286, 40
  %v5643 = vpop.permute.xlu0 %5642
  %5644 = vrot.lane.b32.xlu0 %v3289, 40
  %v5645 = vpop.permute.xlu0 %5644
  %5646 = vrot.lane.b32.xlu0 %v3292, 40
  %v5647 = vpop.permute.xlu0 %5646
  %5648 = vrot.lane.b32.xlu0 %v3295, 40
  %v5649 = vpop.permute.xlu0 %5648
  %5650 = vrot.lane.b32.xlu0 %v3298, 40
  %v5651 = vpop.permute.xlu0 %5650
  %5652 = vrot.lane.b32.xlu0 %v3301, 40
  %v5653 = vpop.permute.xlu0 %5652
  %5654 = vrot.lane.b32.xlu0 %v3304, 40
  %v5655 = vpop.permute.xlu0 %5654
  %5656 = vrot.lane.b32.xlu0 %v3307, 40
  %v5657 = vpop.permute.xlu0 %5656
  %5658 = vrot.lane.b32.xlu0 %v3310, 40
  %v5659 = vpop.permute.xlu0 %5658
  %5660 = vrot.lane.b32.xlu0 %v3313, 40
  %v5661 = vpop.permute.xlu0 %5660
  %5662 = vrot.lane.b32.xlu0 %v3316, 40
  %v5663 = vpop.permute.xlu0 %5662
  %5664 = vrot.lane.b32.xlu0 %v3319, 40
  %v5665 = vpop.permute.xlu0 %5664
  %5666 = vrot.lane.b32.xlu0 %v4919, 40
  %v5667 = vpop.permute.xlu0 %5666
  %5668 = vrot.lane.b32.xlu0 %v5634, 40
  %v5669 = vpop.permute.xlu0 %5668
  %5670 = vrot.lane.b32.xlu0 %v3328, 40
  %v5671 = vpop.permute.xlu0 %5670
  %5672 = vrot.lane.b32.xlu0 %v3331, 40
  %v5673 = vpop.permute.xlu0 %5672
  %5674 = vrot.lane.b32.xlu0 %v3334, 40
  %v5675 = vpop.permute.xlu0 %5674
  %5676 = vrot.lane.b32.xlu0 %v3337, 40
  %v5677 = vpop.permute.xlu0 %5676
  %5678 = vrot.lane.b32.xlu0 %v3340, 40
  %v5679 = vpop.permute.xlu0 %5678
  %5680 = vrot.lane.b32.xlu0 %v3343, 40
  %v5681 = vpop.permute.xlu0 %5680
  %5682 = vrot.lane.b32.xlu0 %v3346, 40
  %v5683 = vpop.permute.xlu0 %5682
  %5684 = vrot.lane.b32.xlu0 %v3349, 40
  %v5685 = vpop.permute.xlu0 %5684
  %5686 = vrot.lane.b32.xlu0 %v3352, 40
  %v5687 = vpop.permute.xlu0 %5686
  %5688 = vrot.lane.b32.xlu0 %v3355, 40
  %v5689 = vpop.permute.xlu0 %5688
  %5690 = vrot.lane.b32.xlu0 %v3358, 40
  %v5691 = vpop.permute.xlu0 %5690
  %5692 = vrot.lane.b32.xlu0 %v3361, 40
  %v5693 = vpop.permute.xlu0 %5692
  %5694 = vrot.lane.b32.xlu0 %v3364, 40
  %v5695 = vpop.permute.xlu0 %5694
  %5696 = vrot.lane.b32.xlu0 %v3367, 40
  %v5697 = vpop.permute.xlu0 %5696
  %5698 = vrot.lane.b32.xlu0 %v4922, 40
  %v5699 = vpop.permute.xlu0 %5698
  %5700 = vrot.lane.b32.xlu0 %v5637, 40
  %v5701 = vpop.permute.xlu0 %5700
  %vm5734 = vcmask 359744
  %5735 = vst.msk [vmem:[#allocation2] sm:$0xff] %vm5734, %v5639
  %5736 = vst.msk [vmem:[#allocation2 + $0x8] sm:$0xff] %vm5734, %v5641
  %5737 = vst.msk [vmem:[#allocation2 + $0x10] sm:$0xff] %vm5734, %v5643
  %5738 = vst.msk [vmem:[#allocation2 + $0x18] sm:$0xff] %vm5734, %v5645
  %5739 = vst.msk [vmem:[#allocation2 + $0x20] sm:$0xff] %vm5734, %v5647
  %5740 = vst.msk [vmem:[#allocation2 + $0x28] sm:$0xff] %vm5734, %v5649
  %5741 = vst.msk [vmem:[#allocation2 + $0x30] sm:$0xff] %vm5734, %v5651
  %5742 = vst.msk [vmem:[#allocation2 + $0x38] sm:$0xff] %vm5734, %v5653
  %5743 = vst.msk [vmem:[#allocation2 + $0x40] sm:$0xff] %vm5734, %v5655
  %5744 = vst.msk [vmem:[#allocation2 + $0x48] sm:$0xff] %vm5734, %v5657
  %5745 = vst.msk [vmem:[#allocation2 + $0x50] sm:$0xff] %vm5734, %v5659
  %5746 = vst.msk [vmem:[#allocation2 + $0x58] sm:$0xff] %vm5734, %v5661
  %5747 = vst.msk [vmem:[#allocation2 + $0x60] sm:$0xff] %vm5734, %v5663
  %5748 = vst.msk [vmem:[#allocation2 + $0x68] sm:$0xff] %vm5734, %v5665
  %5749 = vst.msk [vmem:[#allocation2 + $0x70] sm:$0xff] %vm5734, %v5667
  %5750 = vst.msk [vmem:[#allocation2 + $0x78] sm:$0xff] %vm5734, %v5669
  %5751 = vst.msk [vmem:[#allocation2 + $0x80] sm:$0xff] %vm5734, %v5671
  %5752 = vst.msk [vmem:[#allocation2 + $0x88] sm:$0xff] %vm5734, %v5673
  %5753 = vst.msk [vmem:[#allocation2 + $0x90] sm:$0xff] %vm5734, %v5675
  %5754 = vst.msk [vmem:[#allocation2 + $0x98] sm:$0xff] %vm5734, %v5677
  %5755 = vst.msk [vmem:[#allocation2 + $0xa0] sm:$0xff] %vm5734, %v5679
  %5756 = vst.msk [vmem:[#allocation2 + $0xa8] sm:$0xff] %vm5734, %v5681
  %5757 = vst.msk [vmem:[#allocation2 + $0xb0] sm:$0xff] %vm5734, %v5683
  %5758 = vst.msk [vmem:[#allocation2 + $0xb8] sm:$0xff] %vm5734, %v5685
  %5759 = vst.msk [vmem:[#allocation2 + $0xc0] sm:$0xff] %vm5734, %v5687
  %5760 = vst.msk [vmem:[#allocation2 + $0xc8] sm:$0xff] %vm5734, %v5689
  %5761 = vst.msk [vmem:[#allocation2 + $0xd0] sm:$0xff] %vm5734, %v5691
  %5762 = vst.msk [vmem:[#allocation2 + $0xd8] sm:$0xff] %vm5734, %v5693
  %5763 = vst.msk [vmem:[#allocation2 + $0xe0] sm:$0xff] %vm5734, %v5695
  %5764 = vst.msk [vmem:[#allocation2 + $0xe8] sm:$0xff] %vm5734, %v5697
  %5765 = vst.msk [vmem:[#allocation2 + $0xf0] sm:$0xff] %vm5734, %v5699
  %5766 = vst.msk [vmem:[#allocation2 + $0xf8] sm:$0xff] %vm5734, %v5701
  %v5768 = vshrl.u32 %v3160, 16
  %v5770 = vrot.slane %v5768, 1
  %v5771 = vshll.u32 %v3160, 16
  %v5773 = vrot.slane %v5771, 2
  %v5774 = vor.u32 %v5770, %v5773
  %v5776 = vshrl.u32 %v3161, 16
  %v5778 = vrot.slane %v5776, 1
  %v5779 = vshll.u32 %v3161, 16
  %v5781 = vrot.slane %v5779, 2
  %v5782 = vor.u32 %v5778, %v5781
  %v5783 = vsel %vm3433, %v5774, %v5782
  %v5785 = vshrl.u32 %v3200, 16
  %v5787 = vrot.slane %v5785, 1
  %v5788 = vshll.u32 %v3200, 16
  %v5790 = vrot.slane %v5788, 2
  %v5791 = vor.u32 %v5787, %v5790
  %v5793 = vshrl.u32 %v3201, 16
  %v5795 = vrot.slane %v5793, 1
  %v5796 = vshll.u32 %v3201, 16
  %v5798 = vrot.slane %v5796, 2
  %v5799 = vor.u32 %v5795, %v5798
  %v5800 = vsel %vm3433, %v5791, %v5799
  %5801 = vrot.lane.b32.xlu0 %v3484, 44
  %v5802 = vpop.permute.xlu0 %5801
  %5803 = vrot.lane.b32.xlu0 %v3501, 44
  %v5804 = vpop.permute.xlu0 %5803
  %5805 = vrot.lane.b32.xlu0 %v3518, 44
  %v5806 = vpop.permute.xlu0 %5805
  %5807 = vrot.lane.b32.xlu0 %v3535, 44
  %v5808 = vpop.permute.xlu0 %5807
  %5809 = vrot.lane.b32.xlu0 %v3552, 44
  %v5810 = vpop.permute.xlu0 %5809
  %5811 = vrot.lane.b32.xlu0 %v3569, 44
  %v5812 = vpop.permute.xlu0 %5811
  %5813 = vrot.lane.b32.xlu0 %v3586, 44
  %v5814 = vpop.permute.xlu0 %5813
  %5815 = vrot.lane.b32.xlu0 %v3603, 44
  %v5816 = vpop.permute.xlu0 %5815
  %5817 = vrot.lane.b32.xlu0 %v3620, 44
  %v5818 = vpop.permute.xlu0 %5817
  %5819 = vrot.lane.b32.xlu0 %v3637, 44
  %v5820 = vpop.permute.xlu0 %5819
  %5821 = vrot.lane.b32.xlu0 %v3654, 44
  %v5822 = vpop.permute.xlu0 %5821
  %5823 = vrot.lane.b32.xlu0 %v3671, 44
  %v5824 = vpop.permute.xlu0 %5823
  %5825 = vrot.lane.b32.xlu0 %v3688, 44
  %v5826 = vpop.permute.xlu0 %5825
  %5827 = vrot.lane.b32.xlu0 %v3705, 44
  %v5828 = vpop.permute.xlu0 %5827
  %5829 = vrot.lane.b32.xlu0 %v5068, 44
  %v5830 = vpop.permute.xlu0 %5829
  %5831 = vrot.lane.b32.xlu0 %v5783, 44
  %v5832 = vpop.permute.xlu0 %5831
  %5833 = vrot.lane.b32.xlu0 %v3756, 44
  %v5834 = vpop.permute.xlu0 %5833
  %5835 = vrot.lane.b32.xlu0 %v3773, 44
  %v5836 = vpop.permute.xlu0 %5835
  %5837 = vrot.lane.b32.xlu0 %v3790, 44
  %v5838 = vpop.permute.xlu0 %5837
  %5839 = vrot.lane.b32.xlu0 %v3807, 44
  %v5840 = vpop.permute.xlu0 %5839
  %5841 = vrot.lane.b32.xlu0 %v3824, 44
  %v5842 = vpop.permute.xlu0 %5841
  %5843 = vrot.lane.b32.xlu0 %v3841, 44
  %v5844 = vpop.permute.xlu0 %5843
  %5845 = vrot.lane.b32.xlu0 %v3858, 44
  %v5846 = vpop.permute.xlu0 %5845
  %5847 = vrot.lane.b32.xlu0 %v3875, 44
  %v5848 = vpop.permute.xlu0 %5847
  %5849 = vrot.lane.b32.xlu0 %v3892, 44
  %v5850 = vpop.permute.xlu0 %5849
  %5851 = vrot.lane.b32.xlu0 %v3909, 44
  %v5852 = vpop.permute.xlu0 %5851
  %5853 = vrot.lane.b32.xlu0 %v3926, 44
  %v5854 = vpop.permute.xlu0 %5853
  %5855 = vrot.lane.b32.xlu0 %v3943, 44
  %v5856 = vpop.permute.xlu0 %5855
  %5857 = vrot.lane.b32.xlu0 %v3960, 44
  %v5858 = vpop.permute.xlu0 %5857
  %5859 = vrot.lane.b32.xlu0 %v3977, 44
  %v5860 = vpop.permute.xlu0 %5859
  %5861 = vrot.lane.b32.xlu0 %v5085, 44
  %v5862 = vpop.permute.xlu0 %5861
  %5863 = vrot.lane.b32.xlu0 %v5800, 44
  %v5864 = vpop.permute.xlu0 %5863
  %vm5897 = vcmask 392544
  %5898 = vst.msk [vmem:[#allocation2] sm:$0xff] %vm5897, %v5802
  %5899 = vst.msk [vmem:[#allocation2 + $0x8] sm:$0xff] %vm5897, %v5804
  %5900 = vst.msk [vmem:[#allocation2 + $0x10] sm:$0xff] %vm5897, %v5806
  %5901 = vst.msk [vmem:[#allocation2 + $0x18] sm:$0xff] %vm5897, %v5808
  %5902 = vst.msk [vmem:[#allocation2 + $0x20] sm:$0xff] %vm5897, %v5810
  %5903 = vst.msk [vmem:[#allocation2 + $0x28] sm:$0xff] %vm5897, %v5812
  %5904 = vst.msk [vmem:[#allocation2 + $0x30] sm:$0xff] %vm5897, %v5814
  %5905 = vst.msk [vmem:[#allocation2 + $0x38] sm:$0xff] %vm5897, %v5816
  %5906 = vst.msk [vmem:[#allocation2 + $0x40] sm:$0xff] %vm5897, %v5818
  %5907 = vst.msk [vmem:[#allocation2 + $0x48] sm:$0xff] %vm5897, %v5820
  %5908 = vst.msk [vmem:[#allocation2 + $0x50] sm:$0xff] %vm5897, %v5822
  %5909 = vst.msk [vmem:[#allocation2 + $0x58] sm:$0xff] %vm5897, %v5824
  %5910 = vst.msk [vmem:[#allocation2 + $0x60] sm:$0xff] %vm5897, %v5826
  %5911 = vst.msk [vmem:[#allocation2 + $0x68] sm:$0xff] %vm5897, %v5828
  %5912 = vst.msk [vmem:[#allocation2 + $0x70] sm:$0xff] %vm5897, %v5830
  %5913 = vst.msk [vmem:[#allocation2 + $0x78] sm:$0xff] %vm5897, %v5832
  %5914 = vst.msk [vmem:[#allocation2 + $0x80] sm:$0xff] %vm5897, %v5834
  %5915 = vst.msk [vmem:[#allocation2 + $0x88] sm:$0xff] %vm5897, %v5836
  %5916 = vst.msk [vmem:[#allocation2 + $0x90] sm:$0xff] %vm5897, %v5838
  %5917 = vst.msk [vmem:[#allocation2 + $0x98] sm:$0xff] %vm5897, %v5840
  %5918 = vst.msk [vmem:[#allocation2 + $0xa0] sm:$0xff] %vm5897, %v5842
  %5919 = vst.msk [vmem:[#allocation2 + $0xa8] sm:$0xff] %vm5897, %v5844
  %5920 = vst.msk [vmem:[#allocation2 + $0xb0] sm:$0xff] %vm5897, %v5846
  %5921 = vst.msk [vmem:[#allocation2 + $0xb8] sm:$0xff] %vm5897, %v5848
  %5922 = vst.msk [vmem:[#allocation2 + $0xc0] sm:$0xff] %vm5897, %v5850
  %5923 = vst.msk [vmem:[#allocation2 + $0xc8] sm:$0xff] %vm5897, %v5852
  %5924 = vst.msk [vmem:[#allocation2 + $0xd0] sm:$0xff] %vm5897, %v5854
  %5925 = vst.msk [vmem:[#allocation2 + $0xd8] sm:$0xff] %vm5897, %v5856
  %5926 = vst.msk [vmem:[#allocation2 + $0xe0] sm:$0xff] %vm5897, %v5858
  %5927 = vst.msk [vmem:[#allocation2 + $0xe8] sm:$0xff] %vm5897, %v5860
  %5928 = vst.msk [vmem:[#allocation2 + $0xf0] sm:$0xff] %vm5897, %v5862
  %5929 = vst.msk [vmem:[#allocation2 + $0xf8] sm:$0xff] %vm5897, %v5864
  %v5930 = vrot.slane %v3160, 2
  %v5931 = vrot.slane %v3161, 2
  %v5932 = vsel %vm4107, %v5930, %v5931
  %v5933 = vrot.slane %v3200, 2
  %v5934 = vrot.slane %v3201, 2
  %v5935 = vsel %vm4107, %v5933, %v5934
  %5936 = vrot.lane.b32.xlu0 %v4116, 48
  %v5937 = vpop.permute.xlu0 %5936
  %5938 = vrot.lane.b32.xlu0 %v4119, 48
  %v5939 = vpop.permute.xlu0 %5938
  %5940 = vrot.lane.b32.xlu0 %v4122, 48
  %v5941 = vpop.permute.xlu0 %5940
  %5942 = vrot.lane.b32.xlu0 %v4125, 48
  %v5943 = vpop.permute.xlu0 %5942
  %5944 = vrot.lane.b32.xlu0 %v4128, 48
  %v5945 = vpop.permute.xlu0 %5944
  %5946 = vrot.lane.b32.xlu0 %v4131, 48
  %v5947 = vpop.permute.xlu0 %5946
  %5948 = vrot.lane.b32.xlu0 %v4134, 48
  %v5949 = vpop.permute.xlu0 %5948
  %5950 = vrot.lane.b32.xlu0 %v4137, 48
  %v5951 = vpop.permute.xlu0 %5950
  %5952 = vrot.lane.b32.xlu0 %v4140, 48
  %v5953 = vpop.permute.xlu0 %5952
  %5954 = vrot.lane.b32.xlu0 %v4143, 48
  %v5955 = vpop.permute.xlu0 %5954
  %5956 = vrot.lane.b32.xlu0 %v4146, 48
  %v5957 = vpop.permute.xlu0 %5956
  %5958 = vrot.lane.b32.xlu0 %v4149, 48
  %v5959 = vpop.permute.xlu0 %5958
  %5960 = vrot.lane.b32.xlu0 %v4152, 48
  %v5961 = vpop.permute.xlu0 %5960
  %5962 = vrot.lane.b32.xlu0 %v4155, 48
  %v5963 = vpop.permute.xlu0 %5962
  %5964 = vrot.lane.b32.xlu0 %v5217, 48
  %v5965 = vpop.permute.xlu0 %5964
  %5966 = vrot.lane.b32.xlu0 %v5932, 48
  %v5967 = vpop.permute.xlu0 %5966
  %5968 = vrot.lane.b32.xlu0 %v4164, 48
  %v5969 = vpop.permute.xlu0 %5968
  %5970 = vrot.lane.b32.xlu0 %v4167, 48
  %v5971 = vpop.permute.xlu0 %5970
  %5972 = vrot.lane.b32.xlu0 %v4170, 48
  %v5973 = vpop.permute.xlu0 %5972
  %5974 = vrot.lane.b32.xlu0 %v4173, 48
  %v5975 = vpop.permute.xlu0 %5974
  %5976 = vrot.lane.b32.xlu0 %v4176, 48
  %v5977 = vpop.permute.xlu0 %5976
  %5978 = vrot.lane.b32.xlu0 %v4179, 48
  %v5979 = vpop.permute.xlu0 %5978
  %5980 = vrot.lane.b32.xlu0 %v4182, 48
  %v5981 = vpop.permute.xlu0 %5980
  %5982 = vrot.lane.b32.xlu0 %v4185, 48
  %v5983 = vpop.permute.xlu0 %5982
  %5984 = vrot.lane.b32.xlu0 %v4188, 48
  %v5985 = vpop.permute.xlu0 %5984
  %5986 = vrot.lane.b32.xlu0 %v4191, 48
  %v5987 = vpop.permute.xlu0 %5986
  %5988 = vrot.lane.b32.xlu0 %v4194, 48
  %v5989 = vpop.permute.xlu0 %5988
  %5990 = vrot.lane.b32.xlu0 %v4197, 48
  %v5991 = vpop.permute.xlu0 %5990
  %5992 = vrot.lane.b32.xlu0 %v4200, 48
  %v5993 = vpop.permute.xlu0 %5992
  %5994 = vrot.lane.b32.xlu0 %v4203, 48
  %v5995 = vpop.permute.xlu0 %5994
  %5996 = vrot.lane.b32.xlu0 %v5220, 48
  %v5997 = vpop.permute.xlu0 %5996
  %5998 = vrot.lane.b32.xlu0 %v5935, 48
  %v5999 = vpop.permute.xlu0 %5998
  %vm6032 = vcmask 425344
  %6033 = vst.msk [vmem:[#allocation2] sm:$0xff] %vm6032, %v5937
  %6034 = vst.msk [vmem:[#allocation2 + $0x8] sm:$0xff] %vm6032, %v5939
  %6035 = vst.msk [vmem:[#allocation2 + $0x10] sm:$0xff] %vm6032, %v5941
  %6036 = vst.msk [vmem:[#allocation2 + $0x18] sm:$0xff] %vm6032, %v5943
  %6037 = vst.msk [vmem:[#allocation2 + $0x20] sm:$0xff] %vm6032, %v5945
  %6038 = vst.msk [vmem:[#allocation2 + $0x28] sm:$0xff] %vm6032, %v5947
  %6039 = vst.msk [vmem:[#allocation2 + $0x30] sm:$0xff] %vm6032, %v5949
  %6040 = vst.msk [vmem:[#allocation2 + $0x38] sm:$0xff] %vm6032, %v5951
  %6041 = vst.msk [vmem:[#allocation2 + $0x40] sm:$0xff] %vm6032, %v5953
  %6042 = vst.msk [vmem:[#allocation2 + $0x48] sm:$0xff] %vm6032, %v5955
  %6043 = vst.msk [vmem:[#allocation2 + $0x50] sm:$0xff] %vm6032, %v5957
  %6044 = vst.msk [vmem:[#allocation2 + $0x58] sm:$0xff] %vm6032, %v5959
  %6045 = vst.msk [vmem:[#allocation2 + $0x60] sm:$0xff] %vm6032, %v5961
  %6046 = vst.msk [vmem:[#allocation2 + $0x68] sm:$0xff] %vm6032, %v5963
  %6047 = vst.msk [vmem:[#allocation2 + $0x70] sm:$0xff] %vm6032, %v5965
  %6048 = vst.msk [vmem:[#allocation2 + $0x78] sm:$0xff] %vm6032, %v5967
  %6049 = vst.msk [vmem:[#allocation2 + $0x80] sm:$0xff] %vm6032, %v5969
  %6050 = vst.msk [vmem:[#allocation2 + $0x88] sm:$0xff] %vm6032, %v5971
  %6051 = vst.msk [vmem:[#allocation2 + $0x90] sm:$0xff] %vm6032, %v5973
  %6052 = vst.msk [vmem:[#allocation2 + $0x98] sm:$0xff] %vm6032, %v5975
  %6053 = vst.msk [vmem:[#allocation2 + $0xa0] sm:$0xff] %vm6032, %v5977
  %6054 = vst.msk [vmem:[#allocation2 + $0xa8] sm:$0xff] %vm6032, %v5979
  %6055 = vst.msk [vmem:[#allocation2 + $0xb0] sm:$0xff] %vm6032, %v5981
  %6056 = vst.msk [vmem:[#allocation2 + $0xb8] sm:$0xff] %vm6032, %v5983
  %6057 = vst.msk [vmem:[#allocation2 + $0xc0] sm:$0xff] %vm6032, %v5985
  %6058 = vst.msk [vmem:[#allocation2 + $0xc8] sm:$0xff] %vm6032, %v5987
  %6059 = vst.msk [vmem:[#allocation2 + $0xd0] sm:$0xff] %vm6032, %v5989
  %6060 = vst.msk [vmem:[#allocation2 + $0xd8] sm:$0xff] %vm6032, %v5991
  %6061 = vst.msk [vmem:[#allocation2 + $0xe0] sm:$0xff] %vm6032, %v5993
  %6062 = vst.msk [vmem:[#allocation2 + $0xe8] sm:$0xff] %vm6032, %v5995
  %6063 = vst.msk [vmem:[#allocation2 + $0xf0] sm:$0xff] %vm6032, %v5997
  %6064 = vst.msk [vmem:[#allocation2 + $0xf8] sm:$0xff] %vm6032, %v5999
  %v6065 = vrot.slane %v5768, 2
  %v6066 = vrot.slane %v5771, 3
  %v6067 = vor.u32 %v6065, %v6066
  %v6068 = vrot.slane %v5776, 2
  %v6069 = vrot.slane %v5779, 3
  %v6070 = vor.u32 %v6068, %v6069
  %v6071 = vsel %vm4333, %v6067, %v6070
  %v6072 = vrot.slane %v5785, 2
  %v6073 = vrot.slane %v5788, 3
  %v6074 = vor.u32 %v6072, %v6073
  %v6075 = vrot.slane %v5793, 2
  %v6076 = vrot.slane %v5796, 3
  %v6077 = vor.u32 %v6075, %v6076
  %v6078 = vsel %vm4333, %v6074, %v6077
  %6079 = vrot.lane.b32.xlu0 %v4354, 52
  %v6080 = vpop.permute.xlu0 %6079
  %6081 = vrot.lane.b32.xlu0 %v4361, 52
  %v6082 = vpop.permute.xlu0 %6081
  %6083 = vrot.lane.b32.xlu0 %v4368, 52
  %v6084 = vpop.permute.xlu0 %6083
  %6085 = vrot.lane.b32.xlu0 %v4375, 52
  %v6086 = vpop.permute.xlu0 %6085
  %6087 = vrot.lane.b32.xlu0 %v4382, 52
  %v6088 = vpop.permute.xlu0 %6087
  %6089 = vrot.lane.b32.xlu0 %v4389, 52
  %v6090 = vpop.permute.xlu0 %6089
  %6091 = vrot.lane.b32.xlu0 %v4396, 52
  %v6092 = vpop.permute.xlu0 %6091
  %6093 = vrot.lane.b32.xlu0 %v4403, 52
  %v6094 = vpop.permute.xlu0 %6093
  %6095 = vrot.lane.b32.xlu0 %v4410, 52
  %v6096 = vpop.permute.xlu0 %6095
  %6097 = vrot.lane.b32.xlu0 %v4417, 52
  %v6098 = vpop.permute.xlu0 %6097
  %6099 = vrot.lane.b32.xlu0 %v4424, 52
  %v6100 = vpop.permute.xlu0 %6099
  %6101 = vrot.lane.b32.xlu0 %v4431, 52
  %v6102 = vpop.permute.xlu0 %6101
  %6103 = vrot.lane.b32.xlu0 %v4438, 52
  %v6104 = vpop.permute.xlu0 %6103
  %6105 = vrot.lane.b32.xlu0 %v4445, 52
  %v6106 = vpop.permute.xlu0 %6105
  %6107 = vrot.lane.b32.xlu0 %v5356, 52
  %v6108 = vpop.permute.xlu0 %6107
  %6109 = vrot.lane.b32.xlu0 %v6071, 52
  %v6110 = vpop.permute.xlu0 %6109
  %6111 = vrot.lane.b32.xlu0 %v4466, 52
  %v6112 = vpop.permute.xlu0 %6111
  %6113 = vrot.lane.b32.xlu0 %v4473, 52
  %v6114 = vpop.permute.xlu0 %6113
  %6115 = vrot.lane.b32.xlu0 %v4480, 52
  %v6116 = vpop.permute.xlu0 %6115
  %6117 = vrot.lane.b32.xlu0 %v4487, 52
  %v6118 = vpop.permute.xlu0 %6117
  %6119 = vrot.lane.b32.xlu0 %v4494, 52
  %v6120 = vpop.permute.xlu0 %6119
  %6121 = vrot.lane.b32.xlu0 %v4501, 52
  %v6122 = vpop.permute.xlu0 %6121
  %6123 = vrot.lane.b32.xlu0 %v4508, 52
  %v6124 = vpop.permute.xlu0 %6123
  %6125 = vrot.lane.b32.xlu0 %v4515, 52
  %v6126 = vpop.permute.xlu0 %6125
  %6127 = vrot.lane.b32.xlu0 %v4522, 52
  %v6128 = vpop.permute.xlu0 %6127
  %6129 = vrot.lane.b32.xlu0 %v4529, 52
  %v6130 = vpop.permute.xlu0 %6129
  %6131 = vrot.lane.b32.xlu0 %v4536, 52
  %v6132 = vpop.permute.xlu0 %6131
  %6133 = vrot.lane.b32.xlu0 %v4543, 52
  %v6134 = vpop.permute.xlu0 %6133
  %6135 = vrot.lane.b32.xlu0 %v4550, 52
  %v6136 = vpop.permute.xlu0 %6135
  %6137 = vrot.lane.b32.xlu0 %v4557, 52
  %v6138 = vpop.permute.xlu0 %6137
  %6139 = vrot.lane.b32.xlu0 %v5363, 52
  %v6140 = vpop.permute.xlu0 %6139
  %6141 = vrot.lane.b32.xlu0 %v6078, 52
  %v6142 = vpop.permute.xlu0 %6141
  %vm6175 = vcmask 458144
  %6176 = vst.msk [vmem:[#allocation2] sm:$0xff] %vm6175, %v6080
  %6177 = vst.msk [vmem:[#allocation2 + $0x8] sm:$0xff] %vm6175, %v6082
  %6178 = vst.msk [vmem:[#allocation2 + $0x10] sm:$0xff] %vm6175, %v6084
  %6179 = vst.msk [vmem:[#allocation2 + $0x18] sm:$0xff] %vm6175, %v6086
  %6180 = vst.msk [vmem:[#allocation2 + $0x20] sm:$0xff] %vm6175, %v6088
  %6181 = vst.msk [vmem:[#allocation2 + $0x28] sm:$0xff] %vm6175, %v6090
  %6182 = vst.msk [vmem:[#allocation2 + $0x30] sm:$0xff] %vm6175, %v6092
  %6183 = vst.msk [vmem:[#allocation2 + $0x38] sm:$0xff] %vm6175, %v6094
  %6184 = vst.msk [vmem:[#allocation2 + $0x40] sm:$0xff] %vm6175, %v6096
  %6185 = vst.msk [vmem:[#allocation2 + $0x48] sm:$0xff] %vm6175, %v6098
  %6186 = vst.msk [vmem:[#allocation2 + $0x50] sm:$0xff] %vm6175, %v6100
  %6187 = vst.msk [vmem:[#allocation2 + $0x58] sm:$0xff] %vm6175, %v6102
  %6188 = vst.msk [vmem:[#allocation2 + $0x60] sm:$0xff] %vm6175, %v6104
  %6189 = vst.msk [vmem:[#allocation2 + $0x68] sm:$0xff] %vm6175, %v6106
  %6190 = vst.msk [vmem:[#allocation2 + $0x70] sm:$0xff] %vm6175, %v6108
  %6191 = vst.msk [vmem:[#allocation2 + $0x78] sm:$0xff] %vm6175, %v6110
  %6192 = vst.msk [vmem:[#allocation2 + $0x80] sm:$0xff] %vm6175, %v6112
  %6193 = vst.msk [vmem:[#allocation2 + $0x88] sm:$0xff] %vm6175, %v6114
  %6194 = vst.msk [vmem:[#allocation2 + $0x90] sm:$0xff] %vm6175, %v6116
  %6195 = vst.msk [vmem:[#allocation2 + $0x98] sm:$0xff] %vm6175, %v6118
  %6196 = vst.msk [vmem:[#allocation2 + $0xa0] sm:$0xff] %vm6175, %v6120
  %6197 = vst.msk [vmem:[#allocation2 + $0xa8] sm:$0xff] %vm6175, %v6122
  %6198 = vst.msk [vmem:[#allocation2 + $0xb0] sm:$0xff] %vm6175, %v6124
  %6199 = vst.msk [vmem:[#allocation2 + $0xb8] sm:$0xff] %vm6175, %v6126
  %6200 = vst.msk [vmem:[#allocation2 + $0xc0] sm:$0xff] %vm6175, %v6128
  %6201 = vst.msk [vmem:[#allocation2 + $0xc8] sm:$0xff] %vm6175, %v6130
  %6202 = vst.msk [vmem:[#allocation2 + $0xd0] sm:$0xff] %vm6175, %v6132
  %6203 = vst.msk [vmem:[#allocation2 + $0xd8] sm:$0xff] %vm6175, %v6134
  %6204 = vst.msk [vmem:[#allocation2 + $0xe0] sm:$0xff] %vm6175, %v6136
  %6205 = vst.msk [vmem:[#allocation2 + $0xe8] sm:$0xff] %vm6175, %v6138
  %6206 = vst.msk [vmem:[#allocation2 + $0xf0] sm:$0xff] %vm6175, %v6140
  %6207 = vst.msk [vmem:[#allocation2 + $0xf8] sm:$0xff] %vm6175, %v6142
  %v6208 = vrot.slane %v3160, 3
  %v6209 = vrot.slane %v3161, 3
  %v6210 = vsel %vm4687, %v6208, %v6209
  %v6211 = vrot.slane %v3200, 3
  %v6212 = vrot.slane %v3201, 3
  %v6213 = vsel %vm4687, %v6211, %v6212
  %6214 = vrot.lane.b32.xlu0 %v4696, 56
  %v6215 = vpop.permute.xlu0 %6214
  %6216 = vrot.lane.b32.xlu0 %v4699, 56
  %v6217 = vpop.permute.xlu0 %6216
  %6218 = vrot.lane.b32.xlu0 %v4702, 56
  %v6219 = vpop.permute.xlu0 %6218
  %6220 = vrot.lane.b32.xlu0 %v4705, 56
  %v6221 = vpop.permute.xlu0 %6220
  %6222 = vrot.lane.b32.xlu0 %v4708, 56
  %v6223 = vpop.permute.xlu0 %6222
  %6224 = vrot.lane.b32.xlu0 %v4711, 56
  %v6225 = vpop.permute.xlu0 %6224
  %6226 = vrot.lane.b32.xlu0 %v4714, 56
  %v6227 = vpop.permute.xlu0 %6226
  %6228 = vrot.lane.b32.xlu0 %v4717, 56
  %v6229 = vpop.permute.xlu0 %6228
  %6230 = vrot.lane.b32.xlu0 %v4720, 56
  %v6231 = vpop.permute.xlu0 %6230
  %6232 = vrot.lane.b32.xlu0 %v4723, 56
  %v6233 = vpop.permute.xlu0 %6232
  %6234 = vrot.lane.b32.xlu0 %v4726, 56
  %v6235 = vpop.permute.xlu0 %6234
  %6236 = vrot.lane.b32.xlu0 %v4729, 56
  %v6237 = vpop.permute.xlu0 %6236
  %6238 = vrot.lane.b32.xlu0 %v4732, 56
  %v6239 = vpop.permute.xlu0 %6238
  %6240 = vrot.lane.b32.xlu0 %v4735, 56
  %v6241 = vpop.permute.xlu0 %6240
  %6242 = vrot.lane.b32.xlu0 %v5495, 56
  %v6243 = vpop.permute.xlu0 %6242
  %6244 = vrot.lane.b32.xlu0 %v6210, 56
  %v6245 = vpop.permute.xlu0 %6244
  %6246 = vrot.lane.b32.xlu0 %v4744, 56
  %v6247 = vpop.permute.xlu0 %6246
  %6248 = vrot.lane.b32.xlu0 %v4747, 56
  %v6249 = vpop.permute.xlu0 %6248
  %6250 = vrot.lane.b32.xlu0 %v4750, 56
  %v6251 = vpop.permute.xlu0 %6250
  %6252 = vrot.lane.b32.xlu0 %v4753, 56
  %v6253 = vpop.permute.xlu0 %6252
  %6254 = vrot.lane.b32.xlu0 %v4756, 56
  %v6255 = vpop.permute.xlu0 %6254
  %6256 = vrot.lane.b32.xlu0 %v4759, 56
  %v6257 = vpop.permute.xlu0 %6256
  %6258 = vrot.lane.b32.xlu0 %v4762, 56
  %v6259 = vpop.permute.xlu0 %6258
  %6260 = vrot.lane.b32.xlu0 %v4765, 56
  %v6261 = vpop.permute.xlu0 %6260
  %6262 = vrot.lane.b32.xlu0 %v4768, 56
  %v6263 = vpop.permute.xlu0 %6262
  %6264 = vrot.lane.b32.xlu0 %v4771, 56
  %v6265 = vpop.permute.xlu0 %6264
  %6266 = vrot.lane.b32.xlu0 %v4774, 56
  %v6267 = vpop.permute.xlu0 %6266
  %6268 = vrot.lane.b32.xlu0 %v4777, 56
  %v6269 = vpop.permute.xlu0 %6268
  %6270 = vrot.lane.b32.xlu0 %v4780, 56
  %v6271 = vpop.permute.xlu0 %6270
  %6272 = vrot.lane.b32.xlu0 %v4783, 56
  %v6273 = vpop.permute.xlu0 %6272
  %6274 = vrot.lane.b32.xlu0 %v5498, 56
  %v6275 = vpop.permute.xlu0 %6274
  %6276 = vrot.lane.b32.xlu0 %v6213, 56
  %v6277 = vpop.permute.xlu0 %6276
  %vm6310 = vcmask 490944
  %6311 = vst.msk [vmem:[#allocation2] sm:$0xff] %vm6310, %v6215
  %6312 = vst.msk [vmem:[#allocation2 + $0x8] sm:$0xff] %vm6310, %v6217
  %6313 = vst.msk [vmem:[#allocation2 + $0x10] sm:$0xff] %vm6310, %v6219
  %6314 = vst.msk [vmem:[#allocation2 + $0x18] sm:$0xff] %vm6310, %v6221
  %6315 = vst.msk [vmem:[#allocation2 + $0x20] sm:$0xff] %vm6310, %v6223
  %6316 = vst.msk [vmem:[#allocation2 + $0x28] sm:$0xff] %vm6310, %v6225
  %6317 = vst.msk [vmem:[#allocation2 + $0x30] sm:$0xff] %vm6310, %v6227
  %6318 = vst.msk [vmem:[#allocation2 + $0x38] sm:$0xff] %vm6310, %v6229
  %6319 = vst.msk [vmem:[#allocation2 + $0x40] sm:$0xff] %vm6310, %v6231
  %6320 = vst.msk [vmem:[#allocation2 + $0x48] sm:$0xff] %vm6310, %v6233
  %6321 = vst.msk [vmem:[#allocation2 + $0x50] sm:$0xff] %vm6310, %v6235
  %6322 = vst.msk [vmem:[#allocation2 + $0x58] sm:$0xff] %vm6310, %v6237
  %6323 = vst.msk [vmem:[#allocation2 + $0x60] sm:$0xff] %vm6310, %v6239
  %6324 = vst.msk [vmem:[#allocation2 + $0x68] sm:$0xff] %vm6310, %v6241
  %6325 = vst.msk [vmem:[#allocation2 + $0x70] sm:$0xff] %vm6310, %v6243
  %6326 = vst.msk [vmem:[#allocation2 + $0x78] sm:$0xff] %vm6310, %v6245
  %6327 = vst.msk [vmem:[#allocation2 + $0x80] sm:$0xff] %vm6310, %v6247
  %6328 = vst.msk [vmem:[#allocation2 + $0x88] sm:$0xff] %vm6310, %v6249
  %6329 = vst.msk [vmem:[#allocation2 + $0x90] sm:$0xff] %vm6310, %v6251
  %6330 = vst.msk [vmem:[#allocation2 + $0x98] sm:$0xff] %vm6310, %v6253
  %6331 = vst.msk [vmem:[#allocation2 + $0xa0] sm:$0xff] %vm6310, %v6255
  %6332 = vst.msk [vmem:[#allocation2 + $0xa8] sm:$0xff] %vm6310, %v6257
  %6333 = vst.msk [vmem:[#allocation2 + $0xb0] sm:$0xff] %vm6310, %v6259
  %6334 = vst.msk [vmem:[#allocation2 + $0xb8] sm:$0xff] %vm6310, %v6261
  %6335 = vst.msk [vmem:[#allocation2 + $0xc0] sm:$0xff] %vm6310, %v6263
  %6336 = vst.msk [vmem:[#allocation2 + $0xc8] sm:$0xff] %vm6310, %v6265
  %6337 = vst.msk [vmem:[#allocation2 + $0xd0] sm:$0xff] %vm6310, %v6267
  %6338 = vst.msk [vmem:[#allocation2 + $0xd8] sm:$0xff] %vm6310, %v6269
  %6339 = vst.msk [vmem:[#allocation2 + $0xe0] sm:$0xff] %vm6310, %v6271
  %6340 = vst.msk [vmem:[#allocation2 + $0xe8] sm:$0xff] %vm6310, %v6273
  %6341 = vst.msk [vmem:[#allocation2 + $0xf0] sm:$0xff] %vm6310, %v6275
  %6342 = vst.msk [vmem:[#allocation2 + $0xf8] sm:$0xff] %vm6310, %v6277
  %v6347 = vrot.slane %v3162, 1
  %v6348 = vrot.slane %v3163, 1
  %v6349 = vsel %vm3271, %v6347, %v6348
  %v6350 = vrot.slane %v3202, 1
  %v6351 = vrot.slane %v3203, 1
  %v6352 = vsel %vm3271, %v6350, %v6351
  %6353 = vrot.lane.b32.xlu0 %v3283, 60
  %v6354 = vpop.permute.xlu0 %6353
  %6355 = vrot.lane.b32.xlu0 %v3286, 60
  %v6356 = vpop.permute.xlu0 %6355
  %6357 = vrot.lane.b32.xlu0 %v3289, 60
  %v6358 = vpop.permute.xlu0 %6357
  %6359 = vrot.lane.b32.xlu0 %v3292, 60
  %v6360 = vpop.permute.xlu0 %6359
  %6361 = vrot.lane.b32.xlu0 %v3295, 60
  %v6362 = vpop.permute.xlu0 %6361
  %6363 = vrot.lane.b32.xlu0 %v3298, 60
  %v6364 = vpop.permute.xlu0 %6363
  %6365 = vrot.lane.b32.xlu0 %v3301, 60
  %v6366 = vpop.permute.xlu0 %6365
  %6367 = vrot.lane.b32.xlu0 %v3304, 60
  %v6368 = vpop.permute.xlu0 %6367
  %6369 = vrot.lane.b32.xlu0 %v3307, 60
  %v6370 = vpop.permute.xlu0 %6369
  %6371 = vrot.lane.b32.xlu0 %v3310, 60
  %v6372 = vpop.permute.xlu0 %6371
  %6373 = vrot.lane.b32.xlu0 %v3313, 60
  %v6374 = vpop.permute.xlu0 %6373
  %6375 = vrot.lane.b32.xlu0 %v3316, 60
  %v6376 = vpop.permute.xlu0 %6375
  %6377 = vrot.lane.b32.xlu0 %v3319, 60
  %v6378 = vpop.permute.xlu0 %6377
  %6379 = vrot.lane.b32.xlu0 %v4919, 60
  %v6380 = vpop.permute.xlu0 %6379
  %6381 = vrot.lane.b32.xlu0 %v5634, 60
  %v6382 = vpop.permute.xlu0 %6381
  %6383 = vrot.lane.b32.xlu0 %v6349, 60
  %v6384 = vpop.permute.xlu0 %6383
  %6385 = vrot.lane.b32.xlu0 %v3331, 60
  %v6386 = vpop.permute.xlu0 %6385
  %6387 = vrot.lane.b32.xlu0 %v3334, 60
  %v6388 = vpop.permute.xlu0 %6387
  %6389 = vrot.lane.b32.xlu0 %v3337, 60
  %v6390 = vpop.permute.xlu0 %6389
  %6391 = vrot.lane.b32.xlu0 %v3340, 60
  %v6392 = vpop.permute.xlu0 %6391
  %6393 = vrot.lane.b32.xlu0 %v3343, 60
  %v6394 = vpop.permute.xlu0 %6393
  %6395 = vrot.lane.b32.xlu0 %v3346, 60
  %v6396 = vpop.permute.xlu0 %6395
  %6397 = vrot.lane.b32.xlu0 %v3349, 60
  %v6398 = vpop.permute.xlu0 %6397
  %6399 = vrot.lane.b32.xlu0 %v3352, 60
  %v6400 = vpop.permute.xlu0 %6399
  %6401 = vrot.lane.b32.xlu0 %v3355, 60
  %v6402 = vpop.permute.xlu0 %6401
  %6403 = vrot.lane.b32.xlu0 %v3358, 60
  %v6404 = vpop.permute.xlu0 %6403
  %6405 = vrot.lane.b32.xlu0 %v3361, 60
  %v6406 = vpop.permute.xlu0 %6405
  %6407 = vrot.lane.b32.xlu0 %v3364, 60
  %v6408 = vpop.permute.xlu0 %6407
  %6409 = vrot.lane.b32.xlu0 %v3367, 60
  %v6410 = vpop.permute.xlu0 %6409
  %6411 = vrot.lane.b32.xlu0 %v4922, 60
  %v6412 = vpop.permute.xlu0 %6411
  %6413 = vrot.lane.b32.xlu0 %v5637, 60
  %v6414 = vpop.permute.xlu0 %6413
  %6415 = vrot.lane.b32.xlu0 %v6352, 60
  %v6416 = vpop.permute.xlu0 %6415
  %vm6449 = vcmask 523744
  %6450 = vst.msk [vmem:[#allocation2] sm:$0xff] %vm6449, %v6354
  %6451 = vst.msk [vmem:[#allocation2 + $0x8] sm:$0xff] %vm6449, %v6356
  %6452 = vst.msk [vmem:[#allocation2 + $0x10] sm:$0xff] %vm6449, %v6358
  %6453 = vst.msk [vmem:[#allocation2 + $0x18] sm:$0xff] %vm6449, %v6360
  %6454 = vst.msk [vmem:[#allocation2 + $0x20] sm:$0xff] %vm6449, %v6362
  %6455 = vst.msk [vmem:[#allocation2 + $0x28] sm:$0xff] %vm6449, %v6364
  %6456 = vst.msk [vmem:[#allocation2 + $0x30] sm:$0xff] %vm6449, %v6366
  %6457 = vst.msk [vmem:[#allocation2 + $0x38] sm:$0xff] %vm6449, %v6368
  %6458 = vst.msk [vmem:[#allocation2 + $0x40] sm:$0xff] %vm6449, %v6370
  %6459 = vst.msk [vmem:[#allocation2 + $0x48] sm:$0xff] %vm6449, %v6372
  %6460 = vst.msk [vmem:[#allocation2 + $0x50] sm:$0xff] %vm6449, %v6374
  %6461 = vst.msk [vmem:[#allocation2 + $0x58] sm:$0xff] %vm6449, %v6376
  %6462 = vst.msk [vmem:[#allocation2 + $0x60] sm:$0xff] %vm6449, %v6378
  %6463 = vst.msk [vmem:[#allocation2 + $0x68] sm:$0xff] %vm6449, %v6380
  %6464 = vst.msk [vmem:[#allocation2 + $0x70] sm:$0xff] %vm6449, %v6382
  %6465 = vst.msk [vmem:[#allocation2 + $0x78] sm:$0xff] %vm6449, %v6384
  %6466 = vst.msk [vmem:[#allocation2 + $0x80] sm:$0xff] %vm6449, %v6386
  %6467 = vst.msk [vmem:[#allocation2 + $0x88] sm:$0xff] %vm6449, %v6388
  %6468 = vst.msk [vmem:[#allocation2 + $0x90] sm:$0xff] %vm6449, %v6390
  %6469 = vst.msk [vmem:[#allocation2 + $0x98] sm:$0xff] %vm6449, %v6392
  %6470 = vst.msk [vmem:[#allocation2 + $0xa0] sm:$0xff] %vm6449, %v6394
  %6471 = vst.msk [vmem:[#allocation2 + $0xa8] sm:$0xff] %vm6449, %v6396
  %6472 = vst.msk [vmem:[#allocation2 + $0xb0] sm:$0xff] %vm6449, %v6398
  %6473 = vst.msk [vmem:[#allocation2 + $0xb8] sm:$0xff] %vm6449, %v6400
  %6474 = vst.msk [vmem:[#allocation2 + $0xc0] sm:$0xff] %vm6449, %v6402
  %6475 = vst.msk [vmem:[#allocation2 + $0xc8] sm:$0xff] %vm6449, %v6404
  %6476 = vst.msk [vmem:[#allocation2 + $0xd0] sm:$0xff] %vm6449, %v6406
  %6477 = vst.msk [vmem:[#allocation2 + $0xd8] sm:$0xff] %vm6449, %v6408
  %6478 = vst.msk [vmem:[#allocation2 + $0xe0] sm:$0xff] %vm6449, %v6410
  %6479 = vst.msk [vmem:[#allocation2 + $0xe8] sm:$0xff] %vm6449, %v6412
  %6480 = vst.msk [vmem:[#allocation2 + $0xf0] sm:$0xff] %vm6449, %v6414
  %6481 = vst.msk [vmem:[#allocation2 + $0xf8] sm:$0xff] %vm6449, %v6416
  %v6483 = vshrl.u32 %v3162, 16
  %v6485 = vrot.slane %v6483, 1
  %v6486 = vshll.u32 %v3162, 16
  %v6488 = vrot.slane %v6486, 2
  %v6489 = vor.u32 %v6485, %v6488
  %v6491 = vshrl.u32 %v3163, 16
  %v6493 = vrot.slane %v6491, 1
  %v6494 = vshll.u32 %v3163, 16
  %v6496 = vrot.slane %v6494, 2
  %v6497 = vor.u32 %v6493, %v6496
  %v6498 = vsel %vm3433, %v6489, %v6497
  %v6500 = vshrl.u32 %v3202, 16
  %v6502 = vrot.slane %v6500, 1
  %v6503 = vshll.u32 %v3202, 16
  %v6505 = vrot.slane %v6503, 2
  %v6506 = vor.u32 %v6502, %v6505
  %v6508 = vshrl.u32 %v3203, 16
  %v6510 = vrot.slane %v6508, 1
  %v6511 = vshll.u32 %v3203, 16
  %v6513 = vrot.slane %v6511, 2
  %v6514 = vor.u32 %v6510, %v6513
  %v6515 = vsel %vm3433, %v6506, %v6514
  %6516 = vrot.lane.b32.xlu0 %v3501, 64
  %v6517 = vpop.permute.xlu0 %6516
  %6518 = vrot.lane.b32.xlu0 %v3518, 64
  %v6519 = vpop.permute.xlu0 %6518
  %6520 = vrot.lane.b32.xlu0 %v3535, 64
  %v6521 = vpop.permute.xlu0 %6520
  %6522 = vrot.lane.b32.xlu0 %v3552, 64
  %v6523 = vpop.permute.xlu0 %6522
  %6524 = vrot.lane.b32.xlu0 %v3569, 64
  %v6525 = vpop.permute.xlu0 %6524
  %6526 = vrot.lane.b32.xlu0 %v3586, 64
  %v6527 = vpop.permute.xlu0 %6526
  %6528 = vrot.lane.b32.xlu0 %v3603, 64
  %v6529 = vpop.permute.xlu0 %6528
  %6530 = vrot.lane.b32.xlu0 %v3620, 64
  %v6531 = vpop.permute.xlu0 %6530
  %6532 = vrot.lane.b32.xlu0 %v3637, 64
  %v6533 = vpop.permute.xlu0 %6532
  %6534 = vrot.lane.b32.xlu0 %v3654, 64
  %v6535 = vpop.permute.xlu0 %6534
  %6536 = vrot.lane.b32.xlu0 %v3671, 64
  %v6537 = vpop.permute.xlu0 %6536
  %6538 = vrot.lane.b32.xlu0 %v3688, 64
  %v6539 = vpop.permute.xlu0 %6538
  %6540 = vrot.lane.b32.xlu0 %v3705, 64
  %v6541 = vpop.permute.xlu0 %6540
  %6542 = vrot.lane.b32.xlu0 %v5068, 64
  %v6543 = vpop.permute.xlu0 %6542
  %6544 = vrot.lane.b32.xlu0 %v5783, 64
  %v6545 = vpop.permute.xlu0 %6544
  %6546 = vrot.lane.b32.xlu0 %v6498, 64
  %v6547 = vpop.permute.xlu0 %6546
  %6548 = vrot.lane.b32.xlu0 %v3773, 64
  %v6549 = vpop.permute.xlu0 %6548
  %6550 = vrot.lane.b32.xlu0 %v3790, 64
  %v6551 = vpop.permute.xlu0 %6550
  %6552 = vrot.lane.b32.xlu0 %v3807, 64
  %v6553 = vpop.permute.xlu0 %6552
  %6554 = vrot.lane.b32.xlu0 %v3824, 64
  %v6555 = vpop.permute.xlu0 %6554
  %6556 = vrot.lane.b32.xlu0 %v3841, 64
  %v6557 = vpop.permute.xlu0 %6556
  %6558 = vrot.lane.b32.xlu0 %v3858, 64
  %v6559 = vpop.permute.xlu0 %6558
  %6560 = vrot.lane.b32.xlu0 %v3875, 64
  %v6561 = vpop.permute.xlu0 %6560
  %6562 = vrot.lane.b32.xlu0 %v3892, 64
  %v6563 = vpop.permute.xlu0 %6562
  %6564 = vrot.lane.b32.xlu0 %v3909, 64
  %v6565 = vpop.permute.xlu0 %6564
  %6566 = vrot.lane.b32.xlu0 %v3926, 64
  %v6567 = vpop.permute.xlu0 %6566
  %6568 = vrot.lane.b32.xlu0 %v3943, 64
  %v6569 = vpop.permute.xlu0 %6568
  %6570 = vrot.lane.b32.xlu0 %v3960, 64
  %v6571 = vpop.permute.xlu0 %6570
  %6572 = vrot.lane.b32.xlu0 %v3977, 64
  %v6573 = vpop.permute.xlu0 %6572
  %6574 = vrot.lane.b32.xlu0 %v5085, 64
  %v6575 = vpop.permute.xlu0 %6574
  %6576 = vrot.lane.b32.xlu0 %v5800, 64
  %v6577 = vpop.permute.xlu0 %6576
  %6578 = vrot.lane.b32.xlu0 %v6515, 64
  %v6579 = vpop.permute.xlu0 %6578
  %vm6612 = vcmask 556544
  %6613 = vst.msk [vmem:[#allocation2] sm:$0xff] %vm6612, %v6517
  %6614 = vst.msk [vmem:[#allocation2 + $0x8] sm:$0xff] %vm6612, %v6519
  %6615 = vst.msk [vmem:[#allocation2 + $0x10] sm:$0xff] %vm6612, %v6521
  %6616 = vst.msk [vmem:[#allocation2 + $0x18] sm:$0xff] %vm6612, %v6523
  %6617 = vst.msk [vmem:[#allocation2 + $0x20] sm:$0xff] %vm6612, %v6525
  %6618 = vst.msk [vmem:[#allocation2 + $0x28] sm:$0xff] %vm6612, %v6527
  %6619 = vst.msk [vmem:[#allocation2 + $0x30] sm:$0xff] %vm6612, %v6529
  %6620 = vst.msk [vmem:[#allocation2 + $0x38] sm:$0xff] %vm6612, %v6531
  %6621 = vst.msk [vmem:[#allocation2 + $0x40] sm:$0xff] %vm6612, %v6533
  %6622 = vst.msk [vmem:[#allocation2 + $0x48] sm:$0xff] %vm6612, %v6535
  %6623 = vst.msk [vmem:[#allocation2 + $0x50] sm:$0xff] %vm6612, %v6537
  %6624 = vst.msk [vmem:[#allocation2 + $0x58] sm:$0xff] %vm6612, %v6539
  %6625 = vst.msk [vmem:[#allocation2 + $0x60] sm:$0xff] %vm6612, %v6541
  %6626 = vst.msk [vmem:[#allocation2 + $0x68] sm:$0xff] %vm6612, %v6543
  %6627 = vst.msk [vmem:[#allocation2 + $0x70] sm:$0xff] %vm6612, %v6545
  %6628 = vst.msk [vmem:[#allocation2 + $0x78] sm:$0xff] %vm6612, %v6547
  %6629 = vst.msk [vmem:[#allocation2 + $0x80] sm:$0xff] %vm6612, %v6549
  %6630 = vst.msk [vmem:[#allocation2 + $0x88] sm:$0xff] %vm6612, %v6551
  %6631 = vst.msk [vmem:[#allocation2 + $0x90] sm:$0xff] %vm6612, %v6553
  %6632 = vst.msk [vmem:[#allocation2 + $0x98] sm:$0xff] %vm6612, %v6555
  %6633 = vst.msk [vmem:[#allocation2 + $0xa0] sm:$0xff] %vm6612, %v6557
  %6634 = vst.msk [vmem:[#allocation2 + $0xa8] sm:$0xff] %vm6612, %v6559
  %6635 = vst.msk [vmem:[#allocation2 + $0xb0] sm:$0xff] %vm6612, %v6561
  %6636 = vst.msk [vmem:[#allocation2 + $0xb8] sm:$0xff] %vm6612, %v6563
  %6637 = vst.msk [vmem:[#allocation2 + $0xc0] sm:$0xff] %vm6612, %v6565
  %6638 = vst.msk [vmem:[#allocation2 + $0xc8] sm:$0xff] %vm6612, %v6567
  %6639 = vst.msk [vmem:[#allocation2 + $0xd0] sm:$0xff] %vm6612, %v6569
  %6640 = vst.msk [vmem:[#allocation2 + $0xd8] sm:$0xff] %vm6612, %v6571
  %6641 = vst.msk [vmem:[#allocation2 + $0xe0] sm:$0xff] %vm6612, %v6573
  %6642 = vst.msk [vmem:[#allocation2 + $0xe8] sm:$0xff] %vm6612, %v6575
  %6643 = vst.msk [vmem:[#allocation2 + $0xf0] sm:$0xff] %vm6612, %v6577
  %6644 = vst.msk [vmem:[#allocation2 + $0xf8] sm:$0xff] %vm6612, %v6579
  %v6645 = vrot.slane %v3162, 2
  %v6646 = vrot.slane %v3163, 2
  %v6647 = vsel %vm4107, %v6645, %v6646
  %v6648 = vrot.slane %v3202, 2
  %v6649 = vrot.slane %v3203, 2
  %v6650 = vsel %vm4107, %v6648, %v6649
  %6651 = vrot.lane.b32.xlu0 %v4119, 68
  %v6652 = vpop.permute.xlu0 %6651
  %6653 = vrot.lane.b32.xlu0 %v4122, 68
  %v6654 = vpop.permute.xlu0 %6653
  %6655 = vrot.lane.b32.xlu0 %v4125, 68
  %v6656 = vpop.permute.xlu0 %6655
  %6657 = vrot.lane.b32.xlu0 %v4128, 68
  %v6658 = vpop.permute.xlu0 %6657
  %6659 = vrot.lane.b32.xlu0 %v4131, 68
  %v6660 = vpop.permute.xlu0 %6659
  %6661 = vrot.lane.b32.xlu0 %v4134, 68
  %v6662 = vpop.permute.xlu0 %6661
  %6663 = vrot.lane.b32.xlu0 %v4137, 68
  %v6664 = vpop.permute.xlu0 %6663
  %6665 = vrot.lane.b32.xlu0 %v4140, 68
  %v6666 = vpop.permute.xlu0 %6665
  %6667 = vrot.lane.b32.xlu0 %v4143, 68
  %v6668 = vpop.permute.xlu0 %6667
  %6669 = vrot.lane.b32.xlu0 %v4146, 68
  %v6670 = vpop.permute.xlu0 %6669
  %6671 = vrot.lane.b32.xlu0 %v4149, 68
  %v6672 = vpop.permute.xlu0 %6671
  %6673 = vrot.lane.b32.xlu0 %v4152, 68
  %v6674 = vpop.permute.xlu0 %6673
  %6675 = vrot.lane.b32.xlu0 %v4155, 68
  %v6676 = vpop.permute.xlu0 %6675
  %6677 = vrot.lane.b32.xlu0 %v5217, 68
  %v6678 = vpop.permute.xlu0 %6677
  %6679 = vrot.lane.b32.xlu0 %v5932, 68
  %v6680 = vpop.permute.xlu0 %6679
  %6681 = vrot.lane.b32.xlu0 %v6647, 68
  %v6682 = vpop.permute.xlu0 %6681
  %6683 = vrot.lane.b32.xlu0 %v4167, 68
  %v6684 = vpop.permute.xlu0 %6683
  %6685 = vrot.lane.b32.xlu0 %v4170, 68
  %v6686 = vpop.permute.xlu0 %6685
  %6687 = vrot.lane.b32.xlu0 %v4173, 68
  %v6688 = vpop.permute.xlu0 %6687
  %6689 = vrot.lane.b32.xlu0 %v4176, 68
  %v6690 = vpop.permute.xlu0 %6689
  %6691 = vrot.lane.b32.xlu0 %v4179, 68
  %v6692 = vpop.permute.xlu0 %6691
  %6693 = vrot.lane.b32.xlu0 %v4182, 68
  %v6694 = vpop.permute.xlu0 %6693
  %6695 = vrot.lane.b32.xlu0 %v4185, 68
  %v6696 = vpop.permute.xlu0 %6695
  %6697 = vrot.lane.b32.xlu0 %v4188, 68
  %v6698 = vpop.permute.xlu0 %6697
  %6699 = vrot.lane.b32.xlu0 %v4191, 68
  %v6700 = vpop.permute.xlu0 %6699
  %6701 = vrot.lane.b32.xlu0 %v4194, 68
  %v6702 = vpop.permute.xlu0 %6701
  %6703 = vrot.lane.b32.xlu0 %v4197, 68
  %v6704 = vpop.permute.xlu0 %6703
  %6705 = vrot.lane.b32.xlu0 %v4200, 68
  %v6706 = vpop.permute.xlu0 %6705
  %6707 = vrot.lane.b32.xlu0 %v4203, 68
  %v6708 = vpop.permute.xlu0 %6707
  %6709 = vrot.lane.b32.xlu0 %v5220, 68
  %v6710 = vpop.permute.xlu0 %6709
  %6711 = vrot.lane.b32.xlu0 %v5935, 68
  %v6712 = vpop.permute.xlu0 %6711
  %6713 = vrot.lane.b32.xlu0 %v6650, 68
  %v6714 = vpop.permute.xlu0 %6713
  %vm6747 = vcmask 589344
  %6748 = vst.msk [vmem:[#allocation2] sm:$0xff] %vm6747, %v6652
  %6749 = vst.msk [vmem:[#allocation2 + $0x8] sm:$0xff] %vm6747, %v6654
  %6750 = vst.msk [vmem:[#allocation2 + $0x10] sm:$0xff] %vm6747, %v6656
  %6751 = vst.msk [vmem:[#allocation2 + $0x18] sm:$0xff] %vm6747, %v6658
  %6752 = vst.msk [vmem:[#allocation2 + $0x20] sm:$0xff] %vm6747, %v6660
  %6753 = vst.msk [vmem:[#allocation2 + $0x28] sm:$0xff] %vm6747, %v6662
  %6754 = vst.msk [vmem:[#allocation2 + $0x30] sm:$0xff] %vm6747, %v6664
  %6755 = vst.msk [vmem:[#allocation2 + $0x38] sm:$0xff] %vm6747, %v6666
  %6756 = vst.msk [vmem:[#allocation2 + $0x40] sm:$0xff] %vm6747, %v6668
  %6757 = vst.msk [vmem:[#allocation2 + $0x48] sm:$0xff] %vm6747, %v6670
  %6758 = vst.msk [vmem:[#allocation2 + $0x50] sm:$0xff] %vm6747, %v6672
  %6759 = vst.msk [vmem:[#allocation2 + $0x58] sm:$0xff] %vm6747, %v6674
  %6760 = vst.msk [vmem:[#allocation2 + $0x60] sm:$0xff] %vm6747, %v6676
  %6761 = vst.msk [vmem:[#allocation2 + $0x68] sm:$0xff] %vm6747, %v6678
  %6762 = vst.msk [vmem:[#allocation2 + $0x70] sm:$0xff] %vm6747, %v6680
  %6763 = vst.msk [vmem:[#allocation2 + $0x78] sm:$0xff] %vm6747, %v6682
  %6764 = vst.msk [vmem:[#allocation2 + $0x80] sm:$0xff] %vm6747, %v6684
  %6765 = vst.msk [vmem:[#allocation2 + $0x88] sm:$0xff] %vm6747, %v6686
  %6766 = vst.msk [vmem:[#allocation2 + $0x90] sm:$0xff] %vm6747, %v6688
  %6767 = vst.msk [vmem:[#allocation2 + $0x98] sm:$0xff] %vm6747, %v6690
  %6768 = vst.msk [vmem:[#allocation2 + $0xa0] sm:$0xff] %vm6747, %v6692
  %6769 = vst.msk [vmem:[#allocation2 + $0xa8] sm:$0xff] %vm6747, %v6694
  %6770 = vst.msk [vmem:[#allocation2 + $0xb0] sm:$0xff] %vm6747, %v6696
  %6771 = vst.msk [vmem:[#allocation2 + $0xb8] sm:$0xff] %vm6747, %v6698
  %6772 = vst.msk [vmem:[#allocation2 + $0xc0] sm:$0xff] %vm6747, %v6700
  %6773 = vst.msk [vmem:[#allocation2 + $0xc8] sm:$0xff] %vm6747, %v6702
  %6774 = vst.msk [vmem:[#allocation2 + $0xd0] sm:$0xff] %vm6747, %v6704
  %6775 = vst.msk [vmem:[#allocation2 + $0xd8] sm:$0xff] %vm6747, %v6706
  %6776 = vst.msk [vmem:[#allocation2 + $0xe0] sm:$0xff] %vm6747, %v6708
  %6777 = vst.msk [vmem:[#allocation2 + $0xe8] sm:$0xff] %vm6747, %v6710
  %6778 = vst.msk [vmem:[#allocation2 + $0xf0] sm:$0xff] %vm6747, %v6712
  %6779 = vst.msk [vmem:[#allocation2 + $0xf8] sm:$0xff] %vm6747, %v6714
  %v6780 = vrot.slane %v6483, 2
  %v6781 = vrot.slane %v6486, 3
  %v6782 = vor.u32 %v6780, %v6781
  %v6783 = vrot.slane %v6491, 2
  %v6784 = vrot.slane %v6494, 3
  %v6785 = vor.u32 %v6783, %v6784
  %v6786 = vsel %vm4333, %v6782, %v6785
  %v6787 = vrot.slane %v6500, 2
  %v6788 = vrot.slane %v6503, 3
  %v6789 = vor.u32 %v6787, %v6788
  %v6790 = vrot.slane %v6508, 2
  %v6791 = vrot.slane %v6511, 3
  %v6792 = vor.u32 %v6790, %v6791
  %v6793 = vsel %vm4333, %v6789, %v6792
  %6794 = vrot.lane.b32.xlu0 %v4361, 72
  %v6795 = vpop.permute.xlu0 %6794
  %6796 = vrot.lane.b32.xlu0 %v4368, 72
  %v6797 = vpop.permute.xlu0 %6796
  %6798 = vrot.lane.b32.xlu0 %v4375, 72
  %v6799 = vpop.permute.xlu0 %6798
  %6800 = vrot.lane.b32.xlu0 %v4382, 72
  %v6801 = vpop.permute.xlu0 %6800
  %6802 = vrot.lane.b32.xlu0 %v4389, 72
  %v6803 = vpop.permute.xlu0 %6802
  %6804 = vrot.lane.b32.xlu0 %v4396, 72
  %v6805 = vpop.permute.xlu0 %6804
  %6806 = vrot.lane.b32.xlu0 %v4403, 72
  %v6807 = vpop.permute.xlu0 %6806
  %6808 = vrot.lane.b32.xlu0 %v4410, 72
  %v6809 = vpop.permute.xlu0 %6808
  %6810 = vrot.lane.b32.xlu0 %v4417, 72
  %v6811 = vpop.permute.xlu0 %6810
  %6812 = vrot.lane.b32.xlu0 %v4424, 72
  %v6813 = vpop.permute.xlu0 %6812
  %6814 = vrot.lane.b32.xlu0 %v4431, 72
  %v6815 = vpop.permute.xlu0 %6814
  %6816 = vrot.lane.b32.xlu0 %v4438, 72
  %v6817 = vpop.permute.xlu0 %6816
  %6818 = vrot.lane.b32.xlu0 %v4445, 72
  %v6819 = vpop.permute.xlu0 %6818
  %6820 = vrot.lane.b32.xlu0 %v5356, 72
  %v6821 = vpop.permute.xlu0 %6820
  %6822 = vrot.lane.b32.xlu0 %v6071, 72
  %v6823 = vpop.permute.xlu0 %6822
  %6824 = vrot.lane.b32.xlu0 %v6786, 72
  %v6825 = vpop.permute.xlu0 %6824
  %6826 = vrot.lane.b32.xlu0 %v4473, 72
  %v6827 = vpop.permute.xlu0 %6826
  %6828 = vrot.lane.b32.xlu0 %v4480, 72
  %v6829 = vpop.permute.xlu0 %6828
  %6830 = vrot.lane.b32.xlu0 %v4487, 72
  %v6831 = vpop.permute.xlu0 %6830
  %6832 = vrot.lane.b32.xlu0 %v4494, 72
  %v6833 = vpop.permute.xlu0 %6832
  %6834 = vrot.lane.b32.xlu0 %v4501, 72
  %v6835 = vpop.permute.xlu0 %6834
  %6836 = vrot.lane.b32.xlu0 %v4508, 72
  %v6837 = vpop.permute.xlu0 %6836
  %6838 = vrot.lane.b32.xlu0 %v4515, 72
  %v6839 = vpop.permute.xlu0 %6838
  %6840 = vrot.lane.b32.xlu0 %v4522, 72
  %v6841 = vpop.permute.xlu0 %6840
  %6842 = vrot.lane.b32.xlu0 %v4529, 72
  %v6843 = vpop.permute.xlu0 %6842
  %6844 = vrot.lane.b32.xlu0 %v4536, 72
  %v6845 = vpop.permute.xlu0 %6844
  %6846 = vrot.lane.b32.xlu0 %v4543, 72
  %v6847 = vpop.permute.xlu0 %6846
  %6848 = vrot.lane.b32.xlu0 %v4550, 72
  %v6849 = vpop.permute.xlu0 %6848
  %6850 = vrot.lane.b32.xlu0 %v4557, 72
  %v6851 = vpop.permute.xlu0 %6850
  %6852 = vrot.lane.b32.xlu0 %v5363, 72
  %v6853 = vpop.permute.xlu0 %6852
  %6854 = vrot.lane.b32.xlu0 %v6078, 72
  %v6855 = vpop.permute.xlu0 %6854
  %6856 = vrot.lane.b32.xlu0 %v6793, 72
  %v6857 = vpop.permute.xlu0 %6856
  %vm6890 = vcmask 622144
  %6891 = vst.msk [vmem:[#allocation2] sm:$0xff] %vm6890, %v6795
  %6892 = vst.msk [vmem:[#allocation2 + $0x8] sm:$0xff] %vm6890, %v6797
  %6893 = vst.msk [vmem:[#allocation2 + $0x10] sm:$0xff] %vm6890, %v6799
  %6894 = vst.msk [vmem:[#allocation2 + $0x18] sm:$0xff] %vm6890, %v6801
  %6895 = vst.msk [vmem:[#allocation2 + $0x20] sm:$0xff] %vm6890, %v6803
  %6896 = vst.msk [vmem:[#allocation2 + $0x28] sm:$0xff] %vm6890, %v6805
  %6897 = vst.msk [vmem:[#allocation2 + $0x30] sm:$0xff] %vm6890, %v6807
  %6898 = vst.msk [vmem:[#allocation2 + $0x38] sm:$0xff] %vm6890, %v6809
  %6899 = vst.msk [vmem:[#allocation2 + $0x40] sm:$0xff] %vm6890, %v6811
  %6900 = vst.msk [vmem:[#allocation2 + $0x48] sm:$0xff] %vm6890, %v6813
  %6901 = vst.msk [vmem:[#allocation2 + $0x50] sm:$0xff] %vm6890, %v6815
  %6902 = vst.msk [vmem:[#allocation2 + $0x58] sm:$0xff] %vm6890, %v6817
  %6903 = vst.msk [vmem:[#allocation2 + $0x60] sm:$0xff] %vm6890, %v6819
  %6904 = vst.msk [vmem:[#allocation2 + $0x68] sm:$0xff] %vm6890, %v6821
  %6905 = vst.msk [vmem:[#allocation2 + $0x70] sm:$0xff] %vm6890, %v6823
  %6906 = vst.msk [vmem:[#allocation2 + $0x78] sm:$0xff] %vm6890, %v6825
  %6907 = vst.msk [vmem:[#allocation2 + $0x80] sm:$0xff] %vm6890, %v6827
  %6908 = vst.msk [vmem:[#allocation2 + $0x88] sm:$0xff] %vm6890, %v6829
  %6909 = vst.msk [vmem:[#allocation2 + $0x90] sm:$0xff] %vm6890, %v6831
  %6910 = vst.msk [vmem:[#allocation2 + $0x98] sm:$0xff] %vm6890, %v6833
  %6911 = vst.msk [vmem:[#allocation2 + $0xa0] sm:$0xff] %vm6890, %v6835
  %6912 = vst.msk [vmem:[#allocation2 + $0xa8] sm:$0xff] %vm6890, %v6837
  %6913 = vst.msk [vmem:[#allocation2 + $0xb0] sm:$0xff] %vm6890, %v6839
  %6914 = vst.msk [vmem:[#allocation2 + $0xb8] sm:$0xff] %vm6890, %v6841
  %6915 = vst.msk [vmem:[#allocation2 + $0xc0] sm:$0xff] %vm6890, %v6843
  %6916 = vst.msk [vmem:[#allocation2 + $0xc8] sm:$0xff] %vm6890, %v6845
  %6917 = vst.msk [vmem:[#allocation2 + $0xd0] sm:$0xff] %vm6890, %v6847
  %6918 = vst.msk [vmem:[#allocation2 + $0xd8] sm:$0xff] %vm6890, %v6849
  %6919 = vst.msk [vmem:[#allocation2 + $0xe0] sm:$0xff] %vm6890, %v6851
  %6920 = vst.msk [vmem:[#allocation2 + $0xe8] sm:$0xff] %vm6890, %v6853
  %6921 = vst.msk [vmem:[#allocation2 + $0xf0] sm:$0xff] %vm6890, %v6855
  %6922 = vst.msk [vmem:[#allocation2 + $0xf8] sm:$0xff] %vm6890, %v6857
  %v6923 = vrot.slane %v3162, 3
  %v6924 = vrot.slane %v3163, 3
  %v6925 = vsel %vm4687, %v6923, %v6924
  %v6926 = vrot.slane %v3202, 3
  %v6927 = vrot.slane %v3203, 3
  %v6928 = vsel %vm4687, %v6926, %v6927
  %6929 = vrot.lane.b32.xlu0 %v4699, 76
  %v6930 = vpop.permute.xlu0 %6929
  %6931 = vrot.lane.b32.xlu0 %v4702, 76
  %v6932 = vpop.permute.xlu0 %6931
  %6933 = vrot.lane.b32.xlu0 %v4705, 76
  %v6934 = vpop.permute.xlu0 %6933
  %6935 = vrot.lane.b32.xlu0 %v4708, 76
  %v6936 = vpop.permute.xlu0 %6935
  %6937 = vrot.lane.b32.xlu0 %v4711, 76
  %v6938 = vpop.permute.xlu0 %6937
  %6939 = vrot.lane.b32.xlu0 %v4714, 76
  %v6940 = vpop.permute.xlu0 %6939
  %6941 = vrot.lane.b32.xlu0 %v4717, 76
  %v6942 = vpop.permute.xlu0 %6941
  %6943 = vrot.lane.b32.xlu0 %v4720, 76
  %v6944 = vpop.permute.xlu0 %6943
  %6945 = vrot.lane.b32.xlu0 %v4723, 76
  %v6946 = vpop.permute.xlu0 %6945
  %6947 = vrot.lane.b32.xlu0 %v4726, 76
  %v6948 = vpop.permute.xlu0 %6947
  %6949 = vrot.lane.b32.xlu0 %v4729, 76
  %v6950 = vpop.permute.xlu0 %6949
  %6951 = vrot.lane.b32.xlu0 %v4732, 76
  %v6952 = vpop.permute.xlu0 %6951
  %6953 = vrot.lane.b32.xlu0 %v4735, 76
  %v6954 = vpop.permute.xlu0 %6953
  %6955 = vrot.lane.b32.xlu0 %v5495, 76
  %v6956 = vpop.permute.xlu0 %6955
  %6957 = vrot.lane.b32.xlu0 %v6210, 76
  %v6958 = vpop.permute.xlu0 %6957
  %6959 = vrot.lane.b32.xlu0 %v6925, 76
  %v6960 = vpop.permute.xlu0 %6959
  %6961 = vrot.lane.b32.xlu0 %v4747, 76
  %v6962 = vpop.permute.xlu0 %6961
  %6963 = vrot.lane.b32.xlu0 %v4750, 76
  %v6964 = vpop.permute.xlu0 %6963
  %6965 = vrot.lane.b32.xlu0 %v4753, 76
  %v6966 = vpop.permute.xlu0 %6965
  %6967 = vrot.lane.b32.xlu0 %v4756, 76
  %v6968 = vpop.permute.xlu0 %6967
  %6969 = vrot.lane.b32.xlu0 %v4759, 76
  %v6970 = vpop.permute.xlu0 %6969
  %6971 = vrot.lane.b32.xlu0 %v4762, 76
  %v6972 = vpop.permute.xlu0 %6971
  %6973 = vrot.lane.b32.xlu0 %v4765, 76
  %v6974 = vpop.permute.xlu0 %6973
  %6975 = vrot.lane.b32.xlu0 %v4768, 76
  %v6976 = vpop.permute.xlu0 %6975
  %6977 = vrot.lane.b32.xlu0 %v4771, 76
  %v6978 = vpop.permute.xlu0 %6977
  %6979 = vrot.lane.b32.xlu0 %v4774, 76
  %v6980 = vpop.permute.xlu0 %6979
  %6981 = vrot.lane.b32.xlu0 %v4777, 76
  %v6982 = vpop.permute.xlu0 %6981
  %6983 = vrot.lane.b32.xlu0 %v4780, 76
  %v6984 = vpop.permute.xlu0 %6983
  %6985 = vrot.lane.b32.xlu0 %v4783, 76
  %v6986 = vpop.permute.xlu0 %6985
  %6987 = vrot.lane.b32.xlu0 %v5498, 76
  %v6988 = vpop.permute.xlu0 %6987
  %6989 = vrot.lane.b32.xlu0 %v6213, 76
  %v6990 = vpop.permute.xlu0 %6989
  %6991 = vrot.lane.b32.xlu0 %v6928, 76
  %v6992 = vpop.permute.xlu0 %6991
  %vm7025 = vcmask 654944
  %7026 = vst.msk [vmem:[#allocation2] sm:$0xff] %vm7025, %v6930
  %7027 = vst.msk [vmem:[#allocation2 + $0x8] sm:$0xff] %vm7025, %v6932
  %7028 = vst.msk [vmem:[#allocation2 + $0x10] sm:$0xff] %vm7025, %v6934
  %7029 = vst.msk [vmem:[#allocation2 + $0x18] sm:$0xff] %vm7025, %v6936
  %7030 = vst.msk [vmem:[#allocation2 + $0x20] sm:$0xff] %vm7025, %v6938
  %7031 = vst.msk [vmem:[#allocation2 + $0x28] sm:$0xff] %vm7025, %v6940
  %7032 = vst.msk [vmem:[#allocation2 + $0x30] sm:$0xff] %vm7025, %v6942
  %7033 = vst.msk [vmem:[#allocation2 + $0x38] sm:$0xff] %vm7025, %v6944
  %7034 = vst.msk [vmem:[#allocation2 + $0x40] sm:$0xff] %vm7025, %v6946
  %7035 = vst.msk [vmem:[#allocation2 + $0x48] sm:$0xff] %vm7025, %v6948
  %7036 = vst.msk [vmem:[#allocation2 + $0x50] sm:$0xff] %vm7025, %v6950
  %7037 = vst.msk [vmem:[#allocation2 + $0x58] sm:$0xff] %vm7025, %v6952
  %7038 = vst.msk [vmem:[#allocation2 + $0x60] sm:$0xff] %vm7025, %v6954
  %7039 = vst.msk [vmem:[#allocation2 + $0x68] sm:$0xff] %vm7025, %v6956
  %7040 = vst.msk [vmem:[#allocation2 + $0x70] sm:$0xff] %vm7025, %v6958
  %7041 = vst.msk [vmem:[#allocation2 + $0x78] sm:$0xff] %vm7025, %v6960
  %7042 = vst.msk [vmem:[#allocation2 + $0x80] sm:$0xff] %vm7025, %v6962
  %7043 = vst.msk [vmem:[#allocation2 + $0x88] sm:$0xff] %vm7025, %v6964
  %7044 = vst.msk [vmem:[#allocation2 + $0x90] sm:$0xff] %vm7025, %v6966
  %7045 = vst.msk [vmem:[#allocation2 + $0x98] sm:$0xff] %vm7025, %v6968
  %7046 = vst.msk [vmem:[#allocation2 + $0xa0] sm:$0xff] %vm7025, %v6970
  %7047 = vst.msk [vmem:[#allocation2 + $0xa8] sm:$0xff] %vm7025, %v6972
  %7048 = vst.msk [vmem:[#allocation2 + $0xb0] sm:$0xff] %vm7025, %v6974
  %7049 = vst.msk [vmem:[#allocation2 + $0xb8] sm:$0xff] %vm7025, %v6976
  %7050 = vst.msk [vmem:[#allocation2 + $0xc0] sm:$0xff] %vm7025, %v6978
  %7051 = vst.msk [vmem:[#allocation2 + $0xc8] sm:$0xff] %vm7025, %v6980
  %7052 = vst.msk [vmem:[#allocation2 + $0xd0] sm:$0xff] %vm7025, %v6982
  %7053 = vst.msk [vmem:[#allocation2 + $0xd8] sm:$0xff] %vm7025, %v6984
  %7054 = vst.msk [vmem:[#allocation2 + $0xe0] sm:$0xff] %vm7025, %v6986
  %7055 = vst.msk [vmem:[#allocation2 + $0xe8] sm:$0xff] %vm7025, %v6988
  %7056 = vst.msk [vmem:[#allocation2 + $0xf0] sm:$0xff] %vm7025, %v6990
  %7057 = vst.msk [vmem:[#allocation2 + $0xf8] sm:$0xff] %vm7025, %v6992
  %v7062 = vrot.slane %v3164, 1
  %v7063 = vrot.slane %v3165, 1
  %v7064 = vsel %vm3271, %v7062, %v7063
  %v7065 = vrot.slane %v3204, 1
  %v7066 = vrot.slane %v3205, 1
  %v7067 = vsel %vm3271, %v7065, %v7066
  %7068 = vrot.lane.b32.xlu0 %v3286, 80
  %v7069 = vpop.permute.xlu0 %7068
  %7070 = vrot.lane.b32.xlu0 %v3289, 80
  %v7071 = vpop.permute.xlu0 %7070
  %7072 = vrot.lane.b32.xlu0 %v3292, 80
  %v7073 = vpop.permute.xlu0 %7072
  %7074 = vrot.lane.b32.xlu0 %v3295, 80
  %v7075 = vpop.permute.xlu0 %7074
  %7076 = vrot.lane.b32.xlu0 %v3298, 80
  %v7077 = vpop.permute.xlu0 %7076
  %7078 = vrot.lane.b32.xlu0 %v3301, 80
  %v7079 = vpop.permute.xlu0 %7078
  %7080 = vrot.lane.b32.xlu0 %v3304, 80
  %v7081 = vpop.permute.xlu0 %7080
  %7082 = vrot.lane.b32.xlu0 %v3307, 80
  %v7083 = vpop.permute.xlu0 %7082
  %7084 = vrot.lane.b32.xlu0 %v3310, 80
  %v7085 = vpop.permute.xlu0 %7084
  %7086 = vrot.lane.b32.xlu0 %v3313, 80
  %v7087 = vpop.permute.xlu0 %7086
  %7088 = vrot.lane.b32.xlu0 %v3316, 80
  %v7089 = vpop.permute.xlu0 %7088
  %7090 = vrot.lane.b32.xlu0 %v3319, 80
  %v7091 = vpop.permute.xlu0 %7090
  %7092 = vrot.lane.b32.xlu0 %v4919, 80
  %v7093 = vpop.permute.xlu0 %7092
  %7094 = vrot.lane.b32.xlu0 %v5634, 80
  %v7095 = vpop.permute.xlu0 %7094
  %7096 = vrot.lane.b32.xlu0 %v6349, 80
  %v7097 = vpop.permute.xlu0 %7096
  %7098 = vrot.lane.b32.xlu0 %v7064, 80
  %v7099 = vpop.permute.xlu0 %7098
  %7100 = vrot.lane.b32.xlu0 %v3334, 80
  %v7101 = vpop.permute.xlu0 %7100
  %7102 = vrot.lane.b32.xlu0 %v3337, 80
  %v7103 = vpop.permute.xlu0 %7102
  %7104 = vrot.lane.b32.xlu0 %v3340, 80
  %v7105 = vpop.permute.xlu0 %7104
  %7106 = vrot.lane.b32.xlu0 %v3343, 80
  %v7107 = vpop.permute.xlu0 %7106
  %7108 = vrot.lane.b32.xlu0 %v3346, 80
  %v7109 = vpop.permute.xlu0 %7108
  %7110 = vrot.lane.b32.xlu0 %v3349, 80
  %v7111 = vpop.permute.xlu0 %7110
  %7112 = vrot.lane.b32.xlu0 %v3352, 80
  %v7113 = vpop.permute.xlu0 %7112
  %7114 = vrot.lane.b32.xlu0 %v3355, 80
  %v7115 = vpop.permute.xlu0 %7114
  %7116 = vrot.lane.b32.xlu0 %v3358, 80
  %v7117 = vpop.permute.xlu0 %7116
  %7118 = vrot.lane.b32.xlu0 %v3361, 80
  %v7119 = vpop.permute.xlu0 %7118
  %7120 = vrot.lane.b32.xlu0 %v3364, 80
  %v7121 = vpop.permute.xlu0 %7120
  %7122 = vrot.lane.b32.xlu0 %v3367, 80
  %v7123 = vpop.permute.xlu0 %7122
  %7124 = vrot.lane.b32.xlu0 %v4922, 80
  %v7125 = vpop.permute.xlu0 %7124
  %7126 = vrot.lane.b32.xlu0 %v5637, 80
  %v7127 = vpop.permute.xlu0 %7126
  %7128 = vrot.lane.b32.xlu0 %v6352, 80
  %v7129 = vpop.permute.xlu0 %7128
  %7130 = vrot.lane.b32.xlu0 %v7067, 80
  %v7131 = vpop.permute.xlu0 %7130
  %vm7164 = vcmask 687744
  %7165 = vst.msk [vmem:[#allocation2] sm:$0xff] %vm7164, %v7069
  %7166 = vst.msk [vmem:[#allocation2 + $0x8] sm:$0xff] %vm7164, %v7071
  %7167 = vst.msk [vmem:[#allocation2 + $0x10] sm:$0xff] %vm7164, %v7073
  %7168 = vst.msk [vmem:[#allocation2 + $0x18] sm:$0xff] %vm7164, %v7075
  %7169 = vst.msk [vmem:[#allocation2 + $0x20] sm:$0xff] %vm7164, %v7077
  %7170 = vst.msk [vmem:[#allocation2 + $0x28] sm:$0xff] %vm7164, %v7079
  %7171 = vst.msk [vmem:[#allocation2 + $0x30] sm:$0xff] %vm7164, %v7081
  %7172 = vst.msk [vmem:[#allocation2 + $0x38] sm:$0xff] %vm7164, %v7083
  %7173 = vst.msk [vmem:[#allocation2 + $0x40] sm:$0xff] %vm7164, %v7085
  %7174 = vst.msk [vmem:[#allocation2 + $0x48] sm:$0xff] %vm7164, %v7087
  %7175 = vst.msk [vmem:[#allocation2 + $0x50] sm:$0xff] %vm7164, %v7089
  %7176 = vst.msk [vmem:[#allocation2 + $0x58] sm:$0xff] %vm7164, %v7091
  %7177 = vst.msk [vmem:[#allocation2 + $0x60] sm:$0xff] %vm7164, %v7093
  %7178 = vst.msk [vmem:[#allocation2 + $0x68] sm:$0xff] %vm7164, %v7095
  %7179 = vst.msk [vmem:[#allocation2 + $0x70] sm:$0xff] %vm7164, %v7097
  %7180 = vst.msk [vmem:[#allocation2 + $0x78] sm:$0xff] %vm7164, %v7099
  %7181 = vst.msk [vmem:[#allocation2 + $0x80] sm:$0xff] %vm7164, %v7101
  %7182 = vst.msk [vmem:[#allocation2 + $0x88] sm:$0xff] %vm7164, %v7103
  %7183 = vst.msk [vmem:[#allocation2 + $0x90] sm:$0xff] %vm7164, %v7105
  %7184 = vst.msk [vmem:[#allocation2 + $0x98] sm:$0xff] %vm7164, %v7107
  %7185 = vst.msk [vmem:[#allocation2 + $0xa0] sm:$0xff] %vm7164, %v7109
  %7186 = vst.msk [vmem:[#allocation2 + $0xa8] sm:$0xff] %vm7164, %v7111
  %7187 = vst.msk [vmem:[#allocation2 + $0xb0] sm:$0xff] %vm7164, %v7113
  %7188 = vst.msk [vmem:[#allocation2 + $0xb8] sm:$0xff] %vm7164, %v7115
  %7189 = vst.msk [vmem:[#allocation2 + $0xc0] sm:$0xff] %vm7164, %v7117
  %7190 = vst.msk [vmem:[#allocation2 + $0xc8] sm:$0xff] %vm7164, %v7119
  %7191 = vst.msk [vmem:[#allocation2 + $0xd0] sm:$0xff] %vm7164, %v7121
  %7192 = vst.msk [vmem:[#allocation2 + $0xd8] sm:$0xff] %vm7164, %v7123
  %7193 = vst.msk [vmem:[#allocation2 + $0xe0] sm:$0xff] %vm7164, %v7125
  %7194 = vst.msk [vmem:[#allocation2 + $0xe8] sm:$0xff] %vm7164, %v7127
  %7195 = vst.msk [vmem:[#allocation2 + $0xf0] sm:$0xff] %vm7164, %v7129
  %7196 = vst.msk [vmem:[#allocation2 + $0xf8] sm:$0xff] %vm7164, %v7131
  %v7198 = vshrl.u32 %v3164, 16
  %v7200 = vrot.slane %v7198, 1
  %v7201 = vshll.u32 %v3164, 16
  %v7203 = vrot.slane %v7201, 2
  %v7204 = vor.u32 %v7200, %v7203
  %v7206 = vshrl.u32 %v3165, 16
  %v7208 = vrot.slane %v7206, 1
  %v7209 = vshll.u32 %v3165, 16
  %v7211 = vrot.slane %v7209, 2
  %v7212 = vor.u32 %v7208, %v7211
  %v7213 = vsel %vm3433, %v7204, %v7212
  %v7215 = vshrl.u32 %v3204, 16
  %v7217 = vrot.slane %v7215, 1
  %v7218 = vshll.u32 %v3204, 16
  %v7220 = vrot.slane %v7218, 2
  %v7221 = vor.u32 %v7217, %v7220
  %v7223 = vshrl.u32 %v3205, 16
  %v7225 = vrot.slane %v7223, 1
  %v7226 = vshll.u32 %v3205, 16
  %v7228 = vrot.slane %v7226, 2
  %v7229 = vor.u32 %v7225, %v7228
  %v7230 = vsel %vm3433, %v7221, %v7229
  %7231 = vrot.lane.b32.xlu0 %v3518, 84
  %v7232 = vpop.permute.xlu0 %7231
  %7233 = vrot.lane.b32.xlu0 %v3535, 84
  %v7234 = vpop.permute.xlu0 %7233
  %7235 = vrot.lane.b32.xlu0 %v3552, 84
  %v7236 = vpop.permute.xlu0 %7235
  %7237 = vrot.lane.b32.xlu0 %v3569, 84
  %v7238 = vpop.permute.xlu0 %7237
  %7239 = vrot.lane.b32.xlu0 %v3586, 84
  %v7240 = vpop.permute.xlu0 %7239
  %7241 = vrot.lane.b32.xlu0 %v3603, 84
  %v7242 = vpop.permute.xlu0 %7241
  %7243 = vrot.lane.b32.xlu0 %v3620, 84
  %v7244 = vpop.permute.xlu0 %7243
  %7245 = vrot.lane.b32.xlu0 %v3637, 84
  %v7246 = vpop.permute.xlu0 %7245
  %7247 = vrot.lane.b32.xlu0 %v3654, 84
  %v7248 = vpop.permute.xlu0 %7247
  %7249 = vrot.lane.b32.xlu0 %v3671, 84
  %v7250 = vpop.permute.xlu0 %7249
  %7251 = vrot.lane.b32.xlu0 %v3688, 84
  %v7252 = vpop.permute.xlu0 %7251
  %7253 = vrot.lane.b32.xlu0 %v3705, 84
  %v7254 = vpop.permute.xlu0 %7253
  %7255 = vrot.lane.b32.xlu0 %v5068, 84
  %v7256 = vpop.permute.xlu0 %7255
  %7257 = vrot.lane.b32.xlu0 %v5783, 84
  %v7258 = vpop.permute.xlu0 %7257
  %7259 = vrot.lane.b32.xlu0 %v6498, 84
  %v7260 = vpop.permute.xlu0 %7259
  %7261 = vrot.lane.b32.xlu0 %v7213, 84
  %v7262 = vpop.permute.xlu0 %7261
  %7263 = vrot.lane.b32.xlu0 %v3790, 84
  %v7264 = vpop.permute.xlu0 %7263
  %7265 = vrot.lane.b32.xlu0 %v3807, 84
  %v7266 = vpop.permute.xlu0 %7265
  %7267 = vrot.lane.b32.xlu0 %v3824, 84
  %v7268 = vpop.permute.xlu0 %7267
  %7269 = vrot.lane.b32.xlu0 %v3841, 84
  %v7270 = vpop.permute.xlu0 %7269
  %7271 = vrot.lane.b32.xlu0 %v3858, 84
  %v7272 = vpop.permute.xlu0 %7271
  %7273 = vrot.lane.b32.xlu0 %v3875, 84
  %v7274 = vpop.permute.xlu0 %7273
  %7275 = vrot.lane.b32.xlu0 %v3892, 84
  %v7276 = vpop.permute.xlu0 %7275
  %7277 = vrot.lane.b32.xlu0 %v3909, 84
  %v7278 = vpop.permute.xlu0 %7277
  %7279 = vrot.lane.b32.xlu0 %v3926, 84
  %v7280 = vpop.permute.xlu0 %7279
  %7281 = vrot.lane.b32.xlu0 %v3943, 84
  %v7282 = vpop.permute.xlu0 %7281
  %7283 = vrot.lane.b32.xlu0 %v3960, 84
  %v7284 = vpop.permute.xlu0 %7283
  %7285 = vrot.lane.b32.xlu0 %v3977, 84
  %v7286 = vpop.permute.xlu0 %7285
  %7287 = vrot.lane.b32.xlu0 %v5085, 84
  %v7288 = vpop.permute.xlu0 %7287
  %7289 = vrot.lane.b32.xlu0 %v5800, 84
  %v7290 = vpop.permute.xlu0 %7289
  %7291 = vrot.lane.b32.xlu0 %v6515, 84
  %v7292 = vpop.permute.xlu0 %7291
  %7293 = vrot.lane.b32.xlu0 %v7230, 84
  %v7294 = vpop.permute.xlu0 %7293
  %vm7327 = vcmask 720544
  %7328 = vst.msk [vmem:[#allocation2] sm:$0xff] %vm7327, %v7232
  %7329 = vst.msk [vmem:[#allocation2 + $0x8] sm:$0xff] %vm7327, %v7234
  %7330 = vst.msk [vmem:[#allocation2 + $0x10] sm:$0xff] %vm7327, %v7236
  %7331 = vst.msk [vmem:[#allocation2 + $0x18] sm:$0xff] %vm7327, %v7238
  %7332 = vst.msk [vmem:[#allocation2 + $0x20] sm:$0xff] %vm7327, %v7240
  %7333 = vst.msk [vmem:[#allocation2 + $0x28] sm:$0xff] %vm7327, %v7242
  %7334 = vst.msk [vmem:[#allocation2 + $0x30] sm:$0xff] %vm7327, %v7244
  %7335 = vst.msk [vmem:[#allocation2 + $0x38] sm:$0xff] %vm7327, %v7246
  %7336 = vst.msk [vmem:[#allocation2 + $0x40] sm:$0xff] %vm7327, %v7248
  %7337 = vst.msk [vmem:[#allocation2 + $0x48] sm:$0xff] %vm7327, %v7250
  %7338 = vst.msk [vmem:[#allocation2 + $0x50] sm:$0xff] %vm7327, %v7252
  %7339 = vst.msk [vmem:[#allocation2 + $0x58] sm:$0xff] %vm7327, %v7254
  %7340 = vst.msk [vmem:[#allocation2 + $0x60] sm:$0xff] %vm7327, %v7256
  %7341 = vst.msk [vmem:[#allocation2 + $0x68] sm:$0xff] %vm7327, %v7258
  %7342 = vst.msk [vmem:[#allocation2 + $0x70] sm:$0xff] %vm7327, %v7260
  %7343 = vst.msk [vmem:[#allocation2 + $0x78] sm:$0xff] %vm7327, %v7262
  %7344 = vst.msk [vmem:[#allocation2 + $0x80] sm:$0xff] %vm7327, %v7264
  %7345 = vst.msk [vmem:[#allocation2 + $0x88] sm:$0xff] %vm7327, %v7266
  %7346 = vst.msk [vmem:[#allocation2 + $0x90] sm:$0xff] %vm7327, %v7268
  %7347 = vst.msk [vmem:[#allocation2 + $0x98] sm:$0xff] %vm7327, %v7270
  %7348 = vst.msk [vmem:[#allocation2 + $0xa0] sm:$0xff] %vm7327, %v7272
  %7349 = vst.msk [vmem:[#allocation2 + $0xa8] sm:$0xff] %vm7327, %v7274
  %7350 = vst.msk [vmem:[#allocation2 + $0xb0] sm:$0xff] %vm7327, %v7276
  %7351 = vst.msk [vmem:[#allocation2 + $0xb8] sm:$0xff] %vm7327, %v7278
  %7352 = vst.msk [vmem:[#allocation2 + $0xc0] sm:$0xff] %vm7327, %v7280
  %7353 = vst.msk [vmem:[#allocation2 + $0xc8] sm:$0xff] %vm7327, %v7282
  %7354 = vst.msk [vmem:[#allocation2 + $0xd0] sm:$0xff] %vm7327, %v7284
  %7355 = vst.msk [vmem:[#allocation2 + $0xd8] sm:$0xff] %vm7327, %v7286
  %7356 = vst.msk [vmem:[#allocation2 + $0xe0] sm:$0xff] %vm7327, %v7288
  %7357 = vst.msk [vmem:[#allocation2 + $0xe8] sm:$0xff] %vm7327, %v7290
  %7358 = vst.msk [vmem:[#allocation2 + $0xf0] sm:$0xff] %vm7327, %v7292
  %7359 = vst.msk [vmem:[#allocation2 + $0xf8] sm:$0xff] %vm7327, %v7294
  %v7360 = vrot.slane %v3164, 2
  %v7361 = vrot.slane %v3165, 2
  %v7362 = vsel %vm4107, %v7360, %v7361
  %v7363 = vrot.slane %v3204, 2
  %v7364 = vrot.slane %v3205, 2
  %v7365 = vsel %vm4107, %v7363, %v7364
  %7366 = vrot.lane.b32.xlu0 %v4122, 88
  %v7367 = vpop.permute.xlu0 %7366
  %7368 = vrot.lane.b32.xlu0 %v4125, 88
  %v7369 = vpop.permute.xlu0 %7368
  %7370 = vrot.lane.b32.xlu0 %v4128, 88
  %v7371 = vpop.permute.xlu0 %7370
  %7372 = vrot.lane.b32.xlu0 %v4131, 88
  %v7373 = vpop.permute.xlu0 %7372
  %7374 = vrot.lane.b32.xlu0 %v4134, 88
  %v7375 = vpop.permute.xlu0 %7374
  %7376 = vrot.lane.b32.xlu0 %v4137, 88
  %v7377 = vpop.permute.xlu0 %7376
  %7378 = vrot.lane.b32.xlu0 %v4140, 88
  %v7379 = vpop.permute.xlu0 %7378
  %7380 = vrot.lane.b32.xlu0 %v4143, 88
  %v7381 = vpop.permute.xlu0 %7380
  %7382 = vrot.lane.b32.xlu0 %v4146, 88
  %v7383 = vpop.permute.xlu0 %7382
  %7384 = vrot.lane.b32.xlu0 %v4149, 88
  %v7385 = vpop.permute.xlu0 %7384
  %7386 = vrot.lane.b32.xlu0 %v4152, 88
  %v7387 = vpop.permute.xlu0 %7386
  %7388 = vrot.lane.b32.xlu0 %v4155, 88
  %v7389 = vpop.permute.xlu0 %7388
  %7390 = vrot.lane.b32.xlu0 %v5217, 88
  %v7391 = vpop.permute.xlu0 %7390
  %7392 = vrot.lane.b32.xlu0 %v5932, 88
  %v7393 = vpop.permute.xlu0 %7392
  %7394 = vrot.lane.b32.xlu0 %v6647, 88
  %v7395 = vpop.permute.xlu0 %7394
  %7396 = vrot.lane.b32.xlu0 %v7362, 88
  %v7397 = vpop.permute.xlu0 %7396
  %7398 = vrot.lane.b32.xlu0 %v4170, 88
  %v7399 = vpop.permute.xlu0 %7398
  %7400 = vrot.lane.b32.xlu0 %v4173, 88
  %v7401 = vpop.permute.xlu0 %7400
  %7402 = vrot.lane.b32.xlu0 %v4176, 88
  %v7403 = vpop.permute.xlu0 %7402
  %7404 = vrot.lane.b32.xlu0 %v4179, 88
  %v7405 = vpop.permute.xlu0 %7404
  %7406 = vrot.lane.b32.xlu0 %v4182, 88
  %v7407 = vpop.permute.xlu0 %7406
  %7408 = vrot.lane.b32.xlu0 %v4185, 88
  %v7409 = vpop.permute.xlu0 %7408
  %7410 = vrot.lane.b32.xlu0 %v4188, 88
  %v7411 = vpop.permute.xlu0 %7410
  %7412 = vrot.lane.b32.xlu0 %v4191, 88
  %v7413 = vpop.permute.xlu0 %7412
  %7414 = vrot.lane.b32.xlu0 %v4194, 88
  %v7415 = vpop.permute.xlu0 %7414
  %7416 = vrot.lane.b32.xlu0 %v4197, 88
  %v7417 = vpop.permute.xlu0 %7416
  %7418 = vrot.lane.b32.xlu0 %v4200, 88
  %v7419 = vpop.permute.xlu0 %7418
  %7420 = vrot.lane.b32.xlu0 %v4203, 88
  %v7421 = vpop.permute.xlu0 %7420
  %7422 = vrot.lane.b32.xlu0 %v5220, 88
  %v7423 = vpop.permute.xlu0 %7422
  %7424 = vrot.lane.b32.xlu0 %v5935, 88
  %v7425 = vpop.permute.xlu0 %7424
  %7426 = vrot.lane.b32.xlu0 %v6650, 88
  %v7427 = vpop.permute.xlu0 %7426
  %7428 = vrot.lane.b32.xlu0 %v7365, 88
  %v7429 = vpop.permute.xlu0 %7428
  %vm7462 = vcmask 753344
  %7463 = vst.msk [vmem:[#allocation2] sm:$0xff] %vm7462, %v7367
  %7464 = vst.msk [vmem:[#allocation2 + $0x8] sm:$0xff] %vm7462, %v7369
  %7465 = vst.msk [vmem:[#allocation2 + $0x10] sm:$0xff] %vm7462, %v7371
  %7466 = vst.msk [vmem:[#allocation2 + $0x18] sm:$0xff] %vm7462, %v7373
  %7467 = vst.msk [vmem:[#allocation2 + $0x20] sm:$0xff] %vm7462, %v7375
  %7468 = vst.msk [vmem:[#allocation2 + $0x28] sm:$0xff] %vm7462, %v7377
  %7469 = vst.msk [vmem:[#allocation2 + $0x30] sm:$0xff] %vm7462, %v7379
  %7470 = vst.msk [vmem:[#allocation2 + $0x38] sm:$0xff] %vm7462, %v7381
  %7471 = vst.msk [vmem:[#allocation2 + $0x40] sm:$0xff] %vm7462, %v7383
  %7472 = vst.msk [vmem:[#allocation2 + $0x48] sm:$0xff] %vm7462, %v7385
  %7473 = vst.msk [vmem:[#allocation2 + $0x50] sm:$0xff] %vm7462, %v7387
  %7474 = vst.msk [vmem:[#allocation2 + $0x58] sm:$0xff] %vm7462, %v7389
  %7475 = vst.msk [vmem:[#allocation2 + $0x60] sm:$0xff] %vm7462, %v7391
  %7476 = vst.msk [vmem:[#allocation2 + $0x68] sm:$0xff] %vm7462, %v7393
  %7477 = vst.msk [vmem:[#allocation2 + $0x70] sm:$0xff] %vm7462, %v7395
  %7478 = vst.msk [vmem:[#allocation2 + $0x78] sm:$0xff] %vm7462, %v7397
  %7479 = vst.msk [vmem:[#allocation2 + $0x80] sm:$0xff] %vm7462, %v7399
  %7480 = vst.msk [vmem:[#allocation2 + $0x88] sm:$0xff] %vm7462, %v7401
  %7481 = vst.msk [vmem:[#allocation2 + $0x90] sm:$0xff] %vm7462, %v7403
  %7482 = vst.msk [vmem:[#allocation2 + $0x98] sm:$0xff] %vm7462, %v7405
  %7483 = vst.msk [vmem:[#allocation2 + $0xa0] sm:$0xff] %vm7462, %v7407
  %7484 = vst.msk [vmem:[#allocation2 + $0xa8] sm:$0xff] %vm7462, %v7409
  %7485 = vst.msk [vmem:[#allocation2 + $0xb0] sm:$0xff] %vm7462, %v7411
  %7486 = vst.msk [vmem:[#allocation2 + $0xb8] sm:$0xff] %vm7462, %v7413
  %7487 = vst.msk [vmem:[#allocation2 + $0xc0] sm:$0xff] %vm7462, %v7415
  %7488 = vst.msk [vmem:[#allocation2 + $0xc8] sm:$0xff] %vm7462, %v7417
  %7489 = vst.msk [vmem:[#allocation2 + $0xd0] sm:$0xff] %vm7462, %v7419
  %7490 = vst.msk [vmem:[#allocation2 + $0xd8] sm:$0xff] %vm7462, %v7421
  %7491 = vst.msk [vmem:[#allocation2 + $0xe0] sm:$0xff] %vm7462, %v7423
  %7492 = vst.msk [vmem:[#allocation2 + $0xe8] sm:$0xff] %vm7462, %v7425
  %7493 = vst.msk [vmem:[#allocation2 + $0xf0] sm:$0xff] %vm7462, %v7427
  %7494 = vst.msk [vmem:[#allocation2 + $0xf8] sm:$0xff] %vm7462, %v7429
  %v7495 = vrot.slane %v7198, 2
  %v7496 = vrot.slane %v7201, 3
  %v7497 = vor.u32 %v7495, %v7496
  %v7498 = vrot.slane %v7206, 2
  %v7499 = vrot.slane %v7209, 3
  %v7500 = vor.u32 %v7498, %v7499
  %v7501 = vsel %vm4333, %v7497, %v7500
  %v7502 = vrot.slane %v7215, 2
  %v7503 = vrot.slane %v7218, 3
  %v7504 = vor.u32 %v7502, %v7503
  %v7505 = vrot.slane %v7223, 2
  %v7506 = vrot.slane %v7226, 3
  %v7507 = vor.u32 %v7505, %v7506
  %v7508 = vsel %vm4333, %v7504, %v7507
  %7509 = vrot.lane.b32.xlu0 %v4368, 92
  %v7510 = vpop.permute.xlu0 %7509
  %7511 = vrot.lane.b32.xlu0 %v4375, 92
  %v7512 = vpop.permute.xlu0 %7511
  %7513 = vrot.lane.b32.xlu0 %v4382, 92
  %v7514 = vpop.permute.xlu0 %7513
  %7515 = vrot.lane.b32.xlu0 %v4389, 92
  %v7516 = vpop.permute.xlu0 %7515
  %7517 = vrot.lane.b32.xlu0 %v4396, 92
  %v7518 = vpop.permute.xlu0 %7517
  %7519 = vrot.lane.b32.xlu0 %v4403, 92
  %v7520 = vpop.permute.xlu0 %7519
  %7521 = vrot.lane.b32.xlu0 %v4410, 92
  %v7522 = vpop.permute.xlu0 %7521
  %7523 = vrot.lane.b32.xlu0 %v4417, 92
  %v7524 = vpop.permute.xlu0 %7523
  %7525 = vrot.lane.b32.xlu0 %v4424, 92
  %v7526 = vpop.permute.xlu0 %7525
  %7527 = vrot.lane.b32.xlu0 %v4431, 92
  %v7528 = vpop.permute.xlu0 %7527
  %7529 = vrot.lane.b32.xlu0 %v4438, 92
  %v7530 = vpop.permute.xlu0 %7529
  %7531 = vrot.lane.b32.xlu0 %v4445, 92
  %v7532 = vpop.permute.xlu0 %7531
  %7533 = vrot.lane.b32.xlu0 %v5356, 92
  %v7534 = vpop.permute.xlu0 %7533
  %7535 = vrot.lane.b32.xlu0 %v6071, 92
  %v7536 = vpop.permute.xlu0 %7535
  %7537 = vrot.lane.b32.xlu0 %v6786, 92
  %v7538 = vpop.permute.xlu0 %7537
  %7539 = vrot.lane.b32.xlu0 %v7501, 92
  %v7540 = vpop.permute.xlu0 %7539
  %7541 = vrot.lane.b32.xlu0 %v4480, 92
  %v7542 = vpop.permute.xlu0 %7541
  %7543 = vrot.lane.b32.xlu0 %v4487, 92
  %v7544 = vpop.permute.xlu0 %7543
  %7545 = vrot.lane.b32.xlu0 %v4494, 92
  %v7546 = vpop.permute.xlu0 %7545
  %7547 = vrot.lane.b32.xlu0 %v4501, 92
  %v7548 = vpop.permute.xlu0 %7547
  %7549 = vrot.lane.b32.xlu0 %v4508, 92
  %v7550 = vpop.permute.xlu0 %7549
  %7551 = vrot.lane.b32.xlu0 %v4515, 92
  %v7552 = vpop.permute.xlu0 %7551
  %7553 = vrot.lane.b32.xlu0 %v4522, 92
  %v7554 = vpop.permute.xlu0 %7553
  %7555 = vrot.lane.b32.xlu0 %v4529, 92
  %v7556 = vpop.permute.xlu0 %7555
  %7557 = vrot.lane.b32.xlu0 %v4536, 92
  %v7558 = vpop.permute.xlu0 %7557
  %7559 = vrot.lane.b32.xlu0 %v4543, 92
  %v7560 = vpop.permute.xlu0 %7559
  %7561 = vrot.lane.b32.xlu0 %v4550, 92
  %v7562 = vpop.permute.xlu0 %7561
  %7563 = vrot.lane.b32.xlu0 %v4557, 92
  %v7564 = vpop.permute.xlu0 %7563
  %7565 = vrot.lane.b32.xlu0 %v5363, 92
  %v7566 = vpop.permute.xlu0 %7565
  %7567 = vrot.lane.b32.xlu0 %v6078, 92
  %v7568 = vpop.permute.xlu0 %7567
  %7569 = vrot.lane.b32.xlu0 %v6793, 92
  %v7570 = vpop.permute.xlu0 %7569
  %7571 = vrot.lane.b32.xlu0 %v7508, 92
  %v7572 = vpop.permute.xlu0 %7571
  %vm7605 = vcmask 786144
  %7606 = vst.msk [vmem:[#allocation2] sm:$0xff] %vm7605, %v7510
  %7607 = vst.msk [vmem:[#allocation2 + $0x8] sm:$0xff] %vm7605, %v7512
  %7608 = vst.msk [vmem:[#allocation2 + $0x10] sm:$0xff] %vm7605, %v7514
  %7609 = vst.msk [vmem:[#allocation2 + $0x18] sm:$0xff] %vm7605, %v7516
  %7610 = vst.msk [vmem:[#allocation2 + $0x20] sm:$0xff] %vm7605, %v7518
  %7611 = vst.msk [vmem:[#allocation2 + $0x28] sm:$0xff] %vm7605, %v7520
  %7612 = vst.msk [vmem:[#allocation2 + $0x30] sm:$0xff] %vm7605, %v7522
  %7613 = vst.msk [vmem:[#allocation2 + $0x38] sm:$0xff] %vm7605, %v7524
  %7614 = vst.msk [vmem:[#allocation2 + $0x40] sm:$0xff] %vm7605, %v7526
  %7615 = vst.msk [vmem:[#allocation2 + $0x48] sm:$0xff] %vm7605, %v7528
  %7616 = vst.msk [vmem:[#allocation2 + $0x50] sm:$0xff] %vm7605, %v7530
  %7617 = vst.msk [vmem:[#allocation2 + $0x58] sm:$0xff] %vm7605, %v7532
  %7618 = vst.msk [vmem:[#allocation2 + $0x60] sm:$0xff] %vm7605, %v7534
  %7619 = vst.msk [vmem:[#allocation2 + $0x68] sm:$0xff] %vm7605, %v7536
  %7620 = vst.msk [vmem:[#allocation2 + $0x70] sm:$0xff] %vm7605, %v7538
  %7621 = vst.msk [vmem:[#allocation2 + $0x78] sm:$0xff] %vm7605, %v7540
  %7622 = vst.msk [vmem:[#allocation2 + $0x80] sm:$0xff] %vm7605, %v7542
  %7623 = vst.msk [vmem:[#allocation2 + $0x88] sm:$0xff] %vm7605, %v7544
  %7624 = vst.msk [vmem:[#allocation2 + $0x90] sm:$0xff] %vm7605, %v7546
  %7625 = vst.msk [vmem:[#allocation2 + $0x98] sm:$0xff] %vm7605, %v7548
  %7626 = vst.msk [vmem:[#allocation2 + $0xa0] sm:$0xff] %vm7605, %v7550
  %7627 = vst.msk [vmem:[#allocation2 + $0xa8] sm:$0xff] %vm7605, %v7552
  %7628 = vst.msk [vmem:[#allocation2 + $0xb0] sm:$0xff] %vm7605, %v7554
  %7629 = vst.msk [vmem:[#allocation2 + $0xb8] sm:$0xff] %vm7605, %v7556
  %7630 = vst.msk [vmem:[#allocation2 + $0xc0] sm:$0xff] %vm7605, %v7558
  %7631 = vst.msk [vmem:[#allocation2 + $0xc8] sm:$0xff] %vm7605, %v7560
  %7632 = vst.msk [vmem:[#allocation2 + $0xd0] sm:$0xff] %vm7605, %v7562
  %7633 = vst.msk [vmem:[#allocation2 + $0xd8] sm:$0xff] %vm7605, %v7564
  %7634 = vst.msk [vmem:[#allocation2 + $0xe0] sm:$0xff] %vm7605, %v7566
  %7635 = vst.msk [vmem:[#allocation2 + $0xe8] sm:$0xff] %vm7605, %v7568
  %7636 = vst.msk [vmem:[#allocation2 + $0xf0] sm:$0xff] %vm7605, %v7570
  %7637 = vst.msk [vmem:[#allocation2 + $0xf8] sm:$0xff] %vm7605, %v7572
  %v7638 = vrot.slane %v3164, 3
  %v7639 = vrot.slane %v3165, 3
  %v7640 = vsel %vm4687, %v7638, %v7639
  %v7641 = vrot.slane %v3204, 3
  %v7642 = vrot.slane %v3205, 3
  %v7643 = vsel %vm4687, %v7641, %v7642
  %7644 = vrot.lane.b32.xlu0 %v4702, 96
  %v7645 = vpop.permute.xlu0 %7644
  %7646 = vrot.lane.b32.xlu0 %v4705, 96
  %v7647 = vpop.permute.xlu0 %7646
  %7648 = vrot.lane.b32.xlu0 %v4708, 96
  %v7649 = vpop.permute.xlu0 %7648
  %7650 = vrot.lane.b32.xlu0 %v4711, 96
  %v7651 = vpop.permute.xlu0 %7650
  %7652 = vrot.lane.b32.xlu0 %v4714, 96
  %v7653 = vpop.permute.xlu0 %7652
  %7654 = vrot.lane.b32.xlu0 %v4717, 96
  %v7655 = vpop.permute.xlu0 %7654
  %7656 = vrot.lane.b32.xlu0 %v4720, 96
  %v7657 = vpop.permute.xlu0 %7656
  %7658 = vrot.lane.b32.xlu0 %v4723, 96
  %v7659 = vpop.permute.xlu0 %7658
  %7660 = vrot.lane.b32.xlu0 %v4726, 96
  %v7661 = vpop.permute.xlu0 %7660
  %7662 = vrot.lane.b32.xlu0 %v4729, 96
  %v7663 = vpop.permute.xlu0 %7662
  %7664 = vrot.lane.b32.xlu0 %v4732, 96
  %v7665 = vpop.permute.xlu0 %7664
  %7666 = vrot.lane.b32.xlu0 %v4735, 96
  %v7667 = vpop.permute.xlu0 %7666
  %7668 = vrot.lane.b32.xlu0 %v5495, 96
  %v7669 = vpop.permute.xlu0 %7668
  %7670 = vrot.lane.b32.xlu0 %v6210, 96
  %v7671 = vpop.permute.xlu0 %7670
  %7672 = vrot.lane.b32.xlu0 %v6925, 96
  %v7673 = vpop.permute.xlu0 %7672
  %7674 = vrot.lane.b32.xlu0 %v7640, 96
  %v7675 = vpop.permute.xlu0 %7674
  %7676 = vrot.lane.b32.xlu0 %v4750, 96
  %v7677 = vpop.permute.xlu0 %7676
  %7678 = vrot.lane.b32.xlu0 %v4753, 96
  %v7679 = vpop.permute.xlu0 %7678
  %7680 = vrot.lane.b32.xlu0 %v4756, 96
  %v7681 = vpop.permute.xlu0 %7680
  %7682 = vrot.lane.b32.xlu0 %v4759, 96
  %v7683 = vpop.permute.xlu0 %7682
  %7684 = vrot.lane.b32.xlu0 %v4762, 96
  %v7685 = vpop.permute.xlu0 %7684
  %7686 = vrot.lane.b32.xlu0 %v4765, 96
  %v7687 = vpop.permute.xlu0 %7686
  %7688 = vrot.lane.b32.xlu0 %v4768, 96
  %v7689 = vpop.permute.xlu0 %7688
  %7690 = vrot.lane.b32.xlu0 %v4771, 96
  %v7691 = vpop.permute.xlu0 %7690
  %7692 = vrot.lane.b32.xlu0 %v4774, 96
  %v7693 = vpop.permute.xlu0 %7692
  %7694 = vrot.lane.b32.xlu0 %v4777, 96
  %v7695 = vpop.permute.xlu0 %7694
  %7696 = vrot.lane.b32.xlu0 %v4780, 96
  %v7697 = vpop.permute.xlu0 %7696
  %7698 = vrot.lane.b32.xlu0 %v4783, 96
  %v7699 = vpop.permute.xlu0 %7698
  %7700 = vrot.lane.b32.xlu0 %v5498, 96
  %v7701 = vpop.permute.xlu0 %7700
  %7702 = vrot.lane.b32.xlu0 %v6213, 96
  %v7703 = vpop.permute.xlu0 %7702
  %7704 = vrot.lane.b32.xlu0 %v6928, 96
  %v7705 = vpop.permute.xlu0 %7704
  %7706 = vrot.lane.b32.xlu0 %v7643, 96
  %v7707 = vpop.permute.xlu0 %7706
  %vm7740 = vcmask 818944
  %7741 = vst.msk [vmem:[#allocation2] sm:$0xff] %vm7740, %v7645
  %7742 = vst.msk [vmem:[#allocation2 + $0x8] sm:$0xff] %vm7740, %v7647
  %7743 = vst.msk [vmem:[#allocation2 + $0x10] sm:$0xff] %vm7740, %v7649
  %7744 = vst.msk [vmem:[#allocation2 + $0x18] sm:$0xff] %vm7740, %v7651
  %7745 = vst.msk [vmem:[#allocation2 + $0x20] sm:$0xff] %vm7740, %v7653
  %7746 = vst.msk [vmem:[#allocation2 + $0x28] sm:$0xff] %vm7740, %v7655
  %7747 = vst.msk [vmem:[#allocation2 + $0x30] sm:$0xff] %vm7740, %v7657
  %7748 = vst.msk [vmem:[#allocation2 + $0x38] sm:$0xff] %vm7740, %v7659
  %7749 = vst.msk [vmem:[#allocation2 + $0x40] sm:$0xff] %vm7740, %v7661
  %7750 = vst.msk [vmem:[#allocation2 + $0x48] sm:$0xff] %vm7740, %v7663
  %7751 = vst.msk [vmem:[#allocation2 + $0x50] sm:$0xff] %vm7740, %v7665
  %7752 = vst.msk [vmem:[#allocation2 + $0x58] sm:$0xff] %vm7740, %v7667
  %7753 = vst.msk [vmem:[#allocation2 + $0x60] sm:$0xff] %vm7740, %v7669
  %7754 = vst.msk [vmem:[#allocation2 + $0x68] sm:$0xff] %vm7740, %v7671
  %7755 = vst.msk [vmem:[#allocation2 + $0x70] sm:$0xff] %vm7740, %v7673
  %7756 = vst.msk [vmem:[#allocation2 + $0x78] sm:$0xff] %vm7740, %v7675
  %7757 = vst.msk [vmem:[#allocation2 + $0x80] sm:$0xff] %vm7740, %v7677
  %7758 = vst.msk [vmem:[#allocation2 + $0x88] sm:$0xff] %vm7740, %v7679
  %7759 = vst.msk [vmem:[#allocation2 + $0x90] sm:$0xff] %vm7740, %v7681
  %7760 = vst.msk [vmem:[#allocation2 + $0x98] sm:$0xff] %vm7740, %v7683
  %7761 = vst.msk [vmem:[#allocation2 + $0xa0] sm:$0xff] %vm7740, %v7685
  %7762 = vst.msk [vmem:[#allocation2 + $0xa8] sm:$0xff] %vm7740, %v7687
  %7763 = vst.msk [vmem:[#allocation2 + $0xb0] sm:$0xff] %vm7740, %v7689
  %7764 = vst.msk [vmem:[#allocation2 + $0xb8] sm:$0xff] %vm7740, %v7691
  %7765 = vst.msk [vmem:[#allocation2 + $0xc0] sm:$0xff] %vm7740, %v7693
  %7766 = vst.msk [vmem:[#allocation2 + $0xc8] sm:$0xff] %vm7740, %v7695
  %7767 = vst.msk [vmem:[#allocation2 + $0xd0] sm:$0xff] %vm7740, %v7697
  %7768 = vst.msk [vmem:[#allocation2 + $0xd8] sm:$0xff] %vm7740, %v7699
  %7769 = vst.msk [vmem:[#allocation2 + $0xe0] sm:$0xff] %vm7740, %v7701
  %7770 = vst.msk [vmem:[#allocation2 + $0xe8] sm:$0xff] %vm7740, %v7703
  %7771 = vst.msk [vmem:[#allocation2 + $0xf0] sm:$0xff] %vm7740, %v7705
  %7772 = vst.msk [vmem:[#allocation2 + $0xf8] sm:$0xff] %vm7740, %v7707
  %v7773 = vld [vmem:[#allocation2] sm:$0xff]
  %v7774 = vld [vmem:[#allocation2 + $0x8] sm:$0xff]
  %v7775 = vld [vmem:[#allocation2 + $0x10] sm:$0xff]
  %v7776 = vld [vmem:[#allocation2 + $0x18] sm:$0xff]
  %v7777 = vld [vmem:[#allocation2 + $0x20] sm:$0xff]
  %v7778 = vld [vmem:[#allocation2 + $0x28] sm:$0xff]
  %v7779 = vld [vmem:[#allocation2 + $0x30] sm:$0xff]
  %v7780 = vld [vmem:[#allocation2 + $0x38] sm:$0xff]
  %v7781 = vld [vmem:[#allocation2 + $0x40] sm:$0xff]
  %v7782 = vld [vmem:[#allocation2 + $0x48] sm:$0xff]
  %v7783 = vld [vmem:[#allocation2 + $0x50] sm:$0xff]
  %v7784 = vld [vmem:[#allocation2 + $0x58] sm:$0xff]
  %v7785 = vld [vmem:[#allocation2 + $0x60] sm:$0xff]
  %v7786 = vld [vmem:[#allocation2 + $0x68] sm:$0xff]
  %v7787 = vld [vmem:[#allocation2 + $0x70] sm:$0xff]
  %v7788 = vld [vmem:[#allocation2 + $0x78] sm:$0xff]
  %v7789 = vld [vmem:[#allocation2 + $0x80] sm:$0xff]
  %v7790 = vld [vmem:[#allocation2 + $0x88] sm:$0xff]
  %v7791 = vld [vmem:[#allocation2 + $0x90] sm:$0xff]
  %v7792 = vld [vmem:[#allocation2 + $0x98] sm:$0xff]
  %v7793 = vld [vmem:[#allocation2 + $0xa0] sm:$0xff]
  %v7794 = vld [vmem:[#allocation2 + $0xa8] sm:$0xff]
  %v7795 = vld [vmem:[#allocation2 + $0xb0] sm:$0xff]
  %v7796 = vld [vmem:[#allocation2 + $0xb8] sm:$0xff]
  %v7797 = vld [vmem:[#allocation2 + $0xc0] sm:$0xff]
  %v7798 = vld [vmem:[#allocation2 + $0xc8] sm:$0xff]
  %v7799 = vld [vmem:[#allocation2 + $0xd0] sm:$0xff]
  %v7800 = vld [vmem:[#allocation2 + $0xd8] sm:$0xff]
  %v7801 = vld [vmem:[#allocation2 + $0xe0] sm:$0xff]
  %v7802 = vld [vmem:[#allocation2 + $0xe8] sm:$0xff]
  %v7803 = vld [vmem:[#allocation2 + $0xf0] sm:$0xff]
  %v7804 = vld [vmem:[#allocation2 + $0xf8] sm:$0xff]
  %v7805 = vld [vmem:[%s5] sm:$0xf]
  %v7806 = vld [vmem:[%s6] sm:$0xff]
  %7808 = vset.pattern.permute.xlu0 0
  %7809 = vperm.xlu0 %7808, %v7806
  %v7810 = vpop.permute.xlu0 %7809
  %7812 = vmatprep.subr.bf16.mxu0 0
  %7813 = vmatpush1.bf16.xpose.msra.mxu0 %v7773
  %7814 = vmatprep.subr.bf16.mxu0 0
  %7815 = vmatpush1.bf16.xpose.msra.mxu0 %v7774
  %7816 = vmatprep.subr.bf16.mxu0 0
  %7817 = vmatpush1.bf16.xpose.msra.mxu0 %v7775
  %7818 = vmatprep.subr.bf16.mxu0 0
  %7819 = vmatpush1.bf16.xpose.msra.mxu0 %v7776
  %7820 = vmatprep.subr.bf16.mxu0 0
  %7821 = vmatpush1.bf16.xpose.msra.mxu0 %v7777
  %7822 = vmatprep.subr.bf16.mxu0 0
  %7823 = vmatpush1.bf16.xpose.msra.mxu0 %v7778
  %7824 = vmatprep.subr.bf16.mxu0 0
  %7825 = vmatpush1.bf16.xpose.msra.mxu0 %v7779
  %7826 = vmatprep.subr.bf16.mxu0 0
  %7827 = vmatpush1.bf16.xpose.msra.mxu0 %v7780
  %7828 = vmatprep.subr.bf16.mxu0 0
  %7829 = vmatpush1.bf16.xpose.msra.mxu0 %v7781
  %7830 = vmatprep.subr.bf16.mxu0 0
  %7831 = vmatpush1.bf16.xpose.msra.mxu0 %v7782
  %7832 = vmatprep.subr.bf16.mxu0 0
  %7833 = vmatpush1.bf16.xpose.msra.mxu0 %v7783
  %7834 = vmatprep.subr.bf16.mxu0 0
  %7835 = vmatpush1.bf16.xpose.msra.mxu0 %v7784
  %7836 = vmatprep.subr.bf16.mxu0 0
  %7837 = vmatpush1.bf16.xpose.msra.mxu0 %v7785
  %7838 = vmatprep.subr.bf16.mxu0 0
  %7839 = vmatpush1.bf16.xpose.msra.mxu0 %v7786
  %7840 = vmatprep.subr.bf16.mxu0 0
  %7841 = vmatpush1.bf16.xpose.msra.mxu0 %v7787
  %7842 = vmatprep.subr.bf16.mxu0 0
  %7843 = vmatpush1.bf16.xpose.msra.mxu0 %v7788
  %7844 = vmatprep.mubr.bf16.mxu0 0
  %7845 = vmatmul.mubr.bf16.gmra.mrb[0].mxu0 %v7805
  %v7846 = vpop.f32.mrb[0].mxu0
  %v7847 = vadd.f32 %v7810, %v7846
  %v7848 = vpop.f32.mrb[0].mxu0
  %v7849 = vadd.f32 %v7810, %v7848
  %v7850 = vpop.f32.mrb[0].mxu0
  %v7851 = vpop.f32.mrb[0].mxu0
  %7852 = vdwg.mxu0
  %7853 = vmatprep.subr.bf16.mxu0 0
  %7854 = vmatpush1.bf16.xpose.msra.mxu0 %v7789
  %7855 = vmatprep.subr.bf16.mxu0 0
  %7856 = vmatpush1.bf16.xpose.msra.mxu0 %v7790
  %7857 = vmatprep.subr.bf16.mxu0 0
  %7858 = vmatpush1.bf16.xpose.msra.mxu0 %v7791
  %7859 = vmatprep.subr.bf16.mxu0 0
  %7860 = vmatpush1.bf16.xpose.msra.mxu0 %v7792
  %7861 = vmatprep.subr.bf16.mxu0 0
  %7862 = vmatpush1.bf16.xpose.msra.mxu0 %v7793
  %7863 = vmatprep.subr.bf16.mxu0 0
  %7864 = vmatpush1.bf16.xpose.msra.mxu0 %v7794
  %7865 = vmatprep.subr.bf16.mxu0 0
  %7866 = vmatpush1.bf16.xpose.msra.mxu0 %v7795
  %7867 = vmatprep.subr.bf16.mxu0 0
  %7868 = vmatpush1.bf16.xpose.msra.mxu0 %v7796
  %7869 = vmatprep.subr.bf16.mxu0 0
  %7870 = vmatpush1.bf16.xpose.msra.mxu0 %v7797
  %7871 = vmatprep.subr.bf16.mxu0 0
  %7872 = vmatpush1.bf16.xpose.msra.mxu0 %v7798
  %7873 = vmatprep.subr.bf16.mxu0 0
  %7874 = vmatpush1.bf16.xpose.msra.mxu0 %v7799
  %7875 = vmatprep.subr.bf16.mxu0 0
  %7876 = vmatpush1.bf16.xpose.msra.mxu0 %v7800
  %7877 = vmatprep.subr.bf16.mxu0 0
  %7878 = vmatpush1.bf16.xpose.msra.mxu0 %v7801
  %7879 = vmatprep.subr.bf16.mxu0 0
  %7880 = vmatpush1.bf16.xpose.msra.mxu0 %v7802
  %7881 = vmatprep.subr.bf16.mxu0 0
  %7882 = vmatpush1.bf16.xpose.msra.mxu0 %v7803
  %7883 = vmatprep.subr.bf16.mxu0 0
  %7884 = vmatpush1.bf16.xpose.msra.mxu0 %v7804
  %7885 = vmatprep.mubr.bf16.mxu0 0
  %7886 = vmatmul.mubr.bf16.gmra.mrb[0].mxu0 %v7805
  %v7887 = vpop.f32.mrb[0].mxu0
  %v7888 = vadd.f32 %v7810, %v7887
  %v7889 = vpop.f32.mrb[0].mxu0
  %v7890 = vadd.f32 %v7810, %v7889
  %v7891 = vpop.f32.mrb[0].mxu0
  %v7892 = vpop.f32.mrb[0].mxu0
  %7893 = vdwg.mxu0
  %v7894 = vcombine.high %v7847, 0.0
  %v7896 = vunpack.c.l.s4 1983009808
  %v7897 = vunpack.c.0.s8 %v7896
  %v7898 = vlaneseq
  %v7899 = vshrl.u32 %v7898, 7
  %v7900 = vsub.s32 %v7897, %v7899
  %v7901 = vrot.slane %v7847, %v7900
  %v7903 = vunpack.c.l.s4 1983009808
  %v7904 = vunpack.c.0.s8 %v7903
  %v7905 = vlaneseq
  %v7906 = vshrl.u32 %v7905, 7
  %v7907 = vsub.s32 %v7904, %v7906
  %v7908 = vrot.slane %v7894, %v7907
  %v7909 = vcombine.high %v7888, 0.0
  %v7911 = vunpack.c.l.s4 1983009808
  %v7912 = vunpack.c.0.s8 %v7911
  %v7913 = vlaneseq
  %v7914 = vshrl.u32 %v7913, 7
  %v7915 = vsub.s32 %v7912, %v7914
  %v7916 = vrot.slane %v7888, %v7915
  %v7918 = vunpack.c.l.s4 1983009808
  %v7919 = vunpack.c.0.s8 %v7918
  %v7920 = vlaneseq
  %v7921 = vshrl.u32 %v7920, 7
  %v7922 = vsub.s32 %v7919, %v7921
  %v7923 = vrot.slane %v7909, %v7922
  %v7924 = vcombine.low %v7901, %v7916
  %v7925 = vcombine.high %v7901, %v7916
  %v7927 = vunpack.c.l.s4 1934713408
  %v7928 = vunpack.c.0.s8 %v7927
  %v7929 = vlaneseq
  %v7930 = vshrl.u32 %v7929, 7
  %v7931 = vsub.s32 %v7928, %v7930
  %v7932 = vrot.slane %v7924, %v7931
  %v7934 = vunpack.c.l.s4 1934713408
  %v7935 = vunpack.c.0.s8 %v7934
  %v7936 = vlaneseq
  %v7937 = vshrl.u32 %v7936, 7
  %v7938 = vsub.s32 %v7935, %v7937
  %v7939 = vrot.slane %v7925, %v7938
  %v7940 = vcombine.low %v7908, %v7923
  %v7941 = vcombine.high %v7908, %v7923
  %v7943 = vunpack.c.l.s4 1934713408
  %v7944 = vunpack.c.0.s8 %v7943
  %v7945 = vlaneseq
  %v7946 = vshrl.u32 %v7945, 7
  %v7947 = vsub.s32 %v7944, %v7946
  %v7948 = vrot.slane %v7940, %v7947
  %v7950 = vunpack.c.l.s4 1934713408
  %v7951 = vunpack.c.0.s8 %v7950
  %v7952 = vlaneseq
  %v7953 = vshrl.u32 %v7952, 7
  %v7954 = vsub.s32 %v7951, %v7953
  %v7955 = vrot.slane %v7941, %v7954
  %v7956 = vcombine.high %v7932, 0.0
  %v7957 = vcombine.high %v7939, 0.0
  %v7958 = vcombine.high %v7948, 0.0
  %v7959 = vcombine.high %v7955, 0.0
  %v7960 = vcombine.high %v7849, 0.0
  %v7962 = vunpack.c.l.s4 1983009808
  %v7963 = vunpack.c.0.s8 %v7962
  %v7964 = vlaneseq
  %v7965 = vshrl.u32 %v7964, 7
  %v7966 = vsub.s32 %v7963, %v7965
  %v7967 = vrot.slane %v7849, %v7966
  %v7969 = vunpack.c.l.s4 1983009808
  %v7970 = vunpack.c.0.s8 %v7969
  %v7971 = vlaneseq
  %v7972 = vshrl.u32 %v7971, 7
  %v7973 = vsub.s32 %v7970, %v7972
  %v7974 = vrot.slane %v7960, %v7973
  %v7975 = vcombine.high %v7890, 0.0
  %v7977 = vunpack.c.l.s4 1983009808
  %v7978 = vunpack.c.0.s8 %v7977
  %v7979 = vlaneseq
  %v7980 = vshrl.u32 %v7979, 7
  %v7981 = vsub.s32 %v7978, %v7980
  %v7982 = vrot.slane %v7890, %v7981
  %v7984 = vunpack.c.l.s4 1983009808
  %v7985 = vunpack.c.0.s8 %v7984
  %v7986 = vlaneseq
  %v7987 = vshrl.u32 %v7986, 7
  %v7988 = vsub.s32 %v7985, %v7987
  %v7989 = vrot.slane %v7975, %v7988
  %v7990 = vcombine.low %v7967, %v7982
  %v7991 = vcombine.high %v7967, %v7982
  %v7993 = vunpack.c.l.s4 1934713408
  %v7994 = vunpack.c.0.s8 %v7993
  %v7995 = vlaneseq
  %v7996 = vshrl.u32 %v7995, 7
  %v7997 = vsub.s32 %v7994, %v7996
  %v7998 = vrot.slane %v7990, %v7997
  %v8000 = vunpack.c.l.s4 1934713408
  %v8001 = vunpack.c.0.s8 %v8000
  %v8002 = vlaneseq
  %v8003 = vshrl.u32 %v8002, 7
  %v8004 = vsub.s32 %v8001, %v8003
  %v8005 = vrot.slane %v7991, %v8004
  %v8006 = vcombine.low %v7974, %v7989
  %v8007 = vcombine.high %v7974, %v7989
  %v8009 = vunpack.c.l.s4 1934713408
  %v8010 = vunpack.c.0.s8 %v8009
  %v8011 = vlaneseq
  %v8012 = vshrl.u32 %v8011, 7
  %v8013 = vsub.s32 %v8010, %v8012
  %v8014 = vrot.slane %v8006, %v8013
  %v8016 = vunpack.c.l.s4 1934713408
  %v8017 = vunpack.c.0.s8 %v8016
  %v8018 = vlaneseq
  %v8019 = vshrl.u32 %v8018, 7
  %v8020 = vsub.s32 %v8017, %v8019
  %v8021 = vrot.slane %v8007, %v8020
  %v8022 = vcombine.high %v7998, 0.0
  %v8023 = vcombine.high %v8005, 0.0
  %v8024 = vcombine.high %v8014, 0.0
  %v8025 = vcombine.high %v8021, 0.0
  %v8027 = vlaneseq
  %v8028 = vshrl.u32 %v8027, 7
  %v8029 = vsub.s32 0, %v8028
  %v8030 = vrot.slane %v3206, %v8029
  %v8031 = vlaneseq
  %v8032 = vshrl.u32 %v8031, 7
  %v8033 = vsub.s32 1, %v8032
  %v8034 = vrot.slane %v3206, %v8033
  %v8037 = vmul.f32 %v7932, %v8030
  %v8038 = vmul.f32 %v7998, %v8034
  %v8039 = vmul.f32 %v7956, %v8030
  %v8040 = vmul.f32 %v8022, %v8034
  %v8041 = vmul.f32 %v7939, %v8030
  %v8042 = vmul.f32 %v8005, %v8034
  %v8043 = vmul.f32 %v7957, %v8030
  %v8044 = vmul.f32 %v8023, %v8034
  %v8045 = vmul.f32 %v7948, %v8030
  %v8046 = vmul.f32 %v8014, %v8034
  %v8047 = vmul.f32 %v7958, %v8030
  %v8048 = vmul.f32 %v8024, %v8034
  %v8049 = vmul.f32 %v7955, %v8030
  %v8050 = vmul.f32 %v8021, %v8034
  %v8051 = vmul.f32 %v7959, %v8030
  %v8052 = vmul.f32 %v8025, %v8034
  %v8069 = vrot.slane %v8039, 7
  %vm8070 = vcmask 1041409
  %v8071 = vsel %vm8070, %v8069, %v8037
  %v8072 = vrot.slane %v8041, 6
  %vm8073 = vcmask 1042434
  %v8074 = vsel %vm8073, %v8072, %v8071
  %v8075 = vrot.slane %v8043, 5
  %vm8076 = vcmask 1043459
  %v8077 = vsel %vm8076, %v8075, %v8074
  %v8078 = vrot.slane %v8045, 4
  %vm8079 = vcmask 1044484
  %v8080 = vsel %vm8079, %v8078, %v8077
  %v8081 = vrot.slane %v8047, 3
  %vm8082 = vcmask 1045509
  %v8083 = vsel %vm8082, %v8081, %v8080
  %v8084 = vrot.slane %v8049, 2
  %vm8085 = vcmask 1046534
  %v8086 = vsel %vm8085, %v8084, %v8083
  %v8087 = vrot.slane %v8051, 1
  %vm8088 = vcmask 1047559
  %v8089 = vsel %vm8088, %v8087, %v8086
  %v8090 = vrot.slane %v8040, 7
  %v8091 = vsel %vm8070, %v8090, %v8038
  %v8092 = vrot.slane %v8042, 6
  %v8093 = vsel %vm8073, %v8092, %v8091
  %v8094 = vrot.slane %v8044, 5
  %v8095 = vsel %vm8076, %v8094, %v8093
  %v8096 = vrot.slane %v8046, 4
  %v8097 = vsel %vm8079, %v8096, %v8095
  %v8098 = vrot.slane %v8048, 3
  %v8099 = vsel %vm8082, %v8098, %v8097
  %v8100 = vrot.slane %v8050, 2
  %v8101 = vsel %vm8085, %v8100, %v8099
  %v8102 = vrot.slane %v8052, 1
  %v8103 = vsel %vm8088, %v8102, %v8101
  %8106 = vst [vmem:[%s7] sm:$0xff] %v8089
  %8107 = vst [vmem:[%s7 + $0x8] sm:$0xff] %v8103
  %v8108 = vrot.slane %v8037, 1
  %v8109 = vsel %vm8070, %v8039, %v8108
  %v8110 = vrot.slane %v8041, 7
  %v8111 = vsel %vm8073, %v8110, %v8109
  %v8112 = vrot.slane %v8043, 6
  %v8113 = vsel %vm8076, %v8112, %v8111
  %v8114 = vrot.slane %v8045, 5
  %v8115 = vsel %vm8079, %v8114, %v8113
  %v8116 = vrot.slane %v8047, 4
  %v8117 = vsel %vm8082, %v8116, %v8115
  %v8118 = vrot.slane %v8049, 3
  %v8119 = vsel %vm8085, %v8118, %v8117
  %v8120 = vrot.slane %v8051, 2
  %v8121 = vsel %vm8088, %v8120, %v8119
  %v8122 = vrot.slane %v8038, 1
  %v8123 = vsel %vm8070, %v8040, %v8122
  %v8124 = vrot.slane %v8042, 7
  %v8125 = vsel %vm8073, %v8124, %v8123
  %v8126 = vrot.slane %v8044, 6
  %v8127 = vsel %vm8076, %v8126, %v8125
  %v8128 = vrot.slane %v8046, 5
  %v8129 = vsel %vm8079, %v8128, %v8127
  %v8130 = vrot.slane %v8048, 4
  %v8131 = vsel %vm8082, %v8130, %v8129
  %v8132 = vrot.slane %v8050, 3
  %v8133 = vsel %vm8085, %v8132, %v8131
  %v8134 = vrot.slane %v8052, 2
  %v8135 = vsel %vm8088, %v8134, %v8133
  %8138 = vst [vmem:[%s7 + $0x10] sm:$0xff] %v8121
  %8139 = vst [vmem:[%s7 + $0x18] sm:$0xff] %v8135
  // Predicated region
  $region30: #{space_context.1} parent=0 // pred_check
    _
  $region31: #{space_context.1} parent=0 // pred_check_branch
    %8141 = sbr.rel (0) target = $region33
  $region32: #{space_context.1} parent=0 // pred_region
    _
  $region33: #{space_context.1} parent=0 // pred_fallthru
    _
  // Predicated region
  $region34: #{space_context.1} parent=0 // pred_check
    _
  $region35: #{space_context.1} parent=0 // pred_check_branch
    %8143 = sbr.rel (0) target = $region37
  $region36: #{space_context.1} parent=0 // pred_region
    _
  $region37: #{space_context.1} parent=0 // pred_fallthru
    _

</llo_original>
